<compile_context>
chip_gen: v7x
topology: tpu7x:2x2x1
jax: 0.10.0
libtpu: 0.0.40
codegen_flags: <defaults>
</compile_context>

<pallas_src>
import functools

import jax
import jax.numpy as jnp
from jax.experimental import pallas as pl
from jax.experimental.pallas import tpu as pltpu


# ----------------------------------------------------------------------------
# Fused forward kernel (one batch tile of `bt` images per grid step)
# ----------------------------------------------------------------------------
def _net_fused_kernel(xm0_ref, xm1_ref, xm2_ref, xm3_ref,
                      band1_ref, band2_ref, bias1_ref, bias2_ref,
                      w1p_ref, bfc1_ref, w2p_ref, bfc2_ref, w3p_ref, bfc3_ref,
                      out_ref, *, bt):
    xm_refs = (xm0_ref, xm1_ref, xm2_ref, xm3_ref)   # x rows split by (row % 4)

    # Hoist all weights (VMEM-resident; constant index_map => fetched once).
    b1m = [band1_ref[di] for di in range(5)]     # each (28, 240)
    b2m = [band2_ref[di] for di in range(5)]     # each (120, 160)
    w1p = [w1p_ref[c] for c in range(4)]         # each (80, 160)
    bias1 = bias1_ref[...]                       # (1, 120)  lane = co*12 + jj
    bias2 = bias2_ref[...]                       # (1, 80)   lane = c2*4 + jjj
    w2p = w2p_ref[...]                           # (160, 80)
    w3p = w3p_ref[...]                           # (80, 10)
    bf1 = bfc1_ref[...]                          # (1, 160)
    bf2 = bfc2_ref[...]                          # (1, 80)
    bf3 = bfc3_ref[...]                          # (1, 10)

    for b in range(bt):
        xrows = [xm_refs[r][b] for r in range(4)]    # each (7, 28): rows r, r+4, ...

        # ---- conv1 (+bias) + 2x2 maxpool + relu --------------------------------
        # h1[par][t, co*12 + jj] = relu(pool(conv1))[b, co, 2t+par, jj]
        h1 = []
        for par in range(2):                      # parity of pooled height
            pooled = None
            for p1 in range(2):                   # pool height offset
                acc = None
                for di in range(5):               # conv kernel row tap
                    s1 = 2 * par + p1 + di        # raw-image row offset
                    xs = xrows[s1 % 4][s1 // 4:s1 // 4 + 6, :]        # (6, 28)
                    t = jnp.dot(xs, b1m[di], preferred_element_type=jnp.float32)
                    acc = t if acc is None else acc + t               # (6, 240)
                # two width-parity candidates packed in the band's lanes
                for cand in (acc[:, 0:120], acc[:, 120:240]):
                    pooled = cand if pooled is None else jnp.maximum(pooled, cand)
            h1.append(jnp.maximum(pooled + bias1, 0.0))               # (6, 120)

        # ---- conv2 (+bias) + 2x2 maxpool + relu --------------------------------
        # h2[c, c2*4 + jjj] = relu(pool(conv2))[b, c2, c, jjj]
        pooled2 = None
        for p2 in range(2):
            acc = None
            for di in range(5):
                s2 = p2 + di
                hs = h1[s2 % 2][s2 // 2:s2 // 2 + 4, :]               # (4, 120)
                t = jnp.dot(hs, b2m[di], preferred_element_type=jnp.float32)
                acc = t if acc is None else acc + t                   # (4, 160)
            for cand in (acc[:, 0:80], acc[:, 80:160]):
                pooled2 = cand if pooled2 is None else jnp.maximum(pooled2, cand)
        h2 = jnp.maximum(pooled2 + bias2, 0.0)                        # (4, 80)

        # ---- fc1 -> fc2 -> fc3 (no activations, as in the reference forward) --
        # NCHW flatten is folded into w1p's row permutation.
        y = bf1
        for c in range(4):
            y = y + jnp.dot(h2[c:c + 1, :], w1p[c],
                            preferred_element_type=jnp.float32)       # (1, 160)
        y = jnp.dot(y, w2p, preferred_element_type=jnp.float32) + bf2  # (1, 80)
        y = jnp.dot(y, w3p, preferred_element_type=jnp.float32) + bf3  # (1, 10)
        out_ref[b] = y


# ----------------------------------------------------------------------------
# One-time parameter preparation (banded conv weights, pre-transposed fc)
# ----------------------------------------------------------------------------
def prepare_params(params):
    f32 = jnp.float32
    w1 = params["conv1_w"].astype(f32)[:, 0]         # (10, 5, 5)  [co, di, dj]
    w2 = params["conv2_w"].astype(f32)               # (20, 10, 5, 5)

    # conv1 bands: band1[di][jw, q*120 + co*12 + jj] = w1[co, di, jw-2jj-q]
    jw = jnp.arange(28)[:, None, None]
    jj = jnp.arange(12)[None, :, None]
    qq = jnp.arange(2)[None, None, :]
    dj = jw - 2 * jj - qq                             # (28, 12, 2)
    valid = (dj >= 0) & (dj < 5)
    djc = jnp.clip(dj, 0, 4)
    band1 = []
    for di in range(5):
        vals = w1[:, di, :][:, djc]                   # (10, 28, 12, 2)
        vals = jnp.where(valid[None], vals, 0.0)
        band1.append(vals.transpose(1, 3, 0, 2).reshape(28, 240))
    band1 = jnp.stack(band1)                          # (5, 28, 240)

    # conv2 bands: band2[di][ci*12+jw, q*80 + c2*4 + jjj] = w2[c2,ci,di, jw-2jjj-q]
    jw2 = jnp.arange(12)[:, None, None]
    jj2 = jnp.arange(4)[None, :, None]
    qq2 = jnp.arange(2)[None, None, :]
    dj2 = jw2 - 2 * jj2 - qq2                         # (12, 4, 2)
    valid2 = (dj2 >= 0) & (dj2 < 5)
    djc2 = jnp.clip(dj2, 0, 4)
    band2 = []
    for di in range(5):
        vals = w2[:, :, di, :][:, :, djc2]            # (20, 10, 12, 4, 2)
        vals = jnp.where(valid2[None, None], vals, 0.0)
        band2.append(vals.transpose(1, 2, 4, 0, 3).reshape(120, 160))
    band2 = jnp.stack(band2)                          # (5, 120, 160)

    bias1 = jnp.repeat(params["conv1_b"].astype(f32), 12)[None, :]   # (1, 120)
    bias2 = jnp.repeat(params["conv2_b"].astype(f32), 4)[None, :]    # (1, 80)

    # fc1 weight: permute rows to the kernel's (c2*4+jjj) lane order, split by
    # pooled-height c; fc2/fc3 pre-transposed once here (never per forward).
    w1p = (params["fc1_w"].astype(f32)
           .reshape(160, 20, 4, 4)                    # [m, c2, c, jjj]
           .transpose(2, 1, 3, 0)                     # [c, c2, jjj, m]
           .reshape(4, 80, 160))
    w2p = params["fc2_w"].astype(f32).T               # (160, 80)
    w3p = params["fc3_w"].astype(f32).T               # (80, 10)
    bfc1 = params["fc1_b"].astype(f32)[None, :]
    bfc2 = params["fc2_b"].astype(f32)[None, :]
    bfc3 = params["fc3_b"].astype(f32)[None, :]

    return dict(band1=band1, band2=band2, bias1=bias1, bias2=bias2,
                w1p=w1p, bfc1=bfc1, w2p=w2p, bfc2=bfc2, w3p=w3p, bfc3=bfc3)


def _batch_tile(b):
    for bt in range(min(b, 8), 0, -1):
        if b % bt == 0:
            return bt
    return 1


# ----------------------------------------------------------------------------
# Forward wrapper
# ----------------------------------------------------------------------------
def net_forward(prep, x):
    """x: (B, 1, 28, 28) float32 -> logits (B, 10)."""
    B = x.shape[0]
    assert x.shape[1:] == (1, 28, 28), x.shape
    x2 = x.astype(jnp.float32).reshape(B, 28, 28)
    # Split rows by (row mod 4) so every slice the kernel needs is contiguous.
    # Total bytes == original input (no im2col / patch blow-up).
    xm = [x2[:, r::4, :] for r in range(4)]           # each (B, 7, 28)

    bt = _batch_tile(B)
    grid = (B // bt,)

    def xspec():
        return pl.BlockSpec((bt, 7, 28), lambda i: (i, 0, 0))

    def const_spec(shape):
        n = len(shape)
        return pl.BlockSpec(shape, lambda i, n=n: (0,) * n)

    in_specs = [xspec() for _ in range(4)] + [
        const_spec(prep["band1"].shape),
        const_spec(prep["band2"].shape),
        const_spec(prep["bias1"].shape),
        const_spec(prep["bias2"].shape),
        const_spec(prep["w1p"].shape),
        const_spec(prep["bfc1"].shape),
        const_spec(prep["w2p"].shape),
        const_spec(prep["bfc2"].shape),
        const_spec(prep["w3p"].shape),
        const_spec(prep["bfc3"].shape),
    ]
    out_spec = pl.BlockSpec((bt, 1, 10), lambda i: (i, 0, 0))

    out = pl.pallas_call(
        functools.partial(_net_fused_kernel, bt=bt),
        out_shape=jax.ShapeDtypeStruct((B, 1, 10), jnp.float32),
        grid_spec=pltpu.PrefetchScalarGridSpec(
            num_scalar_prefetch=0,
            grid=grid,
            in_specs=in_specs,
            out_specs=out_spec,
        ),
        compiler_params=pltpu.CompilerParams(
            dimension_semantics=("parallel",)),
    )(xm[0], xm[1], xm[2], xm[3],
      prep["band1"], prep["band2"], prep["bias1"], prep["bias2"],
      prep["w1p"], prep["bfc1"], prep["w2p"], prep["bfc2"],
      prep["w3p"], prep["bfc3"])
    return out.reshape(B, 10)


# ----------------------------------------------------------------------------
# Parameters + pure-JAX reference (for self-validation)
# ----------------------------------------------------------------------------
def init_params(key):
    ks = jax.random.split(key, 10)
    s = 0.1
    return {
        "conv1_w": jax.random.normal(ks[0], (10, 1, 5, 5), jnp.float32) * s,
        "conv1_b": jax.random.normal(ks[1], (10,), jnp.float32) * s,
        "conv2_w": jax.random.normal(ks[2], (20, 10, 5, 5), jnp.float32) * s,
        "conv2_b": jax.random.normal(ks[3], (20,), jnp.float32) * s,
        "fc1_w": jax.random.normal(ks[4], (160, 320), jnp.float32) * s,
        "fc1_b": jax.random.normal(ks[5], (160,), jnp.float32) * s,
        "fc2_w": jax.random.normal(ks[6], (80, 160), jnp.float32) * s,
        "fc2_b": jax.random.normal(ks[7], (80,), jnp.float32) * s,
        "fc3_w": jax.random.normal(ks[8], (10, 80), jnp.float32) * s,
        "fc3_b": jax.random.normal(ks[9], (10,), jnp.float32) * s,
    }


def reference_forward(params, x):
    dn = ("NCHW", "OIHW", "NCHW")
    y = jax.lax.conv_general_dilated(x, params["conv1_w"], (1, 1), "VALID",
                                     dimension_numbers=dn)
    y = y + params["conv1_b"][None, :, None, None]
    y = jax.lax.reduce_window(y, -jnp.inf, jax.lax.max,
                              (1, 1, 2, 2), (1, 1, 2, 2), "VALID")
    y = jnp.maximum(y, 0.0)
    y = jax.lax.conv_general_dilated(y, params["conv2_w"], (1, 1), "VALID",
                                     dimension_numbers=dn)
    y = y + params["conv2_b"][None, :, None, None]
    y = jax.lax.reduce_window(y, -jnp.inf, jax.lax.max,
                              (1, 1, 2, 2), (1, 1, 2, 2), "VALID")
    y = jnp.maximum(y, 0.0)
    y = y.reshape(x.shape[0], -1)
    y = y @ params["fc1_w"].T + params["fc1_b"]
    y = y @ params["fc2_w"].T + params["fc2_b"]
    y = y @ params["fc3_w"].T + params["fc3_b"]
    return y


if __name__ == "__main__":
    key = jax.random.PRNGKey(0)
    pkey, xkey = jax.random.split(key)
    params = init_params(pkey)
    # Spatial size must be 28x28 so the flattened feature is 320 (= 20*4*4).
    x = jax.random.normal(xkey, (2, 1, 28, 28), jnp.float32)

    prep = prepare_params(params)
    out = net_forward(prep, x)
    out = jax.block_until_ready(out)
    assert out.shape == (2, 10), out.shape
    assert bool(jnp.all(jnp.isfinite(out)))

    # Self-check against a pure-JAX reference of the same forward semantics.
    ref = reference_forward(params, x)
    assert bool(jnp.allclose(out, ref, atol=5e-2, rtol=5e-2)), (
        float(jnp.max(jnp.abs(out - ref))))

    print("KERNEL_OK")
</pallas_src>

<mosaic_0001>
module attributes {stable_mosaic.version = 11 : i64} {
  func.func @_net_fused_kernel(%arg0: i32, %arg1: memref<2x7x28xf32, #tpu.memory_space<vmem>>, %arg2: memref<2x7x28xf32, #tpu.memory_space<vmem>>, %arg3: memref<2x7x28xf32, #tpu.memory_space<vmem>>, %arg4: memref<2x7x28xf32, #tpu.memory_space<vmem>>, %arg5: memref<5x28x240xf32, #tpu.memory_space<vmem>>, %arg6: memref<5x120x160xf32, #tpu.memory_space<vmem>>, %arg7: memref<1x120xf32, #tpu.memory_space<vmem>>, %arg8: memref<1x80xf32, #tpu.memory_space<vmem>>, %arg9: memref<4x80x160xf32, #tpu.memory_space<vmem>>, %arg10: memref<1x160xf32, #tpu.memory_space<vmem>>, %arg11: memref<160x80xf32, #tpu.memory_space<vmem>>, %arg12: memref<1x80xf32, #tpu.memory_space<vmem>>, %arg13: memref<80x10xf32, #tpu.memory_space<vmem>>, %arg14: memref<1x10xf32, #tpu.memory_space<vmem>>, %arg15: memref<2x1x10xf32, #tpu.memory_space<vmem>>) attributes {dimension_semantics = [#tpu.dimension_semantics<parallel>], iteration_bounds = array<i64: 1>, scalar_prefetch = 0 : i64, scratch_operands = 0 : i64, tpu.core_type = #tpu.core_type<tc>, window_params = [{transform_indices = @transform_0, window_bounds = array<i64: 2, 7, 28>}, {transform_indices = @transform_1, window_bounds = array<i64: 2, 7, 28>}, {transform_indices = @transform_2, window_bounds = array<i64: 2, 7, 28>}, {transform_indices = @transform_3, window_bounds = array<i64: 2, 7, 28>}, {pipeline_mode = #tpu.pipeline_mode<synchronous>, transform_indices = @transform_4, window_bounds = array<i64: 5, 28, 240>}, {pipeline_mode = #tpu.pipeline_mode<synchronous>, transform_indices = @transform_5, window_bounds = array<i64: 5, 120, 160>}, {pipeline_mode = #tpu.pipeline_mode<synchronous>, transform_indices = @transform_6, window_bounds = array<i64: 1, 120>}, {pipeline_mode = #tpu.pipeline_mode<synchronous>, transform_indices = @transform_7, window_bounds = array<i64: 1, 80>}, {pipeline_mode = #tpu.pipeline_mode<synchronous>, transform_indices = @transform_8, window_bounds = array<i64: 4, 80, 160>}, {pipeline_mode = #tpu.pipeline_mode<synchronous>, transform_indices = @transform_9, window_bounds = array<i64: 1, 160>}, {pipeline_mode = #tpu.pipeline_mode<synchronous>, transform_indices = @transform_10, window_bounds = array<i64: 160, 80>}, {pipeline_mode = #tpu.pipeline_mode<synchronous>, transform_indices = @transform_11, window_bounds = array<i64: 1, 80>}, {pipeline_mode = #tpu.pipeline_mode<synchronous>, transform_indices = @transform_12, window_bounds = array<i64: 80, 10>}, {pipeline_mode = #tpu.pipeline_mode<synchronous>, transform_indices = @transform_13, window_bounds = array<i64: 1, 10>}, {transform_indices = @transform_14, window_bounds = array<i64: 2, 1, 10>}]} {
    %c0 = arith.constant 0 : index
    %c0_0 = arith.constant 0 : index
    %c0_1 = arith.constant 0 : index
    %0 = vector.load %arg5[%c0, %c0_0, %c0_1] : memref<5x28x240xf32, #tpu.memory_space<vmem>>, vector<1x28x240xf32>
    %1 = vector.shape_cast %0 : vector<1x28x240xf32> to vector<28x240xf32>
    %c1 = arith.constant 1 : index
    %c0_2 = arith.constant 0 : index
    %c0_3 = arith.constant 0 : index
    %2 = vector.load %arg5[%c1, %c0_2, %c0_3] : memref<5x28x240xf32, #tpu.memory_space<vmem>>, vector<1x28x240xf32>
    %3 = vector.shape_cast %2 : vector<1x28x240xf32> to vector<28x240xf32>
    %c2 = arith.constant 2 : index
    %c0_4 = arith.constant 0 : index
    %c0_5 = arith.constant 0 : index
    %4 = vector.load %arg5[%c2, %c0_4, %c0_5] : memref<5x28x240xf32, #tpu.memory_space<vmem>>, vector<1x28x240xf32>
    %5 = vector.shape_cast %4 : vector<1x28x240xf32> to vector<28x240xf32>
    %c3 = arith.constant 3 : index
    %c0_6 = arith.constant 0 : index
    %c0_7 = arith.constant 0 : index
    %6 = vector.load %arg5[%c3, %c0_6, %c0_7] : memref<5x28x240xf32, #tpu.memory_space<vmem>>, vector<1x28x240xf32>
    %7 = vector.shape_cast %6 : vector<1x28x240xf32> to vector<28x240xf32>
    %c4 = arith.constant 4 : index
    %c0_8 = arith.constant 0 : index
    %c0_9 = arith.constant 0 : index
    %8 = vector.load %arg5[%c4, %c0_8, %c0_9] : memref<5x28x240xf32, #tpu.memory_space<vmem>>, vector<1x28x240xf32>
    %9 = vector.shape_cast %8 : vector<1x28x240xf32> to vector<28x240xf32>
    %c0_10 = arith.constant 0 : index
    %c0_11 = arith.constant 0 : index
    %c0_12 = arith.constant 0 : index
    %10 = vector.load %arg6[%c0_10, %c0_11, %c0_12] : memref<5x120x160xf32, #tpu.memory_space<vmem>>, vector<1x120x160xf32>
    %11 = vector.shape_cast %10 : vector<1x120x160xf32> to vector<120x160xf32>
    %c1_13 = arith.constant 1 : index
    %c0_14 = arith.constant 0 : index
    %c0_15 = arith.constant 0 : index
    %12 = vector.load %arg6[%c1_13, %c0_14, %c0_15] : memref<5x120x160xf32, #tpu.memory_space<vmem>>, vector<1x120x160xf32>
    %13 = vector.shape_cast %12 : vector<1x120x160xf32> to vector<120x160xf32>
    %c2_16 = arith.constant 2 : index
    %c0_17 = arith.constant 0 : index
    %c0_18 = arith.constant 0 : index
    %14 = vector.load %arg6[%c2_16, %c0_17, %c0_18] : memref<5x120x160xf32, #tpu.memory_space<vmem>>, vector<1x120x160xf32>
    %15 = vector.shape_cast %14 : vector<1x120x160xf32> to vector<120x160xf32>
    %c3_19 = arith.constant 3 : index
    %c0_20 = arith.constant 0 : index
    %c0_21 = arith.constant 0 : index
    %16 = vector.load %arg6[%c3_19, %c0_20, %c0_21] : memref<5x120x160xf32, #tpu.memory_space<vmem>>, vector<1x120x160xf32>
    %17 = vector.shape_cast %16 : vector<1x120x160xf32> to vector<120x160xf32>
    %c4_22 = arith.constant 4 : index
    %c0_23 = arith.constant 0 : index
    %c0_24 = arith.constant 0 : index
    %18 = vector.load %arg6[%c4_22, %c0_23, %c0_24] : memref<5x120x160xf32, #tpu.memory_space<vmem>>, vector<1x120x160xf32>
    %19 = vector.shape_cast %18 : vector<1x120x160xf32> to vector<120x160xf32>
    %c0_25 = arith.constant 0 : index
    %c0_26 = arith.constant 0 : index
    %c0_27 = arith.constant 0 : index
    %20 = vector.load %arg9[%c0_25, %c0_26, %c0_27] : memref<4x80x160xf32, #tpu.memory_space<vmem>>, vector<1x80x160xf32>
    %21 = vector.shape_cast %20 : vector<1x80x160xf32> to vector<80x160xf32>
    %c1_28 = arith.constant 1 : index
    %c0_29 = arith.constant 0 : index
    %c0_30 = arith.constant 0 : index
    %22 = vector.load %arg9[%c1_28, %c0_29, %c0_30] : memref<4x80x160xf32, #tpu.memory_space<vmem>>, vector<1x80x160xf32>
    %23 = vector.shape_cast %22 : vector<1x80x160xf32> to vector<80x160xf32>
    %c2_31 = arith.constant 2 : index
    %c0_32 = arith.constant 0 : index
    %c0_33 = arith.constant 0 : index
    %24 = vector.load %arg9[%c2_31, %c0_32, %c0_33] : memref<4x80x160xf32, #tpu.memory_space<vmem>>, vector<1x80x160xf32>
    %25 = vector.shape_cast %24 : vector<1x80x160xf32> to vector<80x160xf32>
    %c3_34 = arith.constant 3 : index
    %c0_35 = arith.constant 0 : index
    %c0_36 = arith.constant 0 : index
    %26 = vector.load %arg9[%c3_34, %c0_35, %c0_36] : memref<4x80x160xf32, #tpu.memory_space<vmem>>, vector<1x80x160xf32>
    %27 = vector.shape_cast %26 : vector<1x80x160xf32> to vector<80x160xf32>
    %c0_37 = arith.constant 0 : index
    %c0_38 = arith.constant 0 : index
    %28 = vector.load %arg7[%c0_37, %c0_38] : memref<1x120xf32, #tpu.memory_space<vmem>>, vector<1x120xf32>
    %c0_39 = arith.constant 0 : index
    %c0_40 = arith.constant 0 : index
    %29 = vector.load %arg8[%c0_39, %c0_40] : memref<1x80xf32, #tpu.memory_space<vmem>>, vector<1x80xf32>
    %c0_41 = arith.constant 0 : index
    %c0_42 = arith.constant 0 : index
    %30 = vector.load %arg11[%c0_41, %c0_42] : memref<160x80xf32, #tpu.memory_space<vmem>>, vector<160x80xf32>
    %c0_43 = arith.constant 0 : index
    %c0_44 = arith.constant 0 : index
    %31 = vector.load %arg13[%c0_43, %c0_44] : memref<80x10xf32, #tpu.memory_space<vmem>>, vector<80x10xf32>
    %c0_45 = arith.constant 0 : index
    %c0_46 = arith.constant 0 : index
    %32 = vector.load %arg10[%c0_45, %c0_46] : memref<1x160xf32, #tpu.memory_space<vmem>>, vector<1x160xf32>
    %c0_47 = arith.constant 0 : index
    %c0_48 = arith.constant 0 : index
    %33 = vector.load %arg12[%c0_47, %c0_48] : memref<1x80xf32, #tpu.memory_space<vmem>>, vector<1x80xf32>
    %c0_49 = arith.constant 0 : index
    %c0_50 = arith.constant 0 : index
    %34 = vector.load %arg14[%c0_49, %c0_50] : memref<1x10xf32, #tpu.memory_space<vmem>>, vector<1x10xf32>
    %c0_51 = arith.constant 0 : index
    %c0_52 = arith.constant 0 : index
    %c0_53 = arith.constant 0 : index
    %35 = vector.load %arg1[%c0_51, %c0_52, %c0_53] : memref<2x7x28xf32, #tpu.memory_space<vmem>>, vector<1x7x28xf32>
    %36 = vector.shape_cast %35 : vector<1x7x28xf32> to vector<7x28xf32>
    %c0_54 = arith.constant 0 : index
    %c0_55 = arith.constant 0 : index
    %c0_56 = arith.constant 0 : index
    %37 = vector.load %arg2[%c0_54, %c0_55, %c0_56] : memref<2x7x28xf32, #tpu.memory_space<vmem>>, vector<1x7x28xf32>
    %38 = vector.shape_cast %37 : vector<1x7x28xf32> to vector<7x28xf32>
    %c0_57 = arith.constant 0 : index
    %c0_58 = arith.constant 0 : index
    %c0_59 = arith.constant 0 : index
    %39 = vector.load %arg3[%c0_57, %c0_58, %c0_59] : memref<2x7x28xf32, #tpu.memory_space<vmem>>, vector<1x7x28xf32>
    %40 = vector.shape_cast %39 : vector<1x7x28xf32> to vector<7x28xf32>
    %c0_60 = arith.constant 0 : index
    %c0_61 = arith.constant 0 : index
    %c0_62 = arith.constant 0 : index
    %41 = vector.load %arg4[%c0_60, %c0_61, %c0_62] : memref<2x7x28xf32, #tpu.memory_space<vmem>>, vector<1x7x28xf32>
    %42 = vector.shape_cast %41 : vector<1x7x28xf32> to vector<7x28xf32>
    %43 = vector.extract_strided_slice %36 {offsets = [0, 0], sizes = [6, 28], strides = [1, 1]} : vector<7x28xf32> to vector<6x28xf32>
    %cst = arith.constant dense<0.000000e+00> : vector<6x240xf32>
    %44 = tpu.matmul %43, %1, %cst {dimension_numbers = #tpu.dot_dimension_numbers<[1], [0], [0], [1], [0, 0, 1, 1], [], []>} : vector<6x28xf32>, vector<28x240xf32>, vector<6x240xf32> -> vector<6x240xf32>
    %45 = vector.extract_strided_slice %38 {offsets = [0, 0], sizes = [6, 28], strides = [1, 1]} : vector<7x28xf32> to vector<6x28xf32>
    %cst_63 = arith.constant dense<0.000000e+00> : vector<6x240xf32>
    %46 = tpu.matmul %45, %3, %cst_63 {dimension_numbers = #tpu.dot_dimension_numbers<[1], [0], [0], [1], [0, 0, 1, 1], [], []>} : vector<6x28xf32>, vector<28x240xf32>, vector<6x240xf32> -> vector<6x240xf32>
    %47 = arith.addf %44, %46 : vector<6x240xf32>
    %48 = vector.extract_strided_slice %40 {offsets = [0, 0], sizes = [6, 28], strides = [1, 1]} : vector<7x28xf32> to vector<6x28xf32>
    %cst_64 = arith.constant dense<0.000000e+00> : vector<6x240xf32>
    %49 = tpu.matmul %48, %5, %cst_64 {dimension_numbers = #tpu.dot_dimension_numbers<[1], [0], [0], [1], [0, 0, 1, 1], [], []>} : vector<6x28xf32>, vector<28x240xf32>, vector<6x240xf32> -> vector<6x240xf32>
    %50 = arith.addf %47, %49 : vector<6x240xf32>
    %51 = vector.extract_strided_slice %42 {offsets = [0, 0], sizes = [6, 28], strides = [1, 1]} : vector<7x28xf32> to vector<6x28xf32>
    %cst_65 = arith.constant dense<0.000000e+00> : vector<6x240xf32>
    %52 = tpu.matmul %51, %7, %cst_65 {dimension_numbers = #tpu.dot_dimension_numbers<[1], [0], [0], [1], [0, 0, 1, 1], [], []>} : vector<6x28xf32>, vector<28x240xf32>, vector<6x240xf32> -> vector<6x240xf32>
    %53 = arith.addf %50, %52 : vector<6x240xf32>
    %54 = vector.extract_strided_slice %36 {offsets = [1, 0], sizes = [6, 28], strides = [1, 1]} : vector<7x28xf32> to vector<6x28xf32>
    %cst_66 = arith.constant dense<0.000000e+00> : vector<6x240xf32>
    %55 = tpu.matmul %54, %9, %cst_66 {dimension_numbers = #tpu.dot_dimension_numbers<[1], [0], [0], [1], [0, 0, 1, 1], [], []>} : vector<6x28xf32>, vector<28x240xf32>, vector<6x240xf32> -> vector<6x240xf32>
    %56 = arith.addf %53, %55 : vector<6x240xf32>
    %57 = vector.extract_strided_slice %56 {offsets = [0, 0], sizes = [6, 120], strides = [1, 1]} : vector<6x240xf32> to vector<6x120xf32>
    %58 = vector.extract_strided_slice %56 {offsets = [0, 120], sizes = [6, 120], strides = [1, 1]} : vector<6x240xf32> to vector<6x120xf32>
    %59 = arith.maximumf %57, %58 : vector<6x120xf32>
    %60 = vector.extract_strided_slice %38 {offsets = [0, 0], sizes = [6, 28], strides = [1, 1]} : vector<7x28xf32> to vector<6x28xf32>
    %cst_67 = arith.constant dense<0.000000e+00> : vector<6x240xf32>
    %61 = tpu.matmul %60, %1, %cst_67 {dimension_numbers = #tpu.dot_dimension_numbers<[1], [0], [0], [1], [0, 0, 1, 1], [], []>} : vector<6x28xf32>, vector<28x240xf32>, vector<6x240xf32> -> vector<6x240xf32>
    %62 = vector.extract_strided_slice %40 {offsets = [0, 0], sizes = [6, 28], strides = [1, 1]} : vector<7x28xf32> to vector<6x28xf32>
    %cst_68 = arith.constant dense<0.000000e+00> : vector<6x240xf32>
    %63 = tpu.matmul %62, %3, %cst_68 {dimension_numbers = #tpu.dot_dimension_numbers<[1], [0], [0], [1], [0, 0, 1, 1], [], []>} : vector<6x28xf32>, vector<28x240xf32>, vector<6x240xf32> -> vector<6x240xf32>
    %64 = arith.addf %61, %63 : vector<6x240xf32>
    %65 = vector.extract_strided_slice %42 {offsets = [0, 0], sizes = [6, 28], strides = [1, 1]} : vector<7x28xf32> to vector<6x28xf32>
    %cst_69 = arith.constant dense<0.000000e+00> : vector<6x240xf32>
    %66 = tpu.matmul %65, %5, %cst_69 {dimension_numbers = #tpu.dot_dimension_numbers<[1], [0], [0], [1], [0, 0, 1, 1], [], []>} : vector<6x28xf32>, vector<28x240xf32>, vector<6x240xf32> -> vector<6x240xf32>
    %67 = arith.addf %64, %66 : vector<6x240xf32>
    %68 = vector.extract_strided_slice %36 {offsets = [1, 0], sizes = [6, 28], strides = [1, 1]} : vector<7x28xf32> to vector<6x28xf32>
    %cst_70 = arith.constant dense<0.000000e+00> : vector<6x240xf32>
    %69 = tpu.matmul %68, %7, %cst_70 {dimension_numbers = #tpu.dot_dimension_numbers<[1], [0], [0], [1], [0, 0, 1, 1], [], []>} : vector<6x28xf32>, vector<28x240xf32>, vector<6x240xf32> -> vector<6x240xf32>
    %70 = arith.addf %67, %69 : vector<6x240xf32>
    %71 = vector.extract_strided_slice %38 {offsets = [1, 0], sizes = [6, 28], strides = [1, 1]} : vector<7x28xf32> to vector<6x28xf32>
    %cst_71 = arith.constant dense<0.000000e+00> : vector<6x240xf32>
    %72 = tpu.matmul %71, %9, %cst_71 {dimension_numbers = #tpu.dot_dimension_numbers<[1], [0], [0], [1], [0, 0, 1, 1], [], []>} : vector<6x28xf32>, vector<28x240xf32>, vector<6x240xf32> -> vector<6x240xf32>
    %73 = arith.addf %70, %72 : vector<6x240xf32>
    %74 = vector.extract_strided_slice %73 {offsets = [0, 0], sizes = [6, 120], strides = [1, 1]} : vector<6x240xf32> to vector<6x120xf32>
    %75 = vector.extract_strided_slice %73 {offsets = [0, 120], sizes = [6, 120], strides = [1, 1]} : vector<6x240xf32> to vector<6x120xf32>
    %76 = arith.maximumf %59, %74 : vector<6x120xf32>
    %77 = arith.maximumf %76, %75 : vector<6x120xf32>
    %78 = vector.broadcast %28 : vector<1x120xf32> to vector<6x120xf32>
    %79 = arith.addf %77, %78 : vector<6x120xf32>
    %cst_72 = arith.constant 0.000000e+00 : f32
    %80 = vector.broadcast %cst_72 : f32 to vector<6x120xf32>
    %81 = arith.maximumf %79, %80 : vector<6x120xf32>
    %82 = vector.extract_strided_slice %40 {offsets = [0, 0], sizes = [6, 28], strides = [1, 1]} : vector<7x28xf32> to vector<6x28xf32>
    %cst_73 = arith.constant dense<0.000000e+00> : vector<6x240xf32>
    %83 = tpu.matmul %82, %1, %cst_73 {dimension_numbers = #tpu.dot_dimension_numbers<[1], [0], [0], [1], [0, 0, 1, 1], [], []>} : vector<6x28xf32>, vector<28x240xf32>, vector<6x240xf32> -> vector<6x240xf32>
    %84 = vector.extract_strided_slice %42 {offsets = [0, 0], sizes = [6, 28], strides = [1, 1]} : vector<7x28xf32> to vector<6x28xf32>
    %cst_74 = arith.constant dense<0.000000e+00> : vector<6x240xf32>
    %85 = tpu.matmul %84, %3, %cst_74 {dimension_numbers = #tpu.dot_dimension_numbers<[1], [0], [0], [1], [0, 0, 1, 1], [], []>} : vector<6x28xf32>, vector<28x240xf32>, vector<6x240xf32> -> vector<6x240xf32>
    %86 = arith.addf %83, %85 : vector<6x240xf32>
    %87 = vector.extract_strided_slice %36 {offsets = [1, 0], sizes = [6, 28], strides = [1, 1]} : vector<7x28xf32> to vector<6x28xf32>
    %cst_75 = arith.constant dense<0.000000e+00> : vector<6x240xf32>
    %88 = tpu.matmul %87, %5, %cst_75 {dimension_numbers = #tpu.dot_dimension_numbers<[1], [0], [0], [1], [0, 0, 1, 1], [], []>} : vector<6x28xf32>, vector<28x240xf32>, vector<6x240xf32> -> vector<6x240xf32>
    %89 = arith.addf %86, %88 : vector<6x240xf32>
    %90 = vector.extract_strided_slice %38 {offsets = [1, 0], sizes = [6, 28], strides = [1, 1]} : vector<7x28xf32> to vector<6x28xf32>
    %cst_76 = arith.constant dense<0.000000e+00> : vector<6x240xf32>
    %91 = tpu.matmul %90, %7, %cst_76 {dimension_numbers = #tpu.dot_dimension_numbers<[1], [0], [0], [1], [0, 0, 1, 1], [], []>} : vector<6x28xf32>, vector<28x240xf32>, vector<6x240xf32> -> vector<6x240xf32>
    %92 = arith.addf %89, %91 : vector<6x240xf32>
    %93 = vector.extract_strided_slice %40 {offsets = [1, 0], sizes = [6, 28], strides = [1, 1]} : vector<7x28xf32> to vector<6x28xf32>
    %cst_77 = arith.constant dense<0.000000e+00> : vector<6x240xf32>
    %94 = tpu.matmul %93, %9, %cst_77 {dimension_numbers = #tpu.dot_dimension_numbers<[1], [0], [0], [1], [0, 0, 1, 1], [], []>} : vector<6x28xf32>, vector<28x240xf32>, vector<6x240xf32> -> vector<6x240xf32>
    %95 = arith.addf %92, %94 : vector<6x240xf32>
    %96 = vector.extract_strided_slice %95 {offsets = [0, 0], sizes = [6, 120], strides = [1, 1]} : vector<6x240xf32> to vector<6x120xf32>
    %97 = vector.extract_strided_slice %95 {offsets = [0, 120], sizes = [6, 120], strides = [1, 1]} : vector<6x240xf32> to vector<6x120xf32>
    %98 = arith.maximumf %96, %97 : vector<6x120xf32>
    %99 = vector.extract_strided_slice %42 {offsets = [0, 0], sizes = [6, 28], strides = [1, 1]} : vector<7x28xf32> to vector<6x28xf32>
    %cst_78 = arith.constant dense<0.000000e+00> : vector<6x240xf32>
    %100 = tpu.matmul %99, %1, %cst_78 {dimension_numbers = #tpu.dot_dimension_numbers<[1], [0], [0], [1], [0, 0, 1, 1], [], []>} : vector<6x28xf32>, vector<28x240xf32>, vector<6x240xf32> -> vector<6x240xf32>
    %101 = vector.extract_strided_slice %36 {offsets = [1, 0], sizes = [6, 28], strides = [1, 1]} : vector<7x28xf32> to vector<6x28xf32>
    %cst_79 = arith.constant dense<0.000000e+00> : vector<6x240xf32>
    %102 = tpu.matmul %101, %3, %cst_79 {dimension_numbers = #tpu.dot_dimension_numbers<[1], [0], [0], [1], [0, 0, 1, 1], [], []>} : vector<6x28xf32>, vector<28x240xf32>, vector<6x240xf32> -> vector<6x240xf32>
    %103 = arith.addf %100, %102 : vector<6x240xf32>
    %104 = vector.extract_strided_slice %38 {offsets = [1, 0], sizes = [6, 28], strides = [1, 1]} : vector<7x28xf32> to vector<6x28xf32>
    %cst_80 = arith.constant dense<0.000000e+00> : vector<6x240xf32>
    %105 = tpu.matmul %104, %5, %cst_80 {dimension_numbers = #tpu.dot_dimension_numbers<[1], [0], [0], [1], [0, 0, 1, 1], [], []>} : vector<6x28xf32>, vector<28x240xf32>, vector<6x240xf32> -> vector<6x240xf32>
    %106 = arith.addf %103, %105 : vector<6x240xf32>
    %107 = vector.extract_strided_slice %40 {offsets = [1, 0], sizes = [6, 28], strides = [1, 1]} : vector<7x28xf32> to vector<6x28xf32>
    %cst_81 = arith.constant dense<0.000000e+00> : vector<6x240xf32>
    %108 = tpu.matmul %107, %7, %cst_81 {dimension_numbers = #tpu.dot_dimension_numbers<[1], [0], [0], [1], [0, 0, 1, 1], [], []>} : vector<6x28xf32>, vector<28x240xf32>, vector<6x240xf32> -> vector<6x240xf32>
    %109 = arith.addf %106, %108 : vector<6x240xf32>
    %110 = vector.extract_strided_slice %42 {offsets = [1, 0], sizes = [6, 28], strides = [1, 1]} : vector<7x28xf32> to vector<6x28xf32>
    %cst_82 = arith.constant dense<0.000000e+00> : vector<6x240xf32>
    %111 = tpu.matmul %110, %9, %cst_82 {dimension_numbers = #tpu.dot_dimension_numbers<[1], [0], [0], [1], [0, 0, 1, 1], [], []>} : vector<6x28xf32>, vector<28x240xf32>, vector<6x240xf32> -> vector<6x240xf32>
    %112 = arith.addf %109, %111 : vector<6x240xf32>
    %113 = vector.extract_strided_slice %112 {offsets = [0, 0], sizes = [6, 120], strides = [1, 1]} : vector<6x240xf32> to vector<6x120xf32>
    %114 = vector.extract_strided_slice %112 {offsets = [0, 120], sizes = [6, 120], strides = [1, 1]} : vector<6x240xf32> to vector<6x120xf32>
    %115 = arith.maximumf %98, %113 : vector<6x120xf32>
    %116 = arith.maximumf %115, %114 : vector<6x120xf32>
    %117 = vector.broadcast %28 : vector<1x120xf32> to vector<6x120xf32>
    %118 = arith.addf %116, %117 : vector<6x120xf32>
    %cst_83 = arith.constant 0.000000e+00 : f32
    %119 = vector.broadcast %cst_83 : f32 to vector<6x120xf32>
    %120 = arith.maximumf %118, %119 : vector<6x120xf32>
    %121 = vector.extract_strided_slice %81 {offsets = [0, 0], sizes = [4, 120], strides = [1, 1]} : vector<6x120xf32> to vector<4x120xf32>
    %cst_84 = arith.constant dense<0.000000e+00> : vector<4x160xf32>
    %122 = tpu.matmul %121, %11, %cst_84 {dimension_numbers = #tpu.dot_dimension_numbers<[1], [0], [0], [1], [0, 0, 1, 1], [], []>} : vector<4x120xf32>, vector<120x160xf32>, vector<4x160xf32> -> vector<4x160xf32>
    %123 = vector.extract_strided_slice %120 {offsets = [0, 0], sizes = [4, 120], strides = [1, 1]} : vector<6x120xf32> to vector<4x120xf32>
    %cst_85 = arith.constant dense<0.000000e+00> : vector<4x160xf32>
    %124 = tpu.matmul %123, %13, %cst_85 {dimension_numbers = #tpu.dot_dimension_numbers<[1], [0], [0], [1], [0, 0, 1, 1], [], []>} : vector<4x120xf32>, vector<120x160xf32>, vector<4x160xf32> -> vector<4x160xf32>
    %125 = arith.addf %122, %124 : vector<4x160xf32>
    %126 = vector.extract_strided_slice %81 {offsets = [1, 0], sizes = [4, 120], strides = [1, 1]} : vector<6x120xf32> to vector<4x120xf32>
    %cst_86 = arith.constant dense<0.000000e+00> : vector<4x160xf32>
    %127 = tpu.matmul %126, %15, %cst_86 {dimension_numbers = #tpu.dot_dimension_numbers<[1], [0], [0], [1], [0, 0, 1, 1], [], []>} : vector<4x120xf32>, vector<120x160xf32>, vector<4x160xf32> -> vector<4x160xf32>
    %128 = arith.addf %125, %127 : vector<4x160xf32>
    %129 = vector.extract_strided_slice %120 {offsets = [1, 0], sizes = [4, 120], strides = [1, 1]} : vector<6x120xf32> to vector<4x120xf32>
    %cst_87 = arith.constant dense<0.000000e+00> : vector<4x160xf32>
    %130 = tpu.matmul %129, %17, %cst_87 {dimension_numbers = #tpu.dot_dimension_numbers<[1], [0], [0], [1], [0, 0, 1, 1], [], []>} : vector<4x120xf32>, vector<120x160xf32>, vector<4x160xf32> -> vector<4x160xf32>
    %131 = arith.addf %128, %130 : vector<4x160xf32>
    %132 = vector.extract_strided_slice %81 {offsets = [2, 0], sizes = [4, 120], strides = [1, 1]} : vector<6x120xf32> to vector<4x120xf32>
    %cst_88 = arith.constant dense<0.000000e+00> : vector<4x160xf32>
    %133 = tpu.matmul %132, %19, %cst_88 {dimension_numbers = #tpu.dot_dimension_numbers<[1], [0], [0], [1], [0, 0, 1, 1], [], []>} : vector<4x120xf32>, vector<120x160xf32>, vector<4x160xf32> -> vector<4x160xf32>
    %134 = arith.addf %131, %133 : vector<4x160xf32>
    %135 = vector.extract_strided_slice %134 {offsets = [0, 0], sizes = [4, 80], strides = [1, 1]} : vector<4x160xf32> to vector<4x80xf32>
    %136 = vector.extract_strided_slice %134 {offsets = [0, 80], sizes = [4, 80], strides = [1, 1]} : vector<4x160xf32> to vector<4x80xf32>
    %137 = arith.maximumf %135, %136 : vector<4x80xf32>
    %138 = vector.extract_strided_slice %120 {offsets = [0, 0], sizes = [4, 120], strides = [1, 1]} : vector<6x120xf32> to vector<4x120xf32>
    %cst_89 = arith.constant dense<0.000000e+00> : vector<4x160xf32>
    %139 = tpu.matmul %138, %11, %cst_89 {dimension_numbers = #tpu.dot_dimension_numbers<[1], [0], [0], [1], [0, 0, 1, 1], [], []>} : vector<4x120xf32>, vector<120x160xf32>, vector<4x160xf32> -> vector<4x160xf32>
    %140 = vector.extract_strided_slice %81 {offsets = [1, 0], sizes = [4, 120], strides = [1, 1]} : vector<6x120xf32> to vector<4x120xf32>
    %cst_90 = arith.constant dense<0.000000e+00> : vector<4x160xf32>
    %141 = tpu.matmul %140, %13, %cst_90 {dimension_numbers = #tpu.dot_dimension_numbers<[1], [0], [0], [1], [0, 0, 1, 1], [], []>} : vector<4x120xf32>, vector<120x160xf32>, vector<4x160xf32> -> vector<4x160xf32>
    %142 = arith.addf %139, %141 : vector<4x160xf32>
    %143 = vector.extract_strided_slice %120 {offsets = [1, 0], sizes = [4, 120], strides = [1, 1]} : vector<6x120xf32> to vector<4x120xf32>
    %cst_91 = arith.constant dense<0.000000e+00> : vector<4x160xf32>
    %144 = tpu.matmul %143, %15, %cst_91 {dimension_numbers = #tpu.dot_dimension_numbers<[1], [0], [0], [1], [0, 0, 1, 1], [], []>} : vector<4x120xf32>, vector<120x160xf32>, vector<4x160xf32> -> vector<4x160xf32>
    %145 = arith.addf %142, %144 : vector<4x160xf32>
    %146 = vector.extract_strided_slice %81 {offsets = [2, 0], sizes = [4, 120], strides = [1, 1]} : vector<6x120xf32> to vector<4x120xf32>
    %cst_92 = arith.constant dense<0.000000e+00> : vector<4x160xf32>
    %147 = tpu.matmul %146, %17, %cst_92 {dimension_numbers = #tpu.dot_dimension_numbers<[1], [0], [0], [1], [0, 0, 1, 1], [], []>} : vector<4x120xf32>, vector<120x160xf32>, vector<4x160xf32> -> vector<4x160xf32>
    %148 = arith.addf %145, %147 : vector<4x160xf32>
    %149 = vector.extract_strided_slice %120 {offsets = [2, 0], sizes = [4, 120], strides = [1, 1]} : vector<6x120xf32> to vector<4x120xf32>
    %cst_93 = arith.constant dense<0.000000e+00> : vector<4x160xf32>
    %150 = tpu.matmul %149, %19, %cst_93 {dimension_numbers = #tpu.dot_dimension_numbers<[1], [0], [0], [1], [0, 0, 1, 1], [], []>} : vector<4x120xf32>, vector<120x160xf32>, vector<4x160xf32> -> vector<4x160xf32>
    %151 = arith.addf %148, %150 : vector<4x160xf32>
    %152 = vector.extract_strided_slice %151 {offsets = [0, 0], sizes = [4, 80], strides = [1, 1]} : vector<4x160xf32> to vector<4x80xf32>
    %153 = vector.extract_strided_slice %151 {offsets = [0, 80], sizes = [4, 80], strides = [1, 1]} : vector<4x160xf32> to vector<4x80xf32>
    %154 = arith.maximumf %137, %152 : vector<4x80xf32>
    %155 = arith.maximumf %154, %153 : vector<4x80xf32>
    %156 = vector.broadcast %29 : vector<1x80xf32> to vector<4x80xf32>
    %157 = arith.addf %155, %156 : vector<4x80xf32>
    %cst_94 = arith.constant 0.000000e+00 : f32
    %158 = vector.broadcast %cst_94 : f32 to vector<4x80xf32>
    %159 = arith.maximumf %157, %158 : vector<4x80xf32>
    %160 = vector.extract_strided_slice %159 {offsets = [0, 0], sizes = [1, 80], strides = [1, 1]} : vector<4x80xf32> to vector<1x80xf32>
    %cst_95 = arith.constant dense<0.000000e+00> : vector<1x160xf32>
    %161 = tpu.matmul %160, %21, %cst_95 {dimension_numbers = #tpu.dot_dimension_numbers<[1], [0], [0], [1], [0, 0, 1, 1], [], []>} : vector<1x80xf32>, vector<80x160xf32>, vector<1x160xf32> -> vector<1x160xf32>
    %162 = arith.addf %32, %161 : vector<1x160xf32>
    %163 = vector.extract_strided_slice %159 {offsets = [1, 0], sizes = [1, 80], strides = [1, 1]} : vector<4x80xf32> to vector<1x80xf32>
    %cst_96 = arith.constant dense<0.000000e+00> : vector<1x160xf32>
    %164 = tpu.matmul %163, %23, %cst_96 {dimension_numbers = #tpu.dot_dimension_numbers<[1], [0], [0], [1], [0, 0, 1, 1], [], []>} : vector<1x80xf32>, vector<80x160xf32>, vector<1x160xf32> -> vector<1x160xf32>
    %165 = arith.addf %162, %164 : vector<1x160xf32>
    %166 = vector.extract_strided_slice %159 {offsets = [2, 0], sizes = [1, 80], strides = [1, 1]} : vector<4x80xf32> to vector<1x80xf32>
    %cst_97 = arith.constant dense<0.000000e+00> : vector<1x160xf32>
    %167 = tpu.matmul %166, %25, %cst_97 {dimension_numbers = #tpu.dot_dimension_numbers<[1], [0], [0], [1], [0, 0, 1, 1], [], []>} : vector<1x80xf32>, vector<80x160xf32>, vector<1x160xf32> -> vector<1x160xf32>
    %168 = arith.addf %165, %167 : vector<1x160xf32>
    %169 = vector.extract_strided_slice %159 {offsets = [3, 0], sizes = [1, 80], strides = [1, 1]} : vector<4x80xf32> to vector<1x80xf32>
    %cst_98 = arith.constant dense<0.000000e+00> : vector<1x160xf32>
    %170 = tpu.matmul %169, %27, %cst_98 {dimension_numbers = #tpu.dot_dimension_numbers<[1], [0], [0], [1], [0, 0, 1, 1], [], []>} : vector<1x80xf32>, vector<80x160xf32>, vector<1x160xf32> -> vector<1x160xf32>
    %171 = arith.addf %168, %170 : vector<1x160xf32>
    %cst_99 = arith.constant dense<0.000000e+00> : vector<1x80xf32>
    %172 = tpu.matmul %171, %30, %cst_99 {dimension_numbers = #tpu.dot_dimension_numbers<[1], [0], [0], [1], [0, 0, 1, 1], [], []>} : vector<1x160xf32>, vector<160x80xf32>, vector<1x80xf32> -> vector<1x80xf32>
    %173 = arith.addf %172, %33 : vector<1x80xf32>
    %cst_100 = arith.constant dense<0.000000e+00> : vector<1x10xf32>
    %174 = tpu.matmul %173, %31, %cst_100 {dimension_numbers = #tpu.dot_dimension_numbers<[1], [0], [0], [1], [0, 0, 1, 1], [], []>} : vector<1x80xf32>, vector<80x10xf32>, vector<1x10xf32> -> vector<1x10xf32>
    %175 = arith.addf %174, %34 : vector<1x10xf32>
    %c0_101 = arith.constant 0 : index
    %c0_102 = arith.constant 0 : index
    %c0_103 = arith.constant 0 : index
    %176 = vector.load %arg15[%c0_101, %c0_102, %c0_103] : memref<2x1x10xf32, #tpu.memory_space<vmem>>, vector<1x1x10xf32>
    %177 = vector.shape_cast %176 : vector<1x1x10xf32> to vector<1x10xf32>
    %178 = vector.shape_cast %175 : vector<1x10xf32> to vector<1x1x10xf32>
    tpu.vector_store %arg15[%c0_101, %c0_102, %c0_103], %178 {strides = array<i32>} : memref<2x1x10xf32, #tpu.memory_space<vmem>>, vector<1x1x10xf32>,
    %c1_104 = arith.constant 1 : index
    %c0_105 = arith.constant 0 : index
    %c0_106 = arith.constant 0 : index
    %179 = vector.load %arg1[%c1_104, %c0_105, %c0_106] : memref<2x7x28xf32, #tpu.memory_space<vmem>>, vector<1x7x28xf32>
    %180 = vector.shape_cast %179 : vector<1x7x28xf32> to vector<7x28xf32>
    %c1_107 = arith.constant 1 : index
    %c0_108 = arith.constant 0 : index
    %c0_109 = arith.constant 0 : index
    %181 = vector.load %arg2[%c1_107, %c0_108, %c0_109] : memref<2x7x28xf32, #tpu.memory_space<vmem>>, vector<1x7x28xf32>
    %182 = vector.shape_cast %181 : vector<1x7x28xf32> to vector<7x28xf32>
    %c1_110 = arith.constant 1 : index
    %c0_111 = arith.constant 0 : index
    %c0_112 = arith.constant 0 : index
    %183 = vector.load %arg3[%c1_110, %c0_111, %c0_112] : memref<2x7x28xf32, #tpu.memory_space<vmem>>, vector<1x7x28xf32>
    %184 = vector.shape_cast %183 : vector<1x7x28xf32> to vector<7x28xf32>
    %c1_113 = arith.constant 1 : index
    %c0_114 = arith.constant 0 : index
    %c0_115 = arith.constant 0 : index
    %185 = vector.load %arg4[%c1_113, %c0_114, %c0_115] : memref<2x7x28xf32, #tpu.memory_space<vmem>>, vector<1x7x28xf32>
    %186 = vector.shape_cast %185 : vector<1x7x28xf32> to vector<7x28xf32>
    %187 = vector.extract_strided_slice %180 {offsets = [0, 0], sizes = [6, 28], strides = [1, 1]} : vector<7x28xf32> to vector<6x28xf32>
    %cst_116 = arith.constant dense<0.000000e+00> : vector<6x240xf32>
    %188 = tpu.matmul %187, %1, %cst_116 {dimension_numbers = #tpu.dot_dimension_numbers<[1], [0], [0], [1], [0, 0, 1, 1], [], []>} : vector<6x28xf32>, vector<28x240xf32>, vector<6x240xf32> -> vector<6x240xf32>
    %189 = vector.extract_strided_slice %182 {offsets = [0, 0], sizes = [6, 28], strides = [1, 1]} : vector<7x28xf32> to vector<6x28xf32>
    %cst_117 = arith.constant dense<0.000000e+00> : vector<6x240xf32>
    %190 = tpu.matmul %189, %3, %cst_117 {dimension_numbers = #tpu.dot_dimension_numbers<[1], [0], [0], [1], [0, 0, 1, 1], [], []>} : vector<6x28xf32>, vector<28x240xf32>, vector<6x240xf32> -> vector<6x240xf32>
    %191 = arith.addf %188, %190 : vector<6x240xf32>
    %192 = vector.extract_strided_slice %184 {offsets = [0, 0], sizes = [6, 28], strides = [1, 1]} : vector<7x28xf32> to vector<6x28xf32>
    %cst_118 = arith.constant dense<0.000000e+00> : vector<6x240xf32>
    %193 = tpu.matmul %192, %5, %cst_118 {dimension_numbers = #tpu.dot_dimension_numbers<[1], [0], [0], [1], [0, 0, 1, 1], [], []>} : vector<6x28xf32>, vector<28x240xf32>, vector<6x240xf32> -> vector<6x240xf32>
    %194 = arith.addf %191, %193 : vector<6x240xf32>
    %195 = vector.extract_strided_slice %186 {offsets = [0, 0], sizes = [6, 28], strides = [1, 1]} : vector<7x28xf32> to vector<6x28xf32>
    %cst_119 = arith.constant dense<0.000000e+00> : vector<6x240xf32>
    %196 = tpu.matmul %195, %7, %cst_119 {dimension_numbers = #tpu.dot_dimension_numbers<[1], [0], [0], [1], [0, 0, 1, 1], [], []>} : vector<6x28xf32>, vector<28x240xf32>, vector<6x240xf32> -> vector<6x240xf32>
    %197 = arith.addf %194, %196 : vector<6x240xf32>
    %198 = vector.extract_strided_slice %180 {offsets = [1, 0], sizes = [6, 28], strides = [1, 1]} : vector<7x28xf32> to vector<6x28xf32>
    %cst_120 = arith.constant dense<0.000000e+00> : vector<6x240xf32>
    %199 = tpu.matmul %198, %9, %cst_120 {dimension_numbers = #tpu.dot_dimension_numbers<[1], [0], [0], [1], [0, 0, 1, 1], [], []>} : vector<6x28xf32>, vector<28x240xf32>, vector<6x240xf32> -> vector<6x240xf32>
    %200 = arith.addf %197, %199 : vector<6x240xf32>
    %201 = vector.extract_strided_slice %200 {offsets = [0, 0], sizes = [6, 120], strides = [1, 1]} : vector<6x240xf32> to vector<6x120xf32>
    %202 = vector.extract_strided_slice %200 {offsets = [0, 120], sizes = [6, 120], strides = [1, 1]} : vector<6x240xf32> to vector<6x120xf32>
    %203 = arith.maximumf %201, %202 : vector<6x120xf32>
    %204 = vector.extract_strided_slice %182 {offsets = [0, 0], sizes = [6, 28], strides = [1, 1]} : vector<7x28xf32> to vector<6x28xf32>
    %cst_121 = arith.constant dense<0.000000e+00> : vector<6x240xf32>
    %205 = tpu.matmul %204, %1, %cst_121 {dimension_numbers = #tpu.dot_dimension_numbers<[1], [0], [0], [1], [0, 0, 1, 1], [], []>} : vector<6x28xf32>, vector<28x240xf32>, vector<6x240xf32> -> vector<6x240xf32>
    %206 = vector.extract_strided_slice %184 {offsets = [0, 0], sizes = [6, 28], strides = [1, 1]} : vector<7x28xf32> to vector<6x28xf32>
    %cst_122 = arith.constant dense<0.000000e+00> : vector<6x240xf32>
    %207 = tpu.matmul %206, %3, %cst_122 {dimension_numbers = #tpu.dot_dimension_numbers<[1], [0], [0], [1], [0, 0, 1, 1], [], []>} : vector<6x28xf32>, vector<28x240xf32>, vector<6x240xf32> -> vector<6x240xf32>
    %208 = arith.addf %205, %207 : vector<6x240xf32>
    %209 = vector.extract_strided_slice %186 {offsets = [0, 0], sizes = [6, 28], strides = [1, 1]} : vector<7x28xf32> to vector<6x28xf32>
    %cst_123 = arith.constant dense<0.000000e+00> : vector<6x240xf32>
    %210 = tpu.matmul %209, %5, %cst_123 {dimension_numbers = #tpu.dot_dimension_numbers<[1], [0], [0], [1], [0, 0, 1, 1], [], []>} : vector<6x28xf32>, vector<28x240xf32>, vector<6x240xf32> -> vector<6x240xf32>
    %211 = arith.addf %208, %210 : vector<6x240xf32>
    %212 = vector.extract_strided_slice %180 {offsets = [1, 0], sizes = [6, 28], strides = [1, 1]} : vector<7x28xf32> to vector<6x28xf32>
    %cst_124 = arith.constant dense<0.000000e+00> : vector<6x240xf32>
    %213 = tpu.matmul %212, %7, %cst_124 {dimension_numbers = #tpu.dot_dimension_numbers<[1], [0], [0], [1], [0, 0, 1, 1], [], []>} : vector<6x28xf32>, vector<28x240xf32>, vector<6x240xf32> -> vector<6x240xf32>
    %214 = arith.addf %211, %213 : vector<6x240xf32>
    %215 = vector.extract_strided_slice %182 {offsets = [1, 0], sizes = [6, 28], strides = [1, 1]} : vector<7x28xf32> to vector<6x28xf32>
    %cst_125 = arith.constant dense<0.000000e+00> : vector<6x240xf32>
    %216 = tpu.matmul %215, %9, %cst_125 {dimension_numbers = #tpu.dot_dimension_numbers<[1], [0], [0], [1], [0, 0, 1, 1], [], []>} : vector<6x28xf32>, vector<28x240xf32>, vector<6x240xf32> -> vector<6x240xf32>
    %217 = arith.addf %214, %216 : vector<6x240xf32>
    %218 = vector.extract_strided_slice %217 {offsets = [0, 0], sizes = [6, 120], strides = [1, 1]} : vector<6x240xf32> to vector<6x120xf32>
    %219 = vector.extract_strided_slice %217 {offsets = [0, 120], sizes = [6, 120], strides = [1, 1]} : vector<6x240xf32> to vector<6x120xf32>
    %220 = arith.maximumf %203, %218 : vector<6x120xf32>
    %221 = arith.maximumf %220, %219 : vector<6x120xf32>
    %222 = vector.broadcast %28 : vector<1x120xf32> to vector<6x120xf32>
    %223 = arith.addf %221, %222 : vector<6x120xf32>
    %cst_126 = arith.constant 0.000000e+00 : f32
    %224 = vector.broadcast %cst_126 : f32 to vector<6x120xf32>
    %225 = arith.maximumf %223, %224 : vector<6x120xf32>
    %226 = vector.extract_strided_slice %184 {offsets = [0, 0], sizes = [6, 28], strides = [1, 1]} : vector<7x28xf32> to vector<6x28xf32>
    %cst_127 = arith.constant dense<0.000000e+00> : vector<6x240xf32>
    %227 = tpu.matmul %226, %1, %cst_127 {dimension_numbers = #tpu.dot_dimension_numbers<[1], [0], [0], [1], [0, 0, 1, 1], [], []>} : vector<6x28xf32>, vector<28x240xf32>, vector<6x240xf32> -> vector<6x240xf32>
    %228 = vector.extract_strided_slice %186 {offsets = [0, 0], sizes = [6, 28], strides = [1, 1]} : vector<7x28xf32> to vector<6x28xf32>
    %cst_128 = arith.constant dense<0.000000e+00> : vector<6x240xf32>
    %229 = tpu.matmul %228, %3, %cst_128 {dimension_numbers = #tpu.dot_dimension_numbers<[1], [0], [0], [1], [0, 0, 1, 1], [], []>} : vector<6x28xf32>, vector<28x240xf32>, vector<6x240xf32> -> vector<6x240xf32>
    %230 = arith.addf %227, %229 : vector<6x240xf32>
    %231 = vector.extract_strided_slice %180 {offsets = [1, 0], sizes = [6, 28], strides = [1, 1]} : vector<7x28xf32> to vector<6x28xf32>
    %cst_129 = arith.constant dense<0.000000e+00> : vector<6x240xf32>
    %232 = tpu.matmul %231, %5, %cst_129 {dimension_numbers = #tpu.dot_dimension_numbers<[1], [0], [0], [1], [0, 0, 1, 1], [], []>} : vector<6x28xf32>, vector<28x240xf32>, vector<6x240xf32> -> vector<6x240xf32>
    %233 = arith.addf %230, %232 : vector<6x240xf32>
    %234 = vector.extract_strided_slice %182 {offsets = [1, 0], sizes = [6, 28], strides = [1, 1]} : vector<7x28xf32> to vector<6x28xf32>
    %cst_130 = arith.constant dense<0.000000e+00> : vector<6x240xf32>
    %235 = tpu.matmul %234, %7, %cst_130 {dimension_numbers = #tpu.dot_dimension_numbers<[1], [0], [0], [1], [0, 0, 1, 1], [], []>} : vector<6x28xf32>, vector<28x240xf32>, vector<6x240xf32> -> vector<6x240xf32>
    %236 = arith.addf %233, %235 : vector<6x240xf32>
    %237 = vector.extract_strided_slice %184 {offsets = [1, 0], sizes = [6, 28], strides = [1, 1]} : vector<7x28xf32> to vector<6x28xf32>
    %cst_131 = arith.constant dense<0.000000e+00> : vector<6x240xf32>
    %238 = tpu.matmul %237, %9, %cst_131 {dimension_numbers = #tpu.dot_dimension_numbers<[1], [0], [0], [1], [0, 0, 1, 1], [], []>} : vector<6x28xf32>, vector<28x240xf32>, vector<6x240xf32> -> vector<6x240xf32>
    %239 = arith.addf %236, %238 : vector<6x240xf32>
    %240 = vector.extract_strided_slice %239 {offsets = [0, 0], sizes = [6, 120], strides = [1, 1]} : vector<6x240xf32> to vector<6x120xf32>
    %241 = vector.extract_strided_slice %239 {offsets = [0, 120], sizes = [6, 120], strides = [1, 1]} : vector<6x240xf32> to vector<6x120xf32>
    %242 = arith.maximumf %240, %241 : vector<6x120xf32>
    %243 = vector.extract_strided_slice %186 {offsets = [0, 0], sizes = [6, 28], strides = [1, 1]} : vector<7x28xf32> to vector<6x28xf32>
    %cst_132 = arith.constant dense<0.000000e+00> : vector<6x240xf32>
    %244 = tpu.matmul %243, %1, %cst_132 {dimension_numbers = #tpu.dot_dimension_numbers<[1], [0], [0], [1], [0, 0, 1, 1], [], []>} : vector<6x28xf32>, vector<28x240xf32>, vector<6x240xf32> -> vector<6x240xf32>
    %245 = vector.extract_strided_slice %180 {offsets = [1, 0], sizes = [6, 28], strides = [1, 1]} : vector<7x28xf32> to vector<6x28xf32>
    %cst_133 = arith.constant dense<0.000000e+00> : vector<6x240xf32>
    %246 = tpu.matmul %245, %3, %cst_133 {dimension_numbers = #tpu.dot_dimension_numbers<[1], [0], [0], [1], [0, 0, 1, 1], [], []>} : vector<6x28xf32>, vector<28x240xf32>, vector<6x240xf32> -> vector<6x240xf32>
    %247 = arith.addf %244, %246 : vector<6x240xf32>
    %248 = vector.extract_strided_slice %182 {offsets = [1, 0], sizes = [6, 28], strides = [1, 1]} : vector<7x28xf32> to vector<6x28xf32>
    %cst_134 = arith.constant dense<0.000000e+00> : vector<6x240xf32>
    %249 = tpu.matmul %248, %5, %cst_134 {dimension_numbers = #tpu.dot_dimension_numbers<[1], [0], [0], [1], [0, 0, 1, 1], [], []>} : vector<6x28xf32>, vector<28x240xf32>, vector<6x240xf32> -> vector<6x240xf32>
    %250 = arith.addf %247, %249 : vector<6x240xf32>
    %251 = vector.extract_strided_slice %184 {offsets = [1, 0], sizes = [6, 28], strides = [1, 1]} : vector<7x28xf32> to vector<6x28xf32>
    %cst_135 = arith.constant dense<0.000000e+00> : vector<6x240xf32>
    %252 = tpu.matmul %251, %7, %cst_135 {dimension_numbers = #tpu.dot_dimension_numbers<[1], [0], [0], [1], [0, 0, 1, 1], [], []>} : vector<6x28xf32>, vector<28x240xf32>, vector<6x240xf32> -> vector<6x240xf32>
    %253 = arith.addf %250, %252 : vector<6x240xf32>
    %254 = vector.extract_strided_slice %186 {offsets = [1, 0], sizes = [6, 28], strides = [1, 1]} : vector<7x28xf32> to vector<6x28xf32>
    %cst_136 = arith.constant dense<0.000000e+00> : vector<6x240xf32>
    %255 = tpu.matmul %254, %9, %cst_136 {dimension_numbers = #tpu.dot_dimension_numbers<[1], [0], [0], [1], [0, 0, 1, 1], [], []>} : vector<6x28xf32>, vector<28x240xf32>, vector<6x240xf32> -> vector<6x240xf32>
    %256 = arith.addf %253, %255 : vector<6x240xf32>
    %257 = vector.extract_strided_slice %256 {offsets = [0, 0], sizes = [6, 120], strides = [1, 1]} : vector<6x240xf32> to vector<6x120xf32>
    %258 = vector.extract_strided_slice %256 {offsets = [0, 120], sizes = [6, 120], strides = [1, 1]} : vector<6x240xf32> to vector<6x120xf32>
    %259 = arith.maximumf %242, %257 : vector<6x120xf32>
    %260 = arith.maximumf %259, %258 : vector<6x120xf32>
    %261 = vector.broadcast %28 : vector<1x120xf32> to vector<6x120xf32>
    %262 = arith.addf %260, %261 : vector<6x120xf32>
    %cst_137 = arith.constant 0.000000e+00 : f32
    %263 = vector.broadcast %cst_137 : f32 to vector<6x120xf32>
    %264 = arith.maximumf %262, %263 : vector<6x120xf32>
    %265 = vector.extract_strided_slice %225 {offsets = [0, 0], sizes = [4, 120], strides = [1, 1]} : vector<6x120xf32> to vector<4x120xf32>
    %cst_138 = arith.constant dense<0.000000e+00> : vector<4x160xf32>
    %266 = tpu.matmul %265, %11, %cst_138 {dimension_numbers = #tpu.dot_dimension_numbers<[1], [0], [0], [1], [0, 0, 1, 1], [], []>} : vector<4x120xf32>, vector<120x160xf32>, vector<4x160xf32> -> vector<4x160xf32>
    %267 = vector.extract_strided_slice %264 {offsets = [0, 0], sizes = [4, 120], strides = [1, 1]} : vector<6x120xf32> to vector<4x120xf32>
    %cst_139 = arith.constant dense<0.000000e+00> : vector<4x160xf32>
    %268 = tpu.matmul %267, %13, %cst_139 {dimension_numbers = #tpu.dot_dimension_numbers<[1], [0], [0], [1], [0, 0, 1, 1], [], []>} : vector<4x120xf32>, vector<120x160xf32>, vector<4x160xf32> -> vector<4x160xf32>
    %269 = arith.addf %266, %268 : vector<4x160xf32>
    %270 = vector.extract_strided_slice %225 {offsets = [1, 0], sizes = [4, 120], strides = [1, 1]} : vector<6x120xf32> to vector<4x120xf32>
    %cst_140 = arith.constant dense<0.000000e+00> : vector<4x160xf32>
    %271 = tpu.matmul %270, %15, %cst_140 {dimension_numbers = #tpu.dot_dimension_numbers<[1], [0], [0], [1], [0, 0, 1, 1], [], []>} : vector<4x120xf32>, vector<120x160xf32>, vector<4x160xf32> -> vector<4x160xf32>
    %272 = arith.addf %269, %271 : vector<4x160xf32>
    %273 = vector.extract_strided_slice %264 {offsets = [1, 0], sizes = [4, 120], strides = [1, 1]} : vector<6x120xf32> to vector<4x120xf32>
    %cst_141 = arith.constant dense<0.000000e+00> : vector<4x160xf32>
    %274 = tpu.matmul %273, %17, %cst_141 {dimension_numbers = #tpu.dot_dimension_numbers<[1], [0], [0], [1], [0, 0, 1, 1], [], []>} : vector<4x120xf32>, vector<120x160xf32>, vector<4x160xf32> -> vector<4x160xf32>
    %275 = arith.addf %272, %274 : vector<4x160xf32>
    %276 = vector.extract_strided_slice %225 {offsets = [2, 0], sizes = [4, 120], strides = [1, 1]} : vector<6x120xf32> to vector<4x120xf32>
    %cst_142 = arith.constant dense<0.000000e+00> : vector<4x160xf32>
    %277 = tpu.matmul %276, %19, %cst_142 {dimension_numbers = #tpu.dot_dimension_numbers<[1], [0], [0], [1], [0, 0, 1, 1], [], []>} : vector<4x120xf32>, vector<120x160xf32>, vector<4x160xf32> -> vector<4x160xf32>
    %278 = arith.addf %275, %277 : vector<4x160xf32>
    %279 = vector.extract_strided_slice %278 {offsets = [0, 0], sizes = [4, 80], strides = [1, 1]} : vector<4x160xf32> to vector<4x80xf32>
    %280 = vector.extract_strided_slice %278 {offsets = [0, 80], sizes = [4, 80], strides = [1, 1]} : vector<4x160xf32> to vector<4x80xf32>
    %281 = arith.maximumf %279, %280 : vector<4x80xf32>
    %282 = vector.extract_strided_slice %264 {offsets = [0, 0], sizes = [4, 120], strides = [1, 1]} : vector<6x120xf32> to vector<4x120xf32>
    %cst_143 = arith.constant dense<0.000000e+00> : vector<4x160xf32>
    %283 = tpu.matmul %282, %11, %cst_143 {dimension_numbers = #tpu.dot_dimension_numbers<[1], [0], [0], [1], [0, 0, 1, 1], [], []>} : vector<4x120xf32>, vector<120x160xf32>, vector<4x160xf32> -> vector<4x160xf32>
    %284 = vector.extract_strided_slice %225 {offsets = [1, 0], sizes = [4, 120], strides = [1, 1]} : vector<6x120xf32> to vector<4x120xf32>
    %cst_144 = arith.constant dense<0.000000e+00> : vector<4x160xf32>
    %285 = tpu.matmul %284, %13, %cst_144 {dimension_numbers = #tpu.dot_dimension_numbers<[1], [0], [0], [1], [0, 0, 1, 1], [], []>} : vector<4x120xf32>, vector<120x160xf32>, vector<4x160xf32> -> vector<4x160xf32>
    %286 = arith.addf %283, %285 : vector<4x160xf32>
    %287 = vector.extract_strided_slice %264 {offsets = [1, 0], sizes = [4, 120], strides = [1, 1]} : vector<6x120xf32> to vector<4x120xf32>
    %cst_145 = arith.constant dense<0.000000e+00> : vector<4x160xf32>
    %288 = tpu.matmul %287, %15, %cst_145 {dimension_numbers = #tpu.dot_dimension_numbers<[1], [0], [0], [1], [0, 0, 1, 1], [], []>} : vector<4x120xf32>, vector<120x160xf32>, vector<4x160xf32> -> vector<4x160xf32>
    %289 = arith.addf %286, %288 : vector<4x160xf32>
    %290 = vector.extract_strided_slice %225 {offsets = [2, 0], sizes = [4, 120], strides = [1, 1]} : vector<6x120xf32> to vector<4x120xf32>
    %cst_146 = arith.constant dense<0.000000e+00> : vector<4x160xf32>
    %291 = tpu.matmul %290, %17, %cst_146 {dimension_numbers = #tpu.dot_dimension_numbers<[1], [0], [0], [1], [0, 0, 1, 1], [], []>} : vector<4x120xf32>, vector<120x160xf32>, vector<4x160xf32> -> vector<4x160xf32>
    %292 = arith.addf %289, %291 : vector<4x160xf32>
    %293 = vector.extract_strided_slice %264 {offsets = [2, 0], sizes = [4, 120], strides = [1, 1]} : vector<6x120xf32> to vector<4x120xf32>
    %cst_147 = arith.constant dense<0.000000e+00> : vector<4x160xf32>
    %294 = tpu.matmul %293, %19, %cst_147 {dimension_numbers = #tpu.dot_dimension_numbers<[1], [0], [0], [1], [0, 0, 1, 1], [], []>} : vector<4x120xf32>, vector<120x160xf32>, vector<4x160xf32> -> vector<4x160xf32>
    %295 = arith.addf %292, %294 : vector<4x160xf32>
    %296 = vector.extract_strided_slice %295 {offsets = [0, 0], sizes = [4, 80], strides = [1, 1]} : vector<4x160xf32> to vector<4x80xf32>
    %297 = vector.extract_strided_slice %295 {offsets = [0, 80], sizes = [4, 80], strides = [1, 1]} : vector<4x160xf32> to vector<4x80xf32>
    %298 = arith.maximumf %281, %296 : vector<4x80xf32>
    %299 = arith.maximumf %298, %297 : vector<4x80xf32>
    %300 = vector.broadcast %29 : vector<1x80xf32> to vector<4x80xf32>
    %301 = arith.addf %299, %300 : vector<4x80xf32>
    %cst_148 = arith.constant 0.000000e+00 : f32
    %302 = vector.broadcast %cst_148 : f32 to vector<4x80xf32>
    %303 = arith.maximumf %301, %302 : vector<4x80xf32>
    %304 = vector.extract_strided_slice %303 {offsets = [0, 0], sizes = [1, 80], strides = [1, 1]} : vector<4x80xf32> to vector<1x80xf32>
    %cst_149 = arith.constant dense<0.000000e+00> : vector<1x160xf32>
    %305 = tpu.matmul %304, %21, %cst_149 {dimension_numbers = #tpu.dot_dimension_numbers<[1], [0], [0], [1], [0, 0, 1, 1], [], []>} : vector<1x80xf32>, vector<80x160xf32>, vector<1x160xf32> -> vector<1x160xf32>
    %306 = arith.addf %32, %305 : vector<1x160xf32>
    %307 = vector.extract_strided_slice %303 {offsets = [1, 0], sizes = [1, 80], strides = [1, 1]} : vector<4x80xf32> to vector<1x80xf32>
    %cst_150 = arith.constant dense<0.000000e+00> : vector<1x160xf32>
    %308 = tpu.matmul %307, %23, %cst_150 {dimension_numbers = #tpu.dot_dimension_numbers<[1], [0], [0], [1], [0, 0, 1, 1], [], []>} : vector<1x80xf32>, vector<80x160xf32>, vector<1x160xf32> -> vector<1x160xf32>
    %309 = arith.addf %306, %308 : vector<1x160xf32>
    %310 = vector.extract_strided_slice %303 {offsets = [2, 0], sizes = [1, 80], strides = [1, 1]} : vector<4x80xf32> to vector<1x80xf32>
    %cst_151 = arith.constant dense<0.000000e+00> : vector<1x160xf32>
    %311 = tpu.matmul %310, %25, %cst_151 {dimension_numbers = #tpu.dot_dimension_numbers<[1], [0], [0], [1], [0, 0, 1, 1], [], []>} : vector<1x80xf32>, vector<80x160xf32>, vector<1x160xf32> -> vector<1x160xf32>
    %312 = arith.addf %309, %311 : vector<1x160xf32>
    %313 = vector.extract_strided_slice %303 {offsets = [3, 0], sizes = [1, 80], strides = [1, 1]} : vector<4x80xf32> to vector<1x80xf32>
    %cst_152 = arith.constant dense<0.000000e+00> : vector<1x160xf32>
    %314 = tpu.matmul %313, %27, %cst_152 {dimension_numbers = #tpu.dot_dimension_numbers<[1], [0], [0], [1], [0, 0, 1, 1], [], []>} : vector<1x80xf32>, vector<80x160xf32>, vector<1x160xf32> -> vector<1x160xf32>
    %315 = arith.addf %312, %314 : vector<1x160xf32>
    %cst_153 = arith.constant dense<0.000000e+00> : vector<1x80xf32>
    %316 = tpu.matmul %315, %30, %cst_153 {dimension_numbers = #tpu.dot_dimension_numbers<[1], [0], [0], [1], [0, 0, 1, 1], [], []>} : vector<1x160xf32>, vector<160x80xf32>, vector<1x80xf32> -> vector<1x80xf32>
    %317 = arith.addf %316, %33 : vector<1x80xf32>
    %cst_154 = arith.constant dense<0.000000e+00> : vector<1x10xf32>
    %318 = tpu.matmul %317, %31, %cst_154 {dimension_numbers = #tpu.dot_dimension_numbers<[1], [0], [0], [1], [0, 0, 1, 1], [], []>} : vector<1x80xf32>, vector<80x10xf32>, vector<1x10xf32> -> vector<1x10xf32>
    %319 = arith.addf %318, %34 : vector<1x10xf32>
    %c1_155 = arith.constant 1 : index
    %c0_156 = arith.constant 0 : index
    %c0_157 = arith.constant 0 : index
    %320 = vector.load %arg15[%c1_155, %c0_156, %c0_157] : memref<2x1x10xf32, #tpu.memory_space<vmem>>, vector<1x1x10xf32>
    %321 = vector.shape_cast %320 : vector<1x1x10xf32> to vector<1x10xf32>
    %322 = vector.shape_cast %319 : vector<1x10xf32> to vector<1x1x10xf32>
    tpu.vector_store %arg15[%c1_155, %c0_156, %c0_157], %322 {strides = array<i32>} : memref<2x1x10xf32, #tpu.memory_space<vmem>>, vector<1x1x10xf32>,
    return
  }
  func.func @transform_0(%arg0: i32) -> (i32, i32, i32) {
    %c0_i32 = arith.constant 0 : i32
    %c0_i32_0 = arith.constant 0 : i32
    %c0_i32_1 = arith.constant 0 : i32
    return %arg0, %c0_i32, %c0_i32_0 : i32, i32, i32
  }
  func.func @transform_1(%arg0: i32) -> (i32, i32, i32) {
    %c0_i32 = arith.constant 0 : i32
    %c0_i32_0 = arith.constant 0 : i32
    %c0_i32_1 = arith.constant 0 : i32
    return %arg0, %c0_i32, %c0_i32_0 : i32, i32, i32
  }
  func.func @transform_2(%arg0: i32) -> (i32, i32, i32) {
    %c0_i32 = arith.constant 0 : i32
    %c0_i32_0 = arith.constant 0 : i32
    %c0_i32_1 = arith.constant 0 : i32
    return %arg0, %c0_i32, %c0_i32_0 : i32, i32, i32
  }
  func.func @transform_3(%arg0: i32) -> (i32, i32, i32) {
    %c0_i32 = arith.constant 0 : i32
    %c0_i32_0 = arith.constant 0 : i32
    %c0_i32_1 = arith.constant 0 : i32
    return %arg0, %c0_i32, %c0_i32_0 : i32, i32, i32
  }
  func.func @transform_4(%arg0: i32) -> (i32, i32, i32) {
    %c0_i32 = arith.constant 0 : i32
    %c0_i32_0 = arith.constant 0 : i32
    %c0_i32_1 = arith.constant 0 : i32
    %c0_i32_2 = arith.constant 0 : i32
    return %c0_i32, %c0_i32_0, %c0_i32_1 : i32, i32, i32
  }
  func.func @transform_5(%arg0: i32) -> (i32, i32, i32) {
    %c0_i32 = arith.constant 0 : i32
    %c0_i32_0 = arith.constant 0 : i32
    %c0_i32_1 = arith.constant 0 : i32
    %c0_i32_2 = arith.constant 0 : i32
    return %c0_i32, %c0_i32_0, %c0_i32_1 : i32, i32, i32
  }
  func.func @transform_6(%arg0: i32) -> (i32, i32) {
    %c0_i32 = arith.constant 0 : i32
    %c0_i32_0 = arith.constant 0 : i32
    %c0_i32_1 = arith.constant 0 : i32
    return %c0_i32, %c0_i32_0 : i32, i32
  }
  func.func @transform_7(%arg0: i32) -> (i32, i32) {
    %c0_i32 = arith.constant 0 : i32
    %c0_i32_0 = arith.constant 0 : i32
    %c0_i32_1 = arith.constant 0 : i32
    return %c0_i32, %c0_i32_0 : i32, i32
  }
  func.func @transform_8(%arg0: i32) -> (i32, i32, i32) {
    %c0_i32 = arith.constant 0 : i32
    %c0_i32_0 = arith.constant 0 : i32
    %c0_i32_1 = arith.constant 0 : i32
    %c0_i32_2 = arith.constant 0 : i32
    return %c0_i32, %c0_i32_0, %c0_i32_1 : i32, i32, i32
  }
  func.func @transform_9(%arg0: i32) -> (i32, i32) {
    %c0_i32 = arith.constant 0 : i32
    %c0_i32_0 = arith.constant 0 : i32
    %c0_i32_1 = arith.constant 0 : i32
    return %c0_i32, %c0_i32_0 : i32, i32
  }
  func.func @transform_10(%arg0: i32) -> (i32, i32) {
    %c0_i32 = arith.constant 0 : i32
    %c0_i32_0 = arith.constant 0 : i32
    %c0_i32_1 = arith.constant 0 : i32
    return %c0_i32, %c0_i32_0 : i32, i32
  }
  func.func @transform_11(%arg0: i32) -> (i32, i32) {
    %c0_i32 = arith.constant 0 : i32
    %c0_i32_0 = arith.constant 0 : i32
    %c0_i32_1 = arith.constant 0 : i32
    return %c0_i32, %c0_i32_0 : i32, i32
  }
  func.func @transform_12(%arg0: i32) -> (i32, i32) {
    %c0_i32 = arith.constant 0 : i32
    %c0_i32_0 = arith.constant 0 : i32
    %c0_i32_1 = arith.constant 0 : i32
    return %c0_i32, %c0_i32_0 : i32, i32
  }
  func.func @transform_13(%arg0: i32) -> (i32, i32) {
    %c0_i32 = arith.constant 0 : i32
    %c0_i32_0 = arith.constant 0 : i32
    %c0_i32_1 = arith.constant 0 : i32
    return %c0_i32, %c0_i32_0 : i32, i32
  }
  func.func @transform_14(%arg0: i32) -> (i32, i32, i32) {
    %c0_i32 = arith.constant 0 : i32
    %c0_i32_0 = arith.constant 0 : i32
    %c0_i32_1 = arith.constant 0 : i32
    return %arg0, %c0_i32, %c0_i32_0 : i32, i32, i32
  }
}

</mosaic_0001>

<llo_original>
// kernel: tpu_custom_call.1
$region0: #{tpu_custom_call.1}
  #allocation0 [shape = 'u32[]', space=smem, size = 0x4, offset = 0x4, fixed_abs, tag = 'smem constant byte address 0x4 - core index']
  #allocation1 [shape = 'u32[144,128]{1,0:T(1,128)}', space=vmem, size = 0x12000, scoped, tag = 'internal scratch']
  %s0 = inlined_call_operand.vmem [shape: f32[2,7,28], index: 0, kind: input, shape index: {}]
  %s1 = inlined_call_operand.vmem [shape: f32[2,7,28], index: 1, kind: input, shape index: {}]
  %s2 = inlined_call_operand.vmem [shape: f32[2,7,28], index: 2, kind: input, shape index: {}]
  %s3 = inlined_call_operand.vmem [shape: f32[2,7,28], index: 3, kind: input, shape index: {}]
  %s4 = inlined_call_operand.vmem [shape: f32[5,28,240], index: 4, kind: input, shape index: {}]
  %s5 = inlined_call_operand.vmem [shape: f32[5,120,160], index: 5, kind: input, shape index: {}]
  %s6 = inlined_call_operand.vmem [shape: f32[1,120], index: 6, kind: input, shape index: {}]
  %s7 = inlined_call_operand.vmem [shape: f32[1,80], index: 7, kind: input, shape index: {}]
  %s8 = inlined_call_operand.vmem [shape: f32[4,80,160], index: 8, kind: input, shape index: {}]
  %s9 = inlined_call_operand.vmem [shape: f32[1,160], index: 9, kind: input, shape index: {}]
  %s10 = inlined_call_operand.vmem [shape: f32[160,80], index: 10, kind: input, shape index: {}]
  %s11 = inlined_call_operand.vmem [shape: f32[1,80], index: 11, kind: input, shape index: {}]
  %s12 = inlined_call_operand.vmem [shape: f32[80,10], index: 12, kind: input, shape index: {}]
  %s13 = inlined_call_operand.vmem [shape: f32[1,10], index: 13, kind: input, shape index: {}]
  %s14 = inlined_call_operand.hbm [shape: f32[2,1,10], index: 14, kind: output, shape index: {}]
  %s15 = sld [smem:[#allocation0]]
  $region66: #{tpu_custom_call.1} parent=0
    _
  %s17 = ssub.s32 1, %s15
  %s18 = scalar_select 0, %s17, %s15
  $region1: #{tpu_custom_call.1} parent=0
    #allocation2 [shape = 'u8[1024]{0}', space=vmem, size = 0x400, scoped, tag = 'output window, operand 0, single buffered']
    #allocation3 [shape = 's32[1]{0}', space=sflag, size = 0x4, scoped, tag = 'scoped memory for tpu_custom_call.1']
    %19 = vsyncpa [#allocation3], 0
    // Predicated region
    $region2: #{tpu_custom_call.1} parent=1 // pred_check
      _
    $region3: #{tpu_custom_call.1} parent=1 // pred_check_branch
      %21 = sbr.rel (0) target = $region5
    $region4: #{tpu_custom_call.1} parent=1 // pred_region
      _
    $region5: #{tpu_custom_call.1} parent=1 // pred_fallthru
      _
    // Predicated region
    $region6: #{tpu_custom_call.1} parent=1 // pred_check
      _
    $region7: #{tpu_custom_call.1} parent=1 // pred_check_branch
      %23 = sbr.rel (0) target = $region9
    $region8: #{tpu_custom_call.1} parent=1 // pred_region
      _
    $region9: #{tpu_custom_call.1} parent=1 // pred_fallthru
      _
    // Predicated region
    $region10: #{tpu_custom_call.1} parent=1 // pred_check
      _
    $region11: #{tpu_custom_call.1} parent=1 // pred_check_branch
      %25 = sbr.rel (0) target = $region13
    $region12: #{tpu_custom_call.1} parent=1 // pred_region
      _
    $region13: #{tpu_custom_call.1} parent=1 // pred_fallthru
      _
    // Predicated region
    $region14: #{tpu_custom_call.1} parent=1 // pred_check
      _
    $region15: #{tpu_custom_call.1} parent=1 // pred_check_branch
      %27 = sbr.rel (0) target = $region17
    $region16: #{tpu_custom_call.1} parent=1 // pred_region
      _
    $region17: #{tpu_custom_call.1} parent=1 // pred_fallthru
      _
    // Predicated region
    $region18: #{tpu_custom_call.1} parent=1 // pred_check
      _
    $region19: #{tpu_custom_call.1} parent=1 // pred_check_branch
      %29 = sbr.rel (0) target = $region21
    $region20: #{tpu_custom_call.1} parent=1 // pred_region
      _
    $region21: #{tpu_custom_call.1} parent=1 // pred_fallthru
      _
    // Predicated region
    $region22: #{tpu_custom_call.1} parent=1 // pred_check
      _
    $region23: #{tpu_custom_call.1} parent=1 // pred_check_branch
      %31 = sbr.rel (0) target = $region25
    $region24: #{tpu_custom_call.1} parent=1 // pred_region
      _
    $region25: #{tpu_custom_call.1} parent=1 // pred_fallthru
      _
    // Predicated region
    $region26: #{tpu_custom_call.1} parent=1 // pred_check
      _
    $region27: #{tpu_custom_call.1} parent=1 // pred_check_branch
      %33 = sbr.rel (0) target = $region29
    $region28: #{tpu_custom_call.1} parent=1 // pred_region
      _
    $region29: #{tpu_custom_call.1} parent=1 // pred_fallthru
      _
    // Predicated region
    $region30: #{tpu_custom_call.1} parent=1 // pred_check
      _
    $region31: #{tpu_custom_call.1} parent=1 // pred_check_branch
      %35 = sbr.rel (0) target = $region33
    $region32: #{tpu_custom_call.1} parent=1 // pred_region
      _
    $region33: #{tpu_custom_call.1} parent=1 // pred_fallthru
      _
    // Predicated region
    $region34: #{tpu_custom_call.1} parent=1 // pred_check
      _
    $region35: #{tpu_custom_call.1} parent=1 // pred_check_branch
      %37 = sbr.rel (0) target = $region37
    $region36: #{tpu_custom_call.1} parent=1 // pred_region
      _
    $region37: #{tpu_custom_call.1} parent=1 // pred_fallthru
      _
    // Predicated region
    $region38: #{tpu_custom_call.1} parent=1 // pred_check
      _
    $region39: #{tpu_custom_call.1} parent=1 // pred_check_branch
      %39 = sbr.rel (0) target = $region41
    $region40: #{tpu_custom_call.1} parent=1 // pred_region
      _
    $region41: #{tpu_custom_call.1} parent=1 // pred_fallthru
      _
    // Predicated region
    $region42: #{tpu_custom_call.1} parent=1 // pred_check
      _
    $region43: #{tpu_custom_call.1} parent=1 // pred_check_branch
      %41 = sbr.rel (0) target = $region45
    $region44: #{tpu_custom_call.1} parent=1 // pred_region
      _
    $region45: #{tpu_custom_call.1} parent=1 // pred_fallthru
      _
    // Predicated region
    $region46: #{tpu_custom_call.1} parent=1 // pred_check
      _
    $region47: #{tpu_custom_call.1} parent=1 // pred_check_branch
      %43 = sbr.rel (0) target = $region49
    $region48: #{tpu_custom_call.1} parent=1 // pred_region
      _
    $region49: #{tpu_custom_call.1} parent=1 // pred_fallthru
      _
    // Predicated region
    $region50: #{tpu_custom_call.1} parent=1 // pred_check
      _
    $region51: #{tpu_custom_call.1} parent=1 // pred_check_branch
      %45 = sbr.rel (0) target = $region53
    $region52: #{tpu_custom_call.1} parent=1 // pred_region
      _
    $region53: #{tpu_custom_call.1} parent=1 // pred_fallthru
      _
    // Predicated region
    $region54: #{tpu_custom_call.1} parent=1 // pred_check
      _
    $region55: #{tpu_custom_call.1} parent=1 // pred_check_branch
      %47 = sbr.rel (0) target = $region57
    $region56: #{tpu_custom_call.1} parent=1 // pred_region
      _
    $region57: #{tpu_custom_call.1} parent=1 // pred_fallthru
      _
    %v48 = vld [vmem:[%s4] sm:$0xff]
    %v49 = vld [vmem:[%s4 + $0x8] sm:$0xff]
    %v50 = vld [vmem:[%s4 + $0x10] sm:$0xff]
    %v51 = vld [vmem:[%s4 + $0x18] sm:$0xff]
    %v52 = vld [vmem:[%s4 + $0x20] sm:$0xff]
    %v53 = vld [vmem:[%s4 + $0x28] sm:$0xff]
    %v54 = vld [vmem:[%s4 + $0x30] sm:$0xf]
    %v55 = vld [vmem:[%s4 + $0x38] sm:$0xf]
    %s56 = scalar_lea.vmem %s4, 64
    %v57 = vld [vmem:[%s56] sm:$0xff]
    %v58 = vld [vmem:[%s56 + $0x8] sm:$0xff]
    %v59 = vld [vmem:[%s56 + $0x10] sm:$0xff]
    %v60 = vld [vmem:[%s56 + $0x18] sm:$0xff]
    %v61 = vld [vmem:[%s56 + $0x20] sm:$0xff]
    %v62 = vld [vmem:[%s56 + $0x28] sm:$0xff]
    %v63 = vld [vmem:[%s56 + $0x30] sm:$0xf]
    %v64 = vld [vmem:[%s56 + $0x38] sm:$0xf]
    %s65 = scalar_lea.vmem %s4, 128
    %v66 = vld [vmem:[%s65] sm:$0xff]
    %v67 = vld [vmem:[%s65 + $0x8] sm:$0xff]
    %v68 = vld [vmem:[%s65 + $0x10] sm:$0xff]
    %v69 = vld [vmem:[%s65 + $0x18] sm:$0xff]
    %v70 = vld [vmem:[%s65 + $0x20] sm:$0xff]
    %v71 = vld [vmem:[%s65 + $0x28] sm:$0xff]
    %v72 = vld [vmem:[%s65 + $0x30] sm:$0xf]
    %v73 = vld [vmem:[%s65 + $0x38] sm:$0xf]
    %s74 = scalar_lea.vmem %s4, 192
    %v75 = vld [vmem:[%s74] sm:$0xff]
    %v76 = vld [vmem:[%s74 + $0x8] sm:$0xff]
    %v77 = vld [vmem:[%s74 + $0x10] sm:$0xff]
    %v78 = vld [vmem:[%s74 + $0x18] sm:$0xff]
    %v79 = vld [vmem:[%s74 + $0x20] sm:$0xff]
    %v80 = vld [vmem:[%s74 + $0x28] sm:$0xff]
    %v81 = vld [vmem:[%s74 + $0x30] sm:$0xf]
    %v82 = vld [vmem:[%s74 + $0x38] sm:$0xf]
    %s83 = scalar_lea.vmem %s4, 256
    %v84 = vld [vmem:[%s83] sm:$0xff]
    %v85 = vld [vmem:[%s83 + $0x8] sm:$0xff]
    %v86 = vld [vmem:[%s83 + $0x10] sm:$0xff]
    %v87 = vld [vmem:[%s83 + $0x18] sm:$0xff]
    %v88 = vld [vmem:[%s83 + $0x20] sm:$0xff]
    %v89 = vld [vmem:[%s83 + $0x28] sm:$0xff]
    %v90 = vld [vmem:[%s83 + $0x30] sm:$0xf]
    %v91 = vld [vmem:[%s83 + $0x38] sm:$0xf]
    %v92 = vld [vmem:[%s5] sm:$0xff]
    %v93 = vld [vmem:[%s5 + $0x8] sm:$0xff]
    %v94 = vld [vmem:[%s5 + $0x10] sm:$0xff]
    %v95 = vld [vmem:[%s5 + $0x18] sm:$0xff]
    %v96 = vld [vmem:[%s5 + $0x20] sm:$0xff]
    %v97 = vld [vmem:[%s5 + $0x28] sm:$0xff]
    %v98 = vld [vmem:[%s5 + $0x30] sm:$0xff]
    %v99 = vld [vmem:[%s5 + $0x38] sm:$0xff]
    %v100 = vld [vmem:[%s5 + $0x40] sm:$0xff]
    %v101 = vld [vmem:[%s5 + $0x48] sm:$0xff]
    %v102 = vld [vmem:[%s5 + $0x50] sm:$0xff]
    %v103 = vld [vmem:[%s5 + $0x58] sm:$0xff]
    %v104 = vld [vmem:[%s5 + $0x60] sm:$0xff]
    %v105 = vld [vmem:[%s5 + $0x68] sm:$0xff]
    %v106 = vld [vmem:[%s5 + $0x70] sm:$0xff]
    %v107 = vld [vmem:[%s5 + $0x78] sm:$0xff]
    %v108 = vld [vmem:[%s5 + $0x80] sm:$0xff]
    %v109 = vld [vmem:[%s5 + $0x88] sm:$0xff]
    %v110 = vld [vmem:[%s5 + $0x90] sm:$0xff]
    %v111 = vld [vmem:[%s5 + $0x98] sm:$0xff]
    %v112 = vld [vmem:[%s5 + $0xa0] sm:$0xff]
    %v113 = vld [vmem:[%s5 + $0xa8] sm:$0xff]
    %v114 = vld [vmem:[%s5 + $0xb0] sm:$0xff]
    %v115 = vld [vmem:[%s5 + $0xb8] sm:$0xff]
    %v116 = vld [vmem:[%s5 + $0xc0] sm:$0xff]
    %v117 = vld [vmem:[%s5 + $0xc8] sm:$0xff]
    %v118 = vld [vmem:[%s5 + $0xd0] sm:$0xff]
    %v119 = vld [vmem:[%s5 + $0xd8] sm:$0xff]
    %v120 = vld [vmem:[%s5 + $0xe0] sm:$0xff]
    %v121 = vld [vmem:[%s5 + $0xe8] sm:$0xff]
    %s122 = scalar_lea.vmem %s5, 240
    %v123 = vld [vmem:[%s122] sm:$0xff]
    %v124 = vld [vmem:[%s122 + $0x8] sm:$0xff]
    %v125 = vld [vmem:[%s122 + $0x10] sm:$0xff]
    %v126 = vld [vmem:[%s122 + $0x18] sm:$0xff]
    %v127 = vld [vmem:[%s122 + $0x20] sm:$0xff]
    %v128 = vld [vmem:[%s122 + $0x28] sm:$0xff]
    %v129 = vld [vmem:[%s122 + $0x30] sm:$0xff]
    %v130 = vld [vmem:[%s122 + $0x38] sm:$0xff]
    %v131 = vld [vmem:[%s122 + $0x40] sm:$0xff]
    %v132 = vld [vmem:[%s122 + $0x48] sm:$0xff]
    %v133 = vld [vmem:[%s122 + $0x50] sm:$0xff]
    %v134 = vld [vmem:[%s122 + $0x58] sm:$0xff]
    %v135 = vld [vmem:[%s122 + $0x60] sm:$0xff]
    %v136 = vld [vmem:[%s122 + $0x68] sm:$0xff]
    %v137 = vld [vmem:[%s122 + $0x70] sm:$0xff]
    %v138 = vld [vmem:[%s122 + $0x78] sm:$0xff]
    %v139 = vld [vmem:[%s122 + $0x80] sm:$0xff]
    %v140 = vld [vmem:[%s122 + $0x88] sm:$0xff]
    %v141 = vld [vmem:[%s122 + $0x90] sm:$0xff]
    %v142 = vld [vmem:[%s122 + $0x98] sm:$0xff]
    %v143 = vld [vmem:[%s122 + $0xa0] sm:$0xff]
    %v144 = vld [vmem:[%s122 + $0xa8] sm:$0xff]
    %v145 = vld [vmem:[%s122 + $0xb0] sm:$0xff]
    %v146 = vld [vmem:[%s122 + $0xb8] sm:$0xff]
    %v147 = vld [vmem:[%s122 + $0xc0] sm:$0xff]
    %v148 = vld [vmem:[%s122 + $0xc8] sm:$0xff]
    %v149 = vld [vmem:[%s122 + $0xd0] sm:$0xff]
    %v150 = vld [vmem:[%s122 + $0xd8] sm:$0xff]
    %v151 = vld [vmem:[%s122 + $0xe0] sm:$0xff]
    %v152 = vld [vmem:[%s122 + $0xe8] sm:$0xff]
    %s153 = scalar_lea.vmem %s5, 480
    %v154 = vld [vmem:[%s153] sm:$0xff]
    %v155 = vld [vmem:[%s153 + $0x8] sm:$0xff]
    %v156 = vld [vmem:[%s153 + $0x10] sm:$0xff]
    %v157 = vld [vmem:[%s153 + $0x18] sm:$0xff]
    %v158 = vld [vmem:[%s153 + $0x20] sm:$0xff]
    %v159 = vld [vmem:[%s153 + $0x28] sm:$0xff]
    %v160 = vld [vmem:[%s153 + $0x30] sm:$0xff]
    %v161 = vld [vmem:[%s153 + $0x38] sm:$0xff]
    %v162 = vld [vmem:[%s153 + $0x40] sm:$0xff]
    %v163 = vld [vmem:[%s153 + $0x48] sm:$0xff]
    %v164 = vld [vmem:[%s153 + $0x50] sm:$0xff]
    %v165 = vld [vmem:[%s153 + $0x58] sm:$0xff]
    %v166 = vld [vmem:[%s153 + $0x60] sm:$0xff]
    %v167 = vld [vmem:[%s153 + $0x68] sm:$0xff]
    %v168 = vld [vmem:[%s153 + $0x70] sm:$0xff]
    %v169 = vld [vmem:[%s153 + $0x78] sm:$0xff]
    %v170 = vld [vmem:[%s153 + $0x80] sm:$0xff]
    %v171 = vld [vmem:[%s153 + $0x88] sm:$0xff]
    %v172 = vld [vmem:[%s153 + $0x90] sm:$0xff]
    %v173 = vld [vmem:[%s153 + $0x98] sm:$0xff]
    %v174 = vld [vmem:[%s153 + $0xa0] sm:$0xff]
    %v175 = vld [vmem:[%s153 + $0xa8] sm:$0xff]
    %v176 = vld [vmem:[%s153 + $0xb0] sm:$0xff]
    %v177 = vld [vmem:[%s153 + $0xb8] sm:$0xff]
    %v178 = vld [vmem:[%s153 + $0xc0] sm:$0xff]
    %v179 = vld [vmem:[%s153 + $0xc8] sm:$0xff]
    %v180 = vld [vmem:[%s153 + $0xd0] sm:$0xff]
    %v181 = vld [vmem:[%s153 + $0xd8] sm:$0xff]
    %v182 = vld [vmem:[%s153 + $0xe0] sm:$0xff]
    %v183 = vld [vmem:[%s153 + $0xe8] sm:$0xff]
    %s184 = scalar_lea.vmem %s5, 720
    %v185 = vld [vmem:[%s184] sm:$0xff]
    %v186 = vld [vmem:[%s184 + $0x8] sm:$0xff]
    %v187 = vld [vmem:[%s184 + $0x10] sm:$0xff]
    %v188 = vld [vmem:[%s184 + $0x18] sm:$0xff]
    %v189 = vld [vmem:[%s184 + $0x20] sm:$0xff]
    %v190 = vld [vmem:[%s184 + $0x28] sm:$0xff]
    %v191 = vld [vmem:[%s184 + $0x30] sm:$0xff]
    %v192 = vld [vmem:[%s184 + $0x38] sm:$0xff]
    %v193 = vld [vmem:[%s184 + $0x40] sm:$0xff]
    %v194 = vld [vmem:[%s184 + $0x48] sm:$0xff]
    %v195 = vld [vmem:[%s184 + $0x50] sm:$0xff]
    %v196 = vld [vmem:[%s184 + $0x58] sm:$0xff]
    %v197 = vld [vmem:[%s184 + $0x60] sm:$0xff]
    %v198 = vld [vmem:[%s184 + $0x68] sm:$0xff]
    %v199 = vld [vmem:[%s184 + $0x70] sm:$0xff]
    %v200 = vld [vmem:[%s184 + $0x78] sm:$0xff]
    %v201 = vld [vmem:[%s184 + $0x80] sm:$0xff]
    %v202 = vld [vmem:[%s184 + $0x88] sm:$0xff]
    %v203 = vld [vmem:[%s184 + $0x90] sm:$0xff]
    %v204 = vld [vmem:[%s184 + $0x98] sm:$0xff]
    %v205 = vld [vmem:[%s184 + $0xa0] sm:$0xff]
    %v206 = vld [vmem:[%s184 + $0xa8] sm:$0xff]
    %v207 = vld [vmem:[%s184 + $0xb0] sm:$0xff]
    %v208 = vld [vmem:[%s184 + $0xb8] sm:$0xff]
    %v209 = vld [vmem:[%s184 + $0xc0] sm:$0xff]
    %v210 = vld [vmem:[%s184 + $0xc8] sm:$0xff]
    %v211 = vld [vmem:[%s184 + $0xd0] sm:$0xff]
    %v212 = vld [vmem:[%s184 + $0xd8] sm:$0xff]
    %v213 = vld [vmem:[%s184 + $0xe0] sm:$0xff]
    %v214 = vld [vmem:[%s184 + $0xe8] sm:$0xff]
    %s215 = scalar_lea.vmem %s5, 960
    %v216 = vld [vmem:[%s215] sm:$0xff]
    %v217 = vld [vmem:[%s215 + $0x8] sm:$0xff]
    %v218 = vld [vmem:[%s215 + $0x10] sm:$0xff]
    %v219 = vld [vmem:[%s215 + $0x18] sm:$0xff]
    %v220 = vld [vmem:[%s215 + $0x20] sm:$0xff]
    %v221 = vld [vmem:[%s215 + $0x28] sm:$0xff]
    %v222 = vld [vmem:[%s215 + $0x30] sm:$0xff]
    %v223 = vld [vmem:[%s215 + $0x38] sm:$0xff]
    %v224 = vld [vmem:[%s215 + $0x40] sm:$0xff]
    %v225 = vld [vmem:[%s215 + $0x48] sm:$0xff]
    %v226 = vld [vmem:[%s215 + $0x50] sm:$0xff]
    %v227 = vld [vmem:[%s215 + $0x58] sm:$0xff]
    %v228 = vld [vmem:[%s215 + $0x60] sm:$0xff]
    %v229 = vld [vmem:[%s215 + $0x68] sm:$0xff]
    %v230 = vld [vmem:[%s215 + $0x70] sm:$0xff]
    %v231 = vld [vmem:[%s215 + $0x78] sm:$0xff]
    %v232 = vld [vmem:[%s215 + $0x80] sm:$0xff]
    %v233 = vld [vmem:[%s215 + $0x88] sm:$0xff]
    %v234 = vld [vmem:[%s215 + $0x90] sm:$0xff]
    %v235 = vld [vmem:[%s215 + $0x98] sm:$0xff]
    %v236 = vld [vmem:[%s215 + $0xa0] sm:$0xff]
    %v237 = vld [vmem:[%s215 + $0xa8] sm:$0xff]
    %v238 = vld [vmem:[%s215 + $0xb0] sm:$0xff]
    %v239 = vld [vmem:[%s215 + $0xb8] sm:$0xff]
    %v240 = vld [vmem:[%s215 + $0xc0] sm:$0xff]
    %v241 = vld [vmem:[%s215 + $0xc8] sm:$0xff]
    %v242 = vld [vmem:[%s215 + $0xd0] sm:$0xff]
    %v243 = vld [vmem:[%s215 + $0xd8] sm:$0xff]
    %v244 = vld [vmem:[%s215 + $0xe0] sm:$0xff]
    %v245 = vld [vmem:[%s215 + $0xe8] sm:$0xff]
    %v246 = vld [vmem:[%s8] sm:$0xff]
    %v247 = vld [vmem:[%s8 + $0x8] sm:$0xff]
    %v248 = vld [vmem:[%s8 + $0x10] sm:$0xff]
    %v249 = vld [vmem:[%s8 + $0x18] sm:$0xff]
    %v250 = vld [vmem:[%s8 + $0x20] sm:$0xff]
    %v251 = vld [vmem:[%s8 + $0x28] sm:$0xff]
    %v252 = vld [vmem:[%s8 + $0x30] sm:$0xff]
    %v253 = vld [vmem:[%s8 + $0x38] sm:$0xff]
    %v254 = vld [vmem:[%s8 + $0x40] sm:$0xff]
    %v255 = vld [vmem:[%s8 + $0x48] sm:$0xff]
    %v256 = vld [vmem:[%s8 + $0x50] sm:$0xff]
    %v257 = vld [vmem:[%s8 + $0x58] sm:$0xff]
    %v258 = vld [vmem:[%s8 + $0x60] sm:$0xff]
    %v259 = vld [vmem:[%s8 + $0x68] sm:$0xff]
    %v260 = vld [vmem:[%s8 + $0x70] sm:$0xff]
    %v261 = vld [vmem:[%s8 + $0x78] sm:$0xff]
    %v262 = vld [vmem:[%s8 + $0x80] sm:$0xff]
    %v263 = vld [vmem:[%s8 + $0x88] sm:$0xff]
    %v264 = vld [vmem:[%s8 + $0x90] sm:$0xff]
    %v265 = vld [vmem:[%s8 + $0x98] sm:$0xff]
    %s266 = scalar_lea.vmem %s8, 160
    %v267 = vld [vmem:[%s266] sm:$0xff]
    %v268 = vld [vmem:[%s266 + $0x8] sm:$0xff]
    %v269 = vld [vmem:[%s266 + $0x10] sm:$0xff]
    %v270 = vld [vmem:[%s266 + $0x18] sm:$0xff]
    %v271 = vld [vmem:[%s266 + $0x20] sm:$0xff]
    %v272 = vld [vmem:[%s266 + $0x28] sm:$0xff]
    %v273 = vld [vmem:[%s266 + $0x30] sm:$0xff]
    %v274 = vld [vmem:[%s266 + $0x38] sm:$0xff]
    %v275 = vld [vmem:[%s266 + $0x40] sm:$0xff]
    %v276 = vld [vmem:[%s266 + $0x48] sm:$0xff]
    %v277 = vld [vmem:[%s266 + $0x50] sm:$0xff]
    %v278 = vld [vmem:[%s266 + $0x58] sm:$0xff]
    %v279 = vld [vmem:[%s266 + $0x60] sm:$0xff]
    %v280 = vld [vmem:[%s266 + $0x68] sm:$0xff]
    %v281 = vld [vmem:[%s266 + $0x70] sm:$0xff]
    %v282 = vld [vmem:[%s266 + $0x78] sm:$0xff]
    %v283 = vld [vmem:[%s266 + $0x80] sm:$0xff]
    %v284 = vld [vmem:[%s266 + $0x88] sm:$0xff]
    %v285 = vld [vmem:[%s266 + $0x90] sm:$0xff]
    %v286 = vld [vmem:[%s266 + $0x98] sm:$0xff]
    %s287 = scalar_lea.vmem %s8, 320
    %v288 = vld [vmem:[%s287] sm:$0xff]
    %v289 = vld [vmem:[%s287 + $0x8] sm:$0xff]
    %v290 = vld [vmem:[%s287 + $0x10] sm:$0xff]
    %v291 = vld [vmem:[%s287 + $0x18] sm:$0xff]
    %v292 = vld [vmem:[%s287 + $0x20] sm:$0xff]
    %v293 = vld [vmem:[%s287 + $0x28] sm:$0xff]
    %v294 = vld [vmem:[%s287 + $0x30] sm:$0xff]
    %v295 = vld [vmem:[%s287 + $0x38] sm:$0xff]
    %v296 = vld [vmem:[%s287 + $0x40] sm:$0xff]
    %v297 = vld [vmem:[%s287 + $0x48] sm:$0xff]
    %v298 = vld [vmem:[%s287 + $0x50] sm:$0xff]
    %v299 = vld [vmem:[%s287 + $0x58] sm:$0xff]
    %v300 = vld [vmem:[%s287 + $0x60] sm:$0xff]
    %v301 = vld [vmem:[%s287 + $0x68] sm:$0xff]
    %v302 = vld [vmem:[%s287 + $0x70] sm:$0xff]
    %v303 = vld [vmem:[%s287 + $0x78] sm:$0xff]
    %v304 = vld [vmem:[%s287 + $0x80] sm:$0xff]
    %v305 = vld [vmem:[%s287 + $0x88] sm:$0xff]
    %v306 = vld [vmem:[%s287 + $0x90] sm:$0xff]
    %v307 = vld [vmem:[%s287 + $0x98] sm:$0xff]
    %s308 = scalar_lea.vmem %s8, 480
    %v309 = vld [vmem:[%s308] sm:$0xff]
    %v310 = vld [vmem:[%s308 + $0x8] sm:$0xff]
    %v311 = vld [vmem:[%s308 + $0x10] sm:$0xff]
    %v312 = vld [vmem:[%s308 + $0x18] sm:$0xff]
    %v313 = vld [vmem:[%s308 + $0x20] sm:$0xff]
    %v314 = vld [vmem:[%s308 + $0x28] sm:$0xff]
    %v315 = vld [vmem:[%s308 + $0x30] sm:$0xff]
    %v316 = vld [vmem:[%s308 + $0x38] sm:$0xff]
    %v317 = vld [vmem:[%s308 + $0x40] sm:$0xff]
    %v318 = vld [vmem:[%s308 + $0x48] sm:$0xff]
    %v319 = vld [vmem:[%s308 + $0x50] sm:$0xff]
    %v320 = vld [vmem:[%s308 + $0x58] sm:$0xff]
    %v321 = vld [vmem:[%s308 + $0x60] sm:$0xff]
    %v322 = vld [vmem:[%s308 + $0x68] sm:$0xff]
    %v323 = vld [vmem:[%s308 + $0x70] sm:$0xff]
    %v324 = vld [vmem:[%s308 + $0x78] sm:$0xff]
    %v325 = vld [vmem:[%s308 + $0x80] sm:$0xff]
    %v326 = vld [vmem:[%s308 + $0x88] sm:$0xff]
    %v327 = vld [vmem:[%s308 + $0x90] sm:$0xff]
    %v328 = vld [vmem:[%s308 + $0x98] sm:$0xff]
    %v329 = vld [vmem:[%s6] sm:$0x1]
    %v330 = vld [vmem:[%s7] sm:$0x1]
    %v331 = vld [vmem:[%s10] sm:$0xff]
    %v332 = vld [vmem:[%s10 + $0x8] sm:$0xff]
    %v333 = vld [vmem:[%s10 + $0x10] sm:$0xff]
    %v334 = vld [vmem:[%s10 + $0x18] sm:$0xff]
    %v335 = vld [vmem:[%s10 + $0x20] sm:$0xff]
    %v336 = vld [vmem:[%s10 + $0x28] sm:$0xff]
    %v337 = vld [vmem:[%s10 + $0x30] sm:$0xff]
    %v338 = vld [vmem:[%s10 + $0x38] sm:$0xff]
    %v339 = vld [vmem:[%s10 + $0x40] sm:$0xff]
    %v340 = vld [vmem:[%s10 + $0x48] sm:$0xff]
    %v341 = vld [vmem:[%s10 + $0x50] sm:$0xff]
    %v342 = vld [vmem:[%s10 + $0x58] sm:$0xff]
    %v343 = vld [vmem:[%s10 + $0x60] sm:$0xff]
    %v344 = vld [vmem:[%s10 + $0x68] sm:$0xff]
    %v345 = vld [vmem:[%s10 + $0x70] sm:$0xff]
    %v346 = vld [vmem:[%s10 + $0x78] sm:$0xff]
    %v347 = vld [vmem:[%s10 + $0x80] sm:$0xff]
    %v348 = vld [vmem:[%s10 + $0x88] sm:$0xff]
    %v349 = vld [vmem:[%s10 + $0x90] sm:$0xff]
    %v350 = vld [vmem:[%s10 + $0x98] sm:$0xff]
    %v351 = vld [vmem:[%s12] sm:$0xff]
    %v352 = vld [vmem:[%s12 + $0x8] sm:$0xff]
    %v353 = vld [vmem:[%s12 + $0x10] sm:$0xff]
    %v354 = vld [vmem:[%s12 + $0x18] sm:$0xff]
    %v355 = vld [vmem:[%s12 + $0x20] sm:$0xff]
    %v356 = vld [vmem:[%s12 + $0x28] sm:$0xff]
    %v357 = vld [vmem:[%s12 + $0x30] sm:$0xff]
    %v358 = vld [vmem:[%s12 + $0x38] sm:$0xff]
    %v359 = vld [vmem:[%s12 + $0x40] sm:$0xff]
    %v360 = vld [vmem:[%s12 + $0x48] sm:$0xff]
    %v361 = vld [vmem:[%s9] sm:$0x3]
    %v362 = vld [vmem:[%s11] sm:$0x1]
    %v363 = vld [vmem:[%s13] sm:$0x1]
    %v364 = vld [vmem:[%s0] sm:$0x7f]
    %v365 = vld [vmem:[%s1] sm:$0x7f]
    %v366 = vld [vmem:[%s2] sm:$0x7f]
    %v367 = vld [vmem:[%s3] sm:$0x7f]
    %vm368 = vcmask 228352
    %v370 = vsel %vm368, %v365, 0
    %vm372 = vcmask 1043456
    %v374 = vsel %vm372, %v63, 0
    %v377 = vsel %vm372, %v64, 0
    %379 = vmatprep.subr.mxu0 %v58
    %380 = vmatpush1.msra.mxu0 %v57
    %381 = vmatprep.subr.mxu0 %v60
    %382 = vmatpush1.msra.mxu0 %v59
    %383 = vmatprep.subr.mxu0 %v62
    %384 = vmatpush1.msra.mxu0 %v61
    %385 = vmatprep.subr.mxu0 %v377
    %386 = vmatpush1.msra.mxu0 %v374
    %387 = vmatprep.subr.mxu0 0.0
    %388 = vmatpush1.msra.mxu0 0.0
    %389 = vmatprep.subr.mxu0 0.0
    %390 = vmatpush1.msra.mxu0 0.0
    %391 = vmatprep.subr.mxu0 0.0
    %392 = vmatpush1.msra.mxu0 0.0
    %393 = vmatprep.subr.mxu0 0.0
    %394 = vmatpush1.msra.mxu0 0.0
    %395 = vmatprep.subr.mxu0 0.0
    %396 = vmatpush1.msra.mxu0 0.0
    %397 = vmatprep.subr.mxu0 0.0
    %398 = vmatpush1.msra.mxu0 0.0
    %399 = vmatprep.subr.mxu0 0.0
    %400 = vmatpush1.msra.mxu0 0.0
    %401 = vmatprep.subr.mxu0 0.0
    %402 = vmatpush1.msra.mxu0 0.0
    %403 = vmatprep.subr.mxu0 0.0
    %404 = vmatpush1.msra.mxu0 0.0
    %405 = vmatprep.subr.mxu0 0.0
    %406 = vmatpush1.msra.mxu0 0.0
    %407 = vmatprep.subr.mxu0 0.0
    %408 = vmatpush1.msra.mxu0 0.0
    %409 = vmatprep.subr.mxu0 0.0
    %410 = vmatpush1.msra.mxu0 0.0
    %411 = vmatprep.subr.mxu0 0.0
    %412 = vmatpush1.msra.mxu0 0.0
    %413 = vmatprep.subr.mxu0 0.0
    %414 = vmatpush1.msra.mxu0 0.0
    %415 = vmatprep.subr.mxu0 0.0
    %416 = vmatpush1.msra.mxu0 0.0
    %417 = vmatprep.subr.mxu0 0.0
    %418 = vmatpush1.msra.mxu0 0.0
    %419 = vmatprep.subr.mxu0 0.0
    %420 = vmatpush1.msra.mxu0 0.0
    %421 = vmatprep.subr.mxu0 0.0
    %422 = vmatpush1.msra.mxu0 0.0
    %423 = vmatprep.subr.mxu0 0.0
    %424 = vmatpush1.msra.mxu0 0.0
    %425 = vmatprep.subr.mxu0 0.0
    %426 = vmatpush1.msra.mxu0 0.0
    %427 = vmatprep.subr.mxu0 0.0
    %428 = vmatpush1.msra.mxu0 0.0
    %429 = vmatprep.subr.mxu0 0.0
    %430 = vmatpush1.msra.mxu0 0.0
    %431 = vmatprep.subr.mxu0 0.0
    %432 = vmatpush1.msra.mxu0 0.0
    %433 = vmatprep.subr.mxu0 0.0
    %434 = vmatpush1.msra.mxu0 0.0
    %435 = vmatprep.subr.mxu0 0.0
    %436 = vmatpush1.msra.mxu0 0.0
    %437 = vmatprep.subr.mxu0 0.0
    %438 = vmatpush1.msra.mxu0 0.0
    %439 = vmatprep.subr.mxu0 0.0
    %440 = vmatpush1.msra.mxu0 0.0
    %441 = vmatprep.subr.mxu0 0.0
    %442 = vmatpush1.msra.mxu0 0.0
    %443 = vmatprep.mubr.f32.mxu0 0.0
    %444 = vmatmul.mubr.f32.gmra.mrb[0].mxu0 %v370
    %v445 = vpop.f32.mrb[0].mxu0
    %v446 = vadd.f32 0.0, %v445
    %v447 = vpop.f32.mrb[0].mxu0
    %v448 = vadd.f32 0.0, %v447
    %449 = vdwg.mxu0
    %v451 = vsel %vm368, %v364, 0
    %v454 = vsel %vm372, %v54, 0
    %v457 = vsel %vm372, %v55, 0
    %459 = vmatprep.subr.mxu0 %v49
    %460 = vmatpush1.msra.mxu0 %v48
    %461 = vmatprep.subr.mxu0 %v51
    %462 = vmatpush1.msra.mxu0 %v50
    %463 = vmatprep.subr.mxu0 %v53
    %464 = vmatpush1.msra.mxu0 %v52
    %465 = vmatprep.subr.mxu0 %v457
    %466 = vmatpush1.msra.mxu0 %v454
    %467 = vmatprep.subr.mxu0 0.0
    %468 = vmatpush1.msra.mxu0 0.0
    %469 = vmatprep.subr.mxu0 0.0
    %470 = vmatpush1.msra.mxu0 0.0
    %471 = vmatprep.subr.mxu0 0.0
    %472 = vmatpush1.msra.mxu0 0.0
    %473 = vmatprep.subr.mxu0 0.0
    %474 = vmatpush1.msra.mxu0 0.0
    %475 = vmatprep.subr.mxu0 0.0
    %476 = vmatpush1.msra.mxu0 0.0
    %477 = vmatprep.subr.mxu0 0.0
    %478 = vmatpush1.msra.mxu0 0.0
    %479 = vmatprep.subr.mxu0 0.0
    %480 = vmatpush1.msra.mxu0 0.0
    %481 = vmatprep.subr.mxu0 0.0
    %482 = vmatpush1.msra.mxu0 0.0
    %483 = vmatprep.subr.mxu0 0.0
    %484 = vmatpush1.msra.mxu0 0.0
    %485 = vmatprep.subr.mxu0 0.0
    %486 = vmatpush1.msra.mxu0 0.0
    %487 = vmatprep.subr.mxu0 0.0
    %488 = vmatpush1.msra.mxu0 0.0
    %489 = vmatprep.subr.mxu0 0.0
    %490 = vmatpush1.msra.mxu0 0.0
    %491 = vmatprep.subr.mxu0 0.0
    %492 = vmatpush1.msra.mxu0 0.0
    %493 = vmatprep.subr.mxu0 0.0
    %494 = vmatpush1.msra.mxu0 0.0
    %495 = vmatprep.subr.mxu0 0.0
    %496 = vmatpush1.msra.mxu0 0.0
    %497 = vmatprep.subr.mxu0 0.0
    %498 = vmatpush1.msra.mxu0 0.0
    %499 = vmatprep.subr.mxu0 0.0
    %500 = vmatpush1.msra.mxu0 0.0
    %501 = vmatprep.subr.mxu0 0.0
    %502 = vmatpush1.msra.mxu0 0.0
    %503 = vmatprep.subr.mxu0 0.0
    %504 = vmatpush1.msra.mxu0 0.0
    %505 = vmatprep.subr.mxu0 0.0
    %506 = vmatpush1.msra.mxu0 0.0
    %507 = vmatprep.subr.mxu0 0.0
    %508 = vmatpush1.msra.mxu0 0.0
    %509 = vmatprep.subr.mxu0 0.0
    %510 = vmatpush1.msra.mxu0 0.0
    %511 = vmatprep.subr.mxu0 0.0
    %512 = vmatpush1.msra.mxu0 0.0
    %513 = vmatprep.subr.mxu0 0.0
    %514 = vmatpush1.msra.mxu0 0.0
    %515 = vmatprep.subr.mxu0 0.0
    %516 = vmatpush1.msra.mxu0 0.0
    %517 = vmatprep.subr.mxu0 0.0
    %518 = vmatpush1.msra.mxu0 0.0
    %519 = vmatprep.subr.mxu0 0.0
    %520 = vmatpush1.msra.mxu0 0.0
    %521 = vmatprep.subr.mxu0 0.0
    %522 = vmatpush1.msra.mxu0 0.0
    %523 = vmatprep.mubr.f32.mxu0 0.0
    %524 = vmatmul.mubr.f32.gmra.mrb[0].mxu0 %v451
    %v525 = vpop.f32.mrb[0].mxu0
    %v526 = vadd.f32 %v446, %v525
    %v527 = vpop.f32.mrb[0].mxu0
    %v528 = vadd.f32 %v448, %v527
    %529 = vdwg.mxu0
    %v531 = vsel %vm368, %v366, 0
    %v534 = vsel %vm372, %v72, 0
    %v537 = vsel %vm372, %v73, 0
    %539 = vmatprep.subr.mxu0 %v67
    %540 = vmatpush1.msra.mxu0 %v66
    %541 = vmatprep.subr.mxu0 %v69
    %542 = vmatpush1.msra.mxu0 %v68
    %543 = vmatprep.subr.mxu0 %v71
    %544 = vmatpush1.msra.mxu0 %v70
    %545 = vmatprep.subr.mxu0 %v537
    %546 = vmatpush1.msra.mxu0 %v534
    %547 = vmatprep.subr.mxu0 0.0
    %548 = vmatpush1.msra.mxu0 0.0
    %549 = vmatprep.subr.mxu0 0.0
    %550 = vmatpush1.msra.mxu0 0.0
    %551 = vmatprep.subr.mxu0 0.0
    %552 = vmatpush1.msra.mxu0 0.0
    %553 = vmatprep.subr.mxu0 0.0
    %554 = vmatpush1.msra.mxu0 0.0
    %555 = vmatprep.subr.mxu0 0.0
    %556 = vmatpush1.msra.mxu0 0.0
    %557 = vmatprep.subr.mxu0 0.0
    %558 = vmatpush1.msra.mxu0 0.0
    %559 = vmatprep.subr.mxu0 0.0
    %560 = vmatpush1.msra.mxu0 0.0
    %561 = vmatprep.subr.mxu0 0.0
    %562 = vmatpush1.msra.mxu0 0.0
    %563 = vmatprep.subr.mxu0 0.0
    %564 = vmatpush1.msra.mxu0 0.0
    %565 = vmatprep.subr.mxu0 0.0
    %566 = vmatpush1.msra.mxu0 0.0
    %567 = vmatprep.subr.mxu0 0.0
    %568 = vmatpush1.msra.mxu0 0.0
    %569 = vmatprep.subr.mxu0 0.0
    %570 = vmatpush1.msra.mxu0 0.0
    %571 = vmatprep.subr.mxu0 0.0
    %572 = vmatpush1.msra.mxu0 0.0
    %573 = vmatprep.subr.mxu0 0.0
    %574 = vmatpush1.msra.mxu0 0.0
    %575 = vmatprep.subr.mxu0 0.0
    %576 = vmatpush1.msra.mxu0 0.0
    %577 = vmatprep.subr.mxu0 0.0
    %578 = vmatpush1.msra.mxu0 0.0
    %579 = vmatprep.subr.mxu0 0.0
    %580 = vmatpush1.msra.mxu0 0.0
    %581 = vmatprep.subr.mxu0 0.0
    %582 = vmatpush1.msra.mxu0 0.0
    %583 = vmatprep.subr.mxu0 0.0
    %584 = vmatpush1.msra.mxu0 0.0
    %585 = vmatprep.subr.mxu0 0.0
    %586 = vmatpush1.msra.mxu0 0.0
    %587 = vmatprep.subr.mxu0 0.0
    %588 = vmatpush1.msra.mxu0 0.0
    %589 = vmatprep.subr.mxu0 0.0
    %590 = vmatpush1.msra.mxu0 0.0
    %591 = vmatprep.subr.mxu0 0.0
    %592 = vmatpush1.msra.mxu0 0.0
    %593 = vmatprep.subr.mxu0 0.0
    %594 = vmatpush1.msra.mxu0 0.0
    %595 = vmatprep.subr.mxu0 0.0
    %596 = vmatpush1.msra.mxu0 0.0
    %597 = vmatprep.subr.mxu0 0.0
    %598 = vmatpush1.msra.mxu0 0.0
    %599 = vmatprep.subr.mxu0 0.0
    %600 = vmatpush1.msra.mxu0 0.0
    %601 = vmatprep.subr.mxu0 0.0
    %602 = vmatpush1.msra.mxu0 0.0
    %603 = vmatprep.mubr.f32.mxu0 0.0
    %604 = vmatmul.mubr.f32.gmra.mrb[0].mxu0 %v531
    %v605 = vpop.f32.mrb[0].mxu0
    %v606 = vadd.f32 0.0, %v605
    %v607 = vpop.f32.mrb[0].mxu0
    %v608 = vadd.f32 0.0, %v607
    %609 = vdwg.mxu0
    %v610 = vadd.f32 %v526, %v606
    %v611 = vadd.f32 %v528, %v608
    %v613 = vsel %vm368, %v367, 0
    %v616 = vsel %vm372, %v81, 0
    %v619 = vsel %vm372, %v82, 0
    %621 = vmatprep.subr.mxu0 %v76
    %622 = vmatpush1.msra.mxu0 %v75
    %623 = vmatprep.subr.mxu0 %v78
    %624 = vmatpush1.msra.mxu0 %v77
    %625 = vmatprep.subr.mxu0 %v80
    %626 = vmatpush1.msra.mxu0 %v79
    %627 = vmatprep.subr.mxu0 %v619
    %628 = vmatpush1.msra.mxu0 %v616
    %629 = vmatprep.subr.mxu0 0.0
    %630 = vmatpush1.msra.mxu0 0.0
    %631 = vmatprep.subr.mxu0 0.0
    %632 = vmatpush1.msra.mxu0 0.0
    %633 = vmatprep.subr.mxu0 0.0
    %634 = vmatpush1.msra.mxu0 0.0
    %635 = vmatprep.subr.mxu0 0.0
    %636 = vmatpush1.msra.mxu0 0.0
    %637 = vmatprep.subr.mxu0 0.0
    %638 = vmatpush1.msra.mxu0 0.0
    %639 = vmatprep.subr.mxu0 0.0
    %640 = vmatpush1.msra.mxu0 0.0
    %641 = vmatprep.subr.mxu0 0.0
    %642 = vmatpush1.msra.mxu0 0.0
    %643 = vmatprep.subr.mxu0 0.0
    %644 = vmatpush1.msra.mxu0 0.0
    %645 = vmatprep.subr.mxu0 0.0
    %646 = vmatpush1.msra.mxu0 0.0
    %647 = vmatprep.subr.mxu0 0.0
    %648 = vmatpush1.msra.mxu0 0.0
    %649 = vmatprep.subr.mxu0 0.0
    %650 = vmatpush1.msra.mxu0 0.0
    %651 = vmatprep.subr.mxu0 0.0
    %652 = vmatpush1.msra.mxu0 0.0
    %653 = vmatprep.subr.mxu0 0.0
    %654 = vmatpush1.msra.mxu0 0.0
    %655 = vmatprep.subr.mxu0 0.0
    %656 = vmatpush1.msra.mxu0 0.0
    %657 = vmatprep.subr.mxu0 0.0
    %658 = vmatpush1.msra.mxu0 0.0
    %659 = vmatprep.subr.mxu0 0.0
    %660 = vmatpush1.msra.mxu0 0.0
    %661 = vmatprep.subr.mxu0 0.0
    %662 = vmatpush1.msra.mxu0 0.0
    %663 = vmatprep.subr.mxu0 0.0
    %664 = vmatpush1.msra.mxu0 0.0
    %665 = vmatprep.subr.mxu0 0.0
    %666 = vmatpush1.msra.mxu0 0.0
    %667 = vmatprep.subr.mxu0 0.0
    %668 = vmatpush1.msra.mxu0 0.0
    %669 = vmatprep.subr.mxu0 0.0
    %670 = vmatpush1.msra.mxu0 0.0
    %671 = vmatprep.subr.mxu0 0.0
    %672 = vmatpush1.msra.mxu0 0.0
    %673 = vmatprep.subr.mxu0 0.0
    %674 = vmatpush1.msra.mxu0 0.0
    %675 = vmatprep.subr.mxu0 0.0
    %676 = vmatpush1.msra.mxu0 0.0
    %677 = vmatprep.subr.mxu0 0.0
    %678 = vmatpush1.msra.mxu0 0.0
    %679 = vmatprep.subr.mxu0 0.0
    %680 = vmatpush1.msra.mxu0 0.0
    %681 = vmatprep.subr.mxu0 0.0
    %682 = vmatpush1.msra.mxu0 0.0
    %683 = vmatprep.subr.mxu0 0.0
    %684 = vmatpush1.msra.mxu0 0.0
    %685 = vmatprep.mubr.f32.mxu0 0.0
    %686 = vmatmul.mubr.f32.gmra.mrb[0].mxu0 %v613
    %v687 = vpop.f32.mrb[0].mxu0
    %v688 = vadd.f32 0.0, %v687
    %v689 = vpop.f32.mrb[0].mxu0
    %v690 = vadd.f32 0.0, %v689
    %691 = vdwg.mxu0
    %v692 = vadd.f32 %v610, %v688
    %v693 = vadd.f32 %v611, %v690
    %v694 = vrot.slane %v364, 1
    %v695 = vsel %vm368, %v694, 0
    %v698 = vsel %vm372, %v90, 0
    %v701 = vsel %vm372, %v91, 0
    %703 = vmatprep.subr.mxu0 %v85
    %704 = vmatpush1.msra.mxu0 %v84
    %705 = vmatprep.subr.mxu0 %v87
    %706 = vmatpush1.msra.mxu0 %v86
    %707 = vmatprep.subr.mxu0 %v89
    %708 = vmatpush1.msra.mxu0 %v88
    %709 = vmatprep.subr.mxu0 %v701
    %710 = vmatpush1.msra.mxu0 %v698
    %711 = vmatprep.subr.mxu0 0.0
    %712 = vmatpush1.msra.mxu0 0.0
    %713 = vmatprep.subr.mxu0 0.0
    %714 = vmatpush1.msra.mxu0 0.0
    %715 = vmatprep.subr.mxu0 0.0
    %716 = vmatpush1.msra.mxu0 0.0
    %717 = vmatprep.subr.mxu0 0.0
    %718 = vmatpush1.msra.mxu0 0.0
    %719 = vmatprep.subr.mxu0 0.0
    %720 = vmatpush1.msra.mxu0 0.0
    %721 = vmatprep.subr.mxu0 0.0
    %722 = vmatpush1.msra.mxu0 0.0
    %723 = vmatprep.subr.mxu0 0.0
    %724 = vmatpush1.msra.mxu0 0.0
    %725 = vmatprep.subr.mxu0 0.0
    %726 = vmatpush1.msra.mxu0 0.0
    %727 = vmatprep.subr.mxu0 0.0
    %728 = vmatpush1.msra.mxu0 0.0
    %729 = vmatprep.subr.mxu0 0.0
    %730 = vmatpush1.msra.mxu0 0.0
    %731 = vmatprep.subr.mxu0 0.0
    %732 = vmatpush1.msra.mxu0 0.0
    %733 = vmatprep.subr.mxu0 0.0
    %734 = vmatpush1.msra.mxu0 0.0
    %735 = vmatprep.subr.mxu0 0.0
    %736 = vmatpush1.msra.mxu0 0.0
    %737 = vmatprep.subr.mxu0 0.0
    %738 = vmatpush1.msra.mxu0 0.0
    %739 = vmatprep.subr.mxu0 0.0
    %740 = vmatpush1.msra.mxu0 0.0
    %741 = vmatprep.subr.mxu0 0.0
    %742 = vmatpush1.msra.mxu0 0.0
    %743 = vmatprep.subr.mxu0 0.0
    %744 = vmatpush1.msra.mxu0 0.0
    %745 = vmatprep.subr.mxu0 0.0
    %746 = vmatpush1.msra.mxu0 0.0
    %747 = vmatprep.subr.mxu0 0.0
    %748 = vmatpush1.msra.mxu0 0.0
    %749 = vmatprep.subr.mxu0 0.0
    %750 = vmatpush1.msra.mxu0 0.0
    %751 = vmatprep.subr.mxu0 0.0
    %752 = vmatpush1.msra.mxu0 0.0
    %753 = vmatprep.subr.mxu0 0.0
    %754 = vmatpush1.msra.mxu0 0.0
    %755 = vmatprep.subr.mxu0 0.0
    %756 = vmatpush1.msra.mxu0 0.0
    %757 = vmatprep.subr.mxu0 0.0
    %758 = vmatpush1.msra.mxu0 0.0
    %759 = vmatprep.subr.mxu0 0.0
    %760 = vmatpush1.msra.mxu0 0.0
    %761 = vmatprep.subr.mxu0 0.0
    %762 = vmatpush1.msra.mxu0 0.0
    %763 = vmatprep.subr.mxu0 0.0
    %764 = vmatpush1.msra.mxu0 0.0
    %765 = vmatprep.subr.mxu0 0.0
    %766 = vmatpush1.msra.mxu0 0.0
    %767 = vmatprep.mubr.f32.mxu0 0.0
    %768 = vmatmul.mubr.f32.gmra.mrb[0].mxu0 %v695
    %v769 = vpop.f32.mrb[0].mxu0
    %v770 = vadd.f32 0.0, %v769
    %v771 = vpop.f32.mrb[0].mxu0
    %v772 = vadd.f32 0.0, %v771
    %773 = vdwg.mxu0
    %v774 = vadd.f32 %v692, %v770
    %v775 = vadd.f32 %v693, %v772
    %778 = vrot.lane.b32.xlu0 %v774, 8
    %v779 = vpop.permute.xlu0 %778
    %780 = vrot.lane.b32.xlu0 %v775, 8
    %v781 = vpop.permute.xlu0 %780
    %vm782 = vcmask 64512
    %v783 = vsel %vm782, %v779, %v781
    %v785 = vmax.f32 %v774, %v783
    %786 = vmatprep.subr.mxu0 %v58
    %787 = vmatpush1.msra.mxu0 %v57
    %788 = vmatprep.subr.mxu0 %v60
    %789 = vmatpush1.msra.mxu0 %v59
    %790 = vmatprep.subr.mxu0 %v62
    %791 = vmatpush1.msra.mxu0 %v61
    %792 = vmatprep.subr.mxu0 %v377
    %793 = vmatpush1.msra.mxu0 %v374
    %794 = vmatprep.subr.mxu0 0.0
    %795 = vmatpush1.msra.mxu0 0.0
    %796 = vmatprep.subr.mxu0 0.0
    %797 = vmatpush1.msra.mxu0 0.0
    %798 = vmatprep.subr.mxu0 0.0
    %799 = vmatpush1.msra.mxu0 0.0
    %800 = vmatprep.subr.mxu0 0.0
    %801 = vmatpush1.msra.mxu0 0.0
    %802 = vmatprep.subr.mxu0 0.0
    %803 = vmatpush1.msra.mxu0 0.0
    %804 = vmatprep.subr.mxu0 0.0
    %805 = vmatpush1.msra.mxu0 0.0
    %806 = vmatprep.subr.mxu0 0.0
    %807 = vmatpush1.msra.mxu0 0.0
    %808 = vmatprep.subr.mxu0 0.0
    %809 = vmatpush1.msra.mxu0 0.0
    %810 = vmatprep.subr.mxu0 0.0
    %811 = vmatpush1.msra.mxu0 0.0
    %812 = vmatprep.subr.mxu0 0.0
    %813 = vmatpush1.msra.mxu0 0.0
    %814 = vmatprep.subr.mxu0 0.0
    %815 = vmatpush1.msra.mxu0 0.0
    %816 = vmatprep.subr.mxu0 0.0
    %817 = vmatpush1.msra.mxu0 0.0
    %818 = vmatprep.subr.mxu0 0.0
    %819 = vmatpush1.msra.mxu0 0.0
    %820 = vmatprep.subr.mxu0 0.0
    %821 = vmatpush1.msra.mxu0 0.0
    %822 = vmatprep.subr.mxu0 0.0
    %823 = vmatpush1.msra.mxu0 0.0
    %824 = vmatprep.subr.mxu0 0.0
    %825 = vmatpush1.msra.mxu0 0.0
    %826 = vmatprep.subr.mxu0 0.0
    %827 = vmatpush1.msra.mxu0 0.0
    %828 = vmatprep.subr.mxu0 0.0
    %829 = vmatpush1.msra.mxu0 0.0
    %830 = vmatprep.subr.mxu0 0.0
    %831 = vmatpush1.msra.mxu0 0.0
    %832 = vmatprep.subr.mxu0 0.0
    %833 = vmatpush1.msra.mxu0 0.0
    %834 = vmatprep.subr.mxu0 0.0
    %835 = vmatpush1.msra.mxu0 0.0
    %836 = vmatprep.subr.mxu0 0.0
    %837 = vmatpush1.msra.mxu0 0.0
    %838 = vmatprep.subr.mxu0 0.0
    %839 = vmatpush1.msra.mxu0 0.0
    %840 = vmatprep.subr.mxu0 0.0
    %841 = vmatpush1.msra.mxu0 0.0
    %842 = vmatprep.subr.mxu0 0.0
    %843 = vmatpush1.msra.mxu0 0.0
    %844 = vmatprep.subr.mxu0 0.0
    %845 = vmatpush1.msra.mxu0 0.0
    %846 = vmatprep.subr.mxu0 0.0
    %847 = vmatpush1.msra.mxu0 0.0
    %848 = vmatprep.subr.mxu0 0.0
    %849 = vmatpush1.msra.mxu0 0.0
    %850 = vmatprep.mubr.f32.mxu0 0.0
    %851 = vmatmul.mubr.f32.gmra.mrb[0].mxu0 %v531
    %v852 = vpop.f32.mrb[0].mxu0
    %v853 = vadd.f32 0.0, %v852
    %v854 = vpop.f32.mrb[0].mxu0
    %v855 = vadd.f32 0.0, %v854
    %856 = vdwg.mxu0
    %857 = vmatprep.subr.mxu0 %v49
    %858 = vmatpush1.msra.mxu0 %v48
    %859 = vmatprep.subr.mxu0 %v51
    %860 = vmatpush1.msra.mxu0 %v50
    %861 = vmatprep.subr.mxu0 %v53
    %862 = vmatpush1.msra.mxu0 %v52
    %863 = vmatprep.subr.mxu0 %v457
    %864 = vmatpush1.msra.mxu0 %v454
    %865 = vmatprep.subr.mxu0 0.0
    %866 = vmatpush1.msra.mxu0 0.0
    %867 = vmatprep.subr.mxu0 0.0
    %868 = vmatpush1.msra.mxu0 0.0
    %869 = vmatprep.subr.mxu0 0.0
    %870 = vmatpush1.msra.mxu0 0.0
    %871 = vmatprep.subr.mxu0 0.0
    %872 = vmatpush1.msra.mxu0 0.0
    %873 = vmatprep.subr.mxu0 0.0
    %874 = vmatpush1.msra.mxu0 0.0
    %875 = vmatprep.subr.mxu0 0.0
    %876 = vmatpush1.msra.mxu0 0.0
    %877 = vmatprep.subr.mxu0 0.0
    %878 = vmatpush1.msra.mxu0 0.0
    %879 = vmatprep.subr.mxu0 0.0
    %880 = vmatpush1.msra.mxu0 0.0
    %881 = vmatprep.subr.mxu0 0.0
    %882 = vmatpush1.msra.mxu0 0.0
    %883 = vmatprep.subr.mxu0 0.0
    %884 = vmatpush1.msra.mxu0 0.0
    %885 = vmatprep.subr.mxu0 0.0
    %886 = vmatpush1.msra.mxu0 0.0
    %887 = vmatprep.subr.mxu0 0.0
    %888 = vmatpush1.msra.mxu0 0.0
    %889 = vmatprep.subr.mxu0 0.0
    %890 = vmatpush1.msra.mxu0 0.0
    %891 = vmatprep.subr.mxu0 0.0
    %892 = vmatpush1.msra.mxu0 0.0
    %893 = vmatprep.subr.mxu0 0.0
    %894 = vmatpush1.msra.mxu0 0.0
    %895 = vmatprep.subr.mxu0 0.0
    %896 = vmatpush1.msra.mxu0 0.0
    %897 = vmatprep.subr.mxu0 0.0
    %898 = vmatpush1.msra.mxu0 0.0
    %899 = vmatprep.subr.mxu0 0.0
    %900 = vmatpush1.msra.mxu0 0.0
    %901 = vmatprep.subr.mxu0 0.0
    %902 = vmatpush1.msra.mxu0 0.0
    %903 = vmatprep.subr.mxu0 0.0
    %904 = vmatpush1.msra.mxu0 0.0
    %905 = vmatprep.subr.mxu0 0.0
    %906 = vmatpush1.msra.mxu0 0.0
    %907 = vmatprep.subr.mxu0 0.0
    %908 = vmatpush1.msra.mxu0 0.0
    %909 = vmatprep.subr.mxu0 0.0
    %910 = vmatpush1.msra.mxu0 0.0
    %911 = vmatprep.subr.mxu0 0.0
    %912 = vmatpush1.msra.mxu0 0.0
    %913 = vmatprep.subr.mxu0 0.0
    %914 = vmatpush1.msra.mxu0 0.0
    %915 = vmatprep.subr.mxu0 0.0
    %916 = vmatpush1.msra.mxu0 0.0
    %917 = vmatprep.subr.mxu0 0.0
    %918 = vmatpush1.msra.mxu0 0.0
    %919 = vmatprep.subr.mxu0 0.0
    %920 = vmatpush1.msra.mxu0 0.0
    %921 = vmatprep.mubr.f32.mxu0 0.0
    %922 = vmatmul.mubr.f32.gmra.mrb[0].mxu0 %v370
    %v923 = vpop.f32.mrb[0].mxu0
    %v924 = vadd.f32 %v853, %v923
    %v925 = vpop.f32.mrb[0].mxu0
    %v926 = vadd.f32 %v855, %v925
    %927 = vdwg.mxu0
    %928 = vmatprep.subr.mxu0 %v67
    %929 = vmatpush1.msra.mxu0 %v66
    %930 = vmatprep.subr.mxu0 %v69
    %931 = vmatpush1.msra.mxu0 %v68
    %932 = vmatprep.subr.mxu0 %v71
    %933 = vmatpush1.msra.mxu0 %v70
    %934 = vmatprep.subr.mxu0 %v537
    %935 = vmatpush1.msra.mxu0 %v534
    %936 = vmatprep.subr.mxu0 0.0
    %937 = vmatpush1.msra.mxu0 0.0
    %938 = vmatprep.subr.mxu0 0.0
    %939 = vmatpush1.msra.mxu0 0.0
    %940 = vmatprep.subr.mxu0 0.0
    %941 = vmatpush1.msra.mxu0 0.0
    %942 = vmatprep.subr.mxu0 0.0
    %943 = vmatpush1.msra.mxu0 0.0
    %944 = vmatprep.subr.mxu0 0.0
    %945 = vmatpush1.msra.mxu0 0.0
    %946 = vmatprep.subr.mxu0 0.0
    %947 = vmatpush1.msra.mxu0 0.0
    %948 = vmatprep.subr.mxu0 0.0
    %949 = vmatpush1.msra.mxu0 0.0
    %950 = vmatprep.subr.mxu0 0.0
    %951 = vmatpush1.msra.mxu0 0.0
    %952 = vmatprep.subr.mxu0 0.0
    %953 = vmatpush1.msra.mxu0 0.0
    %954 = vmatprep.subr.mxu0 0.0
    %955 = vmatpush1.msra.mxu0 0.0
    %956 = vmatprep.subr.mxu0 0.0
    %957 = vmatpush1.msra.mxu0 0.0
    %958 = vmatprep.subr.mxu0 0.0
    %959 = vmatpush1.msra.mxu0 0.0
    %960 = vmatprep.subr.mxu0 0.0
    %961 = vmatpush1.msra.mxu0 0.0
    %962 = vmatprep.subr.mxu0 0.0
    %963 = vmatpush1.msra.mxu0 0.0
    %964 = vmatprep.subr.mxu0 0.0
    %965 = vmatpush1.msra.mxu0 0.0
    %966 = vmatprep.subr.mxu0 0.0
    %967 = vmatpush1.msra.mxu0 0.0
    %968 = vmatprep.subr.mxu0 0.0
    %969 = vmatpush1.msra.mxu0 0.0
    %970 = vmatprep.subr.mxu0 0.0
    %971 = vmatpush1.msra.mxu0 0.0
    %972 = vmatprep.subr.mxu0 0.0
    %973 = vmatpush1.msra.mxu0 0.0
    %974 = vmatprep.subr.mxu0 0.0
    %975 = vmatpush1.msra.mxu0 0.0
    %976 = vmatprep.subr.mxu0 0.0
    %977 = vmatpush1.msra.mxu0 0.0
    %978 = vmatprep.subr.mxu0 0.0
    %979 = vmatpush1.msra.mxu0 0.0
    %980 = vmatprep.subr.mxu0 0.0
    %981 = vmatpush1.msra.mxu0 0.0
    %982 = vmatprep.subr.mxu0 0.0
    %983 = vmatpush1.msra.mxu0 0.0
    %984 = vmatprep.subr.mxu0 0.0
    %985 = vmatpush1.msra.mxu0 0.0
    %986 = vmatprep.subr.mxu0 0.0
    %987 = vmatpush1.msra.mxu0 0.0
    %988 = vmatprep.subr.mxu0 0.0
    %989 = vmatpush1.msra.mxu0 0.0
    %990 = vmatprep.subr.mxu0 0.0
    %991 = vmatpush1.msra.mxu0 0.0
    %992 = vmatprep.mubr.f32.mxu0 0.0
    %993 = vmatmul.mubr.f32.gmra.mrb[0].mxu0 %v613
    %v994 = vpop.f32.mrb[0].mxu0
    %v995 = vadd.f32 0.0, %v994
    %v996 = vpop.f32.mrb[0].mxu0
    %v997 = vadd.f32 0.0, %v996
    %998 = vdwg.mxu0
    %v999 = vadd.f32 %v924, %v995
    %v1000 = vadd.f32 %v926, %v997
    %1001 = vmatprep.subr.mxu0 %v76
    %1002 = vmatpush1.msra.mxu0 %v75
    %1003 = vmatprep.subr.mxu0 %v78
    %1004 = vmatpush1.msra.mxu0 %v77
    %1005 = vmatprep.subr.mxu0 %v80
    %1006 = vmatpush1.msra.mxu0 %v79
    %1007 = vmatprep.subr.mxu0 %v619
    %1008 = vmatpush1.msra.mxu0 %v616
    %1009 = vmatprep.subr.mxu0 0.0
    %1010 = vmatpush1.msra.mxu0 0.0
    %1011 = vmatprep.subr.mxu0 0.0
    %1012 = vmatpush1.msra.mxu0 0.0
    %1013 = vmatprep.subr.mxu0 0.0
    %1014 = vmatpush1.msra.mxu0 0.0
    %1015 = vmatprep.subr.mxu0 0.0
    %1016 = vmatpush1.msra.mxu0 0.0
    %1017 = vmatprep.subr.mxu0 0.0
    %1018 = vmatpush1.msra.mxu0 0.0
    %1019 = vmatprep.subr.mxu0 0.0
    %1020 = vmatpush1.msra.mxu0 0.0
    %1021 = vmatprep.subr.mxu0 0.0
    %1022 = vmatpush1.msra.mxu0 0.0
    %1023 = vmatprep.subr.mxu0 0.0
    %1024 = vmatpush1.msra.mxu0 0.0
    %1025 = vmatprep.subr.mxu0 0.0
    %1026 = vmatpush1.msra.mxu0 0.0
    %1027 = vmatprep.subr.mxu0 0.0
    %1028 = vmatpush1.msra.mxu0 0.0
    %1029 = vmatprep.subr.mxu0 0.0
    %1030 = vmatpush1.msra.mxu0 0.0
    %1031 = vmatprep.subr.mxu0 0.0
    %1032 = vmatpush1.msra.mxu0 0.0
    %1033 = vmatprep.subr.mxu0 0.0
    %1034 = vmatpush1.msra.mxu0 0.0
    %1035 = vmatprep.subr.mxu0 0.0
    %1036 = vmatpush1.msra.mxu0 0.0
    %1037 = vmatprep.subr.mxu0 0.0
    %1038 = vmatpush1.msra.mxu0 0.0
    %1039 = vmatprep.subr.mxu0 0.0
    %1040 = vmatpush1.msra.mxu0 0.0
    %1041 = vmatprep.subr.mxu0 0.0
    %1042 = vmatpush1.msra.mxu0 0.0
    %1043 = vmatprep.subr.mxu0 0.0
    %1044 = vmatpush1.msra.mxu0 0.0
    %1045 = vmatprep.subr.mxu0 0.0
    %1046 = vmatpush1.msra.mxu0 0.0
    %1047 = vmatprep.subr.mxu0 0.0
    %1048 = vmatpush1.msra.mxu0 0.0
    %1049 = vmatprep.subr.mxu0 0.0
    %1050 = vmatpush1.msra.mxu0 0.0
    %1051 = vmatprep.subr.mxu0 0.0
    %1052 = vmatpush1.msra.mxu0 0.0
    %1053 = vmatprep.subr.mxu0 0.0
    %1054 = vmatpush1.msra.mxu0 0.0
    %1055 = vmatprep.subr.mxu0 0.0
    %1056 = vmatpush1.msra.mxu0 0.0
    %1057 = vmatprep.subr.mxu0 0.0
    %1058 = vmatpush1.msra.mxu0 0.0
    %1059 = vmatprep.subr.mxu0 0.0
    %1060 = vmatpush1.msra.mxu0 0.0
    %1061 = vmatprep.subr.mxu0 0.0
    %1062 = vmatpush1.msra.mxu0 0.0
    %1063 = vmatprep.subr.mxu0 0.0
    %1064 = vmatpush1.msra.mxu0 0.0
    %1065 = vmatprep.mubr.f32.mxu0 0.0
    %1066 = vmatmul.mubr.f32.gmra.mrb[0].mxu0 %v695
    %v1067 = vpop.f32.mrb[0].mxu0
    %v1068 = vadd.f32 0.0, %v1067
    %v1069 = vpop.f32.mrb[0].mxu0
    %v1070 = vadd.f32 0.0, %v1069
    %1071 = vdwg.mxu0
    %v1072 = vadd.f32 %v999, %v1068
    %v1073 = vadd.f32 %v1000, %v1070
    %v1074 = vrot.slane %v365, 1
    %v1075 = vsel %vm368, %v1074, 0
    %1077 = vmatprep.subr.mxu0 %v85
    %1078 = vmatpush1.msra.mxu0 %v84
    %1079 = vmatprep.subr.mxu0 %v87
    %1080 = vmatpush1.msra.mxu0 %v86
    %1081 = vmatprep.subr.mxu0 %v89
    %1082 = vmatpush1.msra.mxu0 %v88
    %1083 = vmatprep.subr.mxu0 %v701
    %1084 = vmatpush1.msra.mxu0 %v698
    %1085 = vmatprep.subr.mxu0 0.0
    %1086 = vmatpush1.msra.mxu0 0.0
    %1087 = vmatprep.subr.mxu0 0.0
    %1088 = vmatpush1.msra.mxu0 0.0
    %1089 = vmatprep.subr.mxu0 0.0
    %1090 = vmatpush1.msra.mxu0 0.0
    %1091 = vmatprep.subr.mxu0 0.0
    %1092 = vmatpush1.msra.mxu0 0.0
    %1093 = vmatprep.subr.mxu0 0.0
    %1094 = vmatpush1.msra.mxu0 0.0
    %1095 = vmatprep.subr.mxu0 0.0
    %1096 = vmatpush1.msra.mxu0 0.0
    %1097 = vmatprep.subr.mxu0 0.0
    %1098 = vmatpush1.msra.mxu0 0.0
    %1099 = vmatprep.subr.mxu0 0.0
    %1100 = vmatpush1.msra.mxu0 0.0
    %1101 = vmatprep.subr.mxu0 0.0
    %1102 = vmatpush1.msra.mxu0 0.0
    %1103 = vmatprep.subr.mxu0 0.0
    %1104 = vmatpush1.msra.mxu0 0.0
    %1105 = vmatprep.subr.mxu0 0.0
    %1106 = vmatpush1.msra.mxu0 0.0
    %1107 = vmatprep.subr.mxu0 0.0
    %1108 = vmatpush1.msra.mxu0 0.0
    %1109 = vmatprep.subr.mxu0 0.0
    %1110 = vmatpush1.msra.mxu0 0.0
    %1111 = vmatprep.subr.mxu0 0.0
    %1112 = vmatpush1.msra.mxu0 0.0
    %1113 = vmatprep.subr.mxu0 0.0
    %1114 = vmatpush1.msra.mxu0 0.0
    %1115 = vmatprep.subr.mxu0 0.0
    %1116 = vmatpush1.msra.mxu0 0.0
    %1117 = vmatprep.subr.mxu0 0.0
    %1118 = vmatpush1.msra.mxu0 0.0
    %1119 = vmatprep.subr.mxu0 0.0
    %1120 = vmatpush1.msra.mxu0 0.0
    %1121 = vmatprep.subr.mxu0 0.0
    %1122 = vmatpush1.msra.mxu0 0.0
    %1123 = vmatprep.subr.mxu0 0.0
    %1124 = vmatpush1.msra.mxu0 0.0
    %1125 = vmatprep.subr.mxu0 0.0
    %1126 = vmatpush1.msra.mxu0 0.0
    %1127 = vmatprep.subr.mxu0 0.0
    %1128 = vmatpush1.msra.mxu0 0.0
    %1129 = vmatprep.subr.mxu0 0.0
    %1130 = vmatpush1.msra.mxu0 0.0
    %1131 = vmatprep.subr.mxu0 0.0
    %1132 = vmatpush1.msra.mxu0 0.0
    %1133 = vmatprep.subr.mxu0 0.0
    %1134 = vmatpush1.msra.mxu0 0.0
    %1135 = vmatprep.subr.mxu0 0.0
    %1136 = vmatpush1.msra.mxu0 0.0
    %1137 = vmatprep.subr.mxu0 0.0
    %1138 = vmatpush1.msra.mxu0 0.0
    %1139 = vmatprep.subr.mxu0 0.0
    %1140 = vmatpush1.msra.mxu0 0.0
    %1141 = vmatprep.mubr.f32.mxu0 0.0
    %1142 = vmatmul.mubr.f32.gmra.mrb[0].mxu0 %v1075
    %v1143 = vpop.f32.mrb[0].mxu0
    %v1144 = vadd.f32 0.0, %v1143
    %v1145 = vpop.f32.mrb[0].mxu0
    %v1146 = vadd.f32 0.0, %v1145
    %1147 = vdwg.mxu0
    %v1148 = vadd.f32 %v1072, %v1144
    %v1149 = vadd.f32 %v1073, %v1146
    %v1150 = vmax.f32 %v785, %v1148
    %1153 = vrot.lane.b32.xlu0 %v1148, 8
    %v1154 = vpop.permute.xlu0 %1153
    %1155 = vrot.lane.b32.xlu0 %v1149, 8
    %v1156 = vpop.permute.xlu0 %1155
    %v1157 = vsel %vm782, %v1154, %v1156
    %v1159 = vmax.f32 %v1150, %v1157
    %v1161 = vlaneseq
    %v1162 = vshrl.u32 %v1161, 7
    %v1163 = vsub.s32 0, %v1162
    %v1164 = vrot.slane %v329, %v1163
    %v1166 = vadd.f32 %v1159, %v1164
    %v1167 = vmax.f32 %v1166, 0.0
    %1168 = vmatprep.subr.mxu0 %v58
    %1169 = vmatpush1.msra.mxu0 %v57
    %1170 = vmatprep.subr.mxu0 %v60
    %1171 = vmatpush1.msra.mxu0 %v59
    %1172 = vmatprep.subr.mxu0 %v62
    %1173 = vmatpush1.msra.mxu0 %v61
    %1174 = vmatprep.subr.mxu0 %v377
    %1175 = vmatpush1.msra.mxu0 %v374
    %1176 = vmatprep.subr.mxu0 0.0
    %1177 = vmatpush1.msra.mxu0 0.0
    %1178 = vmatprep.subr.mxu0 0.0
    %1179 = vmatpush1.msra.mxu0 0.0
    %1180 = vmatprep.subr.mxu0 0.0
    %1181 = vmatpush1.msra.mxu0 0.0
    %1182 = vmatprep.subr.mxu0 0.0
    %1183 = vmatpush1.msra.mxu0 0.0
    %1184 = vmatprep.subr.mxu0 0.0
    %1185 = vmatpush1.msra.mxu0 0.0
    %1186 = vmatprep.subr.mxu0 0.0
    %1187 = vmatpush1.msra.mxu0 0.0
    %1188 = vmatprep.subr.mxu0 0.0
    %1189 = vmatpush1.msra.mxu0 0.0
    %1190 = vmatprep.subr.mxu0 0.0
    %1191 = vmatpush1.msra.mxu0 0.0
    %1192 = vmatprep.subr.mxu0 0.0
    %1193 = vmatpush1.msra.mxu0 0.0
    %1194 = vmatprep.subr.mxu0 0.0
    %1195 = vmatpush1.msra.mxu0 0.0
    %1196 = vmatprep.subr.mxu0 0.0
    %1197 = vmatpush1.msra.mxu0 0.0
    %1198 = vmatprep.subr.mxu0 0.0
    %1199 = vmatpush1.msra.mxu0 0.0
    %1200 = vmatprep.subr.mxu0 0.0
    %1201 = vmatpush1.msra.mxu0 0.0
    %1202 = vmatprep.subr.mxu0 0.0
    %1203 = vmatpush1.msra.mxu0 0.0
    %1204 = vmatprep.subr.mxu0 0.0
    %1205 = vmatpush1.msra.mxu0 0.0
    %1206 = vmatprep.subr.mxu0 0.0
    %1207 = vmatpush1.msra.mxu0 0.0
    %1208 = vmatprep.subr.mxu0 0.0
    %1209 = vmatpush1.msra.mxu0 0.0
    %1210 = vmatprep.subr.mxu0 0.0
    %1211 = vmatpush1.msra.mxu0 0.0
    %1212 = vmatprep.subr.mxu0 0.0
    %1213 = vmatpush1.msra.mxu0 0.0
    %1214 = vmatprep.subr.mxu0 0.0
    %1215 = vmatpush1.msra.mxu0 0.0
    %1216 = vmatprep.subr.mxu0 0.0
    %1217 = vmatpush1.msra.mxu0 0.0
    %1218 = vmatprep.subr.mxu0 0.0
    %1219 = vmatpush1.msra.mxu0 0.0
    %1220 = vmatprep.subr.mxu0 0.0
    %1221 = vmatpush1.msra.mxu0 0.0
    %1222 = vmatprep.subr.mxu0 0.0
    %1223 = vmatpush1.msra.mxu0 0.0
    %1224 = vmatprep.subr.mxu0 0.0
    %1225 = vmatpush1.msra.mxu0 0.0
    %1226 = vmatprep.subr.mxu0 0.0
    %1227 = vmatpush1.msra.mxu0 0.0
    %1228 = vmatprep.subr.mxu0 0.0
    %1229 = vmatpush1.msra.mxu0 0.0
    %1230 = vmatprep.subr.mxu0 0.0
    %1231 = vmatpush1.msra.mxu0 0.0
    %1232 = vmatprep.mubr.f32.mxu0 0.0
    %1233 = vmatmul.mubr.f32.gmra.mrb[0].mxu0 %v613
    %v1234 = vpop.f32.mrb[0].mxu0
    %v1235 = vadd.f32 0.0, %v1234
    %v1236 = vpop.f32.mrb[0].mxu0
    %v1237 = vadd.f32 0.0, %v1236
    %1238 = vdwg.mxu0
    %1239 = vmatprep.subr.mxu0 %v49
    %1240 = vmatpush1.msra.mxu0 %v48
    %1241 = vmatprep.subr.mxu0 %v51
    %1242 = vmatpush1.msra.mxu0 %v50
    %1243 = vmatprep.subr.mxu0 %v53
    %1244 = vmatpush1.msra.mxu0 %v52
    %1245 = vmatprep.subr.mxu0 %v457
    %1246 = vmatpush1.msra.mxu0 %v454
    %1247 = vmatprep.subr.mxu0 0.0
    %1248 = vmatpush1.msra.mxu0 0.0
    %1249 = vmatprep.subr.mxu0 0.0
    %1250 = vmatpush1.msra.mxu0 0.0
    %1251 = vmatprep.subr.mxu0 0.0
    %1252 = vmatpush1.msra.mxu0 0.0
    %1253 = vmatprep.subr.mxu0 0.0
    %1254 = vmatpush1.msra.mxu0 0.0
    %1255 = vmatprep.subr.mxu0 0.0
    %1256 = vmatpush1.msra.mxu0 0.0
    %1257 = vmatprep.subr.mxu0 0.0
    %1258 = vmatpush1.msra.mxu0 0.0
    %1259 = vmatprep.subr.mxu0 0.0
    %1260 = vmatpush1.msra.mxu0 0.0
    %1261 = vmatprep.subr.mxu0 0.0
    %1262 = vmatpush1.msra.mxu0 0.0
    %1263 = vmatprep.subr.mxu0 0.0
    %1264 = vmatpush1.msra.mxu0 0.0
    %1265 = vmatprep.subr.mxu0 0.0
    %1266 = vmatpush1.msra.mxu0 0.0
    %1267 = vmatprep.subr.mxu0 0.0
    %1268 = vmatpush1.msra.mxu0 0.0
    %1269 = vmatprep.subr.mxu0 0.0
    %1270 = vmatpush1.msra.mxu0 0.0
    %1271 = vmatprep.subr.mxu0 0.0
    %1272 = vmatpush1.msra.mxu0 0.0
    %1273 = vmatprep.subr.mxu0 0.0
    %1274 = vmatpush1.msra.mxu0 0.0
    %1275 = vmatprep.subr.mxu0 0.0
    %1276 = vmatpush1.msra.mxu0 0.0
    %1277 = vmatprep.subr.mxu0 0.0
    %1278 = vmatpush1.msra.mxu0 0.0
    %1279 = vmatprep.subr.mxu0 0.0
    %1280 = vmatpush1.msra.mxu0 0.0
    %1281 = vmatprep.subr.mxu0 0.0
    %1282 = vmatpush1.msra.mxu0 0.0
    %1283 = vmatprep.subr.mxu0 0.0
    %1284 = vmatpush1.msra.mxu0 0.0
    %1285 = vmatprep.subr.mxu0 0.0
    %1286 = vmatpush1.msra.mxu0 0.0
    %1287 = vmatprep.subr.mxu0 0.0
    %1288 = vmatpush1.msra.mxu0 0.0
    %1289 = vmatprep.subr.mxu0 0.0
    %1290 = vmatpush1.msra.mxu0 0.0
    %1291 = vmatprep.subr.mxu0 0.0
    %1292 = vmatpush1.msra.mxu0 0.0
    %1293 = vmatprep.subr.mxu0 0.0
    %1294 = vmatpush1.msra.mxu0 0.0
    %1295 = vmatprep.subr.mxu0 0.0
    %1296 = vmatpush1.msra.mxu0 0.0
    %1297 = vmatprep.subr.mxu0 0.0
    %1298 = vmatpush1.msra.mxu0 0.0
    %1299 = vmatprep.subr.mxu0 0.0
    %1300 = vmatpush1.msra.mxu0 0.0
    %1301 = vmatprep.subr.mxu0 0.0
    %1302 = vmatpush1.msra.mxu0 0.0
    %1303 = vmatprep.mubr.f32.mxu0 0.0
    %1304 = vmatmul.mubr.f32.gmra.mrb[0].mxu0 %v531
    %v1305 = vpop.f32.mrb[0].mxu0
    %v1306 = vadd.f32 %v1235, %v1305
    %v1307 = vpop.f32.mrb[0].mxu0
    %v1308 = vadd.f32 %v1237, %v1307
    %1309 = vdwg.mxu0
    %1310 = vmatprep.subr.mxu0 %v67
    %1311 = vmatpush1.msra.mxu0 %v66
    %1312 = vmatprep.subr.mxu0 %v69
    %1313 = vmatpush1.msra.mxu0 %v68
    %1314 = vmatprep.subr.mxu0 %v71
    %1315 = vmatpush1.msra.mxu0 %v70
    %1316 = vmatprep.subr.mxu0 %v537
    %1317 = vmatpush1.msra.mxu0 %v534
    %1318 = vmatprep.subr.mxu0 0.0
    %1319 = vmatpush1.msra.mxu0 0.0
    %1320 = vmatprep.subr.mxu0 0.0
    %1321 = vmatpush1.msra.mxu0 0.0
    %1322 = vmatprep.subr.mxu0 0.0
    %1323 = vmatpush1.msra.mxu0 0.0
    %1324 = vmatprep.subr.mxu0 0.0
    %1325 = vmatpush1.msra.mxu0 0.0
    %1326 = vmatprep.subr.mxu0 0.0
    %1327 = vmatpush1.msra.mxu0 0.0
    %1328 = vmatprep.subr.mxu0 0.0
    %1329 = vmatpush1.msra.mxu0 0.0
    %1330 = vmatprep.subr.mxu0 0.0
    %1331 = vmatpush1.msra.mxu0 0.0
    %1332 = vmatprep.subr.mxu0 0.0
    %1333 = vmatpush1.msra.mxu0 0.0
    %1334 = vmatprep.subr.mxu0 0.0
    %1335 = vmatpush1.msra.mxu0 0.0
    %1336 = vmatprep.subr.mxu0 0.0
    %1337 = vmatpush1.msra.mxu0 0.0
    %1338 = vmatprep.subr.mxu0 0.0
    %1339 = vmatpush1.msra.mxu0 0.0
    %1340 = vmatprep.subr.mxu0 0.0
    %1341 = vmatpush1.msra.mxu0 0.0
    %1342 = vmatprep.subr.mxu0 0.0
    %1343 = vmatpush1.msra.mxu0 0.0
    %1344 = vmatprep.subr.mxu0 0.0
    %1345 = vmatpush1.msra.mxu0 0.0
    %1346 = vmatprep.subr.mxu0 0.0
    %1347 = vmatpush1.msra.mxu0 0.0
    %1348 = vmatprep.subr.mxu0 0.0
    %1349 = vmatpush1.msra.mxu0 0.0
    %1350 = vmatprep.subr.mxu0 0.0
    %1351 = vmatpush1.msra.mxu0 0.0
    %1352 = vmatprep.subr.mxu0 0.0
    %1353 = vmatpush1.msra.mxu0 0.0
    %1354 = vmatprep.subr.mxu0 0.0
    %1355 = vmatpush1.msra.mxu0 0.0
    %1356 = vmatprep.subr.mxu0 0.0
    %1357 = vmatpush1.msra.mxu0 0.0
    %1358 = vmatprep.subr.mxu0 0.0
    %1359 = vmatpush1.msra.mxu0 0.0
    %1360 = vmatprep.subr.mxu0 0.0
    %1361 = vmatpush1.msra.mxu0 0.0
    %1362 = vmatprep.subr.mxu0 0.0
    %1363 = vmatpush1.msra.mxu0 0.0
    %1364 = vmatprep.subr.mxu0 0.0
    %1365 = vmatpush1.msra.mxu0 0.0
    %1366 = vmatprep.subr.mxu0 0.0
    %1367 = vmatpush1.msra.mxu0 0.0
    %1368 = vmatprep.subr.mxu0 0.0
    %1369 = vmatpush1.msra.mxu0 0.0
    %1370 = vmatprep.subr.mxu0 0.0
    %1371 = vmatpush1.msra.mxu0 0.0
    %1372 = vmatprep.subr.mxu0 0.0
    %1373 = vmatpush1.msra.mxu0 0.0
    %1374 = vmatprep.mubr.f32.mxu0 0.0
    %1375 = vmatmul.mubr.f32.gmra.mrb[0].mxu0 %v695
    %v1376 = vpop.f32.mrb[0].mxu0
    %v1377 = vadd.f32 0.0, %v1376
    %v1378 = vpop.f32.mrb[0].mxu0
    %v1379 = vadd.f32 0.0, %v1378
    %1380 = vdwg.mxu0
    %v1381 = vadd.f32 %v1306, %v1377
    %v1382 = vadd.f32 %v1308, %v1379
    %1383 = vmatprep.subr.mxu0 %v76
    %1384 = vmatpush1.msra.mxu0 %v75
    %1385 = vmatprep.subr.mxu0 %v78
    %1386 = vmatpush1.msra.mxu0 %v77
    %1387 = vmatprep.subr.mxu0 %v80
    %1388 = vmatpush1.msra.mxu0 %v79
    %1389 = vmatprep.subr.mxu0 %v619
    %1390 = vmatpush1.msra.mxu0 %v616
    %1391 = vmatprep.subr.mxu0 0.0
    %1392 = vmatpush1.msra.mxu0 0.0
    %1393 = vmatprep.subr.mxu0 0.0
    %1394 = vmatpush1.msra.mxu0 0.0
    %1395 = vmatprep.subr.mxu0 0.0
    %1396 = vmatpush1.msra.mxu0 0.0
    %1397 = vmatprep.subr.mxu0 0.0
    %1398 = vmatpush1.msra.mxu0 0.0
    %1399 = vmatprep.subr.mxu0 0.0
    %1400 = vmatpush1.msra.mxu0 0.0
    %1401 = vmatprep.subr.mxu0 0.0
    %1402 = vmatpush1.msra.mxu0 0.0
    %1403 = vmatprep.subr.mxu0 0.0
    %1404 = vmatpush1.msra.mxu0 0.0
    %1405 = vmatprep.subr.mxu0 0.0
    %1406 = vmatpush1.msra.mxu0 0.0
    %1407 = vmatprep.subr.mxu0 0.0
    %1408 = vmatpush1.msra.mxu0 0.0
    %1409 = vmatprep.subr.mxu0 0.0
    %1410 = vmatpush1.msra.mxu0 0.0
    %1411 = vmatprep.subr.mxu0 0.0
    %1412 = vmatpush1.msra.mxu0 0.0
    %1413 = vmatprep.subr.mxu0 0.0
    %1414 = vmatpush1.msra.mxu0 0.0
    %1415 = vmatprep.subr.mxu0 0.0
    %1416 = vmatpush1.msra.mxu0 0.0
    %1417 = vmatprep.subr.mxu0 0.0
    %1418 = vmatpush1.msra.mxu0 0.0
    %1419 = vmatprep.subr.mxu0 0.0
    %1420 = vmatpush1.msra.mxu0 0.0
    %1421 = vmatprep.subr.mxu0 0.0
    %1422 = vmatpush1.msra.mxu0 0.0
    %1423 = vmatprep.subr.mxu0 0.0
    %1424 = vmatpush1.msra.mxu0 0.0
    %1425 = vmatprep.subr.mxu0 0.0
    %1426 = vmatpush1.msra.mxu0 0.0
    %1427 = vmatprep.subr.mxu0 0.0
    %1428 = vmatpush1.msra.mxu0 0.0
    %1429 = vmatprep.subr.mxu0 0.0
    %1430 = vmatpush1.msra.mxu0 0.0
    %1431 = vmatprep.subr.mxu0 0.0
    %1432 = vmatpush1.msra.mxu0 0.0
    %1433 = vmatprep.subr.mxu0 0.0
    %1434 = vmatpush1.msra.mxu0 0.0
    %1435 = vmatprep.subr.mxu0 0.0
    %1436 = vmatpush1.msra.mxu0 0.0
    %1437 = vmatprep.subr.mxu0 0.0
    %1438 = vmatpush1.msra.mxu0 0.0
    %1439 = vmatprep.subr.mxu0 0.0
    %1440 = vmatpush1.msra.mxu0 0.0
    %1441 = vmatprep.subr.mxu0 0.0
    %1442 = vmatpush1.msra.mxu0 0.0
    %1443 = vmatprep.subr.mxu0 0.0
    %1444 = vmatpush1.msra.mxu0 0.0
    %1445 = vmatprep.subr.mxu0 0.0
    %1446 = vmatpush1.msra.mxu0 0.0
    %1447 = vmatprep.mubr.f32.mxu0 0.0
    %1448 = vmatmul.mubr.f32.gmra.mrb[0].mxu0 %v1075
    %v1449 = vpop.f32.mrb[0].mxu0
    %v1450 = vadd.f32 0.0, %v1449
    %v1451 = vpop.f32.mrb[0].mxu0
    %v1452 = vadd.f32 0.0, %v1451
    %1453 = vdwg.mxu0
    %v1454 = vadd.f32 %v1381, %v1450
    %v1455 = vadd.f32 %v1382, %v1452
    %v1456 = vrot.slane %v366, 1
    %v1457 = vsel %vm368, %v1456, 0
    %1459 = vmatprep.subr.mxu0 %v85
    %1460 = vmatpush1.msra.mxu0 %v84
    %1461 = vmatprep.subr.mxu0 %v87
    %1462 = vmatpush1.msra.mxu0 %v86
    %1463 = vmatprep.subr.mxu0 %v89
    %1464 = vmatpush1.msra.mxu0 %v88
    %1465 = vmatprep.subr.mxu0 %v701
    %1466 = vmatpush1.msra.mxu0 %v698
    %1467 = vmatprep.subr.mxu0 0.0
    %1468 = vmatpush1.msra.mxu0 0.0
    %1469 = vmatprep.subr.mxu0 0.0
    %1470 = vmatpush1.msra.mxu0 0.0
    %1471 = vmatprep.subr.mxu0 0.0
    %1472 = vmatpush1.msra.mxu0 0.0
    %1473 = vmatprep.subr.mxu0 0.0
    %1474 = vmatpush1.msra.mxu0 0.0
    %1475 = vmatprep.subr.mxu0 0.0
    %1476 = vmatpush1.msra.mxu0 0.0
    %1477 = vmatprep.subr.mxu0 0.0
    %1478 = vmatpush1.msra.mxu0 0.0
    %1479 = vmatprep.subr.mxu0 0.0
    %1480 = vmatpush1.msra.mxu0 0.0
    %1481 = vmatprep.subr.mxu0 0.0
    %1482 = vmatpush1.msra.mxu0 0.0
    %1483 = vmatprep.subr.mxu0 0.0
    %1484 = vmatpush1.msra.mxu0 0.0
    %1485 = vmatprep.subr.mxu0 0.0
    %1486 = vmatpush1.msra.mxu0 0.0
    %1487 = vmatprep.subr.mxu0 0.0
    %1488 = vmatpush1.msra.mxu0 0.0
    %1489 = vmatprep.subr.mxu0 0.0
    %1490 = vmatpush1.msra.mxu0 0.0
    %1491 = vmatprep.subr.mxu0 0.0
    %1492 = vmatpush1.msra.mxu0 0.0
    %1493 = vmatprep.subr.mxu0 0.0
    %1494 = vmatpush1.msra.mxu0 0.0
    %1495 = vmatprep.subr.mxu0 0.0
    %1496 = vmatpush1.msra.mxu0 0.0
    %1497 = vmatprep.subr.mxu0 0.0
    %1498 = vmatpush1.msra.mxu0 0.0
    %1499 = vmatprep.subr.mxu0 0.0
    %1500 = vmatpush1.msra.mxu0 0.0
    %1501 = vmatprep.subr.mxu0 0.0
    %1502 = vmatpush1.msra.mxu0 0.0
    %1503 = vmatprep.subr.mxu0 0.0
    %1504 = vmatpush1.msra.mxu0 0.0
    %1505 = vmatprep.subr.mxu0 0.0
    %1506 = vmatpush1.msra.mxu0 0.0
    %1507 = vmatprep.subr.mxu0 0.0
    %1508 = vmatpush1.msra.mxu0 0.0
    %1509 = vmatprep.subr.mxu0 0.0
    %1510 = vmatpush1.msra.mxu0 0.0
    %1511 = vmatprep.subr.mxu0 0.0
    %1512 = vmatpush1.msra.mxu0 0.0
    %1513 = vmatprep.subr.mxu0 0.0
    %1514 = vmatpush1.msra.mxu0 0.0
    %1515 = vmatprep.subr.mxu0 0.0
    %1516 = vmatpush1.msra.mxu0 0.0
    %1517 = vmatprep.subr.mxu0 0.0
    %1518 = vmatpush1.msra.mxu0 0.0
    %1519 = vmatprep.subr.mxu0 0.0
    %1520 = vmatpush1.msra.mxu0 0.0
    %1521 = vmatprep.subr.mxu0 0.0
    %1522 = vmatpush1.msra.mxu0 0.0
    %1523 = vmatprep.mubr.f32.mxu0 0.0
    %1524 = vmatmul.mubr.f32.gmra.mrb[0].mxu0 %v1457
    %v1525 = vpop.f32.mrb[0].mxu0
    %v1526 = vadd.f32 0.0, %v1525
    %v1527 = vpop.f32.mrb[0].mxu0
    %v1528 = vadd.f32 0.0, %v1527
    %1529 = vdwg.mxu0
    %v1530 = vadd.f32 %v1454, %v1526
    %v1531 = vadd.f32 %v1455, %v1528
    %1534 = vrot.lane.b32.xlu0 %v1530, 8
    %v1535 = vpop.permute.xlu0 %1534
    %1536 = vrot.lane.b32.xlu0 %v1531, 8
    %v1537 = vpop.permute.xlu0 %1536
    %v1538 = vsel %vm782, %v1535, %v1537
    %v1540 = vmax.f32 %v1530, %v1538
    %1541 = vmatprep.subr.mxu0 %v58
    %1542 = vmatpush1.msra.mxu0 %v57
    %1543 = vmatprep.subr.mxu0 %v60
    %1544 = vmatpush1.msra.mxu0 %v59
    %1545 = vmatprep.subr.mxu0 %v62
    %1546 = vmatpush1.msra.mxu0 %v61
    %1547 = vmatprep.subr.mxu0 %v377
    %1548 = vmatpush1.msra.mxu0 %v374
    %1549 = vmatprep.subr.mxu0 0.0
    %1550 = vmatpush1.msra.mxu0 0.0
    %1551 = vmatprep.subr.mxu0 0.0
    %1552 = vmatpush1.msra.mxu0 0.0
    %1553 = vmatprep.subr.mxu0 0.0
    %1554 = vmatpush1.msra.mxu0 0.0
    %1555 = vmatprep.subr.mxu0 0.0
    %1556 = vmatpush1.msra.mxu0 0.0
    %1557 = vmatprep.subr.mxu0 0.0
    %1558 = vmatpush1.msra.mxu0 0.0
    %1559 = vmatprep.subr.mxu0 0.0
    %1560 = vmatpush1.msra.mxu0 0.0
    %1561 = vmatprep.subr.mxu0 0.0
    %1562 = vmatpush1.msra.mxu0 0.0
    %1563 = vmatprep.subr.mxu0 0.0
    %1564 = vmatpush1.msra.mxu0 0.0
    %1565 = vmatprep.subr.mxu0 0.0
    %1566 = vmatpush1.msra.mxu0 0.0
    %1567 = vmatprep.subr.mxu0 0.0
    %1568 = vmatpush1.msra.mxu0 0.0
    %1569 = vmatprep.subr.mxu0 0.0
    %1570 = vmatpush1.msra.mxu0 0.0
    %1571 = vmatprep.subr.mxu0 0.0
    %1572 = vmatpush1.msra.mxu0 0.0
    %1573 = vmatprep.subr.mxu0 0.0
    %1574 = vmatpush1.msra.mxu0 0.0
    %1575 = vmatprep.subr.mxu0 0.0
    %1576 = vmatpush1.msra.mxu0 0.0
    %1577 = vmatprep.subr.mxu0 0.0
    %1578 = vmatpush1.msra.mxu0 0.0
    %1579 = vmatprep.subr.mxu0 0.0
    %1580 = vmatpush1.msra.mxu0 0.0
    %1581 = vmatprep.subr.mxu0 0.0
    %1582 = vmatpush1.msra.mxu0 0.0
    %1583 = vmatprep.subr.mxu0 0.0
    %1584 = vmatpush1.msra.mxu0 0.0
    %1585 = vmatprep.subr.mxu0 0.0
    %1586 = vmatpush1.msra.mxu0 0.0
    %1587 = vmatprep.subr.mxu0 0.0
    %1588 = vmatpush1.msra.mxu0 0.0
    %1589 = vmatprep.subr.mxu0 0.0
    %1590 = vmatpush1.msra.mxu0 0.0
    %1591 = vmatprep.subr.mxu0 0.0
    %1592 = vmatpush1.msra.mxu0 0.0
    %1593 = vmatprep.subr.mxu0 0.0
    %1594 = vmatpush1.msra.mxu0 0.0
    %1595 = vmatprep.subr.mxu0 0.0
    %1596 = vmatpush1.msra.mxu0 0.0
    %1597 = vmatprep.subr.mxu0 0.0
    %1598 = vmatpush1.msra.mxu0 0.0
    %1599 = vmatprep.subr.mxu0 0.0
    %1600 = vmatpush1.msra.mxu0 0.0
    %1601 = vmatprep.subr.mxu0 0.0
    %1602 = vmatpush1.msra.mxu0 0.0
    %1603 = vmatprep.subr.mxu0 0.0
    %1604 = vmatpush1.msra.mxu0 0.0
    %1605 = vmatprep.mubr.f32.mxu0 0.0
    %1606 = vmatmul.mubr.f32.gmra.mrb[0].mxu0 %v695
    %v1607 = vpop.f32.mrb[0].mxu0
    %v1608 = vadd.f32 0.0, %v1607
    %v1609 = vpop.f32.mrb[0].mxu0
    %v1610 = vadd.f32 0.0, %v1609
    %1611 = vdwg.mxu0
    %1612 = vmatprep.subr.mxu0 %v49
    %1613 = vmatpush1.msra.mxu0 %v48
    %1614 = vmatprep.subr.mxu0 %v51
    %1615 = vmatpush1.msra.mxu0 %v50
    %1616 = vmatprep.subr.mxu0 %v53
    %1617 = vmatpush1.msra.mxu0 %v52
    %1618 = vmatprep.subr.mxu0 %v457
    %1619 = vmatpush1.msra.mxu0 %v454
    %1620 = vmatprep.subr.mxu0 0.0
    %1621 = vmatpush1.msra.mxu0 0.0
    %1622 = vmatprep.subr.mxu0 0.0
    %1623 = vmatpush1.msra.mxu0 0.0
    %1624 = vmatprep.subr.mxu0 0.0
    %1625 = vmatpush1.msra.mxu0 0.0
    %1626 = vmatprep.subr.mxu0 0.0
    %1627 = vmatpush1.msra.mxu0 0.0
    %1628 = vmatprep.subr.mxu0 0.0
    %1629 = vmatpush1.msra.mxu0 0.0
    %1630 = vmatprep.subr.mxu0 0.0
    %1631 = vmatpush1.msra.mxu0 0.0
    %1632 = vmatprep.subr.mxu0 0.0
    %1633 = vmatpush1.msra.mxu0 0.0
    %1634 = vmatprep.subr.mxu0 0.0
    %1635 = vmatpush1.msra.mxu0 0.0
    %1636 = vmatprep.subr.mxu0 0.0
    %1637 = vmatpush1.msra.mxu0 0.0
    %1638 = vmatprep.subr.mxu0 0.0
    %1639 = vmatpush1.msra.mxu0 0.0
    %1640 = vmatprep.subr.mxu0 0.0
    %1641 = vmatpush1.msra.mxu0 0.0
    %1642 = vmatprep.subr.mxu0 0.0
    %1643 = vmatpush1.msra.mxu0 0.0
    %1644 = vmatprep.subr.mxu0 0.0
    %1645 = vmatpush1.msra.mxu0 0.0
    %1646 = vmatprep.subr.mxu0 0.0
    %1647 = vmatpush1.msra.mxu0 0.0
    %1648 = vmatprep.subr.mxu0 0.0
    %1649 = vmatpush1.msra.mxu0 0.0
    %1650 = vmatprep.subr.mxu0 0.0
    %1651 = vmatpush1.msra.mxu0 0.0
    %1652 = vmatprep.subr.mxu0 0.0
    %1653 = vmatpush1.msra.mxu0 0.0
    %1654 = vmatprep.subr.mxu0 0.0
    %1655 = vmatpush1.msra.mxu0 0.0
    %1656 = vmatprep.subr.mxu0 0.0
    %1657 = vmatpush1.msra.mxu0 0.0
    %1658 = vmatprep.subr.mxu0 0.0
    %1659 = vmatpush1.msra.mxu0 0.0
    %1660 = vmatprep.subr.mxu0 0.0
    %1661 = vmatpush1.msra.mxu0 0.0
    %1662 = vmatprep.subr.mxu0 0.0
    %1663 = vmatpush1.msra.mxu0 0.0
    %1664 = vmatprep.subr.mxu0 0.0
    %1665 = vmatpush1.msra.mxu0 0.0
    %1666 = vmatprep.subr.mxu0 0.0
    %1667 = vmatpush1.msra.mxu0 0.0
    %1668 = vmatprep.subr.mxu0 0.0
    %1669 = vmatpush1.msra.mxu0 0.0
    %1670 = vmatprep.subr.mxu0 0.0
    %1671 = vmatpush1.msra.mxu0 0.0
    %1672 = vmatprep.subr.mxu0 0.0
    %1673 = vmatpush1.msra.mxu0 0.0
    %1674 = vmatprep.subr.mxu0 0.0
    %1675 = vmatpush1.msra.mxu0 0.0
    %1676 = vmatprep.mubr.f32.mxu0 0.0
    %1677 = vmatmul.mubr.f32.gmra.mrb[0].mxu0 %v613
    %v1678 = vpop.f32.mrb[0].mxu0
    %v1679 = vadd.f32 %v1608, %v1678
    %v1680 = vpop.f32.mrb[0].mxu0
    %v1681 = vadd.f32 %v1610, %v1680
    %1682 = vdwg.mxu0
    %1683 = vmatprep.subr.mxu0 %v67
    %1684 = vmatpush1.msra.mxu0 %v66
    %1685 = vmatprep.subr.mxu0 %v69
    %1686 = vmatpush1.msra.mxu0 %v68
    %1687 = vmatprep.subr.mxu0 %v71
    %1688 = vmatpush1.msra.mxu0 %v70
    %1689 = vmatprep.subr.mxu0 %v537
    %1690 = vmatpush1.msra.mxu0 %v534
    %1691 = vmatprep.subr.mxu0 0.0
    %1692 = vmatpush1.msra.mxu0 0.0
    %1693 = vmatprep.subr.mxu0 0.0
    %1694 = vmatpush1.msra.mxu0 0.0
    %1695 = vmatprep.subr.mxu0 0.0
    %1696 = vmatpush1.msra.mxu0 0.0
    %1697 = vmatprep.subr.mxu0 0.0
    %1698 = vmatpush1.msra.mxu0 0.0
    %1699 = vmatprep.subr.mxu0 0.0
    %1700 = vmatpush1.msra.mxu0 0.0
    %1701 = vmatprep.subr.mxu0 0.0
    %1702 = vmatpush1.msra.mxu0 0.0
    %1703 = vmatprep.subr.mxu0 0.0
    %1704 = vmatpush1.msra.mxu0 0.0
    %1705 = vmatprep.subr.mxu0 0.0
    %1706 = vmatpush1.msra.mxu0 0.0
    %1707 = vmatprep.subr.mxu0 0.0
    %1708 = vmatpush1.msra.mxu0 0.0
    %1709 = vmatprep.subr.mxu0 0.0
    %1710 = vmatpush1.msra.mxu0 0.0
    %1711 = vmatprep.subr.mxu0 0.0
    %1712 = vmatpush1.msra.mxu0 0.0
    %1713 = vmatprep.subr.mxu0 0.0
    %1714 = vmatpush1.msra.mxu0 0.0
    %1715 = vmatprep.subr.mxu0 0.0
    %1716 = vmatpush1.msra.mxu0 0.0
    %1717 = vmatprep.subr.mxu0 0.0
    %1718 = vmatpush1.msra.mxu0 0.0
    %1719 = vmatprep.subr.mxu0 0.0
    %1720 = vmatpush1.msra.mxu0 0.0
    %1721 = vmatprep.subr.mxu0 0.0
    %1722 = vmatpush1.msra.mxu0 0.0
    %1723 = vmatprep.subr.mxu0 0.0
    %1724 = vmatpush1.msra.mxu0 0.0
    %1725 = vmatprep.subr.mxu0 0.0
    %1726 = vmatpush1.msra.mxu0 0.0
    %1727 = vmatprep.subr.mxu0 0.0
    %1728 = vmatpush1.msra.mxu0 0.0
    %1729 = vmatprep.subr.mxu0 0.0
    %1730 = vmatpush1.msra.mxu0 0.0
    %1731 = vmatprep.subr.mxu0 0.0
    %1732 = vmatpush1.msra.mxu0 0.0
    %1733 = vmatprep.subr.mxu0 0.0
    %1734 = vmatpush1.msra.mxu0 0.0
    %1735 = vmatprep.subr.mxu0 0.0
    %1736 = vmatpush1.msra.mxu0 0.0
    %1737 = vmatprep.subr.mxu0 0.0
    %1738 = vmatpush1.msra.mxu0 0.0
    %1739 = vmatprep.subr.mxu0 0.0
    %1740 = vmatpush1.msra.mxu0 0.0
    %1741 = vmatprep.subr.mxu0 0.0
    %1742 = vmatpush1.msra.mxu0 0.0
    %1743 = vmatprep.subr.mxu0 0.0
    %1744 = vmatpush1.msra.mxu0 0.0
    %1745 = vmatprep.subr.mxu0 0.0
    %1746 = vmatpush1.msra.mxu0 0.0
    %1747 = vmatprep.mubr.f32.mxu0 0.0
    %1748 = vmatmul.mubr.f32.gmra.mrb[0].mxu0 %v1075
    %v1749 = vpop.f32.mrb[0].mxu0
    %v1750 = vadd.f32 0.0, %v1749
    %v1751 = vpop.f32.mrb[0].mxu0
    %v1752 = vadd.f32 0.0, %v1751
    %1753 = vdwg.mxu0
    %v1754 = vadd.f32 %v1679, %v1750
    %v1755 = vadd.f32 %v1681, %v1752
    %1756 = vmatprep.subr.mxu0 %v76
    %1757 = vmatpush1.msra.mxu0 %v75
    %1758 = vmatprep.subr.mxu0 %v78
    %1759 = vmatpush1.msra.mxu0 %v77
    %1760 = vmatprep.subr.mxu0 %v80
    %1761 = vmatpush1.msra.mxu0 %v79
    %1762 = vmatprep.subr.mxu0 %v619
    %1763 = vmatpush1.msra.mxu0 %v616
    %1764 = vmatprep.subr.mxu0 0.0
    %1765 = vmatpush1.msra.mxu0 0.0
    %1766 = vmatprep.subr.mxu0 0.0
    %1767 = vmatpush1.msra.mxu0 0.0
    %1768 = vmatprep.subr.mxu0 0.0
    %1769 = vmatpush1.msra.mxu0 0.0
    %1770 = vmatprep.subr.mxu0 0.0
    %1771 = vmatpush1.msra.mxu0 0.0
    %1772 = vmatprep.subr.mxu0 0.0
    %1773 = vmatpush1.msra.mxu0 0.0
    %1774 = vmatprep.subr.mxu0 0.0
    %1775 = vmatpush1.msra.mxu0 0.0
    %1776 = vmatprep.subr.mxu0 0.0
    %1777 = vmatpush1.msra.mxu0 0.0
    %1778 = vmatprep.subr.mxu0 0.0
    %1779 = vmatpush1.msra.mxu0 0.0
    %1780 = vmatprep.subr.mxu0 0.0
    %1781 = vmatpush1.msra.mxu0 0.0
    %1782 = vmatprep.subr.mxu0 0.0
    %1783 = vmatpush1.msra.mxu0 0.0
    %1784 = vmatprep.subr.mxu0 0.0
    %1785 = vmatpush1.msra.mxu0 0.0
    %1786 = vmatprep.subr.mxu0 0.0
    %1787 = vmatpush1.msra.mxu0 0.0
    %1788 = vmatprep.subr.mxu0 0.0
    %1789 = vmatpush1.msra.mxu0 0.0
    %1790 = vmatprep.subr.mxu0 0.0
    %1791 = vmatpush1.msra.mxu0 0.0
    %1792 = vmatprep.subr.mxu0 0.0
    %1793 = vmatpush1.msra.mxu0 0.0
    %1794 = vmatprep.subr.mxu0 0.0
    %1795 = vmatpush1.msra.mxu0 0.0
    %1796 = vmatprep.subr.mxu0 0.0
    %1797 = vmatpush1.msra.mxu0 0.0
    %1798 = vmatprep.subr.mxu0 0.0
    %1799 = vmatpush1.msra.mxu0 0.0
    %1800 = vmatprep.subr.mxu0 0.0
    %1801 = vmatpush1.msra.mxu0 0.0
    %1802 = vmatprep.subr.mxu0 0.0
    %1803 = vmatpush1.msra.mxu0 0.0
    %1804 = vmatprep.subr.mxu0 0.0
    %1805 = vmatpush1.msra.mxu0 0.0
    %1806 = vmatprep.subr.mxu0 0.0
    %1807 = vmatpush1.msra.mxu0 0.0
    %1808 = vmatprep.subr.mxu0 0.0
    %1809 = vmatpush1.msra.mxu0 0.0
    %1810 = vmatprep.subr.mxu0 0.0
    %1811 = vmatpush1.msra.mxu0 0.0
    %1812 = vmatprep.subr.mxu0 0.0
    %1813 = vmatpush1.msra.mxu0 0.0
    %1814 = vmatprep.subr.mxu0 0.0
    %1815 = vmatpush1.msra.mxu0 0.0
    %1816 = vmatprep.subr.mxu0 0.0
    %1817 = vmatpush1.msra.mxu0 0.0
    %1818 = vmatprep.subr.mxu0 0.0
    %1819 = vmatpush1.msra.mxu0 0.0
    %1820 = vmatprep.mubr.f32.mxu0 0.0
    %1821 = vmatmul.mubr.f32.gmra.mrb[0].mxu0 %v1457
    %v1822 = vpop.f32.mrb[0].mxu0
    %v1823 = vadd.f32 0.0, %v1822
    %v1824 = vpop.f32.mrb[0].mxu0
    %v1825 = vadd.f32 0.0, %v1824
    %1826 = vdwg.mxu0
    %v1827 = vadd.f32 %v1754, %v1823
    %v1828 = vadd.f32 %v1755, %v1825
    %v1829 = vrot.slane %v367, 1
    %v1830 = vsel %vm368, %v1829, 0
    %1832 = vmatprep.subr.mxu0 %v85
    %1833 = vmatpush1.msra.mxu0 %v84
    %1834 = vmatprep.subr.mxu0 %v87
    %1835 = vmatpush1.msra.mxu0 %v86
    %1836 = vmatprep.subr.mxu0 %v89
    %1837 = vmatpush1.msra.mxu0 %v88
    %1838 = vmatprep.subr.mxu0 %v701
    %1839 = vmatpush1.msra.mxu0 %v698
    %1840 = vmatprep.subr.mxu0 0.0
    %1841 = vmatpush1.msra.mxu0 0.0
    %1842 = vmatprep.subr.mxu0 0.0
    %1843 = vmatpush1.msra.mxu0 0.0
    %1844 = vmatprep.subr.mxu0 0.0
    %1845 = vmatpush1.msra.mxu0 0.0
    %1846 = vmatprep.subr.mxu0 0.0
    %1847 = vmatpush1.msra.mxu0 0.0
    %1848 = vmatprep.subr.mxu0 0.0
    %1849 = vmatpush1.msra.mxu0 0.0
    %1850 = vmatprep.subr.mxu0 0.0
    %1851 = vmatpush1.msra.mxu0 0.0
    %1852 = vmatprep.subr.mxu0 0.0
    %1853 = vmatpush1.msra.mxu0 0.0
    %1854 = vmatprep.subr.mxu0 0.0
    %1855 = vmatpush1.msra.mxu0 0.0
    %1856 = vmatprep.subr.mxu0 0.0
    %1857 = vmatpush1.msra.mxu0 0.0
    %1858 = vmatprep.subr.mxu0 0.0
    %1859 = vmatpush1.msra.mxu0 0.0
    %1860 = vmatprep.subr.mxu0 0.0
    %1861 = vmatpush1.msra.mxu0 0.0
    %1862 = vmatprep.subr.mxu0 0.0
    %1863 = vmatpush1.msra.mxu0 0.0
    %1864 = vmatprep.subr.mxu0 0.0
    %1865 = vmatpush1.msra.mxu0 0.0
    %1866 = vmatprep.subr.mxu0 0.0
    %1867 = vmatpush1.msra.mxu0 0.0
    %1868 = vmatprep.subr.mxu0 0.0
    %1869 = vmatpush1.msra.mxu0 0.0
    %1870 = vmatprep.subr.mxu0 0.0
    %1871 = vmatpush1.msra.mxu0 0.0
    %1872 = vmatprep.subr.mxu0 0.0
    %1873 = vmatpush1.msra.mxu0 0.0
    %1874 = vmatprep.subr.mxu0 0.0
    %1875 = vmatpush1.msra.mxu0 0.0
    %1876 = vmatprep.subr.mxu0 0.0
    %1877 = vmatpush1.msra.mxu0 0.0
    %1878 = vmatprep.subr.mxu0 0.0
    %1879 = vmatpush1.msra.mxu0 0.0
    %1880 = vmatprep.subr.mxu0 0.0
    %1881 = vmatpush1.msra.mxu0 0.0
    %1882 = vmatprep.subr.mxu0 0.0
    %1883 = vmatpush1.msra.mxu0 0.0
    %1884 = vmatprep.subr.mxu0 0.0
    %1885 = vmatpush1.msra.mxu0 0.0
    %1886 = vmatprep.subr.mxu0 0.0
    %1887 = vmatpush1.msra.mxu0 0.0
    %1888 = vmatprep.subr.mxu0 0.0
    %1889 = vmatpush1.msra.mxu0 0.0
    %1890 = vmatprep.subr.mxu0 0.0
    %1891 = vmatpush1.msra.mxu0 0.0
    %1892 = vmatprep.subr.mxu0 0.0
    %1893 = vmatpush1.msra.mxu0 0.0
    %1894 = vmatprep.subr.mxu0 0.0
    %1895 = vmatpush1.msra.mxu0 0.0
    %1896 = vmatprep.mubr.f32.mxu0 0.0
    %1897 = vmatmul.mubr.f32.gmra.mrb[0].mxu0 %v1830
    %v1898 = vpop.f32.mrb[0].mxu0
    %v1899 = vadd.f32 0.0, %v1898
    %v1900 = vpop.f32.mrb[0].mxu0
    %v1901 = vadd.f32 0.0, %v1900
    %1902 = vdwg.mxu0
    %v1903 = vadd.f32 %v1827, %v1899
    %v1904 = vadd.f32 %v1828, %v1901
    %v1905 = vmax.f32 %v1540, %v1903
    %1908 = vrot.lane.b32.xlu0 %v1903, 8
    %v1909 = vpop.permute.xlu0 %1908
    %1910 = vrot.lane.b32.xlu0 %v1904, 8
    %v1911 = vpop.permute.xlu0 %1910
    %v1912 = vsel %vm782, %v1909, %v1911
    %v1914 = vmax.f32 %v1905, %v1912
    %v1915 = vadd.f32 %v1914, %v1164
    %v1916 = vmax.f32 %v1915, 0.0
    %vm1917 = vcmask 982016
    %v1919 = vsel %vm1917, %v1916, 0
    %1921 = vmatprep.subr.mxu0 %v124
    %1922 = vmatpush1.msra.mxu0 %v123
    %1923 = vmatprep.subr.mxu0 %v126
    %1924 = vmatpush1.msra.mxu0 %v125
    %1925 = vmatprep.subr.mxu0 %v128
    %1926 = vmatpush1.msra.mxu0 %v127
    %1927 = vmatprep.subr.mxu0 %v130
    %1928 = vmatpush1.msra.mxu0 %v129
    %1929 = vmatprep.subr.mxu0 %v132
    %1930 = vmatpush1.msra.mxu0 %v131
    %1931 = vmatprep.subr.mxu0 %v134
    %1932 = vmatpush1.msra.mxu0 %v133
    %1933 = vmatprep.subr.mxu0 %v136
    %1934 = vmatpush1.msra.mxu0 %v135
    %1935 = vmatprep.subr.mxu0 %v138
    %1936 = vmatpush1.msra.mxu0 %v137
    %1937 = vmatprep.subr.mxu0 %v140
    %1938 = vmatpush1.msra.mxu0 %v139
    %1939 = vmatprep.subr.mxu0 %v142
    %1940 = vmatpush1.msra.mxu0 %v141
    %1941 = vmatprep.subr.mxu0 %v144
    %1942 = vmatpush1.msra.mxu0 %v143
    %1943 = vmatprep.subr.mxu0 %v146
    %1944 = vmatpush1.msra.mxu0 %v145
    %1945 = vmatprep.subr.mxu0 %v148
    %1946 = vmatpush1.msra.mxu0 %v147
    %1947 = vmatprep.subr.mxu0 %v150
    %1948 = vmatpush1.msra.mxu0 %v149
    %1949 = vmatprep.subr.mxu0 %v152
    %1950 = vmatpush1.msra.mxu0 %v151
    %1951 = vmatprep.subr.mxu0 0.0
    %1952 = vmatpush1.msra.mxu0 0.0
    %1953 = vmatprep.subr.mxu0 0.0
    %1954 = vmatpush1.msra.mxu0 0.0
    %1955 = vmatprep.subr.mxu0 0.0
    %1956 = vmatpush1.msra.mxu0 0.0
    %1957 = vmatprep.subr.mxu0 0.0
    %1958 = vmatpush1.msra.mxu0 0.0
    %1959 = vmatprep.subr.mxu0 0.0
    %1960 = vmatpush1.msra.mxu0 0.0
    %1961 = vmatprep.subr.mxu0 0.0
    %1962 = vmatpush1.msra.mxu0 0.0
    %1963 = vmatprep.subr.mxu0 0.0
    %1964 = vmatpush1.msra.mxu0 0.0
    %1965 = vmatprep.subr.mxu0 0.0
    %1966 = vmatpush1.msra.mxu0 0.0
    %1967 = vmatprep.subr.mxu0 0.0
    %1968 = vmatpush1.msra.mxu0 0.0
    %1969 = vmatprep.subr.mxu0 0.0
    %1970 = vmatpush1.msra.mxu0 0.0
    %1971 = vmatprep.subr.mxu0 0.0
    %1972 = vmatpush1.msra.mxu0 0.0
    %1973 = vmatprep.subr.mxu0 0.0
    %1974 = vmatpush1.msra.mxu0 0.0
    %1975 = vmatprep.subr.mxu0 0.0
    %1976 = vmatpush1.msra.mxu0 0.0
    %1977 = vmatprep.subr.mxu0 0.0
    %1978 = vmatpush1.msra.mxu0 0.0
    %1979 = vmatprep.subr.mxu0 0.0
    %1980 = vmatpush1.msra.mxu0 0.0
    %1981 = vmatprep.subr.mxu0 0.0
    %1982 = vmatpush1.msra.mxu0 0.0
    %1983 = vmatprep.subr.mxu0 0.0
    %1984 = vmatpush1.msra.mxu0 0.0
    %1985 = vmatprep.mubr.f32.mxu0 0.0
    %1986 = vmatmul.mubr.f32.gmra.mrb[0].mxu0 %v1919
    %v1987 = vpop.f32.mrb[0].mxu0
    %v1988 = vadd.f32 0.0, %v1987
    %v1989 = vpop.f32.mrb[0].mxu0
    %v1990 = vadd.f32 0.0, %v1989
    %1991 = vdwg.mxu0
    %v1993 = vsel %vm1917, %v1167, 0
    %1995 = vmatprep.subr.mxu0 %v93
    %1996 = vmatpush1.msra.mxu0 %v92
    %1997 = vmatprep.subr.mxu0 %v95
    %1998 = vmatpush1.msra.mxu0 %v94
    %1999 = vmatprep.subr.mxu0 %v97
    %2000 = vmatpush1.msra.mxu0 %v96
    %2001 = vmatprep.subr.mxu0 %v99
    %2002 = vmatpush1.msra.mxu0 %v98
    %2003 = vmatprep.subr.mxu0 %v101
    %2004 = vmatpush1.msra.mxu0 %v100
    %2005 = vmatprep.subr.mxu0 %v103
    %2006 = vmatpush1.msra.mxu0 %v102
    %2007 = vmatprep.subr.mxu0 %v105
    %2008 = vmatpush1.msra.mxu0 %v104
    %2009 = vmatprep.subr.mxu0 %v107
    %2010 = vmatpush1.msra.mxu0 %v106
    %2011 = vmatprep.subr.mxu0 %v109
    %2012 = vmatpush1.msra.mxu0 %v108
    %2013 = vmatprep.subr.mxu0 %v111
    %2014 = vmatpush1.msra.mxu0 %v110
    %2015 = vmatprep.subr.mxu0 %v113
    %2016 = vmatpush1.msra.mxu0 %v112
    %2017 = vmatprep.subr.mxu0 %v115
    %2018 = vmatpush1.msra.mxu0 %v114
    %2019 = vmatprep.subr.mxu0 %v117
    %2020 = vmatpush1.msra.mxu0 %v116
    %2021 = vmatprep.subr.mxu0 %v119
    %2022 = vmatpush1.msra.mxu0 %v118
    %2023 = vmatprep.subr.mxu0 %v121
    %2024 = vmatpush1.msra.mxu0 %v120
    %2025 = vmatprep.subr.mxu0 0.0
    %2026 = vmatpush1.msra.mxu0 0.0
    %2027 = vmatprep.subr.mxu0 0.0
    %2028 = vmatpush1.msra.mxu0 0.0
    %2029 = vmatprep.subr.mxu0 0.0
    %2030 = vmatpush1.msra.mxu0 0.0
    %2031 = vmatprep.subr.mxu0 0.0
    %2032 = vmatpush1.msra.mxu0 0.0
    %2033 = vmatprep.subr.mxu0 0.0
    %2034 = vmatpush1.msra.mxu0 0.0
    %2035 = vmatprep.subr.mxu0 0.0
    %2036 = vmatpush1.msra.mxu0 0.0
    %2037 = vmatprep.subr.mxu0 0.0
    %2038 = vmatpush1.msra.mxu0 0.0
    %2039 = vmatprep.subr.mxu0 0.0
    %2040 = vmatpush1.msra.mxu0 0.0
    %2041 = vmatprep.subr.mxu0 0.0
    %2042 = vmatpush1.msra.mxu0 0.0
    %2043 = vmatprep.subr.mxu0 0.0
    %2044 = vmatpush1.msra.mxu0 0.0
    %2045 = vmatprep.subr.mxu0 0.0
    %2046 = vmatpush1.msra.mxu0 0.0
    %2047 = vmatprep.subr.mxu0 0.0
    %2048 = vmatpush1.msra.mxu0 0.0
    %2049 = vmatprep.subr.mxu0 0.0
    %2050 = vmatpush1.msra.mxu0 0.0
    %2051 = vmatprep.subr.mxu0 0.0
    %2052 = vmatpush1.msra.mxu0 0.0
    %2053 = vmatprep.subr.mxu0 0.0
    %2054 = vmatpush1.msra.mxu0 0.0
    %2055 = vmatprep.subr.mxu0 0.0
    %2056 = vmatpush1.msra.mxu0 0.0
    %2057 = vmatprep.subr.mxu0 0.0
    %2058 = vmatpush1.msra.mxu0 0.0
    %2059 = vmatprep.mubr.f32.mxu0 0.0
    %2060 = vmatmul.mubr.f32.gmra.mrb[0].mxu0 %v1993
    %v2061 = vpop.f32.mrb[0].mxu0
    %v2062 = vadd.f32 %v1988, %v2061
    %v2063 = vpop.f32.mrb[0].mxu0
    %v2064 = vadd.f32 %v1990, %v2063
    %2065 = vdwg.mxu0
    %v2066 = vrot.slane %v1167, 1
    %v2067 = vsel %vm1917, %v2066, 0
    %2069 = vmatprep.subr.mxu0 %v155
    %2070 = vmatpush1.msra.mxu0 %v154
    %2071 = vmatprep.subr.mxu0 %v157
    %2072 = vmatpush1.msra.mxu0 %v156
    %2073 = vmatprep.subr.mxu0 %v159
    %2074 = vmatpush1.msra.mxu0 %v158
    %2075 = vmatprep.subr.mxu0 %v161
    %2076 = vmatpush1.msra.mxu0 %v160
    %2077 = vmatprep.subr.mxu0 %v163
    %2078 = vmatpush1.msra.mxu0 %v162
    %2079 = vmatprep.subr.mxu0 %v165
    %2080 = vmatpush1.msra.mxu0 %v164
    %2081 = vmatprep.subr.mxu0 %v167
    %2082 = vmatpush1.msra.mxu0 %v166
    %2083 = vmatprep.subr.mxu0 %v169
    %2084 = vmatpush1.msra.mxu0 %v168
    %2085 = vmatprep.subr.mxu0 %v171
    %2086 = vmatpush1.msra.mxu0 %v170
    %2087 = vmatprep.subr.mxu0 %v173
    %2088 = vmatpush1.msra.mxu0 %v172
    %2089 = vmatprep.subr.mxu0 %v175
    %2090 = vmatpush1.msra.mxu0 %v174
    %2091 = vmatprep.subr.mxu0 %v177
    %2092 = vmatpush1.msra.mxu0 %v176
    %2093 = vmatprep.subr.mxu0 %v179
    %2094 = vmatpush1.msra.mxu0 %v178
    %2095 = vmatprep.subr.mxu0 %v181
    %2096 = vmatpush1.msra.mxu0 %v180
    %2097 = vmatprep.subr.mxu0 %v183
    %2098 = vmatpush1.msra.mxu0 %v182
    %2099 = vmatprep.subr.mxu0 0.0
    %2100 = vmatpush1.msra.mxu0 0.0
    %2101 = vmatprep.subr.mxu0 0.0
    %2102 = vmatpush1.msra.mxu0 0.0
    %2103 = vmatprep.subr.mxu0 0.0
    %2104 = vmatpush1.msra.mxu0 0.0
    %2105 = vmatprep.subr.mxu0 0.0
    %2106 = vmatpush1.msra.mxu0 0.0
    %2107 = vmatprep.subr.mxu0 0.0
    %2108 = vmatpush1.msra.mxu0 0.0
    %2109 = vmatprep.subr.mxu0 0.0
    %2110 = vmatpush1.msra.mxu0 0.0
    %2111 = vmatprep.subr.mxu0 0.0
    %2112 = vmatpush1.msra.mxu0 0.0
    %2113 = vmatprep.subr.mxu0 0.0
    %2114 = vmatpush1.msra.mxu0 0.0
    %2115 = vmatprep.subr.mxu0 0.0
    %2116 = vmatpush1.msra.mxu0 0.0
    %2117 = vmatprep.subr.mxu0 0.0
    %2118 = vmatpush1.msra.mxu0 0.0
    %2119 = vmatprep.subr.mxu0 0.0
    %2120 = vmatpush1.msra.mxu0 0.0
    %2121 = vmatprep.subr.mxu0 0.0
    %2122 = vmatpush1.msra.mxu0 0.0
    %2123 = vmatprep.subr.mxu0 0.0
    %2124 = vmatpush1.msra.mxu0 0.0
    %2125 = vmatprep.subr.mxu0 0.0
    %2126 = vmatpush1.msra.mxu0 0.0
    %2127 = vmatprep.subr.mxu0 0.0
    %2128 = vmatpush1.msra.mxu0 0.0
    %2129 = vmatprep.subr.mxu0 0.0
    %2130 = vmatpush1.msra.mxu0 0.0
    %2131 = vmatprep.subr.mxu0 0.0
    %2132 = vmatpush1.msra.mxu0 0.0
    %2133 = vmatprep.mubr.f32.mxu0 0.0
    %2134 = vmatmul.mubr.f32.gmra.mrb[0].mxu0 %v2067
    %v2135 = vpop.f32.mrb[0].mxu0
    %v2136 = vadd.f32 0.0, %v2135
    %v2137 = vpop.f32.mrb[0].mxu0
    %v2138 = vadd.f32 0.0, %v2137
    %2139 = vdwg.mxu0
    %v2140 = vadd.f32 %v2062, %v2136
    %v2141 = vadd.f32 %v2064, %v2138
    %v2142 = vrot.slane %v1916, 1
    %v2143 = vsel %vm1917, %v2142, 0
    %2145 = vmatprep.subr.mxu0 %v186
    %2146 = vmatpush1.msra.mxu0 %v185
    %2147 = vmatprep.subr.mxu0 %v188
    %2148 = vmatpush1.msra.mxu0 %v187
    %2149 = vmatprep.subr.mxu0 %v190
    %2150 = vmatpush1.msra.mxu0 %v189
    %2151 = vmatprep.subr.mxu0 %v192
    %2152 = vmatpush1.msra.mxu0 %v191
    %2153 = vmatprep.subr.mxu0 %v194
    %2154 = vmatpush1.msra.mxu0 %v193
    %2155 = vmatprep.subr.mxu0 %v196
    %2156 = vmatpush1.msra.mxu0 %v195
    %2157 = vmatprep.subr.mxu0 %v198
    %2158 = vmatpush1.msra.mxu0 %v197
    %2159 = vmatprep.subr.mxu0 %v200
    %2160 = vmatpush1.msra.mxu0 %v199
    %2161 = vmatprep.subr.mxu0 %v202
    %2162 = vmatpush1.msra.mxu0 %v201
    %2163 = vmatprep.subr.mxu0 %v204
    %2164 = vmatpush1.msra.mxu0 %v203
    %2165 = vmatprep.subr.mxu0 %v206
    %2166 = vmatpush1.msra.mxu0 %v205
    %2167 = vmatprep.subr.mxu0 %v208
    %2168 = vmatpush1.msra.mxu0 %v207
    %2169 = vmatprep.subr.mxu0 %v210
    %2170 = vmatpush1.msra.mxu0 %v209
    %2171 = vmatprep.subr.mxu0 %v212
    %2172 = vmatpush1.msra.mxu0 %v211
    %2173 = vmatprep.subr.mxu0 %v214
    %2174 = vmatpush1.msra.mxu0 %v213
    %2175 = vmatprep.subr.mxu0 0.0
    %2176 = vmatpush1.msra.mxu0 0.0
    %2177 = vmatprep.subr.mxu0 0.0
    %2178 = vmatpush1.msra.mxu0 0.0
    %2179 = vmatprep.subr.mxu0 0.0
    %2180 = vmatpush1.msra.mxu0 0.0
    %2181 = vmatprep.subr.mxu0 0.0
    %2182 = vmatpush1.msra.mxu0 0.0
    %2183 = vmatprep.subr.mxu0 0.0
    %2184 = vmatpush1.msra.mxu0 0.0
    %2185 = vmatprep.subr.mxu0 0.0
    %2186 = vmatpush1.msra.mxu0 0.0
    %2187 = vmatprep.subr.mxu0 0.0
    %2188 = vmatpush1.msra.mxu0 0.0
    %2189 = vmatprep.subr.mxu0 0.0
    %2190 = vmatpush1.msra.mxu0 0.0
    %2191 = vmatprep.subr.mxu0 0.0
    %2192 = vmatpush1.msra.mxu0 0.0
    %2193 = vmatprep.subr.mxu0 0.0
    %2194 = vmatpush1.msra.mxu0 0.0
    %2195 = vmatprep.subr.mxu0 0.0
    %2196 = vmatpush1.msra.mxu0 0.0
    %2197 = vmatprep.subr.mxu0 0.0
    %2198 = vmatpush1.msra.mxu0 0.0
    %2199 = vmatprep.subr.mxu0 0.0
    %2200 = vmatpush1.msra.mxu0 0.0
    %2201 = vmatprep.subr.mxu0 0.0
    %2202 = vmatpush1.msra.mxu0 0.0
    %2203 = vmatprep.subr.mxu0 0.0
    %2204 = vmatpush1.msra.mxu0 0.0
    %2205 = vmatprep.subr.mxu0 0.0
    %2206 = vmatpush1.msra.mxu0 0.0
    %2207 = vmatprep.subr.mxu0 0.0
    %2208 = vmatpush1.msra.mxu0 0.0
    %2209 = vmatprep.mubr.f32.mxu0 0.0
    %2210 = vmatmul.mubr.f32.gmra.mrb[0].mxu0 %v2143
    %v2211 = vpop.f32.mrb[0].mxu0
    %v2212 = vadd.f32 0.0, %v2211
    %v2213 = vpop.f32.mrb[0].mxu0
    %v2214 = vadd.f32 0.0, %v2213
    %2215 = vdwg.mxu0
    %v2216 = vadd.f32 %v2140, %v2212
    %v2217 = vadd.f32 %v2141, %v2214
    %v2218 = vrot.slane %v1167, 2
    %v2219 = vsel %vm1917, %v2218, 0
    %2221 = vmatprep.subr.mxu0 %v217
    %2222 = vmatpush1.msra.mxu0 %v216
    %2223 = vmatprep.subr.mxu0 %v219
    %2224 = vmatpush1.msra.mxu0 %v218
    %2225 = vmatprep.subr.mxu0 %v221
    %2226 = vmatpush1.msra.mxu0 %v220
    %2227 = vmatprep.subr.mxu0 %v223
    %2228 = vmatpush1.msra.mxu0 %v222
    %2229 = vmatprep.subr.mxu0 %v225
    %2230 = vmatpush1.msra.mxu0 %v224
    %2231 = vmatprep.subr.mxu0 %v227
    %2232 = vmatpush1.msra.mxu0 %v226
    %2233 = vmatprep.subr.mxu0 %v229
    %2234 = vmatpush1.msra.mxu0 %v228
    %2235 = vmatprep.subr.mxu0 %v231
    %2236 = vmatpush1.msra.mxu0 %v230
    %2237 = vmatprep.subr.mxu0 %v233
    %2238 = vmatpush1.msra.mxu0 %v232
    %2239 = vmatprep.subr.mxu0 %v235
    %2240 = vmatpush1.msra.mxu0 %v234
    %2241 = vmatprep.subr.mxu0 %v237
    %2242 = vmatpush1.msra.mxu0 %v236
    %2243 = vmatprep.subr.mxu0 %v239
    %2244 = vmatpush1.msra.mxu0 %v238
    %2245 = vmatprep.subr.mxu0 %v241
    %2246 = vmatpush1.msra.mxu0 %v240
    %2247 = vmatprep.subr.mxu0 %v243
    %2248 = vmatpush1.msra.mxu0 %v242
    %2249 = vmatprep.subr.mxu0 %v245
    %2250 = vmatpush1.msra.mxu0 %v244
    %2251 = vmatprep.subr.mxu0 0.0
    %2252 = vmatpush1.msra.mxu0 0.0
    %2253 = vmatprep.subr.mxu0 0.0
    %2254 = vmatpush1.msra.mxu0 0.0
    %2255 = vmatprep.subr.mxu0 0.0
    %2256 = vmatpush1.msra.mxu0 0.0
    %2257 = vmatprep.subr.mxu0 0.0
    %2258 = vmatpush1.msra.mxu0 0.0
    %2259 = vmatprep.subr.mxu0 0.0
    %2260 = vmatpush1.msra.mxu0 0.0
    %2261 = vmatprep.subr.mxu0 0.0
    %2262 = vmatpush1.msra.mxu0 0.0
    %2263 = vmatprep.subr.mxu0 0.0
    %2264 = vmatpush1.msra.mxu0 0.0
    %2265 = vmatprep.subr.mxu0 0.0
    %2266 = vmatpush1.msra.mxu0 0.0
    %2267 = vmatprep.subr.mxu0 0.0
    %2268 = vmatpush1.msra.mxu0 0.0
    %2269 = vmatprep.subr.mxu0 0.0
    %2270 = vmatpush1.msra.mxu0 0.0
    %2271 = vmatprep.subr.mxu0 0.0
    %2272 = vmatpush1.msra.mxu0 0.0
    %2273 = vmatprep.subr.mxu0 0.0
    %2274 = vmatpush1.msra.mxu0 0.0
    %2275 = vmatprep.subr.mxu0 0.0
    %2276 = vmatpush1.msra.mxu0 0.0
    %2277 = vmatprep.subr.mxu0 0.0
    %2278 = vmatpush1.msra.mxu0 0.0
    %2279 = vmatprep.subr.mxu0 0.0
    %2280 = vmatpush1.msra.mxu0 0.0
    %2281 = vmatprep.subr.mxu0 0.0
    %2282 = vmatpush1.msra.mxu0 0.0
    %2283 = vmatprep.subr.mxu0 0.0
    %2284 = vmatpush1.msra.mxu0 0.0
    %2285 = vmatprep.mubr.f32.mxu0 0.0
    %2286 = vmatmul.mubr.f32.gmra.mrb[0].mxu0 %v2219
    %v2287 = vpop.f32.mrb[0].mxu0
    %v2288 = vadd.f32 0.0, %v2287
    %v2289 = vpop.f32.mrb[0].mxu0
    %v2290 = vadd.f32 0.0, %v2289
    %2291 = vdwg.mxu0
    %v2292 = vadd.f32 %v2216, %v2288
    %v2293 = vadd.f32 %v2217, %v2290
    %2296 = vrot.lane.b32.xlu0 %v2292, 48
    %v2297 = vpop.permute.xlu0 %2296
    %2298 = vrot.lane.b32.xlu0 %v2293, 48
    %v2299 = vpop.permute.xlu0 %2298
    %vm2300 = vcmask 392192
    %v2301 = vsel %vm2300, %v2297, %v2299
    %v2303 = vmax.f32 %v2292, %v2301
    %2304 = vmatprep.subr.mxu0 %v124
    %2305 = vmatpush1.msra.mxu0 %v123
    %2306 = vmatprep.subr.mxu0 %v126
    %2307 = vmatpush1.msra.mxu0 %v125
    %2308 = vmatprep.subr.mxu0 %v128
    %2309 = vmatpush1.msra.mxu0 %v127
    %2310 = vmatprep.subr.mxu0 %v130
    %2311 = vmatpush1.msra.mxu0 %v129
    %2312 = vmatprep.subr.mxu0 %v132
    %2313 = vmatpush1.msra.mxu0 %v131
    %2314 = vmatprep.subr.mxu0 %v134
    %2315 = vmatpush1.msra.mxu0 %v133
    %2316 = vmatprep.subr.mxu0 %v136
    %2317 = vmatpush1.msra.mxu0 %v135
    %2318 = vmatprep.subr.mxu0 %v138
    %2319 = vmatpush1.msra.mxu0 %v137
    %2320 = vmatprep.subr.mxu0 %v140
    %2321 = vmatpush1.msra.mxu0 %v139
    %2322 = vmatprep.subr.mxu0 %v142
    %2323 = vmatpush1.msra.mxu0 %v141
    %2324 = vmatprep.subr.mxu0 %v144
    %2325 = vmatpush1.msra.mxu0 %v143
    %2326 = vmatprep.subr.mxu0 %v146
    %2327 = vmatpush1.msra.mxu0 %v145
    %2328 = vmatprep.subr.mxu0 %v148
    %2329 = vmatpush1.msra.mxu0 %v147
    %2330 = vmatprep.subr.mxu0 %v150
    %2331 = vmatpush1.msra.mxu0 %v149
    %2332 = vmatprep.subr.mxu0 %v152
    %2333 = vmatpush1.msra.mxu0 %v151
    %2334 = vmatprep.subr.mxu0 0.0
    %2335 = vmatpush1.msra.mxu0 0.0
    %2336 = vmatprep.subr.mxu0 0.0
    %2337 = vmatpush1.msra.mxu0 0.0
    %2338 = vmatprep.subr.mxu0 0.0
    %2339 = vmatpush1.msra.mxu0 0.0
    %2340 = vmatprep.subr.mxu0 0.0
    %2341 = vmatpush1.msra.mxu0 0.0
    %2342 = vmatprep.subr.mxu0 0.0
    %2343 = vmatpush1.msra.mxu0 0.0
    %2344 = vmatprep.subr.mxu0 0.0
    %2345 = vmatpush1.msra.mxu0 0.0
    %2346 = vmatprep.subr.mxu0 0.0
    %2347 = vmatpush1.msra.mxu0 0.0
    %2348 = vmatprep.subr.mxu0 0.0
    %2349 = vmatpush1.msra.mxu0 0.0
    %2350 = vmatprep.subr.mxu0 0.0
    %2351 = vmatpush1.msra.mxu0 0.0
    %2352 = vmatprep.subr.mxu0 0.0
    %2353 = vmatpush1.msra.mxu0 0.0
    %2354 = vmatprep.subr.mxu0 0.0
    %2355 = vmatpush1.msra.mxu0 0.0
    %2356 = vmatprep.subr.mxu0 0.0
    %2357 = vmatpush1.msra.mxu0 0.0
    %2358 = vmatprep.subr.mxu0 0.0
    %2359 = vmatpush1.msra.mxu0 0.0
    %2360 = vmatprep.subr.mxu0 0.0
    %2361 = vmatpush1.msra.mxu0 0.0
    %2362 = vmatprep.subr.mxu0 0.0
    %2363 = vmatpush1.msra.mxu0 0.0
    %2364 = vmatprep.subr.mxu0 0.0
    %2365 = vmatpush1.msra.mxu0 0.0
    %2366 = vmatprep.subr.mxu0 0.0
    %2367 = vmatpush1.msra.mxu0 0.0
    %2368 = vmatprep.mubr.f32.mxu0 0.0
    %2369 = vmatmul.mubr.f32.gmra.mrb[0].mxu0 %v2067
    %v2370 = vpop.f32.mrb[0].mxu0
    %v2371 = vadd.f32 0.0, %v2370
    %v2372 = vpop.f32.mrb[0].mxu0
    %v2373 = vadd.f32 0.0, %v2372
    %2374 = vdwg.mxu0
    %2375 = vmatprep.subr.mxu0 %v93
    %2376 = vmatpush1.msra.mxu0 %v92
    %2377 = vmatprep.subr.mxu0 %v95
    %2378 = vmatpush1.msra.mxu0 %v94
    %2379 = vmatprep.subr.mxu0 %v97
    %2380 = vmatpush1.msra.mxu0 %v96
    %2381 = vmatprep.subr.mxu0 %v99
    %2382 = vmatpush1.msra.mxu0 %v98
    %2383 = vmatprep.subr.mxu0 %v101
    %2384 = vmatpush1.msra.mxu0 %v100
    %2385 = vmatprep.subr.mxu0 %v103
    %2386 = vmatpush1.msra.mxu0 %v102
    %2387 = vmatprep.subr.mxu0 %v105
    %2388 = vmatpush1.msra.mxu0 %v104
    %2389 = vmatprep.subr.mxu0 %v107
    %2390 = vmatpush1.msra.mxu0 %v106
    %2391 = vmatprep.subr.mxu0 %v109
    %2392 = vmatpush1.msra.mxu0 %v108
    %2393 = vmatprep.subr.mxu0 %v111
    %2394 = vmatpush1.msra.mxu0 %v110
    %2395 = vmatprep.subr.mxu0 %v113
    %2396 = vmatpush1.msra.mxu0 %v112
    %2397 = vmatprep.subr.mxu0 %v115
    %2398 = vmatpush1.msra.mxu0 %v114
    %2399 = vmatprep.subr.mxu0 %v117
    %2400 = vmatpush1.msra.mxu0 %v116
    %2401 = vmatprep.subr.mxu0 %v119
    %2402 = vmatpush1.msra.mxu0 %v118
    %2403 = vmatprep.subr.mxu0 %v121
    %2404 = vmatpush1.msra.mxu0 %v120
    %2405 = vmatprep.subr.mxu0 0.0
    %2406 = vmatpush1.msra.mxu0 0.0
    %2407 = vmatprep.subr.mxu0 0.0
    %2408 = vmatpush1.msra.mxu0 0.0
    %2409 = vmatprep.subr.mxu0 0.0
    %2410 = vmatpush1.msra.mxu0 0.0
    %2411 = vmatprep.subr.mxu0 0.0
    %2412 = vmatpush1.msra.mxu0 0.0
    %2413 = vmatprep.subr.mxu0 0.0
    %2414 = vmatpush1.msra.mxu0 0.0
    %2415 = vmatprep.subr.mxu0 0.0
    %2416 = vmatpush1.msra.mxu0 0.0
    %2417 = vmatprep.subr.mxu0 0.0
    %2418 = vmatpush1.msra.mxu0 0.0
    %2419 = vmatprep.subr.mxu0 0.0
    %2420 = vmatpush1.msra.mxu0 0.0
    %2421 = vmatprep.subr.mxu0 0.0
    %2422 = vmatpush1.msra.mxu0 0.0
    %2423 = vmatprep.subr.mxu0 0.0
    %2424 = vmatpush1.msra.mxu0 0.0
    %2425 = vmatprep.subr.mxu0 0.0
    %2426 = vmatpush1.msra.mxu0 0.0
    %2427 = vmatprep.subr.mxu0 0.0
    %2428 = vmatpush1.msra.mxu0 0.0
    %2429 = vmatprep.subr.mxu0 0.0
    %2430 = vmatpush1.msra.mxu0 0.0
    %2431 = vmatprep.subr.mxu0 0.0
    %2432 = vmatpush1.msra.mxu0 0.0
    %2433 = vmatprep.subr.mxu0 0.0
    %2434 = vmatpush1.msra.mxu0 0.0
    %2435 = vmatprep.subr.mxu0 0.0
    %2436 = vmatpush1.msra.mxu0 0.0
    %2437 = vmatprep.subr.mxu0 0.0
    %2438 = vmatpush1.msra.mxu0 0.0
    %2439 = vmatprep.mubr.f32.mxu0 0.0
    %2440 = vmatmul.mubr.f32.gmra.mrb[0].mxu0 %v1919
    %v2441 = vpop.f32.mrb[0].mxu0
    %v2442 = vadd.f32 %v2371, %v2441
    %v2443 = vpop.f32.mrb[0].mxu0
    %v2444 = vadd.f32 %v2373, %v2443
    %2445 = vdwg.mxu0
    %2446 = vmatprep.subr.mxu0 %v155
    %2447 = vmatpush1.msra.mxu0 %v154
    %2448 = vmatprep.subr.mxu0 %v157
    %2449 = vmatpush1.msra.mxu0 %v156
    %2450 = vmatprep.subr.mxu0 %v159
    %2451 = vmatpush1.msra.mxu0 %v158
    %2452 = vmatprep.subr.mxu0 %v161
    %2453 = vmatpush1.msra.mxu0 %v160
    %2454 = vmatprep.subr.mxu0 %v163
    %2455 = vmatpush1.msra.mxu0 %v162
    %2456 = vmatprep.subr.mxu0 %v165
    %2457 = vmatpush1.msra.mxu0 %v164
    %2458 = vmatprep.subr.mxu0 %v167
    %2459 = vmatpush1.msra.mxu0 %v166
    %2460 = vmatprep.subr.mxu0 %v169
    %2461 = vmatpush1.msra.mxu0 %v168
    %2462 = vmatprep.subr.mxu0 %v171
    %2463 = vmatpush1.msra.mxu0 %v170
    %2464 = vmatprep.subr.mxu0 %v173
    %2465 = vmatpush1.msra.mxu0 %v172
    %2466 = vmatprep.subr.mxu0 %v175
    %2467 = vmatpush1.msra.mxu0 %v174
    %2468 = vmatprep.subr.mxu0 %v177
    %2469 = vmatpush1.msra.mxu0 %v176
    %2470 = vmatprep.subr.mxu0 %v179
    %2471 = vmatpush1.msra.mxu0 %v178
    %2472 = vmatprep.subr.mxu0 %v181
    %2473 = vmatpush1.msra.mxu0 %v180
    %2474 = vmatprep.subr.mxu0 %v183
    %2475 = vmatpush1.msra.mxu0 %v182
    %2476 = vmatprep.subr.mxu0 0.0
    %2477 = vmatpush1.msra.mxu0 0.0
    %2478 = vmatprep.subr.mxu0 0.0
    %2479 = vmatpush1.msra.mxu0 0.0
    %2480 = vmatprep.subr.mxu0 0.0
    %2481 = vmatpush1.msra.mxu0 0.0
    %2482 = vmatprep.subr.mxu0 0.0
    %2483 = vmatpush1.msra.mxu0 0.0
    %2484 = vmatprep.subr.mxu0 0.0
    %2485 = vmatpush1.msra.mxu0 0.0
    %2486 = vmatprep.subr.mxu0 0.0
    %2487 = vmatpush1.msra.mxu0 0.0
    %2488 = vmatprep.subr.mxu0 0.0
    %2489 = vmatpush1.msra.mxu0 0.0
    %2490 = vmatprep.subr.mxu0 0.0
    %2491 = vmatpush1.msra.mxu0 0.0
    %2492 = vmatprep.subr.mxu0 0.0
    %2493 = vmatpush1.msra.mxu0 0.0
    %2494 = vmatprep.subr.mxu0 0.0
    %2495 = vmatpush1.msra.mxu0 0.0
    %2496 = vmatprep.subr.mxu0 0.0
    %2497 = vmatpush1.msra.mxu0 0.0
    %2498 = vmatprep.subr.mxu0 0.0
    %2499 = vmatpush1.msra.mxu0 0.0
    %2500 = vmatprep.subr.mxu0 0.0
    %2501 = vmatpush1.msra.mxu0 0.0
    %2502 = vmatprep.subr.mxu0 0.0
    %2503 = vmatpush1.msra.mxu0 0.0
    %2504 = vmatprep.subr.mxu0 0.0
    %2505 = vmatpush1.msra.mxu0 0.0
    %2506 = vmatprep.subr.mxu0 0.0
    %2507 = vmatpush1.msra.mxu0 0.0
    %2508 = vmatprep.subr.mxu0 0.0
    %2509 = vmatpush1.msra.mxu0 0.0
    %2510 = vmatprep.mubr.f32.mxu0 0.0
    %2511 = vmatmul.mubr.f32.gmra.mrb[0].mxu0 %v2143
    %v2512 = vpop.f32.mrb[0].mxu0
    %v2513 = vadd.f32 0.0, %v2512
    %v2514 = vpop.f32.mrb[0].mxu0
    %v2515 = vadd.f32 0.0, %v2514
    %2516 = vdwg.mxu0
    %v2517 = vadd.f32 %v2442, %v2513
    %v2518 = vadd.f32 %v2444, %v2515
    %2519 = vmatprep.subr.mxu0 %v186
    %2520 = vmatpush1.msra.mxu0 %v185
    %2521 = vmatprep.subr.mxu0 %v188
    %2522 = vmatpush1.msra.mxu0 %v187
    %2523 = vmatprep.subr.mxu0 %v190
    %2524 = vmatpush1.msra.mxu0 %v189
    %2525 = vmatprep.subr.mxu0 %v192
    %2526 = vmatpush1.msra.mxu0 %v191
    %2527 = vmatprep.subr.mxu0 %v194
    %2528 = vmatpush1.msra.mxu0 %v193
    %2529 = vmatprep.subr.mxu0 %v196
    %2530 = vmatpush1.msra.mxu0 %v195
    %2531 = vmatprep.subr.mxu0 %v198
    %2532 = vmatpush1.msra.mxu0 %v197
    %2533 = vmatprep.subr.mxu0 %v200
    %2534 = vmatpush1.msra.mxu0 %v199
    %2535 = vmatprep.subr.mxu0 %v202
    %2536 = vmatpush1.msra.mxu0 %v201
    %2537 = vmatprep.subr.mxu0 %v204
    %2538 = vmatpush1.msra.mxu0 %v203
    %2539 = vmatprep.subr.mxu0 %v206
    %2540 = vmatpush1.msra.mxu0 %v205
    %2541 = vmatprep.subr.mxu0 %v208
    %2542 = vmatpush1.msra.mxu0 %v207
    %2543 = vmatprep.subr.mxu0 %v210
    %2544 = vmatpush1.msra.mxu0 %v209
    %2545 = vmatprep.subr.mxu0 %v212
    %2546 = vmatpush1.msra.mxu0 %v211
    %2547 = vmatprep.subr.mxu0 %v214
    %2548 = vmatpush1.msra.mxu0 %v213
    %2549 = vmatprep.subr.mxu0 0.0
    %2550 = vmatpush1.msra.mxu0 0.0
    %2551 = vmatprep.subr.mxu0 0.0
    %2552 = vmatpush1.msra.mxu0 0.0
    %2553 = vmatprep.subr.mxu0 0.0
    %2554 = vmatpush1.msra.mxu0 0.0
    %2555 = vmatprep.subr.mxu0 0.0
    %2556 = vmatpush1.msra.mxu0 0.0
    %2557 = vmatprep.subr.mxu0 0.0
    %2558 = vmatpush1.msra.mxu0 0.0
    %2559 = vmatprep.subr.mxu0 0.0
    %2560 = vmatpush1.msra.mxu0 0.0
    %2561 = vmatprep.subr.mxu0 0.0
    %2562 = vmatpush1.msra.mxu0 0.0
    %2563 = vmatprep.subr.mxu0 0.0
    %2564 = vmatpush1.msra.mxu0 0.0
    %2565 = vmatprep.subr.mxu0 0.0
    %2566 = vmatpush1.msra.mxu0 0.0
    %2567 = vmatprep.subr.mxu0 0.0
    %2568 = vmatpush1.msra.mxu0 0.0
    %2569 = vmatprep.subr.mxu0 0.0
    %2570 = vmatpush1.msra.mxu0 0.0
    %2571 = vmatprep.subr.mxu0 0.0
    %2572 = vmatpush1.msra.mxu0 0.0
    %2573 = vmatprep.subr.mxu0 0.0
    %2574 = vmatpush1.msra.mxu0 0.0
    %2575 = vmatprep.subr.mxu0 0.0
    %2576 = vmatpush1.msra.mxu0 0.0
    %2577 = vmatprep.subr.mxu0 0.0
    %2578 = vmatpush1.msra.mxu0 0.0
    %2579 = vmatprep.subr.mxu0 0.0
    %2580 = vmatpush1.msra.mxu0 0.0
    %2581 = vmatprep.subr.mxu0 0.0
    %2582 = vmatpush1.msra.mxu0 0.0
    %2583 = vmatprep.mubr.f32.mxu0 0.0
    %2584 = vmatmul.mubr.f32.gmra.mrb[0].mxu0 %v2219
    %v2585 = vpop.f32.mrb[0].mxu0
    %v2586 = vadd.f32 0.0, %v2585
    %v2587 = vpop.f32.mrb[0].mxu0
    %v2588 = vadd.f32 0.0, %v2587
    %2589 = vdwg.mxu0
    %v2590 = vadd.f32 %v2517, %v2586
    %v2591 = vadd.f32 %v2518, %v2588
    %v2592 = vrot.slane %v1916, 2
    %v2593 = vsel %vm1917, %v2592, 0
    %2595 = vmatprep.subr.mxu0 %v217
    %2596 = vmatpush1.msra.mxu0 %v216
    %2597 = vmatprep.subr.mxu0 %v219
    %2598 = vmatpush1.msra.mxu0 %v218
    %2599 = vmatprep.subr.mxu0 %v221
    %2600 = vmatpush1.msra.mxu0 %v220
    %2601 = vmatprep.subr.mxu0 %v223
    %2602 = vmatpush1.msra.mxu0 %v222
    %2603 = vmatprep.subr.mxu0 %v225
    %2604 = vmatpush1.msra.mxu0 %v224
    %2605 = vmatprep.subr.mxu0 %v227
    %2606 = vmatpush1.msra.mxu0 %v226
    %2607 = vmatprep.subr.mxu0 %v229
    %2608 = vmatpush1.msra.mxu0 %v228
    %2609 = vmatprep.subr.mxu0 %v231
    %2610 = vmatpush1.msra.mxu0 %v230
    %2611 = vmatprep.subr.mxu0 %v233
    %2612 = vmatpush1.msra.mxu0 %v232
    %2613 = vmatprep.subr.mxu0 %v235
    %2614 = vmatpush1.msra.mxu0 %v234
    %2615 = vmatprep.subr.mxu0 %v237
    %2616 = vmatpush1.msra.mxu0 %v236
    %2617 = vmatprep.subr.mxu0 %v239
    %2618 = vmatpush1.msra.mxu0 %v238
    %2619 = vmatprep.subr.mxu0 %v241
    %2620 = vmatpush1.msra.mxu0 %v240
    %2621 = vmatprep.subr.mxu0 %v243
    %2622 = vmatpush1.msra.mxu0 %v242
    %2623 = vmatprep.subr.mxu0 %v245
    %2624 = vmatpush1.msra.mxu0 %v244
    %2625 = vmatprep.subr.mxu0 0.0
    %2626 = vmatpush1.msra.mxu0 0.0
    %2627 = vmatprep.subr.mxu0 0.0
    %2628 = vmatpush1.msra.mxu0 0.0
    %2629 = vmatprep.subr.mxu0 0.0
    %2630 = vmatpush1.msra.mxu0 0.0
    %2631 = vmatprep.subr.mxu0 0.0
    %2632 = vmatpush1.msra.mxu0 0.0
    %2633 = vmatprep.subr.mxu0 0.0
    %2634 = vmatpush1.msra.mxu0 0.0
    %2635 = vmatprep.subr.mxu0 0.0
    %2636 = vmatpush1.msra.mxu0 0.0
    %2637 = vmatprep.subr.mxu0 0.0
    %2638 = vmatpush1.msra.mxu0 0.0
    %2639 = vmatprep.subr.mxu0 0.0
    %2640 = vmatpush1.msra.mxu0 0.0
    %2641 = vmatprep.subr.mxu0 0.0
    %2642 = vmatpush1.msra.mxu0 0.0
    %2643 = vmatprep.subr.mxu0 0.0
    %2644 = vmatpush1.msra.mxu0 0.0
    %2645 = vmatprep.subr.mxu0 0.0
    %2646 = vmatpush1.msra.mxu0 0.0
    %2647 = vmatprep.subr.mxu0 0.0
    %2648 = vmatpush1.msra.mxu0 0.0
    %2649 = vmatprep.subr.mxu0 0.0
    %2650 = vmatpush1.msra.mxu0 0.0
    %2651 = vmatprep.subr.mxu0 0.0
    %2652 = vmatpush1.msra.mxu0 0.0
    %2653 = vmatprep.subr.mxu0 0.0
    %2654 = vmatpush1.msra.mxu0 0.0
    %2655 = vmatprep.subr.mxu0 0.0
    %2656 = vmatpush1.msra.mxu0 0.0
    %2657 = vmatprep.subr.mxu0 0.0
    %2658 = vmatpush1.msra.mxu0 0.0
    %2659 = vmatprep.mubr.f32.mxu0 0.0
    %2660 = vmatmul.mubr.f32.gmra.mrb[0].mxu0 %v2593
    %v2661 = vpop.f32.mrb[0].mxu0
    %v2662 = vadd.f32 0.0, %v2661
    %v2663 = vpop.f32.mrb[0].mxu0
    %v2664 = vadd.f32 0.0, %v2663
    %2665 = vdwg.mxu0
    %v2666 = vadd.f32 %v2590, %v2662
    %v2667 = vadd.f32 %v2591, %v2664
    %v2668 = vmax.f32 %v2303, %v2666
    %2671 = vrot.lane.b32.xlu0 %v2666, 48
    %v2672 = vpop.permute.xlu0 %2671
    %2673 = vrot.lane.b32.xlu0 %v2667, 48
    %v2674 = vpop.permute.xlu0 %2673
    %v2675 = vsel %vm2300, %v2672, %v2674
    %v2677 = vmax.f32 %v2668, %v2675
    %v2679 = vlaneseq
    %v2680 = vshrl.u32 %v2679, 7
    %v2681 = vsub.s32 0, %v2680
    %v2682 = vrot.slane %v330, %v2681
    %v2684 = vadd.f32 %v2677, %v2682
    %v2685 = vmax.f32 %v2684, 0.0
    %vm2686 = vcmask 654336
    %v2688 = vsel %vm2686, %v2685, 0
    %2690 = vmatprep.subr.mxu0 %v247
    %2691 = vmatpush1.msra.mxu0 %v246
    %2692 = vmatprep.subr.mxu0 %v249
    %2693 = vmatpush1.msra.mxu0 %v248
    %2694 = vmatprep.subr.mxu0 %v251
    %2695 = vmatpush1.msra.mxu0 %v250
    %2696 = vmatprep.subr.mxu0 %v253
    %2697 = vmatpush1.msra.mxu0 %v252
    %2698 = vmatprep.subr.mxu0 %v255
    %2699 = vmatpush1.msra.mxu0 %v254
    %2700 = vmatprep.subr.mxu0 %v257
    %2701 = vmatpush1.msra.mxu0 %v256
    %2702 = vmatprep.subr.mxu0 %v259
    %2703 = vmatpush1.msra.mxu0 %v258
    %2704 = vmatprep.subr.mxu0 %v261
    %2705 = vmatpush1.msra.mxu0 %v260
    %2706 = vmatprep.subr.mxu0 %v263
    %2707 = vmatpush1.msra.mxu0 %v262
    %2708 = vmatprep.subr.mxu0 %v265
    %2709 = vmatpush1.msra.mxu0 %v264
    %2710 = vmatprep.subr.mxu0 0.0
    %2711 = vmatpush1.msra.mxu0 0.0
    %2712 = vmatprep.subr.mxu0 0.0
    %2713 = vmatpush1.msra.mxu0 0.0
    %2714 = vmatprep.subr.mxu0 0.0
    %2715 = vmatpush1.msra.mxu0 0.0
    %2716 = vmatprep.subr.mxu0 0.0
    %2717 = vmatpush1.msra.mxu0 0.0
    %2718 = vmatprep.subr.mxu0 0.0
    %2719 = vmatpush1.msra.mxu0 0.0
    %2720 = vmatprep.subr.mxu0 0.0
    %2721 = vmatpush1.msra.mxu0 0.0
    %2722 = vmatprep.subr.mxu0 0.0
    %2723 = vmatpush1.msra.mxu0 0.0
    %2724 = vmatprep.subr.mxu0 0.0
    %2725 = vmatpush1.msra.mxu0 0.0
    %2726 = vmatprep.subr.mxu0 0.0
    %2727 = vmatpush1.msra.mxu0 0.0
    %2728 = vmatprep.subr.mxu0 0.0
    %2729 = vmatpush1.msra.mxu0 0.0
    %2730 = vmatprep.subr.mxu0 0.0
    %2731 = vmatpush1.msra.mxu0 0.0
    %2732 = vmatprep.subr.mxu0 0.0
    %2733 = vmatpush1.msra.mxu0 0.0
    %2734 = vmatprep.subr.mxu0 0.0
    %2735 = vmatpush1.msra.mxu0 0.0
    %2736 = vmatprep.subr.mxu0 0.0
    %2737 = vmatpush1.msra.mxu0 0.0
    %2738 = vmatprep.subr.mxu0 0.0
    %2739 = vmatpush1.msra.mxu0 0.0
    %2740 = vmatprep.subr.mxu0 0.0
    %2741 = vmatpush1.msra.mxu0 0.0
    %2742 = vmatprep.subr.mxu0 0.0
    %2743 = vmatpush1.msra.mxu0 0.0
    %2744 = vmatprep.subr.mxu0 0.0
    %2745 = vmatpush1.msra.mxu0 0.0
    %2746 = vmatprep.subr.mxu0 0.0
    %2747 = vmatpush1.msra.mxu0 0.0
    %2748 = vmatprep.subr.mxu0 0.0
    %2749 = vmatpush1.msra.mxu0 0.0
    %2750 = vmatprep.subr.mxu0 0.0
    %2751 = vmatpush1.msra.mxu0 0.0
    %2752 = vmatprep.subr.mxu0 0.0
    %2753 = vmatpush1.msra.mxu0 0.0
    %2754 = vmatprep.mubr.f32.mxu0 0.0
    %2755 = vmatmul.mubr.f32.gmra.mrb[0].mxu0 %v2688
    %v2756 = vpop.f32.mrb[0].mxu0
    %v2757 = vadd.f32 0.0, %v2756
    %v2758 = vpop.f32.mrb[0].mxu0
    %v2759 = vadd.f32 0.0, %v2758
    %2760 = vdwg.mxu0
    %v2763 = vcombine.low %v2757, %v2759
    %v2765 = vunpack.c.l.s4 1966171168
    %v2766 = vunpack.c.0.s8 %v2765
    %v2767 = vlaneseq
    %v2768 = vshrl.u32 %v2767, 7
    %v2769 = vsub.s32 %v2766, %v2768
    %v2770 = vrot.slane %v2763, %v2769
    %v2772 = vunpack.c.l.s4 1966171168
    %v2773 = vunpack.c.0.s8 %v2772
    %v2774 = vlaneseq
    %v2775 = vshrl.u32 %v2774, 7
    %v2776 = vsub.s32 %v2773, %v2775
    %v2777 = vrot.slane %v2770, %v2776
    %v2779 = vadd.f32 %v361, %v2777
    %v2780 = vrot.slane %v2685, 1
    %v2781 = vsel %vm2686, %v2780, 0
    %2783 = vmatprep.subr.mxu0 %v268
    %2784 = vmatpush1.msra.mxu0 %v267
    %2785 = vmatprep.subr.mxu0 %v270
    %2786 = vmatpush1.msra.mxu0 %v269
    %2787 = vmatprep.subr.mxu0 %v272
    %2788 = vmatpush1.msra.mxu0 %v271
    %2789 = vmatprep.subr.mxu0 %v274
    %2790 = vmatpush1.msra.mxu0 %v273
    %2791 = vmatprep.subr.mxu0 %v276
    %2792 = vmatpush1.msra.mxu0 %v275
    %2793 = vmatprep.subr.mxu0 %v278
    %2794 = vmatpush1.msra.mxu0 %v277
    %2795 = vmatprep.subr.mxu0 %v280
    %2796 = vmatpush1.msra.mxu0 %v279
    %2797 = vmatprep.subr.mxu0 %v282
    %2798 = vmatpush1.msra.mxu0 %v281
    %2799 = vmatprep.subr.mxu0 %v284
    %2800 = vmatpush1.msra.mxu0 %v283
    %2801 = vmatprep.subr.mxu0 %v286
    %2802 = vmatpush1.msra.mxu0 %v285
    %2803 = vmatprep.subr.mxu0 0.0
    %2804 = vmatpush1.msra.mxu0 0.0
    %2805 = vmatprep.subr.mxu0 0.0
    %2806 = vmatpush1.msra.mxu0 0.0
    %2807 = vmatprep.subr.mxu0 0.0
    %2808 = vmatpush1.msra.mxu0 0.0
    %2809 = vmatprep.subr.mxu0 0.0
    %2810 = vmatpush1.msra.mxu0 0.0
    %2811 = vmatprep.subr.mxu0 0.0
    %2812 = vmatpush1.msra.mxu0 0.0
    %2813 = vmatprep.subr.mxu0 0.0
    %2814 = vmatpush1.msra.mxu0 0.0
    %2815 = vmatprep.subr.mxu0 0.0
    %2816 = vmatpush1.msra.mxu0 0.0
    %2817 = vmatprep.subr.mxu0 0.0
    %2818 = vmatpush1.msra.mxu0 0.0
    %2819 = vmatprep.subr.mxu0 0.0
    %2820 = vmatpush1.msra.mxu0 0.0
    %2821 = vmatprep.subr.mxu0 0.0
    %2822 = vmatpush1.msra.mxu0 0.0
    %2823 = vmatprep.subr.mxu0 0.0
    %2824 = vmatpush1.msra.mxu0 0.0
    %2825 = vmatprep.subr.mxu0 0.0
    %2826 = vmatpush1.msra.mxu0 0.0
    %2827 = vmatprep.subr.mxu0 0.0
    %2828 = vmatpush1.msra.mxu0 0.0
    %2829 = vmatprep.subr.mxu0 0.0
    %2830 = vmatpush1.msra.mxu0 0.0
    %2831 = vmatprep.subr.mxu0 0.0
    %2832 = vmatpush1.msra.mxu0 0.0
    %2833 = vmatprep.subr.mxu0 0.0
    %2834 = vmatpush1.msra.mxu0 0.0
    %2835 = vmatprep.subr.mxu0 0.0
    %2836 = vmatpush1.msra.mxu0 0.0
    %2837 = vmatprep.subr.mxu0 0.0
    %2838 = vmatpush1.msra.mxu0 0.0
    %2839 = vmatprep.subr.mxu0 0.0
    %2840 = vmatpush1.msra.mxu0 0.0
    %2841 = vmatprep.subr.mxu0 0.0
    %2842 = vmatpush1.msra.mxu0 0.0
    %2843 = vmatprep.subr.mxu0 0.0
    %2844 = vmatpush1.msra.mxu0 0.0
    %2845 = vmatprep.subr.mxu0 0.0
    %2846 = vmatpush1.msra.mxu0 0.0
    %2847 = vmatprep.mubr.f32.mxu0 0.0
    %2848 = vmatmul.mubr.f32.gmra.mrb[0].mxu0 %v2781
    %v2849 = vpop.f32.mrb[0].mxu0
    %v2850 = vadd.f32 0.0, %v2849
    %v2851 = vpop.f32.mrb[0].mxu0
    %v2852 = vadd.f32 0.0, %v2851
    %2853 = vdwg.mxu0
    %v2856 = vcombine.low %v2850, %v2852
    %v2858 = vunpack.c.l.s4 1966171168
    %v2859 = vunpack.c.0.s8 %v2858
    %v2860 = vlaneseq
    %v2861 = vshrl.u32 %v2860, 7
    %v2862 = vsub.s32 %v2859, %v2861
    %v2863 = vrot.slane %v2856, %v2862
    %v2865 = vunpack.c.l.s4 1966171168
    %v2866 = vunpack.c.0.s8 %v2865
    %v2867 = vlaneseq
    %v2868 = vshrl.u32 %v2867, 7
    %v2869 = vsub.s32 %v2866, %v2868
    %v2870 = vrot.slane %v2863, %v2869
    %v2872 = vadd.f32 %v2779, %v2870
    %v2873 = vrot.slane %v2685, 2
    %v2874 = vsel %vm2686, %v2873, 0
    %2876 = vmatprep.subr.mxu0 %v289
    %2877 = vmatpush1.msra.mxu0 %v288
    %2878 = vmatprep.subr.mxu0 %v291
    %2879 = vmatpush1.msra.mxu0 %v290
    %2880 = vmatprep.subr.mxu0 %v293
    %2881 = vmatpush1.msra.mxu0 %v292
    %2882 = vmatprep.subr.mxu0 %v295
    %2883 = vmatpush1.msra.mxu0 %v294
    %2884 = vmatprep.subr.mxu0 %v297
    %2885 = vmatpush1.msra.mxu0 %v296
    %2886 = vmatprep.subr.mxu0 %v299
    %2887 = vmatpush1.msra.mxu0 %v298
    %2888 = vmatprep.subr.mxu0 %v301
    %2889 = vmatpush1.msra.mxu0 %v300
    %2890 = vmatprep.subr.mxu0 %v303
    %2891 = vmatpush1.msra.mxu0 %v302
    %2892 = vmatprep.subr.mxu0 %v305
    %2893 = vmatpush1.msra.mxu0 %v304
    %2894 = vmatprep.subr.mxu0 %v307
    %2895 = vmatpush1.msra.mxu0 %v306
    %2896 = vmatprep.subr.mxu0 0.0
    %2897 = vmatpush1.msra.mxu0 0.0
    %2898 = vmatprep.subr.mxu0 0.0
    %2899 = vmatpush1.msra.mxu0 0.0
    %2900 = vmatprep.subr.mxu0 0.0
    %2901 = vmatpush1.msra.mxu0 0.0
    %2902 = vmatprep.subr.mxu0 0.0
    %2903 = vmatpush1.msra.mxu0 0.0
    %2904 = vmatprep.subr.mxu0 0.0
    %2905 = vmatpush1.msra.mxu0 0.0
    %2906 = vmatprep.subr.mxu0 0.0
    %2907 = vmatpush1.msra.mxu0 0.0
    %2908 = vmatprep.subr.mxu0 0.0
    %2909 = vmatpush1.msra.mxu0 0.0
    %2910 = vmatprep.subr.mxu0 0.0
    %2911 = vmatpush1.msra.mxu0 0.0
    %2912 = vmatprep.subr.mxu0 0.0
    %2913 = vmatpush1.msra.mxu0 0.0
    %2914 = vmatprep.subr.mxu0 0.0
    %2915 = vmatpush1.msra.mxu0 0.0
    %2916 = vmatprep.subr.mxu0 0.0
    %2917 = vmatpush1.msra.mxu0 0.0
    %2918 = vmatprep.subr.mxu0 0.0
    %2919 = vmatpush1.msra.mxu0 0.0
    %2920 = vmatprep.subr.mxu0 0.0
    %2921 = vmatpush1.msra.mxu0 0.0
    %2922 = vmatprep.subr.mxu0 0.0
    %2923 = vmatpush1.msra.mxu0 0.0
    %2924 = vmatprep.subr.mxu0 0.0
    %2925 = vmatpush1.msra.mxu0 0.0
    %2926 = vmatprep.subr.mxu0 0.0
    %2927 = vmatpush1.msra.mxu0 0.0
    %2928 = vmatprep.subr.mxu0 0.0
    %2929 = vmatpush1.msra.mxu0 0.0
    %2930 = vmatprep.subr.mxu0 0.0
    %2931 = vmatpush1.msra.mxu0 0.0
    %2932 = vmatprep.subr.mxu0 0.0
    %2933 = vmatpush1.msra.mxu0 0.0
    %2934 = vmatprep.subr.mxu0 0.0
    %2935 = vmatpush1.msra.mxu0 0.0
    %2936 = vmatprep.subr.mxu0 0.0
    %2937 = vmatpush1.msra.mxu0 0.0
    %2938 = vmatprep.subr.mxu0 0.0
    %2939 = vmatpush1.msra.mxu0 0.0
    %2940 = vmatprep.mubr.f32.mxu0 0.0
    %2941 = vmatmul.mubr.f32.gmra.mrb[0].mxu0 %v2874
    %v2942 = vpop.f32.mrb[0].mxu0
    %v2943 = vadd.f32 0.0, %v2942
    %v2944 = vpop.f32.mrb[0].mxu0
    %v2945 = vadd.f32 0.0, %v2944
    %2946 = vdwg.mxu0
    %v2949 = vcombine.low %v2943, %v2945
    %v2951 = vunpack.c.l.s4 1966171168
    %v2952 = vunpack.c.0.s8 %v2951
    %v2953 = vlaneseq
    %v2954 = vshrl.u32 %v2953, 7
    %v2955 = vsub.s32 %v2952, %v2954
    %v2956 = vrot.slane %v2949, %v2955
    %v2958 = vunpack.c.l.s4 1966171168
    %v2959 = vunpack.c.0.s8 %v2958
    %v2960 = vlaneseq
    %v2961 = vshrl.u32 %v2960, 7
    %v2962 = vsub.s32 %v2959, %v2961
    %v2963 = vrot.slane %v2956, %v2962
    %v2965 = vadd.f32 %v2872, %v2963
    %v2966 = vrot.slane %v2685, 3
    %v2967 = vsel %vm2686, %v2966, 0
    %2969 = vmatprep.subr.mxu0 %v310
    %2970 = vmatpush1.msra.mxu0 %v309
    %2971 = vmatprep.subr.mxu0 %v312
    %2972 = vmatpush1.msra.mxu0 %v311
    %2973 = vmatprep.subr.mxu0 %v314
    %2974 = vmatpush1.msra.mxu0 %v313
    %2975 = vmatprep.subr.mxu0 %v316
    %2976 = vmatpush1.msra.mxu0 %v315
    %2977 = vmatprep.subr.mxu0 %v318
    %2978 = vmatpush1.msra.mxu0 %v317
    %2979 = vmatprep.subr.mxu0 %v320
    %2980 = vmatpush1.msra.mxu0 %v319
    %2981 = vmatprep.subr.mxu0 %v322
    %2982 = vmatpush1.msra.mxu0 %v321
    %2983 = vmatprep.subr.mxu0 %v324
    %2984 = vmatpush1.msra.mxu0 %v323
    %2985 = vmatprep.subr.mxu0 %v326
    %2986 = vmatpush1.msra.mxu0 %v325
    %2987 = vmatprep.subr.mxu0 %v328
    %2988 = vmatpush1.msra.mxu0 %v327
    %2989 = vmatprep.subr.mxu0 0.0
    %2990 = vmatpush1.msra.mxu0 0.0
    %2991 = vmatprep.subr.mxu0 0.0
    %2992 = vmatpush1.msra.mxu0 0.0
    %2993 = vmatprep.subr.mxu0 0.0
    %2994 = vmatpush1.msra.mxu0 0.0
    %2995 = vmatprep.subr.mxu0 0.0
    %2996 = vmatpush1.msra.mxu0 0.0
    %2997 = vmatprep.subr.mxu0 0.0
    %2998 = vmatpush1.msra.mxu0 0.0
    %2999 = vmatprep.subr.mxu0 0.0
    %3000 = vmatpush1.msra.mxu0 0.0
    %3001 = vmatprep.subr.mxu0 0.0
    %3002 = vmatpush1.msra.mxu0 0.0
    %3003 = vmatprep.subr.mxu0 0.0
    %3004 = vmatpush1.msra.mxu0 0.0
    %3005 = vmatprep.subr.mxu0 0.0
    %3006 = vmatpush1.msra.mxu0 0.0
    %3007 = vmatprep.subr.mxu0 0.0
    %3008 = vmatpush1.msra.mxu0 0.0
    %3009 = vmatprep.subr.mxu0 0.0
    %3010 = vmatpush1.msra.mxu0 0.0
    %3011 = vmatprep.subr.mxu0 0.0
    %3012 = vmatpush1.msra.mxu0 0.0
    %3013 = vmatprep.subr.mxu0 0.0
    %3014 = vmatpush1.msra.mxu0 0.0
    %3015 = vmatprep.subr.mxu0 0.0
    %3016 = vmatpush1.msra.mxu0 0.0
    %3017 = vmatprep.subr.mxu0 0.0
    %3018 = vmatpush1.msra.mxu0 0.0
    %3019 = vmatprep.subr.mxu0 0.0
    %3020 = vmatpush1.msra.mxu0 0.0
    %3021 = vmatprep.subr.mxu0 0.0
    %3022 = vmatpush1.msra.mxu0 0.0
    %3023 = vmatprep.subr.mxu0 0.0
    %3024 = vmatpush1.msra.mxu0 0.0
    %3025 = vmatprep.subr.mxu0 0.0
    %3026 = vmatpush1.msra.mxu0 0.0
    %3027 = vmatprep.subr.mxu0 0.0
    %3028 = vmatpush1.msra.mxu0 0.0
    %3029 = vmatprep.subr.mxu0 0.0
    %3030 = vmatpush1.msra.mxu0 0.0
    %3031 = vmatprep.subr.mxu0 0.0
    %3032 = vmatpush1.msra.mxu0 0.0
    %3033 = vmatprep.mubr.f32.mxu0 0.0
    %3034 = vmatmul.mubr.f32.gmra.mrb[0].mxu0 %v2967
    %v3035 = vpop.f32.mrb[0].mxu0
    %v3036 = vadd.f32 0.0, %v3035
    %v3037 = vpop.f32.mrb[0].mxu0
    %v3038 = vadd.f32 0.0, %v3037
    %3039 = vdwg.mxu0
    %v3042 = vcombine.low %v3036, %v3038
    %v3044 = vunpack.c.l.s4 1966171168
    %v3045 = vunpack.c.0.s8 %v3044
    %v3046 = vlaneseq
    %v3047 = vshrl.u32 %v3046, 7
    %v3048 = vsub.s32 %v3045, %v3047
    %v3049 = vrot.slane %v3042, %v3048
    %v3051 = vunpack.c.l.s4 1966171168
    %v3052 = vunpack.c.0.s8 %v3051
    %v3053 = vlaneseq
    %v3054 = vshrl.u32 %v3053, 7
    %v3055 = vsub.s32 %v3052, %v3054
    %v3056 = vrot.slane %v3049, %v3055
    %v3058 = vadd.f32 %v2965, %v3056
    %v3060 = vlaneseq
    %v3061 = vshrl.u32 %v3060, 7
    %v3062 = vsub.s32 0, %v3061
    %v3063 = vrot.slane %v3058, %v3062
    %v3064 = vlaneseq
    %v3065 = vshrl.u32 %v3064, 7
    %v3066 = vsub.s32 1, %v3065
    %v3067 = vrot.slane %v3058, %v3066
    %vm3069 = vcmask 261120
    %v3070 = vsel %vm3069, %v3067, 0
    %3072 = vmatprep.subr.mxu0 0.0
    %3073 = vmatpush1.msra.mxu0 %v331
    %3074 = vmatprep.subr.mxu0 0.0
    %3075 = vmatpush1.msra.mxu0 %v332
    %3076 = vmatprep.subr.mxu0 0.0
    %3077 = vmatpush1.msra.mxu0 %v333
    %3078 = vmatprep.subr.mxu0 0.0
    %3079 = vmatpush1.msra.mxu0 %v334
    %3080 = vmatprep.subr.mxu0 0.0
    %3081 = vmatpush1.msra.mxu0 %v335
    %3082 = vmatprep.subr.mxu0 0.0
    %3083 = vmatpush1.msra.mxu0 %v336
    %3084 = vmatprep.subr.mxu0 0.0
    %3085 = vmatpush1.msra.mxu0 %v337
    %3086 = vmatprep.subr.mxu0 0.0
    %3087 = vmatpush1.msra.mxu0 %v338
    %3088 = vmatprep.subr.mxu0 0.0
    %3089 = vmatpush1.msra.mxu0 %v339
    %3090 = vmatprep.subr.mxu0 0.0
    %3091 = vmatpush1.msra.mxu0 %v340
    %3092 = vmatprep.subr.mxu0 0.0
    %3093 = vmatpush1.msra.mxu0 %v341
    %3094 = vmatprep.subr.mxu0 0.0
    %3095 = vmatpush1.msra.mxu0 %v342
    %3096 = vmatprep.subr.mxu0 0.0
    %3097 = vmatpush1.msra.mxu0 %v343
    %3098 = vmatprep.subr.mxu0 0.0
    %3099 = vmatpush1.msra.mxu0 %v344
    %3100 = vmatprep.subr.mxu0 0.0
    %3101 = vmatpush1.msra.mxu0 %v345
    %3102 = vmatprep.subr.mxu0 0.0
    %3103 = vmatpush1.msra.mxu0 %v346
    %3104 = vmatprep.subr.mxu0 0.0
    %3105 = vmatpush1.msra.mxu0 %v347
    %3106 = vmatprep.subr.mxu0 0.0
    %3107 = vmatpush1.msra.mxu0 %v348
    %3108 = vmatprep.subr.mxu0 0.0
    %3109 = vmatpush1.msra.mxu0 %v349
    %3110 = vmatprep.subr.mxu0 0.0
    %3111 = vmatpush1.msra.mxu0 %v350
    %3112 = vmatprep.subr.mxu0 0.0
    %3113 = vmatpush1.msra.mxu0 0.0
    %3114 = vmatprep.subr.mxu0 0.0
    %3115 = vmatpush1.msra.mxu0 0.0
    %3116 = vmatprep.subr.mxu0 0.0
    %3117 = vmatpush1.msra.mxu0 0.0
    %3118 = vmatprep.subr.mxu0 0.0
    %3119 = vmatpush1.msra.mxu0 0.0
    %3120 = vmatprep.subr.mxu0 0.0
    %3121 = vmatpush1.msra.mxu0 0.0
    %3122 = vmatprep.subr.mxu0 0.0
    %3123 = vmatpush1.msra.mxu0 0.0
    %3124 = vmatprep.subr.mxu0 0.0
    %3125 = vmatpush1.msra.mxu0 0.0
    %3126 = vmatprep.subr.mxu0 0.0
    %3127 = vmatpush1.msra.mxu0 0.0
    %3128 = vmatprep.subr.mxu0 0.0
    %3129 = vmatpush1.msra.mxu0 0.0
    %3130 = vmatprep.subr.mxu0 0.0
    %3131 = vmatpush1.msra.mxu0 0.0
    %3132 = vmatprep.subr.mxu0 0.0
    %3133 = vmatpush1.msra.mxu0 0.0
    %3134 = vmatprep.subr.mxu0 0.0
    %3135 = vmatpush1.msra.mxu0 0.0
    %3136 = vmatprep.mubr.f32.mxu0 %v3070
    %3137 = vmatmul.mubr.f32.gmra.mrb[0].mxu0 %v3063
    %v3138 = vpop.f32.mrb[0].mxu0
    %v3139 = vadd.f32 %v362, %v3138
    %v3140 = vpop.f32.mrb[0].mxu0
    %3141 = vdwg.mxu0
    %v3143 = vsel %vm2686, %v3139, 0
    %3145 = vmatprep.subr.mxu0 0.0
    %3146 = vmatpush1.msra.mxu0 %v351
    %3147 = vmatprep.subr.mxu0 0.0
    %3148 = vmatpush1.msra.mxu0 %v352
    %3149 = vmatprep.subr.mxu0 0.0
    %3150 = vmatpush1.msra.mxu0 %v353
    %3151 = vmatprep.subr.mxu0 0.0
    %3152 = vmatpush1.msra.mxu0 %v354
    %3153 = vmatprep.subr.mxu0 0.0
    %3154 = vmatpush1.msra.mxu0 %v355
    %3155 = vmatprep.subr.mxu0 0.0
    %3156 = vmatpush1.msra.mxu0 %v356
    %3157 = vmatprep.subr.mxu0 0.0
    %3158 = vmatpush1.msra.mxu0 %v357
    %3159 = vmatprep.subr.mxu0 0.0
    %3160 = vmatpush1.msra.mxu0 %v358
    %3161 = vmatprep.subr.mxu0 0.0
    %3162 = vmatpush1.msra.mxu0 %v359
    %3163 = vmatprep.subr.mxu0 0.0
    %3164 = vmatpush1.msra.mxu0 %v360
    %3165 = vmatprep.subr.mxu0 0.0
    %3166 = vmatpush1.msra.mxu0 0.0
    %3167 = vmatprep.subr.mxu0 0.0
    %3168 = vmatpush1.msra.mxu0 0.0
    %3169 = vmatprep.subr.mxu0 0.0
    %3170 = vmatpush1.msra.mxu0 0.0
    %3171 = vmatprep.subr.mxu0 0.0
    %3172 = vmatpush1.msra.mxu0 0.0
    %3173 = vmatprep.subr.mxu0 0.0
    %3174 = vmatpush1.msra.mxu0 0.0
    %3175 = vmatprep.subr.mxu0 0.0
    %3176 = vmatpush1.msra.mxu0 0.0
    %3177 = vmatprep.subr.mxu0 0.0
    %3178 = vmatpush1.msra.mxu0 0.0
    %3179 = vmatprep.subr.mxu0 0.0
    %3180 = vmatpush1.msra.mxu0 0.0
    %3181 = vmatprep.subr.mxu0 0.0
    %3182 = vmatpush1.msra.mxu0 0.0
    %3183 = vmatprep.subr.mxu0 0.0
    %3184 = vmatpush1.msra.mxu0 0.0
    %3185 = vmatprep.subr.mxu0 0.0
    %3186 = vmatpush1.msra.mxu0 0.0
    %3187 = vmatprep.subr.mxu0 0.0
    %3188 = vmatpush1.msra.mxu0 0.0
    %3189 = vmatprep.subr.mxu0 0.0
    %3190 = vmatpush1.msra.mxu0 0.0
    %3191 = vmatprep.subr.mxu0 0.0
    %3192 = vmatpush1.msra.mxu0 0.0
    %3193 = vmatprep.subr.mxu0 0.0
    %3194 = vmatpush1.msra.mxu0 0.0
    %3195 = vmatprep.subr.mxu0 0.0
    %3196 = vmatpush1.msra.mxu0 0.0
    %3197 = vmatprep.subr.mxu0 0.0
    %3198 = vmatpush1.msra.mxu0 0.0
    %3199 = vmatprep.subr.mxu0 0.0
    %3200 = vmatpush1.msra.mxu0 0.0
    %3201 = vmatprep.subr.mxu0 0.0
    %3202 = vmatpush1.msra.mxu0 0.0
    %3203 = vmatprep.subr.mxu0 0.0
    %3204 = vmatpush1.msra.mxu0 0.0
    %3205 = vmatprep.subr.mxu0 0.0
    %3206 = vmatpush1.msra.mxu0 0.0
    %3207 = vmatprep.subr.mxu0 0.0
    %3208 = vmatpush1.msra.mxu0 0.0
    %3209 = vmatprep.mubr.f32.mxu0 0.0
    %3210 = vmatmul.mubr.f32.gmra.mrb[0].mxu0 %v3143
    %v3211 = vpop.f32.mrb[0].mxu0
    %v3212 = vadd.f32 %v363, %v3211
    %v3213 = vpop.f32.mrb[0].mxu0
    %3214 = vdwg.mxu0
    %vm3215 = vcmask 73728
    %3216 = vst.msk [vmem:[#allocation2] sm:$0x1] %vm3215, %v3212
    %s3217 = scalar_lea.vmem %s0, 8
    %v3218 = vld [vmem:[%s3217] sm:$0x7f]
    %s3219 = scalar_lea.vmem %s1, 8
    %v3220 = vld [vmem:[%s3219] sm:$0x7f]
    %s3221 = scalar_lea.vmem %s2, 8
    %v3222 = vld [vmem:[%s3221] sm:$0x7f]
    %s3223 = scalar_lea.vmem %s3, 8
    %v3224 = vld [vmem:[%s3223] sm:$0x7f]
    %v3226 = vsel %vm368, %v3220, 0
    %3228 = vmatprep.subr.mxu0 %v58
    %3229 = vmatpush1.msra.mxu0 %v57
    %3230 = vmatprep.subr.mxu0 %v60
    %3231 = vmatpush1.msra.mxu0 %v59
    %3232 = vmatprep.subr.mxu0 %v62
    %3233 = vmatpush1.msra.mxu0 %v61
    %3234 = vmatprep.subr.mxu0 %v377
    %3235 = vmatpush1.msra.mxu0 %v374
    %3236 = vmatprep.subr.mxu0 0.0
    %3237 = vmatpush1.msra.mxu0 0.0
    %3238 = vmatprep.subr.mxu0 0.0
    %3239 = vmatpush1.msra.mxu0 0.0
    %3240 = vmatprep.subr.mxu0 0.0
    %3241 = vmatpush1.msra.mxu0 0.0
    %3242 = vmatprep.subr.mxu0 0.0
    %3243 = vmatpush1.msra.mxu0 0.0
    %3244 = vmatprep.subr.mxu0 0.0
    %3245 = vmatpush1.msra.mxu0 0.0
    %3246 = vmatprep.subr.mxu0 0.0
    %3247 = vmatpush1.msra.mxu0 0.0
    %3248 = vmatprep.subr.mxu0 0.0
    %3249 = vmatpush1.msra.mxu0 0.0
    %3250 = vmatprep.subr.mxu0 0.0
    %3251 = vmatpush1.msra.mxu0 0.0
    %3252 = vmatprep.subr.mxu0 0.0
    %3253 = vmatpush1.msra.mxu0 0.0
    %3254 = vmatprep.subr.mxu0 0.0
    %3255 = vmatpush1.msra.mxu0 0.0
    %3256 = vmatprep.subr.mxu0 0.0
    %3257 = vmatpush1.msra.mxu0 0.0
    %3258 = vmatprep.subr.mxu0 0.0
    %3259 = vmatpush1.msra.mxu0 0.0
    %3260 = vmatprep.subr.mxu0 0.0
    %3261 = vmatpush1.msra.mxu0 0.0
    %3262 = vmatprep.subr.mxu0 0.0
    %3263 = vmatpush1.msra.mxu0 0.0
    %3264 = vmatprep.subr.mxu0 0.0
    %3265 = vmatpush1.msra.mxu0 0.0
    %3266 = vmatprep.subr.mxu0 0.0
    %3267 = vmatpush1.msra.mxu0 0.0
    %3268 = vmatprep.subr.mxu0 0.0
    %3269 = vmatpush1.msra.mxu0 0.0
    %3270 = vmatprep.subr.mxu0 0.0
    %3271 = vmatpush1.msra.mxu0 0.0
    %3272 = vmatprep.subr.mxu0 0.0
    %3273 = vmatpush1.msra.mxu0 0.0
    %3274 = vmatprep.subr.mxu0 0.0
    %3275 = vmatpush1.msra.mxu0 0.0
    %3276 = vmatprep.subr.mxu0 0.0
    %3277 = vmatpush1.msra.mxu0 0.0
    %3278 = vmatprep.subr.mxu0 0.0
    %3279 = vmatpush1.msra.mxu0 0.0
    %3280 = vmatprep.subr.mxu0 0.0
    %3281 = vmatpush1.msra.mxu0 0.0
    %3282 = vmatprep.subr.mxu0 0.0
    %3283 = vmatpush1.msra.mxu0 0.0
    %3284 = vmatprep.subr.mxu0 0.0
    %3285 = vmatpush1.msra.mxu0 0.0
    %3286 = vmatprep.subr.mxu0 0.0
    %3287 = vmatpush1.msra.mxu0 0.0
    %3288 = vmatprep.subr.mxu0 0.0
    %3289 = vmatpush1.msra.mxu0 0.0
    %3290 = vmatprep.subr.mxu0 0.0
    %3291 = vmatpush1.msra.mxu0 0.0
    %3292 = vmatprep.mubr.f32.mxu0 0.0
    %3293 = vmatmul.mubr.f32.gmra.mrb[0].mxu0 %v3226
    %v3294 = vpop.f32.mrb[0].mxu0
    %v3295 = vadd.f32 0.0, %v3294
    %v3296 = vpop.f32.mrb[0].mxu0
    %v3297 = vadd.f32 0.0, %v3296
    %3298 = vdwg.mxu0
    %v3300 = vsel %vm368, %v3218, 0
    %3302 = vmatprep.subr.mxu0 %v49
    %3303 = vmatpush1.msra.mxu0 %v48
    %3304 = vmatprep.subr.mxu0 %v51
    %3305 = vmatpush1.msra.mxu0 %v50
    %3306 = vmatprep.subr.mxu0 %v53
    %3307 = vmatpush1.msra.mxu0 %v52
    %3308 = vmatprep.subr.mxu0 %v457
    %3309 = vmatpush1.msra.mxu0 %v454
    %3310 = vmatprep.subr.mxu0 0.0
    %3311 = vmatpush1.msra.mxu0 0.0
    %3312 = vmatprep.subr.mxu0 0.0
    %3313 = vmatpush1.msra.mxu0 0.0
    %3314 = vmatprep.subr.mxu0 0.0
    %3315 = vmatpush1.msra.mxu0 0.0
    %3316 = vmatprep.subr.mxu0 0.0
    %3317 = vmatpush1.msra.mxu0 0.0
    %3318 = vmatprep.subr.mxu0 0.0
    %3319 = vmatpush1.msra.mxu0 0.0
    %3320 = vmatprep.subr.mxu0 0.0
    %3321 = vmatpush1.msra.mxu0 0.0
    %3322 = vmatprep.subr.mxu0 0.0
    %3323 = vmatpush1.msra.mxu0 0.0
    %3324 = vmatprep.subr.mxu0 0.0
    %3325 = vmatpush1.msra.mxu0 0.0
    %3326 = vmatprep.subr.mxu0 0.0
    %3327 = vmatpush1.msra.mxu0 0.0
    %3328 = vmatprep.subr.mxu0 0.0
    %3329 = vmatpush1.msra.mxu0 0.0
    %3330 = vmatprep.subr.mxu0 0.0
    %3331 = vmatpush1.msra.mxu0 0.0
    %3332 = vmatprep.subr.mxu0 0.0
    %3333 = vmatpush1.msra.mxu0 0.0
    %3334 = vmatprep.subr.mxu0 0.0
    %3335 = vmatpush1.msra.mxu0 0.0
    %3336 = vmatprep.subr.mxu0 0.0
    %3337 = vmatpush1.msra.mxu0 0.0
    %3338 = vmatprep.subr.mxu0 0.0
    %3339 = vmatpush1.msra.mxu0 0.0
    %3340 = vmatprep.subr.mxu0 0.0
    %3341 = vmatpush1.msra.mxu0 0.0
    %3342 = vmatprep.subr.mxu0 0.0
    %3343 = vmatpush1.msra.mxu0 0.0
    %3344 = vmatprep.subr.mxu0 0.0
    %3345 = vmatpush1.msra.mxu0 0.0
    %3346 = vmatprep.subr.mxu0 0.0
    %3347 = vmatpush1.msra.mxu0 0.0
    %3348 = vmatprep.subr.mxu0 0.0
    %3349 = vmatpush1.msra.mxu0 0.0
    %3350 = vmatprep.subr.mxu0 0.0
    %3351 = vmatpush1.msra.mxu0 0.0
    %3352 = vmatprep.subr.mxu0 0.0
    %3353 = vmatpush1.msra.mxu0 0.0
    %3354 = vmatprep.subr.mxu0 0.0
    %3355 = vmatpush1.msra.mxu0 0.0
    %3356 = vmatprep.subr.mxu0 0.0
    %3357 = vmatpush1.msra.mxu0 0.0
    %3358 = vmatprep.subr.mxu0 0.0
    %3359 = vmatpush1.msra.mxu0 0.0
    %3360 = vmatprep.subr.mxu0 0.0
    %3361 = vmatpush1.msra.mxu0 0.0
    %3362 = vmatprep.subr.mxu0 0.0
    %3363 = vmatpush1.msra.mxu0 0.0
    %3364 = vmatprep.subr.mxu0 0.0
    %3365 = vmatpush1.msra.mxu0 0.0
    %3366 = vmatprep.mubr.f32.mxu0 0.0
    %3367 = vmatmul.mubr.f32.gmra.mrb[0].mxu0 %v3300
    %v3368 = vpop.f32.mrb[0].mxu0
    %v3369 = vadd.f32 %v3295, %v3368
    %v3370 = vpop.f32.mrb[0].mxu0
    %v3371 = vadd.f32 %v3297, %v3370
    %3372 = vdwg.mxu0
    %v3374 = vsel %vm368, %v3222, 0
    %3376 = vmatprep.subr.mxu0 %v67
    %3377 = vmatpush1.msra.mxu0 %v66
    %3378 = vmatprep.subr.mxu0 %v69
    %3379 = vmatpush1.msra.mxu0 %v68
    %3380 = vmatprep.subr.mxu0 %v71
    %3381 = vmatpush1.msra.mxu0 %v70
    %3382 = vmatprep.subr.mxu0 %v537
    %3383 = vmatpush1.msra.mxu0 %v534
    %3384 = vmatprep.subr.mxu0 0.0
    %3385 = vmatpush1.msra.mxu0 0.0
    %3386 = vmatprep.subr.mxu0 0.0
    %3387 = vmatpush1.msra.mxu0 0.0
    %3388 = vmatprep.subr.mxu0 0.0
    %3389 = vmatpush1.msra.mxu0 0.0
    %3390 = vmatprep.subr.mxu0 0.0
    %3391 = vmatpush1.msra.mxu0 0.0
    %3392 = vmatprep.subr.mxu0 0.0
    %3393 = vmatpush1.msra.mxu0 0.0
    %3394 = vmatprep.subr.mxu0 0.0
    %3395 = vmatpush1.msra.mxu0 0.0
    %3396 = vmatprep.subr.mxu0 0.0
    %3397 = vmatpush1.msra.mxu0 0.0
    %3398 = vmatprep.subr.mxu0 0.0
    %3399 = vmatpush1.msra.mxu0 0.0
    %3400 = vmatprep.subr.mxu0 0.0
    %3401 = vmatpush1.msra.mxu0 0.0
    %3402 = vmatprep.subr.mxu0 0.0
    %3403 = vmatpush1.msra.mxu0 0.0
    %3404 = vmatprep.subr.mxu0 0.0
    %3405 = vmatpush1.msra.mxu0 0.0
    %3406 = vmatprep.subr.mxu0 0.0
    %3407 = vmatpush1.msra.mxu0 0.0
    %3408 = vmatprep.subr.mxu0 0.0
    %3409 = vmatpush1.msra.mxu0 0.0
    %3410 = vmatprep.subr.mxu0 0.0
    %3411 = vmatpush1.msra.mxu0 0.0
    %3412 = vmatprep.subr.mxu0 0.0
    %3413 = vmatpush1.msra.mxu0 0.0
    %3414 = vmatprep.subr.mxu0 0.0
    %3415 = vmatpush1.msra.mxu0 0.0
    %3416 = vmatprep.subr.mxu0 0.0
    %3417 = vmatpush1.msra.mxu0 0.0
    %3418 = vmatprep.subr.mxu0 0.0
    %3419 = vmatpush1.msra.mxu0 0.0
    %3420 = vmatprep.subr.mxu0 0.0
    %3421 = vmatpush1.msra.mxu0 0.0
    %3422 = vmatprep.subr.mxu0 0.0
    %3423 = vmatpush1.msra.mxu0 0.0
    %3424 = vmatprep.subr.mxu0 0.0
    %3425 = vmatpush1.msra.mxu0 0.0
    %3426 = vmatprep.subr.mxu0 0.0
    %3427 = vmatpush1.msra.mxu0 0.0
    %3428 = vmatprep.subr.mxu0 0.0
    %3429 = vmatpush1.msra.mxu0 0.0
    %3430 = vmatprep.subr.mxu0 0.0
    %3431 = vmatpush1.msra.mxu0 0.0
    %3432 = vmatprep.subr.mxu0 0.0
    %3433 = vmatpush1.msra.mxu0 0.0
    %3434 = vmatprep.subr.mxu0 0.0
    %3435 = vmatpush1.msra.mxu0 0.0
    %3436 = vmatprep.subr.mxu0 0.0
    %3437 = vmatpush1.msra.mxu0 0.0
    %3438 = vmatprep.subr.mxu0 0.0
    %3439 = vmatpush1.msra.mxu0 0.0
    %3440 = vmatprep.mubr.f32.mxu0 0.0
    %3441 = vmatmul.mubr.f32.gmra.mrb[0].mxu0 %v3374
    %v3442 = vpop.f32.mrb[0].mxu0
    %v3443 = vadd.f32 0.0, %v3442
    %v3444 = vpop.f32.mrb[0].mxu0
    %v3445 = vadd.f32 0.0, %v3444
    %3446 = vdwg.mxu0
    %v3447 = vadd.f32 %v3369, %v3443
    %v3448 = vadd.f32 %v3371, %v3445
    %v3450 = vsel %vm368, %v3224, 0
    %3452 = vmatprep.subr.mxu0 %v76
    %3453 = vmatpush1.msra.mxu0 %v75
    %3454 = vmatprep.subr.mxu0 %v78
    %3455 = vmatpush1.msra.mxu0 %v77
    %3456 = vmatprep.subr.mxu0 %v80
    %3457 = vmatpush1.msra.mxu0 %v79
    %3458 = vmatprep.subr.mxu0 %v619
    %3459 = vmatpush1.msra.mxu0 %v616
    %3460 = vmatprep.subr.mxu0 0.0
    %3461 = vmatpush1.msra.mxu0 0.0
    %3462 = vmatprep.subr.mxu0 0.0
    %3463 = vmatpush1.msra.mxu0 0.0
    %3464 = vmatprep.subr.mxu0 0.0
    %3465 = vmatpush1.msra.mxu0 0.0
    %3466 = vmatprep.subr.mxu0 0.0
    %3467 = vmatpush1.msra.mxu0 0.0
    %3468 = vmatprep.subr.mxu0 0.0
    %3469 = vmatpush1.msra.mxu0 0.0
    %3470 = vmatprep.subr.mxu0 0.0
    %3471 = vmatpush1.msra.mxu0 0.0
    %3472 = vmatprep.subr.mxu0 0.0
    %3473 = vmatpush1.msra.mxu0 0.0
    %3474 = vmatprep.subr.mxu0 0.0
    %3475 = vmatpush1.msra.mxu0 0.0
    %3476 = vmatprep.subr.mxu0 0.0
    %3477 = vmatpush1.msra.mxu0 0.0
    %3478 = vmatprep.subr.mxu0 0.0
    %3479 = vmatpush1.msra.mxu0 0.0
    %3480 = vmatprep.subr.mxu0 0.0
    %3481 = vmatpush1.msra.mxu0 0.0
    %3482 = vmatprep.subr.mxu0 0.0
    %3483 = vmatpush1.msra.mxu0 0.0
    %3484 = vmatprep.subr.mxu0 0.0
    %3485 = vmatpush1.msra.mxu0 0.0
    %3486 = vmatprep.subr.mxu0 0.0
    %3487 = vmatpush1.msra.mxu0 0.0
    %3488 = vmatprep.subr.mxu0 0.0
    %3489 = vmatpush1.msra.mxu0 0.0
    %3490 = vmatprep.subr.mxu0 0.0
    %3491 = vmatpush1.msra.mxu0 0.0
    %3492 = vmatprep.subr.mxu0 0.0
    %3493 = vmatpush1.msra.mxu0 0.0
    %3494 = vmatprep.subr.mxu0 0.0
    %3495 = vmatpush1.msra.mxu0 0.0
    %3496 = vmatprep.subr.mxu0 0.0
    %3497 = vmatpush1.msra.mxu0 0.0
    %3498 = vmatprep.subr.mxu0 0.0
    %3499 = vmatpush1.msra.mxu0 0.0
    %3500 = vmatprep.subr.mxu0 0.0
    %3501 = vmatpush1.msra.mxu0 0.0
    %3502 = vmatprep.subr.mxu0 0.0
    %3503 = vmatpush1.msra.mxu0 0.0
    %3504 = vmatprep.subr.mxu0 0.0
    %3505 = vmatpush1.msra.mxu0 0.0
    %3506 = vmatprep.subr.mxu0 0.0
    %3507 = vmatpush1.msra.mxu0 0.0
    %3508 = vmatprep.subr.mxu0 0.0
    %3509 = vmatpush1.msra.mxu0 0.0
    %3510 = vmatprep.subr.mxu0 0.0
    %3511 = vmatpush1.msra.mxu0 0.0
    %3512 = vmatprep.subr.mxu0 0.0
    %3513 = vmatpush1.msra.mxu0 0.0
    %3514 = vmatprep.subr.mxu0 0.0
    %3515 = vmatpush1.msra.mxu0 0.0
    %3516 = vmatprep.mubr.f32.mxu0 0.0
    %3517 = vmatmul.mubr.f32.gmra.mrb[0].mxu0 %v3450
    %v3518 = vpop.f32.mrb[0].mxu0
    %v3519 = vadd.f32 0.0, %v3518
    %v3520 = vpop.f32.mrb[0].mxu0
    %v3521 = vadd.f32 0.0, %v3520
    %3522 = vdwg.mxu0
    %v3523 = vadd.f32 %v3447, %v3519
    %v3524 = vadd.f32 %v3448, %v3521
    %v3525 = vrot.slane %v3218, 1
    %v3526 = vsel %vm368, %v3525, 0
    %3528 = vmatprep.subr.mxu0 %v85
    %3529 = vmatpush1.msra.mxu0 %v84
    %3530 = vmatprep.subr.mxu0 %v87
    %3531 = vmatpush1.msra.mxu0 %v86
    %3532 = vmatprep.subr.mxu0 %v89
    %3533 = vmatpush1.msra.mxu0 %v88
    %3534 = vmatprep.subr.mxu0 %v701
    %3535 = vmatpush1.msra.mxu0 %v698
    %3536 = vmatprep.subr.mxu0 0.0
    %3537 = vmatpush1.msra.mxu0 0.0
    %3538 = vmatprep.subr.mxu0 0.0
    %3539 = vmatpush1.msra.mxu0 0.0
    %3540 = vmatprep.subr.mxu0 0.0
    %3541 = vmatpush1.msra.mxu0 0.0
    %3542 = vmatprep.subr.mxu0 0.0
    %3543 = vmatpush1.msra.mxu0 0.0
    %3544 = vmatprep.subr.mxu0 0.0
    %3545 = vmatpush1.msra.mxu0 0.0
    %3546 = vmatprep.subr.mxu0 0.0
    %3547 = vmatpush1.msra.mxu0 0.0
    %3548 = vmatprep.subr.mxu0 0.0
    %3549 = vmatpush1.msra.mxu0 0.0
    %3550 = vmatprep.subr.mxu0 0.0
    %3551 = vmatpush1.msra.mxu0 0.0
    %3552 = vmatprep.subr.mxu0 0.0
    %3553 = vmatpush1.msra.mxu0 0.0
    %3554 = vmatprep.subr.mxu0 0.0
    %3555 = vmatpush1.msra.mxu0 0.0
    %3556 = vmatprep.subr.mxu0 0.0
    %3557 = vmatpush1.msra.mxu0 0.0
    %3558 = vmatprep.subr.mxu0 0.0
    %3559 = vmatpush1.msra.mxu0 0.0
    %3560 = vmatprep.subr.mxu0 0.0
    %3561 = vmatpush1.msra.mxu0 0.0
    %3562 = vmatprep.subr.mxu0 0.0
    %3563 = vmatpush1.msra.mxu0 0.0
    %3564 = vmatprep.subr.mxu0 0.0
    %3565 = vmatpush1.msra.mxu0 0.0
    %3566 = vmatprep.subr.mxu0 0.0
    %3567 = vmatpush1.msra.mxu0 0.0
    %3568 = vmatprep.subr.mxu0 0.0
    %3569 = vmatpush1.msra.mxu0 0.0
    %3570 = vmatprep.subr.mxu0 0.0
    %3571 = vmatpush1.msra.mxu0 0.0
    %3572 = vmatprep.subr.mxu0 0.0
    %3573 = vmatpush1.msra.mxu0 0.0
    %3574 = vmatprep.subr.mxu0 0.0
    %3575 = vmatpush1.msra.mxu0 0.0
    %3576 = vmatprep.subr.mxu0 0.0
    %3577 = vmatpush1.msra.mxu0 0.0
    %3578 = vmatprep.subr.mxu0 0.0
    %3579 = vmatpush1.msra.mxu0 0.0
    %3580 = vmatprep.subr.mxu0 0.0
    %3581 = vmatpush1.msra.mxu0 0.0
    %3582 = vmatprep.subr.mxu0 0.0
    %3583 = vmatpush1.msra.mxu0 0.0
    %3584 = vmatprep.subr.mxu0 0.0
    %3585 = vmatpush1.msra.mxu0 0.0
    %3586 = vmatprep.subr.mxu0 0.0
    %3587 = vmatpush1.msra.mxu0 0.0
    %3588 = vmatprep.subr.mxu0 0.0
    %3589 = vmatpush1.msra.mxu0 0.0
    %3590 = vmatprep.subr.mxu0 0.0
    %3591 = vmatpush1.msra.mxu0 0.0
    %3592 = vmatprep.mubr.f32.mxu0 0.0
    %3593 = vmatmul.mubr.f32.gmra.mrb[0].mxu0 %v3526
    %v3594 = vpop.f32.mrb[0].mxu0
    %v3595 = vadd.f32 0.0, %v3594
    %v3596 = vpop.f32.mrb[0].mxu0
    %v3597 = vadd.f32 0.0, %v3596
    %3598 = vdwg.mxu0
    %v3599 = vadd.f32 %v3523, %v3595
    %v3600 = vadd.f32 %v3524, %v3597
    %3603 = vrot.lane.b32.xlu0 %v3599, 8
    %v3604 = vpop.permute.xlu0 %3603
    %3605 = vrot.lane.b32.xlu0 %v3600, 8
    %v3606 = vpop.permute.xlu0 %3605
    %v3607 = vsel %vm782, %v3604, %v3606
    %v3609 = vmax.f32 %v3599, %v3607
    %3610 = vmatprep.subr.mxu0 %v58
    %3611 = vmatpush1.msra.mxu0 %v57
    %3612 = vmatprep.subr.mxu0 %v60
    %3613 = vmatpush1.msra.mxu0 %v59
    %3614 = vmatprep.subr.mxu0 %v62
    %3615 = vmatpush1.msra.mxu0 %v61
    %3616 = vmatprep.subr.mxu0 %v377
    %3617 = vmatpush1.msra.mxu0 %v374
    %3618 = vmatprep.subr.mxu0 0.0
    %3619 = vmatpush1.msra.mxu0 0.0
    %3620 = vmatprep.subr.mxu0 0.0
    %3621 = vmatpush1.msra.mxu0 0.0
    %3622 = vmatprep.subr.mxu0 0.0
    %3623 = vmatpush1.msra.mxu0 0.0
    %3624 = vmatprep.subr.mxu0 0.0
    %3625 = vmatpush1.msra.mxu0 0.0
    %3626 = vmatprep.subr.mxu0 0.0
    %3627 = vmatpush1.msra.mxu0 0.0
    %3628 = vmatprep.subr.mxu0 0.0
    %3629 = vmatpush1.msra.mxu0 0.0
    %3630 = vmatprep.subr.mxu0 0.0
    %3631 = vmatpush1.msra.mxu0 0.0
    %3632 = vmatprep.subr.mxu0 0.0
    %3633 = vmatpush1.msra.mxu0 0.0
    %3634 = vmatprep.subr.mxu0 0.0
    %3635 = vmatpush1.msra.mxu0 0.0
    %3636 = vmatprep.subr.mxu0 0.0
    %3637 = vmatpush1.msra.mxu0 0.0
    %3638 = vmatprep.subr.mxu0 0.0
    %3639 = vmatpush1.msra.mxu0 0.0
    %3640 = vmatprep.subr.mxu0 0.0
    %3641 = vmatpush1.msra.mxu0 0.0
    %3642 = vmatprep.subr.mxu0 0.0
    %3643 = vmatpush1.msra.mxu0 0.0
    %3644 = vmatprep.subr.mxu0 0.0
    %3645 = vmatpush1.msra.mxu0 0.0
    %3646 = vmatprep.subr.mxu0 0.0
    %3647 = vmatpush1.msra.mxu0 0.0
    %3648 = vmatprep.subr.mxu0 0.0
    %3649 = vmatpush1.msra.mxu0 0.0
    %3650 = vmatprep.subr.mxu0 0.0
    %3651 = vmatpush1.msra.mxu0 0.0
    %3652 = vmatprep.subr.mxu0 0.0
    %3653 = vmatpush1.msra.mxu0 0.0
    %3654 = vmatprep.subr.mxu0 0.0
    %3655 = vmatpush1.msra.mxu0 0.0
    %3656 = vmatprep.subr.mxu0 0.0
    %3657 = vmatpush1.msra.mxu0 0.0
    %3658 = vmatprep.subr.mxu0 0.0
    %3659 = vmatpush1.msra.mxu0 0.0
    %3660 = vmatprep.subr.mxu0 0.0
    %3661 = vmatpush1.msra.mxu0 0.0
    %3662 = vmatprep.subr.mxu0 0.0
    %3663 = vmatpush1.msra.mxu0 0.0
    %3664 = vmatprep.subr.mxu0 0.0
    %3665 = vmatpush1.msra.mxu0 0.0
    %3666 = vmatprep.subr.mxu0 0.0
    %3667 = vmatpush1.msra.mxu0 0.0
    %3668 = vmatprep.subr.mxu0 0.0
    %3669 = vmatpush1.msra.mxu0 0.0
    %3670 = vmatprep.subr.mxu0 0.0
    %3671 = vmatpush1.msra.mxu0 0.0
    %3672 = vmatprep.subr.mxu0 0.0
    %3673 = vmatpush1.msra.mxu0 0.0
    %3674 = vmatprep.mubr.f32.mxu0 0.0
    %3675 = vmatmul.mubr.f32.gmra.mrb[0].mxu0 %v3374
    %v3676 = vpop.f32.mrb[0].mxu0
    %v3677 = vadd.f32 0.0, %v3676
    %v3678 = vpop.f32.mrb[0].mxu0
    %v3679 = vadd.f32 0.0, %v3678
    %3680 = vdwg.mxu0
    %3681 = vmatprep.subr.mxu0 %v49
    %3682 = vmatpush1.msra.mxu0 %v48
    %3683 = vmatprep.subr.mxu0 %v51
    %3684 = vmatpush1.msra.mxu0 %v50
    %3685 = vmatprep.subr.mxu0 %v53
    %3686 = vmatpush1.msra.mxu0 %v52
    %3687 = vmatprep.subr.mxu0 %v457
    %3688 = vmatpush1.msra.mxu0 %v454
    %3689 = vmatprep.subr.mxu0 0.0
    %3690 = vmatpush1.msra.mxu0 0.0
    %3691 = vmatprep.subr.mxu0 0.0
    %3692 = vmatpush1.msra.mxu0 0.0
    %3693 = vmatprep.subr.mxu0 0.0
    %3694 = vmatpush1.msra.mxu0 0.0
    %3695 = vmatprep.subr.mxu0 0.0
    %3696 = vmatpush1.msra.mxu0 0.0
    %3697 = vmatprep.subr.mxu0 0.0
    %3698 = vmatpush1.msra.mxu0 0.0
    %3699 = vmatprep.subr.mxu0 0.0
    %3700 = vmatpush1.msra.mxu0 0.0
    %3701 = vmatprep.subr.mxu0 0.0
    %3702 = vmatpush1.msra.mxu0 0.0
    %3703 = vmatprep.subr.mxu0 0.0
    %3704 = vmatpush1.msra.mxu0 0.0
    %3705 = vmatprep.subr.mxu0 0.0
    %3706 = vmatpush1.msra.mxu0 0.0
    %3707 = vmatprep.subr.mxu0 0.0
    %3708 = vmatpush1.msra.mxu0 0.0
    %3709 = vmatprep.subr.mxu0 0.0
    %3710 = vmatpush1.msra.mxu0 0.0
    %3711 = vmatprep.subr.mxu0 0.0
    %3712 = vmatpush1.msra.mxu0 0.0
    %3713 = vmatprep.subr.mxu0 0.0
    %3714 = vmatpush1.msra.mxu0 0.0
    %3715 = vmatprep.subr.mxu0 0.0
    %3716 = vmatpush1.msra.mxu0 0.0
    %3717 = vmatprep.subr.mxu0 0.0
    %3718 = vmatpush1.msra.mxu0 0.0
    %3719 = vmatprep.subr.mxu0 0.0
    %3720 = vmatpush1.msra.mxu0 0.0
    %3721 = vmatprep.subr.mxu0 0.0
    %3722 = vmatpush1.msra.mxu0 0.0
    %3723 = vmatprep.subr.mxu0 0.0
    %3724 = vmatpush1.msra.mxu0 0.0
    %3725 = vmatprep.subr.mxu0 0.0
    %3726 = vmatpush1.msra.mxu0 0.0
    %3727 = vmatprep.subr.mxu0 0.0
    %3728 = vmatpush1.msra.mxu0 0.0
    %3729 = vmatprep.subr.mxu0 0.0
    %3730 = vmatpush1.msra.mxu0 0.0
    %3731 = vmatprep.subr.mxu0 0.0
    %3732 = vmatpush1.msra.mxu0 0.0
    %3733 = vmatprep.subr.mxu0 0.0
    %3734 = vmatpush1.msra.mxu0 0.0
    %3735 = vmatprep.subr.mxu0 0.0
    %3736 = vmatpush1.msra.mxu0 0.0
    %3737 = vmatprep.subr.mxu0 0.0
    %3738 = vmatpush1.msra.mxu0 0.0
    %3739 = vmatprep.subr.mxu0 0.0
    %3740 = vmatpush1.msra.mxu0 0.0
    %3741 = vmatprep.subr.mxu0 0.0
    %3742 = vmatpush1.msra.mxu0 0.0
    %3743 = vmatprep.subr.mxu0 0.0
    %3744 = vmatpush1.msra.mxu0 0.0
    %3745 = vmatprep.mubr.f32.mxu0 0.0
    %3746 = vmatmul.mubr.f32.gmra.mrb[0].mxu0 %v3226
    %v3747 = vpop.f32.mrb[0].mxu0
    %v3748 = vadd.f32 %v3677, %v3747
    %v3749 = vpop.f32.mrb[0].mxu0
    %v3750 = vadd.f32 %v3679, %v3749
    %3751 = vdwg.mxu0
    %3752 = vmatprep.subr.mxu0 %v67
    %3753 = vmatpush1.msra.mxu0 %v66
    %3754 = vmatprep.subr.mxu0 %v69
    %3755 = vmatpush1.msra.mxu0 %v68
    %3756 = vmatprep.subr.mxu0 %v71
    %3757 = vmatpush1.msra.mxu0 %v70
    %3758 = vmatprep.subr.mxu0 %v537
    %3759 = vmatpush1.msra.mxu0 %v534
    %3760 = vmatprep.subr.mxu0 0.0
    %3761 = vmatpush1.msra.mxu0 0.0
    %3762 = vmatprep.subr.mxu0 0.0
    %3763 = vmatpush1.msra.mxu0 0.0
    %3764 = vmatprep.subr.mxu0 0.0
    %3765 = vmatpush1.msra.mxu0 0.0
    %3766 = vmatprep.subr.mxu0 0.0
    %3767 = vmatpush1.msra.mxu0 0.0
    %3768 = vmatprep.subr.mxu0 0.0
    %3769 = vmatpush1.msra.mxu0 0.0
    %3770 = vmatprep.subr.mxu0 0.0
    %3771 = vmatpush1.msra.mxu0 0.0
    %3772 = vmatprep.subr.mxu0 0.0
    %3773 = vmatpush1.msra.mxu0 0.0
    %3774 = vmatprep.subr.mxu0 0.0
    %3775 = vmatpush1.msra.mxu0 0.0
    %3776 = vmatprep.subr.mxu0 0.0
    %3777 = vmatpush1.msra.mxu0 0.0
    %3778 = vmatprep.subr.mxu0 0.0
    %3779 = vmatpush1.msra.mxu0 0.0
    %3780 = vmatprep.subr.mxu0 0.0
    %3781 = vmatpush1.msra.mxu0 0.0
    %3782 = vmatprep.subr.mxu0 0.0
    %3783 = vmatpush1.msra.mxu0 0.0
    %3784 = vmatprep.subr.mxu0 0.0
    %3785 = vmatpush1.msra.mxu0 0.0
    %3786 = vmatprep.subr.mxu0 0.0
    %3787 = vmatpush1.msra.mxu0 0.0
    %3788 = vmatprep.subr.mxu0 0.0
    %3789 = vmatpush1.msra.mxu0 0.0
    %3790 = vmatprep.subr.mxu0 0.0
    %3791 = vmatpush1.msra.mxu0 0.0
    %3792 = vmatprep.subr.mxu0 0.0
    %3793 = vmatpush1.msra.mxu0 0.0
    %3794 = vmatprep.subr.mxu0 0.0
    %3795 = vmatpush1.msra.mxu0 0.0
    %3796 = vmatprep.subr.mxu0 0.0
    %3797 = vmatpush1.msra.mxu0 0.0
    %3798 = vmatprep.subr.mxu0 0.0
    %3799 = vmatpush1.msra.mxu0 0.0
    %3800 = vmatprep.subr.mxu0 0.0
    %3801 = vmatpush1.msra.mxu0 0.0
    %3802 = vmatprep.subr.mxu0 0.0
    %3803 = vmatpush1.msra.mxu0 0.0
    %3804 = vmatprep.subr.mxu0 0.0
    %3805 = vmatpush1.msra.mxu0 0.0
    %3806 = vmatprep.subr.mxu0 0.0
    %3807 = vmatpush1.msra.mxu0 0.0
    %3808 = vmatprep.subr.mxu0 0.0
    %3809 = vmatpush1.msra.mxu0 0.0
    %3810 = vmatprep.subr.mxu0 0.0
    %3811 = vmatpush1.msra.mxu0 0.0
    %3812 = vmatprep.subr.mxu0 0.0
    %3813 = vmatpush1.msra.mxu0 0.0
    %3814 = vmatprep.subr.mxu0 0.0
    %3815 = vmatpush1.msra.mxu0 0.0
    %3816 = vmatprep.mubr.f32.mxu0 0.0
    %3817 = vmatmul.mubr.f32.gmra.mrb[0].mxu0 %v3450
    %v3818 = vpop.f32.mrb[0].mxu0
    %v3819 = vadd.f32 0.0, %v3818
    %v3820 = vpop.f32.mrb[0].mxu0
    %v3821 = vadd.f32 0.0, %v3820
    %3822 = vdwg.mxu0
    %v3823 = vadd.f32 %v3748, %v3819
    %v3824 = vadd.f32 %v3750, %v3821
    %3825 = vmatprep.subr.mxu0 %v76
    %3826 = vmatpush1.msra.mxu0 %v75
    %3827 = vmatprep.subr.mxu0 %v78
    %3828 = vmatpush1.msra.mxu0 %v77
    %3829 = vmatprep.subr.mxu0 %v80
    %3830 = vmatpush1.msra.mxu0 %v79
    %3831 = vmatprep.subr.mxu0 %v619
    %3832 = vmatpush1.msra.mxu0 %v616
    %3833 = vmatprep.subr.mxu0 0.0
    %3834 = vmatpush1.msra.mxu0 0.0
    %3835 = vmatprep.subr.mxu0 0.0
    %3836 = vmatpush1.msra.mxu0 0.0
    %3837 = vmatprep.subr.mxu0 0.0
    %3838 = vmatpush1.msra.mxu0 0.0
    %3839 = vmatprep.subr.mxu0 0.0
    %3840 = vmatpush1.msra.mxu0 0.0
    %3841 = vmatprep.subr.mxu0 0.0
    %3842 = vmatpush1.msra.mxu0 0.0
    %3843 = vmatprep.subr.mxu0 0.0
    %3844 = vmatpush1.msra.mxu0 0.0
    %3845 = vmatprep.subr.mxu0 0.0
    %3846 = vmatpush1.msra.mxu0 0.0
    %3847 = vmatprep.subr.mxu0 0.0
    %3848 = vmatpush1.msra.mxu0 0.0
    %3849 = vmatprep.subr.mxu0 0.0
    %3850 = vmatpush1.msra.mxu0 0.0
    %3851 = vmatprep.subr.mxu0 0.0
    %3852 = vmatpush1.msra.mxu0 0.0
    %3853 = vmatprep.subr.mxu0 0.0
    %3854 = vmatpush1.msra.mxu0 0.0
    %3855 = vmatprep.subr.mxu0 0.0
    %3856 = vmatpush1.msra.mxu0 0.0
    %3857 = vmatprep.subr.mxu0 0.0
    %3858 = vmatpush1.msra.mxu0 0.0
    %3859 = vmatprep.subr.mxu0 0.0
    %3860 = vmatpush1.msra.mxu0 0.0
    %3861 = vmatprep.subr.mxu0 0.0
    %3862 = vmatpush1.msra.mxu0 0.0
    %3863 = vmatprep.subr.mxu0 0.0
    %3864 = vmatpush1.msra.mxu0 0.0
    %3865 = vmatprep.subr.mxu0 0.0
    %3866 = vmatpush1.msra.mxu0 0.0
    %3867 = vmatprep.subr.mxu0 0.0
    %3868 = vmatpush1.msra.mxu0 0.0
    %3869 = vmatprep.subr.mxu0 0.0
    %3870 = vmatpush1.msra.mxu0 0.0
    %3871 = vmatprep.subr.mxu0 0.0
    %3872 = vmatpush1.msra.mxu0 0.0
    %3873 = vmatprep.subr.mxu0 0.0
    %3874 = vmatpush1.msra.mxu0 0.0
    %3875 = vmatprep.subr.mxu0 0.0
    %3876 = vmatpush1.msra.mxu0 0.0
    %3877 = vmatprep.subr.mxu0 0.0
    %3878 = vmatpush1.msra.mxu0 0.0
    %3879 = vmatprep.subr.mxu0 0.0
    %3880 = vmatpush1.msra.mxu0 0.0
    %3881 = vmatprep.subr.mxu0 0.0
    %3882 = vmatpush1.msra.mxu0 0.0
    %3883 = vmatprep.subr.mxu0 0.0
    %3884 = vmatpush1.msra.mxu0 0.0
    %3885 = vmatprep.subr.mxu0 0.0
    %3886 = vmatpush1.msra.mxu0 0.0
    %3887 = vmatprep.subr.mxu0 0.0
    %3888 = vmatpush1.msra.mxu0 0.0
    %3889 = vmatprep.mubr.f32.mxu0 0.0
    %3890 = vmatmul.mubr.f32.gmra.mrb[0].mxu0 %v3526
    %v3891 = vpop.f32.mrb[0].mxu0
    %v3892 = vadd.f32 0.0, %v3891
    %v3893 = vpop.f32.mrb[0].mxu0
    %v3894 = vadd.f32 0.0, %v3893
    %3895 = vdwg.mxu0
    %v3896 = vadd.f32 %v3823, %v3892
    %v3897 = vadd.f32 %v3824, %v3894
    %v3898 = vrot.slane %v3220, 1
    %v3899 = vsel %vm368, %v3898, 0
    %3901 = vmatprep.subr.mxu0 %v85
    %3902 = vmatpush1.msra.mxu0 %v84
    %3903 = vmatprep.subr.mxu0 %v87
    %3904 = vmatpush1.msra.mxu0 %v86
    %3905 = vmatprep.subr.mxu0 %v89
    %3906 = vmatpush1.msra.mxu0 %v88
    %3907 = vmatprep.subr.mxu0 %v701
    %3908 = vmatpush1.msra.mxu0 %v698
    %3909 = vmatprep.subr.mxu0 0.0
    %3910 = vmatpush1.msra.mxu0 0.0
    %3911 = vmatprep.subr.mxu0 0.0
    %3912 = vmatpush1.msra.mxu0 0.0
    %3913 = vmatprep.subr.mxu0 0.0
    %3914 = vmatpush1.msra.mxu0 0.0
    %3915 = vmatprep.subr.mxu0 0.0
    %3916 = vmatpush1.msra.mxu0 0.0
    %3917 = vmatprep.subr.mxu0 0.0
    %3918 = vmatpush1.msra.mxu0 0.0
    %3919 = vmatprep.subr.mxu0 0.0
    %3920 = vmatpush1.msra.mxu0 0.0
    %3921 = vmatprep.subr.mxu0 0.0
    %3922 = vmatpush1.msra.mxu0 0.0
    %3923 = vmatprep.subr.mxu0 0.0
    %3924 = vmatpush1.msra.mxu0 0.0
    %3925 = vmatprep.subr.mxu0 0.0
    %3926 = vmatpush1.msra.mxu0 0.0
    %3927 = vmatprep.subr.mxu0 0.0
    %3928 = vmatpush1.msra.mxu0 0.0
    %3929 = vmatprep.subr.mxu0 0.0
    %3930 = vmatpush1.msra.mxu0 0.0
    %3931 = vmatprep.subr.mxu0 0.0
    %3932 = vmatpush1.msra.mxu0 0.0
    %3933 = vmatprep.subr.mxu0 0.0
    %3934 = vmatpush1.msra.mxu0 0.0
    %3935 = vmatprep.subr.mxu0 0.0
    %3936 = vmatpush1.msra.mxu0 0.0
    %3937 = vmatprep.subr.mxu0 0.0
    %3938 = vmatpush1.msra.mxu0 0.0
    %3939 = vmatprep.subr.mxu0 0.0
    %3940 = vmatpush1.msra.mxu0 0.0
    %3941 = vmatprep.subr.mxu0 0.0
    %3942 = vmatpush1.msra.mxu0 0.0
    %3943 = vmatprep.subr.mxu0 0.0
    %3944 = vmatpush1.msra.mxu0 0.0
    %3945 = vmatprep.subr.mxu0 0.0
    %3946 = vmatpush1.msra.mxu0 0.0
    %3947 = vmatprep.subr.mxu0 0.0
    %3948 = vmatpush1.msra.mxu0 0.0
    %3949 = vmatprep.subr.mxu0 0.0
    %3950 = vmatpush1.msra.mxu0 0.0
    %3951 = vmatprep.subr.mxu0 0.0
    %3952 = vmatpush1.msra.mxu0 0.0
    %3953 = vmatprep.subr.mxu0 0.0
    %3954 = vmatpush1.msra.mxu0 0.0
    %3955 = vmatprep.subr.mxu0 0.0
    %3956 = vmatpush1.msra.mxu0 0.0
    %3957 = vmatprep.subr.mxu0 0.0
    %3958 = vmatpush1.msra.mxu0 0.0
    %3959 = vmatprep.subr.mxu0 0.0
    %3960 = vmatpush1.msra.mxu0 0.0
    %3961 = vmatprep.subr.mxu0 0.0
    %3962 = vmatpush1.msra.mxu0 0.0
    %3963 = vmatprep.subr.mxu0 0.0
    %3964 = vmatpush1.msra.mxu0 0.0
    %3965 = vmatprep.mubr.f32.mxu0 0.0
    %3966 = vmatmul.mubr.f32.gmra.mrb[0].mxu0 %v3899
    %v3967 = vpop.f32.mrb[0].mxu0
    %v3968 = vadd.f32 0.0, %v3967
    %v3969 = vpop.f32.mrb[0].mxu0
    %v3970 = vadd.f32 0.0, %v3969
    %3971 = vdwg.mxu0
    %v3972 = vadd.f32 %v3896, %v3968
    %v3973 = vadd.f32 %v3897, %v3970
    %v3974 = vmax.f32 %v3609, %v3972
    %3977 = vrot.lane.b32.xlu0 %v3972, 8
    %v3978 = vpop.permute.xlu0 %3977
    %3979 = vrot.lane.b32.xlu0 %v3973, 8
    %v3980 = vpop.permute.xlu0 %3979
    %v3981 = vsel %vm782, %v3978, %v3980
    %v3983 = vmax.f32 %v3974, %v3981
    %v3984 = vadd.f32 %v3983, %v1164
    %v3985 = vmax.f32 %v3984, 0.0
    %3986 = vmatprep.subr.mxu0 %v58
    %3987 = vmatpush1.msra.mxu0 %v57
    %3988 = vmatprep.subr.mxu0 %v60
    %3989 = vmatpush1.msra.mxu0 %v59
    %3990 = vmatprep.subr.mxu0 %v62
    %3991 = vmatpush1.msra.mxu0 %v61
    %3992 = vmatprep.subr.mxu0 %v377
    %3993 = vmatpush1.msra.mxu0 %v374
    %3994 = vmatprep.subr.mxu0 0.0
    %3995 = vmatpush1.msra.mxu0 0.0
    %3996 = vmatprep.subr.mxu0 0.0
    %3997 = vmatpush1.msra.mxu0 0.0
    %3998 = vmatprep.subr.mxu0 0.0
    %3999 = vmatpush1.msra.mxu0 0.0
    %4000 = vmatprep.subr.mxu0 0.0
    %4001 = vmatpush1.msra.mxu0 0.0
    %4002 = vmatprep.subr.mxu0 0.0
    %4003 = vmatpush1.msra.mxu0 0.0
    %4004 = vmatprep.subr.mxu0 0.0
    %4005 = vmatpush1.msra.mxu0 0.0
    %4006 = vmatprep.subr.mxu0 0.0
    %4007 = vmatpush1.msra.mxu0 0.0
    %4008 = vmatprep.subr.mxu0 0.0
    %4009 = vmatpush1.msra.mxu0 0.0
    %4010 = vmatprep.subr.mxu0 0.0
    %4011 = vmatpush1.msra.mxu0 0.0
    %4012 = vmatprep.subr.mxu0 0.0
    %4013 = vmatpush1.msra.mxu0 0.0
    %4014 = vmatprep.subr.mxu0 0.0
    %4015 = vmatpush1.msra.mxu0 0.0
    %4016 = vmatprep.subr.mxu0 0.0
    %4017 = vmatpush1.msra.mxu0 0.0
    %4018 = vmatprep.subr.mxu0 0.0
    %4019 = vmatpush1.msra.mxu0 0.0
    %4020 = vmatprep.subr.mxu0 0.0
    %4021 = vmatpush1.msra.mxu0 0.0
    %4022 = vmatprep.subr.mxu0 0.0
    %4023 = vmatpush1.msra.mxu0 0.0
    %4024 = vmatprep.subr.mxu0 0.0
    %4025 = vmatpush1.msra.mxu0 0.0
    %4026 = vmatprep.subr.mxu0 0.0
    %4027 = vmatpush1.msra.mxu0 0.0
    %4028 = vmatprep.subr.mxu0 0.0
    %4029 = vmatpush1.msra.mxu0 0.0
    %4030 = vmatprep.subr.mxu0 0.0
    %4031 = vmatpush1.msra.mxu0 0.0
    %4032 = vmatprep.subr.mxu0 0.0
    %4033 = vmatpush1.msra.mxu0 0.0
    %4034 = vmatprep.subr.mxu0 0.0
    %4035 = vmatpush1.msra.mxu0 0.0
    %4036 = vmatprep.subr.mxu0 0.0
    %4037 = vmatpush1.msra.mxu0 0.0
    %4038 = vmatprep.subr.mxu0 0.0
    %4039 = vmatpush1.msra.mxu0 0.0
    %4040 = vmatprep.subr.mxu0 0.0
    %4041 = vmatpush1.msra.mxu0 0.0
    %4042 = vmatprep.subr.mxu0 0.0
    %4043 = vmatpush1.msra.mxu0 0.0
    %4044 = vmatprep.subr.mxu0 0.0
    %4045 = vmatpush1.msra.mxu0 0.0
    %4046 = vmatprep.subr.mxu0 0.0
    %4047 = vmatpush1.msra.mxu0 0.0
    %4048 = vmatprep.subr.mxu0 0.0
    %4049 = vmatpush1.msra.mxu0 0.0
    %4050 = vmatprep.mubr.f32.mxu0 0.0
    %4051 = vmatmul.mubr.f32.gmra.mrb[0].mxu0 %v3450
    %v4052 = vpop.f32.mrb[0].mxu0
    %v4053 = vadd.f32 0.0, %v4052
    %v4054 = vpop.f32.mrb[0].mxu0
    %v4055 = vadd.f32 0.0, %v4054
    %4056 = vdwg.mxu0
    %4057 = vmatprep.subr.mxu0 %v49
    %4058 = vmatpush1.msra.mxu0 %v48
    %4059 = vmatprep.subr.mxu0 %v51
    %4060 = vmatpush1.msra.mxu0 %v50
    %4061 = vmatprep.subr.mxu0 %v53
    %4062 = vmatpush1.msra.mxu0 %v52
    %4063 = vmatprep.subr.mxu0 %v457
    %4064 = vmatpush1.msra.mxu0 %v454
    %4065 = vmatprep.subr.mxu0 0.0
    %4066 = vmatpush1.msra.mxu0 0.0
    %4067 = vmatprep.subr.mxu0 0.0
    %4068 = vmatpush1.msra.mxu0 0.0
    %4069 = vmatprep.subr.mxu0 0.0
    %4070 = vmatpush1.msra.mxu0 0.0
    %4071 = vmatprep.subr.mxu0 0.0
    %4072 = vmatpush1.msra.mxu0 0.0
    %4073 = vmatprep.subr.mxu0 0.0
    %4074 = vmatpush1.msra.mxu0 0.0
    %4075 = vmatprep.subr.mxu0 0.0
    %4076 = vmatpush1.msra.mxu0 0.0
    %4077 = vmatprep.subr.mxu0 0.0
    %4078 = vmatpush1.msra.mxu0 0.0
    %4079 = vmatprep.subr.mxu0 0.0
    %4080 = vmatpush1.msra.mxu0 0.0
    %4081 = vmatprep.subr.mxu0 0.0
    %4082 = vmatpush1.msra.mxu0 0.0
    %4083 = vmatprep.subr.mxu0 0.0
    %4084 = vmatpush1.msra.mxu0 0.0
    %4085 = vmatprep.subr.mxu0 0.0
    %4086 = vmatpush1.msra.mxu0 0.0
    %4087 = vmatprep.subr.mxu0 0.0
    %4088 = vmatpush1.msra.mxu0 0.0
    %4089 = vmatprep.subr.mxu0 0.0
    %4090 = vmatpush1.msra.mxu0 0.0
    %4091 = vmatprep.subr.mxu0 0.0
    %4092 = vmatpush1.msra.mxu0 0.0
    %4093 = vmatprep.subr.mxu0 0.0
    %4094 = vmatpush1.msra.mxu0 0.0
    %4095 = vmatprep.subr.mxu0 0.0
    %4096 = vmatpush1.msra.mxu0 0.0
    %4097 = vmatprep.subr.mxu0 0.0
    %4098 = vmatpush1.msra.mxu0 0.0
    %4099 = vmatprep.subr.mxu0 0.0
    %4100 = vmatpush1.msra.mxu0 0.0
    %4101 = vmatprep.subr.mxu0 0.0
    %4102 = vmatpush1.msra.mxu0 0.0
    %4103 = vmatprep.subr.mxu0 0.0
    %4104 = vmatpush1.msra.mxu0 0.0
    %4105 = vmatprep.subr.mxu0 0.0
    %4106 = vmatpush1.msra.mxu0 0.0
    %4107 = vmatprep.subr.mxu0 0.0
    %4108 = vmatpush1.msra.mxu0 0.0
    %4109 = vmatprep.subr.mxu0 0.0
    %4110 = vmatpush1.msra.mxu0 0.0
    %4111 = vmatprep.subr.mxu0 0.0
    %4112 = vmatpush1.msra.mxu0 0.0
    %4113 = vmatprep.subr.mxu0 0.0
    %4114 = vmatpush1.msra.mxu0 0.0
    %4115 = vmatprep.subr.mxu0 0.0
    %4116 = vmatpush1.msra.mxu0 0.0
    %4117 = vmatprep.subr.mxu0 0.0
    %4118 = vmatpush1.msra.mxu0 0.0
    %4119 = vmatprep.subr.mxu0 0.0
    %4120 = vmatpush1.msra.mxu0 0.0
    %4121 = vmatprep.mubr.f32.mxu0 0.0
    %4122 = vmatmul.mubr.f32.gmra.mrb[0].mxu0 %v3374
    %v4123 = vpop.f32.mrb[0].mxu0
    %v4124 = vadd.f32 %v4053, %v4123
    %v4125 = vpop.f32.mrb[0].mxu0
    %v4126 = vadd.f32 %v4055, %v4125
    %4127 = vdwg.mxu0
    %4128 = vmatprep.subr.mxu0 %v67
    %4129 = vmatpush1.msra.mxu0 %v66
    %4130 = vmatprep.subr.mxu0 %v69
    %4131 = vmatpush1.msra.mxu0 %v68
    %4132 = vmatprep.subr.mxu0 %v71
    %4133 = vmatpush1.msra.mxu0 %v70
    %4134 = vmatprep.subr.mxu0 %v537
    %4135 = vmatpush1.msra.mxu0 %v534
    %4136 = vmatprep.subr.mxu0 0.0
    %4137 = vmatpush1.msra.mxu0 0.0
    %4138 = vmatprep.subr.mxu0 0.0
    %4139 = vmatpush1.msra.mxu0 0.0
    %4140 = vmatprep.subr.mxu0 0.0
    %4141 = vmatpush1.msra.mxu0 0.0
    %4142 = vmatprep.subr.mxu0 0.0
    %4143 = vmatpush1.msra.mxu0 0.0
    %4144 = vmatprep.subr.mxu0 0.0
    %4145 = vmatpush1.msra.mxu0 0.0
    %4146 = vmatprep.subr.mxu0 0.0
    %4147 = vmatpush1.msra.mxu0 0.0
    %4148 = vmatprep.subr.mxu0 0.0
    %4149 = vmatpush1.msra.mxu0 0.0
    %4150 = vmatprep.subr.mxu0 0.0
    %4151 = vmatpush1.msra.mxu0 0.0
    %4152 = vmatprep.subr.mxu0 0.0
    %4153 = vmatpush1.msra.mxu0 0.0
    %4154 = vmatprep.subr.mxu0 0.0
    %4155 = vmatpush1.msra.mxu0 0.0
    %4156 = vmatprep.subr.mxu0 0.0
    %4157 = vmatpush1.msra.mxu0 0.0
    %4158 = vmatprep.subr.mxu0 0.0
    %4159 = vmatpush1.msra.mxu0 0.0
    %4160 = vmatprep.subr.mxu0 0.0
    %4161 = vmatpush1.msra.mxu0 0.0
    %4162 = vmatprep.subr.mxu0 0.0
    %4163 = vmatpush1.msra.mxu0 0.0
    %4164 = vmatprep.subr.mxu0 0.0
    %4165 = vmatpush1.msra.mxu0 0.0
    %4166 = vmatprep.subr.mxu0 0.0
    %4167 = vmatpush1.msra.mxu0 0.0
    %4168 = vmatprep.subr.mxu0 0.0
    %4169 = vmatpush1.msra.mxu0 0.0
    %4170 = vmatprep.subr.mxu0 0.0
    %4171 = vmatpush1.msra.mxu0 0.0
    %4172 = vmatprep.subr.mxu0 0.0
    %4173 = vmatpush1.msra.mxu0 0.0
    %4174 = vmatprep.subr.mxu0 0.0
    %4175 = vmatpush1.msra.mxu0 0.0
    %4176 = vmatprep.subr.mxu0 0.0
    %4177 = vmatpush1.msra.mxu0 0.0
    %4178 = vmatprep.subr.mxu0 0.0
    %4179 = vmatpush1.msra.mxu0 0.0
    %4180 = vmatprep.subr.mxu0 0.0
    %4181 = vmatpush1.msra.mxu0 0.0
    %4182 = vmatprep.subr.mxu0 0.0
    %4183 = vmatpush1.msra.mxu0 0.0
    %4184 = vmatprep.subr.mxu0 0.0
    %4185 = vmatpush1.msra.mxu0 0.0
    %4186 = vmatprep.subr.mxu0 0.0
    %4187 = vmatpush1.msra.mxu0 0.0
    %4188 = vmatprep.subr.mxu0 0.0
    %4189 = vmatpush1.msra.mxu0 0.0
    %4190 = vmatprep.subr.mxu0 0.0
    %4191 = vmatpush1.msra.mxu0 0.0
    %4192 = vmatprep.mubr.f32.mxu0 0.0
    %4193 = vmatmul.mubr.f32.gmra.mrb[0].mxu0 %v3526
    %v4194 = vpop.f32.mrb[0].mxu0
    %v4195 = vadd.f32 0.0, %v4194
    %v4196 = vpop.f32.mrb[0].mxu0
    %v4197 = vadd.f32 0.0, %v4196
    %4198 = vdwg.mxu0
    %v4199 = vadd.f32 %v4124, %v4195
    %v4200 = vadd.f32 %v4126, %v4197
    %4201 = vmatprep.subr.mxu0 %v76
    %4202 = vmatpush1.msra.mxu0 %v75
    %4203 = vmatprep.subr.mxu0 %v78
    %4204 = vmatpush1.msra.mxu0 %v77
    %4205 = vmatprep.subr.mxu0 %v80
    %4206 = vmatpush1.msra.mxu0 %v79
    %4207 = vmatprep.subr.mxu0 %v619
    %4208 = vmatpush1.msra.mxu0 %v616
    %4209 = vmatprep.subr.mxu0 0.0
    %4210 = vmatpush1.msra.mxu0 0.0
    %4211 = vmatprep.subr.mxu0 0.0
    %4212 = vmatpush1.msra.mxu0 0.0
    %4213 = vmatprep.subr.mxu0 0.0
    %4214 = vmatpush1.msra.mxu0 0.0
    %4215 = vmatprep.subr.mxu0 0.0
    %4216 = vmatpush1.msra.mxu0 0.0
    %4217 = vmatprep.subr.mxu0 0.0
    %4218 = vmatpush1.msra.mxu0 0.0
    %4219 = vmatprep.subr.mxu0 0.0
    %4220 = vmatpush1.msra.mxu0 0.0
    %4221 = vmatprep.subr.mxu0 0.0
    %4222 = vmatpush1.msra.mxu0 0.0
    %4223 = vmatprep.subr.mxu0 0.0
    %4224 = vmatpush1.msra.mxu0 0.0
    %4225 = vmatprep.subr.mxu0 0.0
    %4226 = vmatpush1.msra.mxu0 0.0
    %4227 = vmatprep.subr.mxu0 0.0
    %4228 = vmatpush1.msra.mxu0 0.0
    %4229 = vmatprep.subr.mxu0 0.0
    %4230 = vmatpush1.msra.mxu0 0.0
    %4231 = vmatprep.subr.mxu0 0.0
    %4232 = vmatpush1.msra.mxu0 0.0
    %4233 = vmatprep.subr.mxu0 0.0
    %4234 = vmatpush1.msra.mxu0 0.0
    %4235 = vmatprep.subr.mxu0 0.0
    %4236 = vmatpush1.msra.mxu0 0.0
    %4237 = vmatprep.subr.mxu0 0.0
    %4238 = vmatpush1.msra.mxu0 0.0
    %4239 = vmatprep.subr.mxu0 0.0
    %4240 = vmatpush1.msra.mxu0 0.0
    %4241 = vmatprep.subr.mxu0 0.0
    %4242 = vmatpush1.msra.mxu0 0.0
    %4243 = vmatprep.subr.mxu0 0.0
    %4244 = vmatpush1.msra.mxu0 0.0
    %4245 = vmatprep.subr.mxu0 0.0
    %4246 = vmatpush1.msra.mxu0 0.0
    %4247 = vmatprep.subr.mxu0 0.0
    %4248 = vmatpush1.msra.mxu0 0.0
    %4249 = vmatprep.subr.mxu0 0.0
    %4250 = vmatpush1.msra.mxu0 0.0
    %4251 = vmatprep.subr.mxu0 0.0
    %4252 = vmatpush1.msra.mxu0 0.0
    %4253 = vmatprep.subr.mxu0 0.0
    %4254 = vmatpush1.msra.mxu0 0.0
    %4255 = vmatprep.subr.mxu0 0.0
    %4256 = vmatpush1.msra.mxu0 0.0
    %4257 = vmatprep.subr.mxu0 0.0
    %4258 = vmatpush1.msra.mxu0 0.0
    %4259 = vmatprep.subr.mxu0 0.0
    %4260 = vmatpush1.msra.mxu0 0.0
    %4261 = vmatprep.subr.mxu0 0.0
    %4262 = vmatpush1.msra.mxu0 0.0
    %4263 = vmatprep.subr.mxu0 0.0
    %4264 = vmatpush1.msra.mxu0 0.0
    %4265 = vmatprep.mubr.f32.mxu0 0.0
    %4266 = vmatmul.mubr.f32.gmra.mrb[0].mxu0 %v3899
    %v4267 = vpop.f32.mrb[0].mxu0
    %v4268 = vadd.f32 0.0, %v4267
    %v4269 = vpop.f32.mrb[0].mxu0
    %v4270 = vadd.f32 0.0, %v4269
    %4271 = vdwg.mxu0
    %v4272 = vadd.f32 %v4199, %v4268
    %v4273 = vadd.f32 %v4200, %v4270
    %v4274 = vrot.slane %v3222, 1
    %v4275 = vsel %vm368, %v4274, 0
    %4277 = vmatprep.subr.mxu0 %v85
    %4278 = vmatpush1.msra.mxu0 %v84
    %4279 = vmatprep.subr.mxu0 %v87
    %4280 = vmatpush1.msra.mxu0 %v86
    %4281 = vmatprep.subr.mxu0 %v89
    %4282 = vmatpush1.msra.mxu0 %v88
    %4283 = vmatprep.subr.mxu0 %v701
    %4284 = vmatpush1.msra.mxu0 %v698
    %4285 = vmatprep.subr.mxu0 0.0
    %4286 = vmatpush1.msra.mxu0 0.0
    %4287 = vmatprep.subr.mxu0 0.0
    %4288 = vmatpush1.msra.mxu0 0.0
    %4289 = vmatprep.subr.mxu0 0.0
    %4290 = vmatpush1.msra.mxu0 0.0
    %4291 = vmatprep.subr.mxu0 0.0
    %4292 = vmatpush1.msra.mxu0 0.0
    %4293 = vmatprep.subr.mxu0 0.0
    %4294 = vmatpush1.msra.mxu0 0.0
    %4295 = vmatprep.subr.mxu0 0.0
    %4296 = vmatpush1.msra.mxu0 0.0
    %4297 = vmatprep.subr.mxu0 0.0
    %4298 = vmatpush1.msra.mxu0 0.0
    %4299 = vmatprep.subr.mxu0 0.0
    %4300 = vmatpush1.msra.mxu0 0.0
    %4301 = vmatprep.subr.mxu0 0.0
    %4302 = vmatpush1.msra.mxu0 0.0
    %4303 = vmatprep.subr.mxu0 0.0
    %4304 = vmatpush1.msra.mxu0 0.0
    %4305 = vmatprep.subr.mxu0 0.0
    %4306 = vmatpush1.msra.mxu0 0.0
    %4307 = vmatprep.subr.mxu0 0.0
    %4308 = vmatpush1.msra.mxu0 0.0
    %4309 = vmatprep.subr.mxu0 0.0
    %4310 = vmatpush1.msra.mxu0 0.0
    %4311 = vmatprep.subr.mxu0 0.0
    %4312 = vmatpush1.msra.mxu0 0.0
    %4313 = vmatprep.subr.mxu0 0.0
    %4314 = vmatpush1.msra.mxu0 0.0
    %4315 = vmatprep.subr.mxu0 0.0
    %4316 = vmatpush1.msra.mxu0 0.0
    %4317 = vmatprep.subr.mxu0 0.0
    %4318 = vmatpush1.msra.mxu0 0.0
    %4319 = vmatprep.subr.mxu0 0.0
    %4320 = vmatpush1.msra.mxu0 0.0
    %4321 = vmatprep.subr.mxu0 0.0
    %4322 = vmatpush1.msra.mxu0 0.0
    %4323 = vmatprep.subr.mxu0 0.0
    %4324 = vmatpush1.msra.mxu0 0.0
    %4325 = vmatprep.subr.mxu0 0.0
    %4326 = vmatpush1.msra.mxu0 0.0
    %4327 = vmatprep.subr.mxu0 0.0
    %4328 = vmatpush1.msra.mxu0 0.0
    %4329 = vmatprep.subr.mxu0 0.0
    %4330 = vmatpush1.msra.mxu0 0.0
    %4331 = vmatprep.subr.mxu0 0.0
    %4332 = vmatpush1.msra.mxu0 0.0
    %4333 = vmatprep.subr.mxu0 0.0
    %4334 = vmatpush1.msra.mxu0 0.0
    %4335 = vmatprep.subr.mxu0 0.0
    %4336 = vmatpush1.msra.mxu0 0.0
    %4337 = vmatprep.subr.mxu0 0.0
    %4338 = vmatpush1.msra.mxu0 0.0
    %4339 = vmatprep.subr.mxu0 0.0
    %4340 = vmatpush1.msra.mxu0 0.0
    %4341 = vmatprep.mubr.f32.mxu0 0.0
    %4342 = vmatmul.mubr.f32.gmra.mrb[0].mxu0 %v4275
    %v4343 = vpop.f32.mrb[0].mxu0
    %v4344 = vadd.f32 0.0, %v4343
    %v4345 = vpop.f32.mrb[0].mxu0
    %v4346 = vadd.f32 0.0, %v4345
    %4347 = vdwg.mxu0
    %v4348 = vadd.f32 %v4272, %v4344
    %v4349 = vadd.f32 %v4273, %v4346
    %4352 = vrot.lane.b32.xlu0 %v4348, 8
    %v4353 = vpop.permute.xlu0 %4352
    %4354 = vrot.lane.b32.xlu0 %v4349, 8
    %v4355 = vpop.permute.xlu0 %4354
    %v4356 = vsel %vm782, %v4353, %v4355
    %v4358 = vmax.f32 %v4348, %v4356
    %4359 = vmatprep.subr.mxu0 %v58
    %4360 = vmatpush1.msra.mxu0 %v57
    %4361 = vmatprep.subr.mxu0 %v60
    %4362 = vmatpush1.msra.mxu0 %v59
    %4363 = vmatprep.subr.mxu0 %v62
    %4364 = vmatpush1.msra.mxu0 %v61
    %4365 = vmatprep.subr.mxu0 %v377
    %4366 = vmatpush1.msra.mxu0 %v374
    %4367 = vmatprep.subr.mxu0 0.0
    %4368 = vmatpush1.msra.mxu0 0.0
    %4369 = vmatprep.subr.mxu0 0.0
    %4370 = vmatpush1.msra.mxu0 0.0
    %4371 = vmatprep.subr.mxu0 0.0
    %4372 = vmatpush1.msra.mxu0 0.0
    %4373 = vmatprep.subr.mxu0 0.0
    %4374 = vmatpush1.msra.mxu0 0.0
    %4375 = vmatprep.subr.mxu0 0.0
    %4376 = vmatpush1.msra.mxu0 0.0
    %4377 = vmatprep.subr.mxu0 0.0
    %4378 = vmatpush1.msra.mxu0 0.0
    %4379 = vmatprep.subr.mxu0 0.0
    %4380 = vmatpush1.msra.mxu0 0.0
    %4381 = vmatprep.subr.mxu0 0.0
    %4382 = vmatpush1.msra.mxu0 0.0
    %4383 = vmatprep.subr.mxu0 0.0
    %4384 = vmatpush1.msra.mxu0 0.0
    %4385 = vmatprep.subr.mxu0 0.0
    %4386 = vmatpush1.msra.mxu0 0.0
    %4387 = vmatprep.subr.mxu0 0.0
    %4388 = vmatpush1.msra.mxu0 0.0
    %4389 = vmatprep.subr.mxu0 0.0
    %4390 = vmatpush1.msra.mxu0 0.0
    %4391 = vmatprep.subr.mxu0 0.0
    %4392 = vmatpush1.msra.mxu0 0.0
    %4393 = vmatprep.subr.mxu0 0.0
    %4394 = vmatpush1.msra.mxu0 0.0
    %4395 = vmatprep.subr.mxu0 0.0
    %4396 = vmatpush1.msra.mxu0 0.0
    %4397 = vmatprep.subr.mxu0 0.0
    %4398 = vmatpush1.msra.mxu0 0.0
    %4399 = vmatprep.subr.mxu0 0.0
    %4400 = vmatpush1.msra.mxu0 0.0
    %4401 = vmatprep.subr.mxu0 0.0
    %4402 = vmatpush1.msra.mxu0 0.0
    %4403 = vmatprep.subr.mxu0 0.0
    %4404 = vmatpush1.msra.mxu0 0.0
    %4405 = vmatprep.subr.mxu0 0.0
    %4406 = vmatpush1.msra.mxu0 0.0
    %4407 = vmatprep.subr.mxu0 0.0
    %4408 = vmatpush1.msra.mxu0 0.0
    %4409 = vmatprep.subr.mxu0 0.0
    %4410 = vmatpush1.msra.mxu0 0.0
    %4411 = vmatprep.subr.mxu0 0.0
    %4412 = vmatpush1.msra.mxu0 0.0
    %4413 = vmatprep.subr.mxu0 0.0
    %4414 = vmatpush1.msra.mxu0 0.0
    %4415 = vmatprep.subr.mxu0 0.0
    %4416 = vmatpush1.msra.mxu0 0.0
    %4417 = vmatprep.subr.mxu0 0.0
    %4418 = vmatpush1.msra.mxu0 0.0
    %4419 = vmatprep.subr.mxu0 0.0
    %4420 = vmatpush1.msra.mxu0 0.0
    %4421 = vmatprep.subr.mxu0 0.0
    %4422 = vmatpush1.msra.mxu0 0.0
    %4423 = vmatprep.mubr.f32.mxu0 0.0
    %4424 = vmatmul.mubr.f32.gmra.mrb[0].mxu0 %v3526
    %v4425 = vpop.f32.mrb[0].mxu0
    %v4426 = vadd.f32 0.0, %v4425
    %v4427 = vpop.f32.mrb[0].mxu0
    %v4428 = vadd.f32 0.0, %v4427
    %4429 = vdwg.mxu0
    %4430 = vmatprep.subr.mxu0 %v49
    %4431 = vmatpush1.msra.mxu0 %v48
    %4432 = vmatprep.subr.mxu0 %v51
    %4433 = vmatpush1.msra.mxu0 %v50
    %4434 = vmatprep.subr.mxu0 %v53
    %4435 = vmatpush1.msra.mxu0 %v52
    %4436 = vmatprep.subr.mxu0 %v457
    %4437 = vmatpush1.msra.mxu0 %v454
    %4438 = vmatprep.subr.mxu0 0.0
    %4439 = vmatpush1.msra.mxu0 0.0
    %4440 = vmatprep.subr.mxu0 0.0
    %4441 = vmatpush1.msra.mxu0 0.0
    %4442 = vmatprep.subr.mxu0 0.0
    %4443 = vmatpush1.msra.mxu0 0.0
    %4444 = vmatprep.subr.mxu0 0.0
    %4445 = vmatpush1.msra.mxu0 0.0
    %4446 = vmatprep.subr.mxu0 0.0
    %4447 = vmatpush1.msra.mxu0 0.0
    %4448 = vmatprep.subr.mxu0 0.0
    %4449 = vmatpush1.msra.mxu0 0.0
    %4450 = vmatprep.subr.mxu0 0.0
    %4451 = vmatpush1.msra.mxu0 0.0
    %4452 = vmatprep.subr.mxu0 0.0
    %4453 = vmatpush1.msra.mxu0 0.0
    %4454 = vmatprep.subr.mxu0 0.0
    %4455 = vmatpush1.msra.mxu0 0.0
    %4456 = vmatprep.subr.mxu0 0.0
    %4457 = vmatpush1.msra.mxu0 0.0
    %4458 = vmatprep.subr.mxu0 0.0
    %4459 = vmatpush1.msra.mxu0 0.0
    %4460 = vmatprep.subr.mxu0 0.0
    %4461 = vmatpush1.msra.mxu0 0.0
    %4462 = vmatprep.subr.mxu0 0.0
    %4463 = vmatpush1.msra.mxu0 0.0
    %4464 = vmatprep.subr.mxu0 0.0
    %4465 = vmatpush1.msra.mxu0 0.0
    %4466 = vmatprep.subr.mxu0 0.0
    %4467 = vmatpush1.msra.mxu0 0.0
    %4468 = vmatprep.subr.mxu0 0.0
    %4469 = vmatpush1.msra.mxu0 0.0
    %4470 = vmatprep.subr.mxu0 0.0
    %4471 = vmatpush1.msra.mxu0 0.0
    %4472 = vmatprep.subr.mxu0 0.0
    %4473 = vmatpush1.msra.mxu0 0.0
    %4474 = vmatprep.subr.mxu0 0.0
    %4475 = vmatpush1.msra.mxu0 0.0
    %4476 = vmatprep.subr.mxu0 0.0
    %4477 = vmatpush1.msra.mxu0 0.0
    %4478 = vmatprep.subr.mxu0 0.0
    %4479 = vmatpush1.msra.mxu0 0.0
    %4480 = vmatprep.subr.mxu0 0.0
    %4481 = vmatpush1.msra.mxu0 0.0
    %4482 = vmatprep.subr.mxu0 0.0
    %4483 = vmatpush1.msra.mxu0 0.0
    %4484 = vmatprep.subr.mxu0 0.0
    %4485 = vmatpush1.msra.mxu0 0.0
    %4486 = vmatprep.subr.mxu0 0.0
    %4487 = vmatpush1.msra.mxu0 0.0
    %4488 = vmatprep.subr.mxu0 0.0
    %4489 = vmatpush1.msra.mxu0 0.0
    %4490 = vmatprep.subr.mxu0 0.0
    %4491 = vmatpush1.msra.mxu0 0.0
    %4492 = vmatprep.subr.mxu0 0.0
    %4493 = vmatpush1.msra.mxu0 0.0
    %4494 = vmatprep.mubr.f32.mxu0 0.0
    %4495 = vmatmul.mubr.f32.gmra.mrb[0].mxu0 %v3450
    %v4496 = vpop.f32.mrb[0].mxu0
    %v4497 = vadd.f32 %v4426, %v4496
    %v4498 = vpop.f32.mrb[0].mxu0
    %v4499 = vadd.f32 %v4428, %v4498
    %4500 = vdwg.mxu0
    %4501 = vmatprep.subr.mxu0 %v67
    %4502 = vmatpush1.msra.mxu0 %v66
    %4503 = vmatprep.subr.mxu0 %v69
    %4504 = vmatpush1.msra.mxu0 %v68
    %4505 = vmatprep.subr.mxu0 %v71
    %4506 = vmatpush1.msra.mxu0 %v70
    %4507 = vmatprep.subr.mxu0 %v537
    %4508 = vmatpush1.msra.mxu0 %v534
    %4509 = vmatprep.subr.mxu0 0.0
    %4510 = vmatpush1.msra.mxu0 0.0
    %4511 = vmatprep.subr.mxu0 0.0
    %4512 = vmatpush1.msra.mxu0 0.0
    %4513 = vmatprep.subr.mxu0 0.0
    %4514 = vmatpush1.msra.mxu0 0.0
    %4515 = vmatprep.subr.mxu0 0.0
    %4516 = vmatpush1.msra.mxu0 0.0
    %4517 = vmatprep.subr.mxu0 0.0
    %4518 = vmatpush1.msra.mxu0 0.0
    %4519 = vmatprep.subr.mxu0 0.0
    %4520 = vmatpush1.msra.mxu0 0.0
    %4521 = vmatprep.subr.mxu0 0.0
    %4522 = vmatpush1.msra.mxu0 0.0
    %4523 = vmatprep.subr.mxu0 0.0
    %4524 = vmatpush1.msra.mxu0 0.0
    %4525 = vmatprep.subr.mxu0 0.0
    %4526 = vmatpush1.msra.mxu0 0.0
    %4527 = vmatprep.subr.mxu0 0.0
    %4528 = vmatpush1.msra.mxu0 0.0
    %4529 = vmatprep.subr.mxu0 0.0
    %4530 = vmatpush1.msra.mxu0 0.0
    %4531 = vmatprep.subr.mxu0 0.0
    %4532 = vmatpush1.msra.mxu0 0.0
    %4533 = vmatprep.subr.mxu0 0.0
    %4534 = vmatpush1.msra.mxu0 0.0
    %4535 = vmatprep.subr.mxu0 0.0
    %4536 = vmatpush1.msra.mxu0 0.0
    %4537 = vmatprep.subr.mxu0 0.0
    %4538 = vmatpush1.msra.mxu0 0.0
    %4539 = vmatprep.subr.mxu0 0.0
    %4540 = vmatpush1.msra.mxu0 0.0
    %4541 = vmatprep.subr.mxu0 0.0
    %4542 = vmatpush1.msra.mxu0 0.0
    %4543 = vmatprep.subr.mxu0 0.0
    %4544 = vmatpush1.msra.mxu0 0.0
    %4545 = vmatprep.subr.mxu0 0.0
    %4546 = vmatpush1.msra.mxu0 0.0
    %4547 = vmatprep.subr.mxu0 0.0
    %4548 = vmatpush1.msra.mxu0 0.0
    %4549 = vmatprep.subr.mxu0 0.0
    %4550 = vmatpush1.msra.mxu0 0.0
    %4551 = vmatprep.subr.mxu0 0.0
    %4552 = vmatpush1.msra.mxu0 0.0
    %4553 = vmatprep.subr.mxu0 0.0
    %4554 = vmatpush1.msra.mxu0 0.0
    %4555 = vmatprep.subr.mxu0 0.0
    %4556 = vmatpush1.msra.mxu0 0.0
    %4557 = vmatprep.subr.mxu0 0.0
    %4558 = vmatpush1.msra.mxu0 0.0
    %4559 = vmatprep.subr.mxu0 0.0
    %4560 = vmatpush1.msra.mxu0 0.0
    %4561 = vmatprep.subr.mxu0 0.0
    %4562 = vmatpush1.msra.mxu0 0.0
    %4563 = vmatprep.subr.mxu0 0.0
    %4564 = vmatpush1.msra.mxu0 0.0
    %4565 = vmatprep.mubr.f32.mxu0 0.0
    %4566 = vmatmul.mubr.f32.gmra.mrb[0].mxu0 %v3899
    %v4567 = vpop.f32.mrb[0].mxu0
    %v4568 = vadd.f32 0.0, %v4567
    %v4569 = vpop.f32.mrb[0].mxu0
    %v4570 = vadd.f32 0.0, %v4569
    %4571 = vdwg.mxu0
    %v4572 = vadd.f32 %v4497, %v4568
    %v4573 = vadd.f32 %v4499, %v4570
    %4574 = vmatprep.subr.mxu0 %v76
    %4575 = vmatpush1.msra.mxu0 %v75
    %4576 = vmatprep.subr.mxu0 %v78
    %4577 = vmatpush1.msra.mxu0 %v77
    %4578 = vmatprep.subr.mxu0 %v80
    %4579 = vmatpush1.msra.mxu0 %v79
    %4580 = vmatprep.subr.mxu0 %v619
    %4581 = vmatpush1.msra.mxu0 %v616
    %4582 = vmatprep.subr.mxu0 0.0
    %4583 = vmatpush1.msra.mxu0 0.0
    %4584 = vmatprep.subr.mxu0 0.0
    %4585 = vmatpush1.msra.mxu0 0.0
    %4586 = vmatprep.subr.mxu0 0.0
    %4587 = vmatpush1.msra.mxu0 0.0
    %4588 = vmatprep.subr.mxu0 0.0
    %4589 = vmatpush1.msra.mxu0 0.0
    %4590 = vmatprep.subr.mxu0 0.0
    %4591 = vmatpush1.msra.mxu0 0.0
    %4592 = vmatprep.subr.mxu0 0.0
    %4593 = vmatpush1.msra.mxu0 0.0
    %4594 = vmatprep.subr.mxu0 0.0
    %4595 = vmatpush1.msra.mxu0 0.0
    %4596 = vmatprep.subr.mxu0 0.0
    %4597 = vmatpush1.msra.mxu0 0.0
    %4598 = vmatprep.subr.mxu0 0.0
    %4599 = vmatpush1.msra.mxu0 0.0
    %4600 = vmatprep.subr.mxu0 0.0
    %4601 = vmatpush1.msra.mxu0 0.0
    %4602 = vmatprep.subr.mxu0 0.0
    %4603 = vmatpush1.msra.mxu0 0.0
    %4604 = vmatprep.subr.mxu0 0.0
    %4605 = vmatpush1.msra.mxu0 0.0
    %4606 = vmatprep.subr.mxu0 0.0
    %4607 = vmatpush1.msra.mxu0 0.0
    %4608 = vmatprep.subr.mxu0 0.0
    %4609 = vmatpush1.msra.mxu0 0.0
    %4610 = vmatprep.subr.mxu0 0.0
    %4611 = vmatpush1.msra.mxu0 0.0
    %4612 = vmatprep.subr.mxu0 0.0
    %4613 = vmatpush1.msra.mxu0 0.0
    %4614 = vmatprep.subr.mxu0 0.0
    %4615 = vmatpush1.msra.mxu0 0.0
    %4616 = vmatprep.subr.mxu0 0.0
    %4617 = vmatpush1.msra.mxu0 0.0
    %4618 = vmatprep.subr.mxu0 0.0
    %4619 = vmatpush1.msra.mxu0 0.0
    %4620 = vmatprep.subr.mxu0 0.0
    %4621 = vmatpush1.msra.mxu0 0.0
    %4622 = vmatprep.subr.mxu0 0.0
    %4623 = vmatpush1.msra.mxu0 0.0
    %4624 = vmatprep.subr.mxu0 0.0
    %4625 = vmatpush1.msra.mxu0 0.0
    %4626 = vmatprep.subr.mxu0 0.0
    %4627 = vmatpush1.msra.mxu0 0.0
    %4628 = vmatprep.subr.mxu0 0.0
    %4629 = vmatpush1.msra.mxu0 0.0
    %4630 = vmatprep.subr.mxu0 0.0
    %4631 = vmatpush1.msra.mxu0 0.0
    %4632 = vmatprep.subr.mxu0 0.0
    %4633 = vmatpush1.msra.mxu0 0.0
    %4634 = vmatprep.subr.mxu0 0.0
    %4635 = vmatpush1.msra.mxu0 0.0
    %4636 = vmatprep.subr.mxu0 0.0
    %4637 = vmatpush1.msra.mxu0 0.0
    %4638 = vmatprep.mubr.f32.mxu0 0.0
    %4639 = vmatmul.mubr.f32.gmra.mrb[0].mxu0 %v4275
    %v4640 = vpop.f32.mrb[0].mxu0
    %v4641 = vadd.f32 0.0, %v4640
    %v4642 = vpop.f32.mrb[0].mxu0
    %v4643 = vadd.f32 0.0, %v4642
    %4644 = vdwg.mxu0
    %v4645 = vadd.f32 %v4572, %v4641
    %v4646 = vadd.f32 %v4573, %v4643
    %v4647 = vrot.slane %v3224, 1
    %v4648 = vsel %vm368, %v4647, 0
    %4650 = vmatprep.subr.mxu0 %v85
    %4651 = vmatpush1.msra.mxu0 %v84
    %4652 = vmatprep.subr.mxu0 %v87
    %4653 = vmatpush1.msra.mxu0 %v86
    %4654 = vmatprep.subr.mxu0 %v89
    %4655 = vmatpush1.msra.mxu0 %v88
    %4656 = vmatprep.subr.mxu0 %v701
    %4657 = vmatpush1.msra.mxu0 %v698
    %4658 = vmatprep.subr.mxu0 0.0
    %4659 = vmatpush1.msra.mxu0 0.0
    %4660 = vmatprep.subr.mxu0 0.0
    %4661 = vmatpush1.msra.mxu0 0.0
    %4662 = vmatprep.subr.mxu0 0.0
    %4663 = vmatpush1.msra.mxu0 0.0
    %4664 = vmatprep.subr.mxu0 0.0
    %4665 = vmatpush1.msra.mxu0 0.0
    %4666 = vmatprep.subr.mxu0 0.0
    %4667 = vmatpush1.msra.mxu0 0.0
    %4668 = vmatprep.subr.mxu0 0.0
    %4669 = vmatpush1.msra.mxu0 0.0
    %4670 = vmatprep.subr.mxu0 0.0
    %4671 = vmatpush1.msra.mxu0 0.0
    %4672 = vmatprep.subr.mxu0 0.0
    %4673 = vmatpush1.msra.mxu0 0.0
    %4674 = vmatprep.subr.mxu0 0.0
    %4675 = vmatpush1.msra.mxu0 0.0
    %4676 = vmatprep.subr.mxu0 0.0
    %4677 = vmatpush1.msra.mxu0 0.0
    %4678 = vmatprep.subr.mxu0 0.0
    %4679 = vmatpush1.msra.mxu0 0.0
    %4680 = vmatprep.subr.mxu0 0.0
    %4681 = vmatpush1.msra.mxu0 0.0
    %4682 = vmatprep.subr.mxu0 0.0
    %4683 = vmatpush1.msra.mxu0 0.0
    %4684 = vmatprep.subr.mxu0 0.0
    %4685 = vmatpush1.msra.mxu0 0.0
    %4686 = vmatprep.subr.mxu0 0.0
    %4687 = vmatpush1.msra.mxu0 0.0
    %4688 = vmatprep.subr.mxu0 0.0
    %4689 = vmatpush1.msra.mxu0 0.0
    %4690 = vmatprep.subr.mxu0 0.0
    %4691 = vmatpush1.msra.mxu0 0.0
    %4692 = vmatprep.subr.mxu0 0.0
    %4693 = vmatpush1.msra.mxu0 0.0
    %4694 = vmatprep.subr.mxu0 0.0
    %4695 = vmatpush1.msra.mxu0 0.0
    %4696 = vmatprep.subr.mxu0 0.0
    %4697 = vmatpush1.msra.mxu0 0.0
    %4698 = vmatprep.subr.mxu0 0.0
    %4699 = vmatpush1.msra.mxu0 0.0
    %4700 = vmatprep.subr.mxu0 0.0
    %4701 = vmatpush1.msra.mxu0 0.0
    %4702 = vmatprep.subr.mxu0 0.0
    %4703 = vmatpush1.msra.mxu0 0.0
    %4704 = vmatprep.subr.mxu0 0.0
    %4705 = vmatpush1.msra.mxu0 0.0
    %4706 = vmatprep.subr.mxu0 0.0
    %4707 = vmatpush1.msra.mxu0 0.0
    %4708 = vmatprep.subr.mxu0 0.0
    %4709 = vmatpush1.msra.mxu0 0.0
    %4710 = vmatprep.subr.mxu0 0.0
    %4711 = vmatpush1.msra.mxu0 0.0
    %4712 = vmatprep.subr.mxu0 0.0
    %4713 = vmatpush1.msra.mxu0 0.0
    %4714 = vmatprep.mubr.f32.mxu0 0.0
    %4715 = vmatmul.mubr.f32.gmra.mrb[0].mxu0 %v4648
    %v4716 = vpop.f32.mrb[0].mxu0
    %v4717 = vadd.f32 0.0, %v4716
    %v4718 = vpop.f32.mrb[0].mxu0
    %v4719 = vadd.f32 0.0, %v4718
    %4720 = vdwg.mxu0
    %v4721 = vadd.f32 %v4645, %v4717
    %v4722 = vadd.f32 %v4646, %v4719
    %v4723 = vmax.f32 %v4358, %v4721
    %4726 = vrot.lane.b32.xlu0 %v4721, 8
    %v4727 = vpop.permute.xlu0 %4726
    %4728 = vrot.lane.b32.xlu0 %v4722, 8
    %v4729 = vpop.permute.xlu0 %4728
    %v4730 = vsel %vm782, %v4727, %v4729
    %v4732 = vmax.f32 %v4723, %v4730
    %v4733 = vadd.f32 %v4732, %v1164
    %v4734 = vmax.f32 %v4733, 0.0
    %v4736 = vsel %vm1917, %v4734, 0
    %4738 = vmatprep.subr.mxu0 %v124
    %4739 = vmatpush1.msra.mxu0 %v123
    %4740 = vmatprep.subr.mxu0 %v126
    %4741 = vmatpush1.msra.mxu0 %v125
    %4742 = vmatprep.subr.mxu0 %v128
    %4743 = vmatpush1.msra.mxu0 %v127
    %4744 = vmatprep.subr.mxu0 %v130
    %4745 = vmatpush1.msra.mxu0 %v129
    %4746 = vmatprep.subr.mxu0 %v132
    %4747 = vmatpush1.msra.mxu0 %v131
    %4748 = vmatprep.subr.mxu0 %v134
    %4749 = vmatpush1.msra.mxu0 %v133
    %4750 = vmatprep.subr.mxu0 %v136
    %4751 = vmatpush1.msra.mxu0 %v135
    %4752 = vmatprep.subr.mxu0 %v138
    %4753 = vmatpush1.msra.mxu0 %v137
    %4754 = vmatprep.subr.mxu0 %v140
    %4755 = vmatpush1.msra.mxu0 %v139
    %4756 = vmatprep.subr.mxu0 %v142
    %4757 = vmatpush1.msra.mxu0 %v141
    %4758 = vmatprep.subr.mxu0 %v144
    %4759 = vmatpush1.msra.mxu0 %v143
    %4760 = vmatprep.subr.mxu0 %v146
    %4761 = vmatpush1.msra.mxu0 %v145
    %4762 = vmatprep.subr.mxu0 %v148
    %4763 = vmatpush1.msra.mxu0 %v147
    %4764 = vmatprep.subr.mxu0 %v150
    %4765 = vmatpush1.msra.mxu0 %v149
    %4766 = vmatprep.subr.mxu0 %v152
    %4767 = vmatpush1.msra.mxu0 %v151
    %4768 = vmatprep.subr.mxu0 0.0
    %4769 = vmatpush1.msra.mxu0 0.0
    %4770 = vmatprep.subr.mxu0 0.0
    %4771 = vmatpush1.msra.mxu0 0.0
    %4772 = vmatprep.subr.mxu0 0.0
    %4773 = vmatpush1.msra.mxu0 0.0
    %4774 = vmatprep.subr.mxu0 0.0
    %4775 = vmatpush1.msra.mxu0 0.0
    %4776 = vmatprep.subr.mxu0 0.0
    %4777 = vmatpush1.msra.mxu0 0.0
    %4778 = vmatprep.subr.mxu0 0.0
    %4779 = vmatpush1.msra.mxu0 0.0
    %4780 = vmatprep.subr.mxu0 0.0
    %4781 = vmatpush1.msra.mxu0 0.0
    %4782 = vmatprep.subr.mxu0 0.0
    %4783 = vmatpush1.msra.mxu0 0.0
    %4784 = vmatprep.subr.mxu0 0.0
    %4785 = vmatpush1.msra.mxu0 0.0
    %4786 = vmatprep.subr.mxu0 0.0
    %4787 = vmatpush1.msra.mxu0 0.0
    %4788 = vmatprep.subr.mxu0 0.0
    %4789 = vmatpush1.msra.mxu0 0.0
    %4790 = vmatprep.subr.mxu0 0.0
    %4791 = vmatpush1.msra.mxu0 0.0
    %4792 = vmatprep.subr.mxu0 0.0
    %4793 = vmatpush1.msra.mxu0 0.0
    %4794 = vmatprep.subr.mxu0 0.0
    %4795 = vmatpush1.msra.mxu0 0.0
    %4796 = vmatprep.subr.mxu0 0.0
    %4797 = vmatpush1.msra.mxu0 0.0
    %4798 = vmatprep.subr.mxu0 0.0
    %4799 = vmatpush1.msra.mxu0 0.0
    %4800 = vmatprep.subr.mxu0 0.0
    %4801 = vmatpush1.msra.mxu0 0.0
    %4802 = vmatprep.mubr.f32.mxu0 0.0
    %4803 = vmatmul.mubr.f32.gmra.mrb[0].mxu0 %v4736
    %v4804 = vpop.f32.mrb[0].mxu0
    %v4805 = vadd.f32 0.0, %v4804
    %v4806 = vpop.f32.mrb[0].mxu0
    %v4807 = vadd.f32 0.0, %v4806
    %4808 = vdwg.mxu0
    %v4810 = vsel %vm1917, %v3985, 0
    %4812 = vmatprep.subr.mxu0 %v93
    %4813 = vmatpush1.msra.mxu0 %v92
    %4814 = vmatprep.subr.mxu0 %v95
    %4815 = vmatpush1.msra.mxu0 %v94
    %4816 = vmatprep.subr.mxu0 %v97
    %4817 = vmatpush1.msra.mxu0 %v96
    %4818 = vmatprep.subr.mxu0 %v99
    %4819 = vmatpush1.msra.mxu0 %v98
    %4820 = vmatprep.subr.mxu0 %v101
    %4821 = vmatpush1.msra.mxu0 %v100
    %4822 = vmatprep.subr.mxu0 %v103
    %4823 = vmatpush1.msra.mxu0 %v102
    %4824 = vmatprep.subr.mxu0 %v105
    %4825 = vmatpush1.msra.mxu0 %v104
    %4826 = vmatprep.subr.mxu0 %v107
    %4827 = vmatpush1.msra.mxu0 %v106
    %4828 = vmatprep.subr.mxu0 %v109
    %4829 = vmatpush1.msra.mxu0 %v108
    %4830 = vmatprep.subr.mxu0 %v111
    %4831 = vmatpush1.msra.mxu0 %v110
    %4832 = vmatprep.subr.mxu0 %v113
    %4833 = vmatpush1.msra.mxu0 %v112
    %4834 = vmatprep.subr.mxu0 %v115
    %4835 = vmatpush1.msra.mxu0 %v114
    %4836 = vmatprep.subr.mxu0 %v117
    %4837 = vmatpush1.msra.mxu0 %v116
    %4838 = vmatprep.subr.mxu0 %v119
    %4839 = vmatpush1.msra.mxu0 %v118
    %4840 = vmatprep.subr.mxu0 %v121
    %4841 = vmatpush1.msra.mxu0 %v120
    %4842 = vmatprep.subr.mxu0 0.0
    %4843 = vmatpush1.msra.mxu0 0.0
    %4844 = vmatprep.subr.mxu0 0.0
    %4845 = vmatpush1.msra.mxu0 0.0
    %4846 = vmatprep.subr.mxu0 0.0
    %4847 = vmatpush1.msra.mxu0 0.0
    %4848 = vmatprep.subr.mxu0 0.0
    %4849 = vmatpush1.msra.mxu0 0.0
    %4850 = vmatprep.subr.mxu0 0.0
    %4851 = vmatpush1.msra.mxu0 0.0
    %4852 = vmatprep.subr.mxu0 0.0
    %4853 = vmatpush1.msra.mxu0 0.0
    %4854 = vmatprep.subr.mxu0 0.0
    %4855 = vmatpush1.msra.mxu0 0.0
    %4856 = vmatprep.subr.mxu0 0.0
    %4857 = vmatpush1.msra.mxu0 0.0
    %4858 = vmatprep.subr.mxu0 0.0
    %4859 = vmatpush1.msra.mxu0 0.0
    %4860 = vmatprep.subr.mxu0 0.0
    %4861 = vmatpush1.msra.mxu0 0.0
    %4862 = vmatprep.subr.mxu0 0.0
    %4863 = vmatpush1.msra.mxu0 0.0
    %4864 = vmatprep.subr.mxu0 0.0
    %4865 = vmatpush1.msra.mxu0 0.0
    %4866 = vmatprep.subr.mxu0 0.0
    %4867 = vmatpush1.msra.mxu0 0.0
    %4868 = vmatprep.subr.mxu0 0.0
    %4869 = vmatpush1.msra.mxu0 0.0
    %4870 = vmatprep.subr.mxu0 0.0
    %4871 = vmatpush1.msra.mxu0 0.0
    %4872 = vmatprep.subr.mxu0 0.0
    %4873 = vmatpush1.msra.mxu0 0.0
    %4874 = vmatprep.subr.mxu0 0.0
    %4875 = vmatpush1.msra.mxu0 0.0
    %4876 = vmatprep.mubr.f32.mxu0 0.0
    %4877 = vmatmul.mubr.f32.gmra.mrb[0].mxu0 %v4810
    %v4878 = vpop.f32.mrb[0].mxu0
    %v4879 = vadd.f32 %v4805, %v4878
    %v4880 = vpop.f32.mrb[0].mxu0
    %v4881 = vadd.f32 %v4807, %v4880
    %4882 = vdwg.mxu0
    %v4883 = vrot.slane %v3985, 1
    %v4884 = vsel %vm1917, %v4883, 0
    %4886 = vmatprep.subr.mxu0 %v155
    %4887 = vmatpush1.msra.mxu0 %v154
    %4888 = vmatprep.subr.mxu0 %v157
    %4889 = vmatpush1.msra.mxu0 %v156
    %4890 = vmatprep.subr.mxu0 %v159
    %4891 = vmatpush1.msra.mxu0 %v158
    %4892 = vmatprep.subr.mxu0 %v161
    %4893 = vmatpush1.msra.mxu0 %v160
    %4894 = vmatprep.subr.mxu0 %v163
    %4895 = vmatpush1.msra.mxu0 %v162
    %4896 = vmatprep.subr.mxu0 %v165
    %4897 = vmatpush1.msra.mxu0 %v164
    %4898 = vmatprep.subr.mxu0 %v167
    %4899 = vmatpush1.msra.mxu0 %v166
    %4900 = vmatprep.subr.mxu0 %v169
    %4901 = vmatpush1.msra.mxu0 %v168
    %4902 = vmatprep.subr.mxu0 %v171
    %4903 = vmatpush1.msra.mxu0 %v170
    %4904 = vmatprep.subr.mxu0 %v173
    %4905 = vmatpush1.msra.mxu0 %v172
    %4906 = vmatprep.subr.mxu0 %v175
    %4907 = vmatpush1.msra.mxu0 %v174
    %4908 = vmatprep.subr.mxu0 %v177
    %4909 = vmatpush1.msra.mxu0 %v176
    %4910 = vmatprep.subr.mxu0 %v179
    %4911 = vmatpush1.msra.mxu0 %v178
    %4912 = vmatprep.subr.mxu0 %v181
    %4913 = vmatpush1.msra.mxu0 %v180
    %4914 = vmatprep.subr.mxu0 %v183
    %4915 = vmatpush1.msra.mxu0 %v182
    %4916 = vmatprep.subr.mxu0 0.0
    %4917 = vmatpush1.msra.mxu0 0.0
    %4918 = vmatprep.subr.mxu0 0.0
    %4919 = vmatpush1.msra.mxu0 0.0
    %4920 = vmatprep.subr.mxu0 0.0
    %4921 = vmatpush1.msra.mxu0 0.0
    %4922 = vmatprep.subr.mxu0 0.0
    %4923 = vmatpush1.msra.mxu0 0.0
    %4924 = vmatprep.subr.mxu0 0.0
    %4925 = vmatpush1.msra.mxu0 0.0
    %4926 = vmatprep.subr.mxu0 0.0
    %4927 = vmatpush1.msra.mxu0 0.0
    %4928 = vmatprep.subr.mxu0 0.0
    %4929 = vmatpush1.msra.mxu0 0.0
    %4930 = vmatprep.subr.mxu0 0.0
    %4931 = vmatpush1.msra.mxu0 0.0
    %4932 = vmatprep.subr.mxu0 0.0
    %4933 = vmatpush1.msra.mxu0 0.0
    %4934 = vmatprep.subr.mxu0 0.0
    %4935 = vmatpush1.msra.mxu0 0.0
    %4936 = vmatprep.subr.mxu0 0.0
    %4937 = vmatpush1.msra.mxu0 0.0
    %4938 = vmatprep.subr.mxu0 0.0
    %4939 = vmatpush1.msra.mxu0 0.0
    %4940 = vmatprep.subr.mxu0 0.0
    %4941 = vmatpush1.msra.mxu0 0.0
    %4942 = vmatprep.subr.mxu0 0.0
    %4943 = vmatpush1.msra.mxu0 0.0
    %4944 = vmatprep.subr.mxu0 0.0
    %4945 = vmatpush1.msra.mxu0 0.0
    %4946 = vmatprep.subr.mxu0 0.0
    %4947 = vmatpush1.msra.mxu0 0.0
    %4948 = vmatprep.subr.mxu0 0.0
    %4949 = vmatpush1.msra.mxu0 0.0
    %4950 = vmatprep.mubr.f32.mxu0 0.0
    %4951 = vmatmul.mubr.f32.gmra.mrb[0].mxu0 %v4884
    %v4952 = vpop.f32.mrb[0].mxu0
    %v4953 = vadd.f32 0.0, %v4952
    %v4954 = vpop.f32.mrb[0].mxu0
    %v4955 = vadd.f32 0.0, %v4954
    %4956 = vdwg.mxu0
    %v4957 = vadd.f32 %v4879, %v4953
    %v4958 = vadd.f32 %v4881, %v4955
    %v4959 = vrot.slane %v4734, 1
    %v4960 = vsel %vm1917, %v4959, 0
    %4962 = vmatprep.subr.mxu0 %v186
    %4963 = vmatpush1.msra.mxu0 %v185
    %4964 = vmatprep.subr.mxu0 %v188
    %4965 = vmatpush1.msra.mxu0 %v187
    %4966 = vmatprep.subr.mxu0 %v190
    %4967 = vmatpush1.msra.mxu0 %v189
    %4968 = vmatprep.subr.mxu0 %v192
    %4969 = vmatpush1.msra.mxu0 %v191
    %4970 = vmatprep.subr.mxu0 %v194
    %4971 = vmatpush1.msra.mxu0 %v193
    %4972 = vmatprep.subr.mxu0 %v196
    %4973 = vmatpush1.msra.mxu0 %v195
    %4974 = vmatprep.subr.mxu0 %v198
    %4975 = vmatpush1.msra.mxu0 %v197
    %4976 = vmatprep.subr.mxu0 %v200
    %4977 = vmatpush1.msra.mxu0 %v199
    %4978 = vmatprep.subr.mxu0 %v202
    %4979 = vmatpush1.msra.mxu0 %v201
    %4980 = vmatprep.subr.mxu0 %v204
    %4981 = vmatpush1.msra.mxu0 %v203
    %4982 = vmatprep.subr.mxu0 %v206
    %4983 = vmatpush1.msra.mxu0 %v205
    %4984 = vmatprep.subr.mxu0 %v208
    %4985 = vmatpush1.msra.mxu0 %v207
    %4986 = vmatprep.subr.mxu0 %v210
    %4987 = vmatpush1.msra.mxu0 %v209
    %4988 = vmatprep.subr.mxu0 %v212
    %4989 = vmatpush1.msra.mxu0 %v211
    %4990 = vmatprep.subr.mxu0 %v214
    %4991 = vmatpush1.msra.mxu0 %v213
    %4992 = vmatprep.subr.mxu0 0.0
    %4993 = vmatpush1.msra.mxu0 0.0
    %4994 = vmatprep.subr.mxu0 0.0
    %4995 = vmatpush1.msra.mxu0 0.0
    %4996 = vmatprep.subr.mxu0 0.0
    %4997 = vmatpush1.msra.mxu0 0.0
    %4998 = vmatprep.subr.mxu0 0.0
    %4999 = vmatpush1.msra.mxu0 0.0
    %5000 = vmatprep.subr.mxu0 0.0
    %5001 = vmatpush1.msra.mxu0 0.0
    %5002 = vmatprep.subr.mxu0 0.0
    %5003 = vmatpush1.msra.mxu0 0.0
    %5004 = vmatprep.subr.mxu0 0.0
    %5005 = vmatpush1.msra.mxu0 0.0
    %5006 = vmatprep.subr.mxu0 0.0
    %5007 = vmatpush1.msra.mxu0 0.0
    %5008 = vmatprep.subr.mxu0 0.0
    %5009 = vmatpush1.msra.mxu0 0.0
    %5010 = vmatprep.subr.mxu0 0.0
    %5011 = vmatpush1.msra.mxu0 0.0
    %5012 = vmatprep.subr.mxu0 0.0
    %5013 = vmatpush1.msra.mxu0 0.0
    %5014 = vmatprep.subr.mxu0 0.0
    %5015 = vmatpush1.msra.mxu0 0.0
    %5016 = vmatprep.subr.mxu0 0.0
    %5017 = vmatpush1.msra.mxu0 0.0
    %5018 = vmatprep.subr.mxu0 0.0
    %5019 = vmatpush1.msra.mxu0 0.0
    %5020 = vmatprep.subr.mxu0 0.0
    %5021 = vmatpush1.msra.mxu0 0.0
    %5022 = vmatprep.subr.mxu0 0.0
    %5023 = vmatpush1.msra.mxu0 0.0
    %5024 = vmatprep.subr.mxu0 0.0
    %5025 = vmatpush1.msra.mxu0 0.0
    %5026 = vmatprep.mubr.f32.mxu0 0.0
    %5027 = vmatmul.mubr.f32.gmra.mrb[0].mxu0 %v4960
    %v5028 = vpop.f32.mrb[0].mxu0
    %v5029 = vadd.f32 0.0, %v5028
    %v5030 = vpop.f32.mrb[0].mxu0
    %v5031 = vadd.f32 0.0, %v5030
    %5032 = vdwg.mxu0
    %v5033 = vadd.f32 %v4957, %v5029
    %v5034 = vadd.f32 %v4958, %v5031
    %v5035 = vrot.slane %v3985, 2
    %v5036 = vsel %vm1917, %v5035, 0
    %5038 = vmatprep.subr.mxu0 %v217
    %5039 = vmatpush1.msra.mxu0 %v216
    %5040 = vmatprep.subr.mxu0 %v219
    %5041 = vmatpush1.msra.mxu0 %v218
    %5042 = vmatprep.subr.mxu0 %v221
    %5043 = vmatpush1.msra.mxu0 %v220
    %5044 = vmatprep.subr.mxu0 %v223
    %5045 = vmatpush1.msra.mxu0 %v222
    %5046 = vmatprep.subr.mxu0 %v225
    %5047 = vmatpush1.msra.mxu0 %v224
    %5048 = vmatprep.subr.mxu0 %v227
    %5049 = vmatpush1.msra.mxu0 %v226
    %5050 = vmatprep.subr.mxu0 %v229
    %5051 = vmatpush1.msra.mxu0 %v228
    %5052 = vmatprep.subr.mxu0 %v231
    %5053 = vmatpush1.msra.mxu0 %v230
    %5054 = vmatprep.subr.mxu0 %v233
    %5055 = vmatpush1.msra.mxu0 %v232
    %5056 = vmatprep.subr.mxu0 %v235
    %5057 = vmatpush1.msra.mxu0 %v234
    %5058 = vmatprep.subr.mxu0 %v237
    %5059 = vmatpush1.msra.mxu0 %v236
    %5060 = vmatprep.subr.mxu0 %v239
    %5061 = vmatpush1.msra.mxu0 %v238
    %5062 = vmatprep.subr.mxu0 %v241
    %5063 = vmatpush1.msra.mxu0 %v240
    %5064 = vmatprep.subr.mxu0 %v243
    %5065 = vmatpush1.msra.mxu0 %v242
    %5066 = vmatprep.subr.mxu0 %v245
    %5067 = vmatpush1.msra.mxu0 %v244
    %5068 = vmatprep.subr.mxu0 0.0
    %5069 = vmatpush1.msra.mxu0 0.0
    %5070 = vmatprep.subr.mxu0 0.0
    %5071 = vmatpush1.msra.mxu0 0.0
    %5072 = vmatprep.subr.mxu0 0.0
    %5073 = vmatpush1.msra.mxu0 0.0
    %5074 = vmatprep.subr.mxu0 0.0
    %5075 = vmatpush1.msra.mxu0 0.0
    %5076 = vmatprep.subr.mxu0 0.0
    %5077 = vmatpush1.msra.mxu0 0.0
    %5078 = vmatprep.subr.mxu0 0.0
    %5079 = vmatpush1.msra.mxu0 0.0
    %5080 = vmatprep.subr.mxu0 0.0
    %5081 = vmatpush1.msra.mxu0 0.0
    %5082 = vmatprep.subr.mxu0 0.0
    %5083 = vmatpush1.msra.mxu0 0.0
    %5084 = vmatprep.subr.mxu0 0.0
    %5085 = vmatpush1.msra.mxu0 0.0
    %5086 = vmatprep.subr.mxu0 0.0
    %5087 = vmatpush1.msra.mxu0 0.0
    %5088 = vmatprep.subr.mxu0 0.0
    %5089 = vmatpush1.msra.mxu0 0.0
    %5090 = vmatprep.subr.mxu0 0.0
    %5091 = vmatpush1.msra.mxu0 0.0
    %5092 = vmatprep.subr.mxu0 0.0
    %5093 = vmatpush1.msra.mxu0 0.0
    %5094 = vmatprep.subr.mxu0 0.0
    %5095 = vmatpush1.msra.mxu0 0.0
    %5096 = vmatprep.subr.mxu0 0.0
    %5097 = vmatpush1.msra.mxu0 0.0
    %5098 = vmatprep.subr.mxu0 0.0
    %5099 = vmatpush1.msra.mxu0 0.0
    %5100 = vmatprep.subr.mxu0 0.0
    %5101 = vmatpush1.msra.mxu0 0.0
    %5102 = vmatprep.mubr.f32.mxu0 0.0
    %5103 = vmatmul.mubr.f32.gmra.mrb[0].mxu0 %v5036
    %v5104 = vpop.f32.mrb[0].mxu0
    %v5105 = vadd.f32 0.0, %v5104
    %v5106 = vpop.f32.mrb[0].mxu0
    %v5107 = vadd.f32 0.0, %v5106
    %5108 = vdwg.mxu0
    %v5109 = vadd.f32 %v5033, %v5105
    %v5110 = vadd.f32 %v5034, %v5107
    %5113 = vrot.lane.b32.xlu0 %v5109, 48
    %v5114 = vpop.permute.xlu0 %5113
    %5115 = vrot.lane.b32.xlu0 %v5110, 48
    %v5116 = vpop.permute.xlu0 %5115
    %v5117 = vsel %vm2300, %v5114, %v5116
    %v5119 = vmax.f32 %v5109, %v5117
    %5120 = vmatprep.subr.mxu0 %v124
    %5121 = vmatpush1.msra.mxu0 %v123
    %5122 = vmatprep.subr.mxu0 %v126
    %5123 = vmatpush1.msra.mxu0 %v125
    %5124 = vmatprep.subr.mxu0 %v128
    %5125 = vmatpush1.msra.mxu0 %v127
    %5126 = vmatprep.subr.mxu0 %v130
    %5127 = vmatpush1.msra.mxu0 %v129
    %5128 = vmatprep.subr.mxu0 %v132
    %5129 = vmatpush1.msra.mxu0 %v131
    %5130 = vmatprep.subr.mxu0 %v134
    %5131 = vmatpush1.msra.mxu0 %v133
    %5132 = vmatprep.subr.mxu0 %v136
    %5133 = vmatpush1.msra.mxu0 %v135
    %5134 = vmatprep.subr.mxu0 %v138
    %5135 = vmatpush1.msra.mxu0 %v137
    %5136 = vmatprep.subr.mxu0 %v140
    %5137 = vmatpush1.msra.mxu0 %v139
    %5138 = vmatprep.subr.mxu0 %v142
    %5139 = vmatpush1.msra.mxu0 %v141
    %5140 = vmatprep.subr.mxu0 %v144
    %5141 = vmatpush1.msra.mxu0 %v143
    %5142 = vmatprep.subr.mxu0 %v146
    %5143 = vmatpush1.msra.mxu0 %v145
    %5144 = vmatprep.subr.mxu0 %v148
    %5145 = vmatpush1.msra.mxu0 %v147
    %5146 = vmatprep.subr.mxu0 %v150
    %5147 = vmatpush1.msra.mxu0 %v149
    %5148 = vmatprep.subr.mxu0 %v152
    %5149 = vmatpush1.msra.mxu0 %v151
    %5150 = vmatprep.subr.mxu0 0.0
    %5151 = vmatpush1.msra.mxu0 0.0
    %5152 = vmatprep.subr.mxu0 0.0
    %5153 = vmatpush1.msra.mxu0 0.0
    %5154 = vmatprep.subr.mxu0 0.0
    %5155 = vmatpush1.msra.mxu0 0.0
    %5156 = vmatprep.subr.mxu0 0.0
    %5157 = vmatpush1.msra.mxu0 0.0
    %5158 = vmatprep.subr.mxu0 0.0
    %5159 = vmatpush1.msra.mxu0 0.0
    %5160 = vmatprep.subr.mxu0 0.0
    %5161 = vmatpush1.msra.mxu0 0.0
    %5162 = vmatprep.subr.mxu0 0.0
    %5163 = vmatpush1.msra.mxu0 0.0
    %5164 = vmatprep.subr.mxu0 0.0
    %5165 = vmatpush1.msra.mxu0 0.0
    %5166 = vmatprep.subr.mxu0 0.0
    %5167 = vmatpush1.msra.mxu0 0.0
    %5168 = vmatprep.subr.mxu0 0.0
    %5169 = vmatpush1.msra.mxu0 0.0
    %5170 = vmatprep.subr.mxu0 0.0
    %5171 = vmatpush1.msra.mxu0 0.0
    %5172 = vmatprep.subr.mxu0 0.0
    %5173 = vmatpush1.msra.mxu0 0.0
    %5174 = vmatprep.subr.mxu0 0.0
    %5175 = vmatpush1.msra.mxu0 0.0
    %5176 = vmatprep.subr.mxu0 0.0
    %5177 = vmatpush1.msra.mxu0 0.0
    %5178 = vmatprep.subr.mxu0 0.0
    %5179 = vmatpush1.msra.mxu0 0.0
    %5180 = vmatprep.subr.mxu0 0.0
    %5181 = vmatpush1.msra.mxu0 0.0
    %5182 = vmatprep.subr.mxu0 0.0
    %5183 = vmatpush1.msra.mxu0 0.0
    %5184 = vmatprep.mubr.f32.mxu0 0.0
    %5185 = vmatmul.mubr.f32.gmra.mrb[0].mxu0 %v4884
    %v5186 = vpop.f32.mrb[0].mxu0
    %v5187 = vadd.f32 0.0, %v5186
    %v5188 = vpop.f32.mrb[0].mxu0
    %v5189 = vadd.f32 0.0, %v5188
    %5190 = vdwg.mxu0
    %5191 = vmatprep.subr.mxu0 %v93
    %5192 = vmatpush1.msra.mxu0 %v92
    %5193 = vmatprep.subr.mxu0 %v95
    %5194 = vmatpush1.msra.mxu0 %v94
    %5195 = vmatprep.subr.mxu0 %v97
    %5196 = vmatpush1.msra.mxu0 %v96
    %5197 = vmatprep.subr.mxu0 %v99
    %5198 = vmatpush1.msra.mxu0 %v98
    %5199 = vmatprep.subr.mxu0 %v101
    %5200 = vmatpush1.msra.mxu0 %v100
    %5201 = vmatprep.subr.mxu0 %v103
    %5202 = vmatpush1.msra.mxu0 %v102
    %5203 = vmatprep.subr.mxu0 %v105
    %5204 = vmatpush1.msra.mxu0 %v104
    %5205 = vmatprep.subr.mxu0 %v107
    %5206 = vmatpush1.msra.mxu0 %v106
    %5207 = vmatprep.subr.mxu0 %v109
    %5208 = vmatpush1.msra.mxu0 %v108
    %5209 = vmatprep.subr.mxu0 %v111
    %5210 = vmatpush1.msra.mxu0 %v110
    %5211 = vmatprep.subr.mxu0 %v113
    %5212 = vmatpush1.msra.mxu0 %v112
    %5213 = vmatprep.subr.mxu0 %v115
    %5214 = vmatpush1.msra.mxu0 %v114
    %5215 = vmatprep.subr.mxu0 %v117
    %5216 = vmatpush1.msra.mxu0 %v116
    %5217 = vmatprep.subr.mxu0 %v119
    %5218 = vmatpush1.msra.mxu0 %v118
    %5219 = vmatprep.subr.mxu0 %v121
    %5220 = vmatpush1.msra.mxu0 %v120
    %5221 = vmatprep.subr.mxu0 0.0
    %5222 = vmatpush1.msra.mxu0 0.0
    %5223 = vmatprep.subr.mxu0 0.0
    %5224 = vmatpush1.msra.mxu0 0.0
    %5225 = vmatprep.subr.mxu0 0.0
    %5226 = vmatpush1.msra.mxu0 0.0
    %5227 = vmatprep.subr.mxu0 0.0
    %5228 = vmatpush1.msra.mxu0 0.0
    %5229 = vmatprep.subr.mxu0 0.0
    %5230 = vmatpush1.msra.mxu0 0.0
    %5231 = vmatprep.subr.mxu0 0.0
    %5232 = vmatpush1.msra.mxu0 0.0
    %5233 = vmatprep.subr.mxu0 0.0
    %5234 = vmatpush1.msra.mxu0 0.0
    %5235 = vmatprep.subr.mxu0 0.0
    %5236 = vmatpush1.msra.mxu0 0.0
    %5237 = vmatprep.subr.mxu0 0.0
    %5238 = vmatpush1.msra.mxu0 0.0
    %5239 = vmatprep.subr.mxu0 0.0
    %5240 = vmatpush1.msra.mxu0 0.0
    %5241 = vmatprep.subr.mxu0 0.0
    %5242 = vmatpush1.msra.mxu0 0.0
    %5243 = vmatprep.subr.mxu0 0.0
    %5244 = vmatpush1.msra.mxu0 0.0
    %5245 = vmatprep.subr.mxu0 0.0
    %5246 = vmatpush1.msra.mxu0 0.0
    %5247 = vmatprep.subr.mxu0 0.0
    %5248 = vmatpush1.msra.mxu0 0.0
    %5249 = vmatprep.subr.mxu0 0.0
    %5250 = vmatpush1.msra.mxu0 0.0
    %5251 = vmatprep.subr.mxu0 0.0
    %5252 = vmatpush1.msra.mxu0 0.0
    %5253 = vmatprep.subr.mxu0 0.0
    %5254 = vmatpush1.msra.mxu0 0.0
    %5255 = vmatprep.mubr.f32.mxu0 0.0
    %5256 = vmatmul.mubr.f32.gmra.mrb[0].mxu0 %v4736
    %v5257 = vpop.f32.mrb[0].mxu0
    %v5258 = vadd.f32 %v5187, %v5257
    %v5259 = vpop.f32.mrb[0].mxu0
    %v5260 = vadd.f32 %v5189, %v5259
    %5261 = vdwg.mxu0
    %5262 = vmatprep.subr.mxu0 %v155
    %5263 = vmatpush1.msra.mxu0 %v154
    %5264 = vmatprep.subr.mxu0 %v157
    %5265 = vmatpush1.msra.mxu0 %v156
    %5266 = vmatprep.subr.mxu0 %v159
    %5267 = vmatpush1.msra.mxu0 %v158
    %5268 = vmatprep.subr.mxu0 %v161
    %5269 = vmatpush1.msra.mxu0 %v160
    %5270 = vmatprep.subr.mxu0 %v163
    %5271 = vmatpush1.msra.mxu0 %v162
    %5272 = vmatprep.subr.mxu0 %v165
    %5273 = vmatpush1.msra.mxu0 %v164
    %5274 = vmatprep.subr.mxu0 %v167
    %5275 = vmatpush1.msra.mxu0 %v166
    %5276 = vmatprep.subr.mxu0 %v169
    %5277 = vmatpush1.msra.mxu0 %v168
    %5278 = vmatprep.subr.mxu0 %v171
    %5279 = vmatpush1.msra.mxu0 %v170
    %5280 = vmatprep.subr.mxu0 %v173
    %5281 = vmatpush1.msra.mxu0 %v172
    %5282 = vmatprep.subr.mxu0 %v175
    %5283 = vmatpush1.msra.mxu0 %v174
    %5284 = vmatprep.subr.mxu0 %v177
    %5285 = vmatpush1.msra.mxu0 %v176
    %5286 = vmatprep.subr.mxu0 %v179
    %5287 = vmatpush1.msra.mxu0 %v178
    %5288 = vmatprep.subr.mxu0 %v181
    %5289 = vmatpush1.msra.mxu0 %v180
    %5290 = vmatprep.subr.mxu0 %v183
    %5291 = vmatpush1.msra.mxu0 %v182
    %5292 = vmatprep.subr.mxu0 0.0
    %5293 = vmatpush1.msra.mxu0 0.0
    %5294 = vmatprep.subr.mxu0 0.0
    %5295 = vmatpush1.msra.mxu0 0.0
    %5296 = vmatprep.subr.mxu0 0.0
    %5297 = vmatpush1.msra.mxu0 0.0
    %5298 = vmatprep.subr.mxu0 0.0
    %5299 = vmatpush1.msra.mxu0 0.0
    %5300 = vmatprep.subr.mxu0 0.0
    %5301 = vmatpush1.msra.mxu0 0.0
    %5302 = vmatprep.subr.mxu0 0.0
    %5303 = vmatpush1.msra.mxu0 0.0
    %5304 = vmatprep.subr.mxu0 0.0
    %5305 = vmatpush1.msra.mxu0 0.0
    %5306 = vmatprep.subr.mxu0 0.0
    %5307 = vmatpush1.msra.mxu0 0.0
    %5308 = vmatprep.subr.mxu0 0.0
    %5309 = vmatpush1.msra.mxu0 0.0
    %5310 = vmatprep.subr.mxu0 0.0
    %5311 = vmatpush1.msra.mxu0 0.0
    %5312 = vmatprep.subr.mxu0 0.0
    %5313 = vmatpush1.msra.mxu0 0.0
    %5314 = vmatprep.subr.mxu0 0.0
    %5315 = vmatpush1.msra.mxu0 0.0
    %5316 = vmatprep.subr.mxu0 0.0
    %5317 = vmatpush1.msra.mxu0 0.0
    %5318 = vmatprep.subr.mxu0 0.0
    %5319 = vmatpush1.msra.mxu0 0.0
    %5320 = vmatprep.subr.mxu0 0.0
    %5321 = vmatpush1.msra.mxu0 0.0
    %5322 = vmatprep.subr.mxu0 0.0
    %5323 = vmatpush1.msra.mxu0 0.0
    %5324 = vmatprep.subr.mxu0 0.0
    %5325 = vmatpush1.msra.mxu0 0.0
    %5326 = vmatprep.mubr.f32.mxu0 0.0
    %5327 = vmatmul.mubr.f32.gmra.mrb[0].mxu0 %v4960
    %v5328 = vpop.f32.mrb[0].mxu0
    %v5329 = vadd.f32 0.0, %v5328
    %v5330 = vpop.f32.mrb[0].mxu0
    %v5331 = vadd.f32 0.0, %v5330
    %5332 = vdwg.mxu0
    %v5333 = vadd.f32 %v5258, %v5329
    %v5334 = vadd.f32 %v5260, %v5331
    %5335 = vmatprep.subr.mxu0 %v186
    %5336 = vmatpush1.msra.mxu0 %v185
    %5337 = vmatprep.subr.mxu0 %v188
    %5338 = vmatpush1.msra.mxu0 %v187
    %5339 = vmatprep.subr.mxu0 %v190
    %5340 = vmatpush1.msra.mxu0 %v189
    %5341 = vmatprep.subr.mxu0 %v192
    %5342 = vmatpush1.msra.mxu0 %v191
    %5343 = vmatprep.subr.mxu0 %v194
    %5344 = vmatpush1.msra.mxu0 %v193
    %5345 = vmatprep.subr.mxu0 %v196
    %5346 = vmatpush1.msra.mxu0 %v195
    %5347 = vmatprep.subr.mxu0 %v198
    %5348 = vmatpush1.msra.mxu0 %v197
    %5349 = vmatprep.subr.mxu0 %v200
    %5350 = vmatpush1.msra.mxu0 %v199
    %5351 = vmatprep.subr.mxu0 %v202
    %5352 = vmatpush1.msra.mxu0 %v201
    %5353 = vmatprep.subr.mxu0 %v204
    %5354 = vmatpush1.msra.mxu0 %v203
    %5355 = vmatprep.subr.mxu0 %v206
    %5356 = vmatpush1.msra.mxu0 %v205
    %5357 = vmatprep.subr.mxu0 %v208
    %5358 = vmatpush1.msra.mxu0 %v207
    %5359 = vmatprep.subr.mxu0 %v210
    %5360 = vmatpush1.msra.mxu0 %v209
    %5361 = vmatprep.subr.mxu0 %v212
    %5362 = vmatpush1.msra.mxu0 %v211
    %5363 = vmatprep.subr.mxu0 %v214
    %5364 = vmatpush1.msra.mxu0 %v213
    %5365 = vmatprep.subr.mxu0 0.0
    %5366 = vmatpush1.msra.mxu0 0.0
    %5367 = vmatprep.subr.mxu0 0.0
    %5368 = vmatpush1.msra.mxu0 0.0
    %5369 = vmatprep.subr.mxu0 0.0
    %5370 = vmatpush1.msra.mxu0 0.0
    %5371 = vmatprep.subr.mxu0 0.0
    %5372 = vmatpush1.msra.mxu0 0.0
    %5373 = vmatprep.subr.mxu0 0.0
    %5374 = vmatpush1.msra.mxu0 0.0
    %5375 = vmatprep.subr.mxu0 0.0
    %5376 = vmatpush1.msra.mxu0 0.0
    %5377 = vmatprep.subr.mxu0 0.0
    %5378 = vmatpush1.msra.mxu0 0.0
    %5379 = vmatprep.subr.mxu0 0.0
    %5380 = vmatpush1.msra.mxu0 0.0
    %5381 = vmatprep.subr.mxu0 0.0
    %5382 = vmatpush1.msra.mxu0 0.0
    %5383 = vmatprep.subr.mxu0 0.0
    %5384 = vmatpush1.msra.mxu0 0.0
    %5385 = vmatprep.subr.mxu0 0.0
    %5386 = vmatpush1.msra.mxu0 0.0
    %5387 = vmatprep.subr.mxu0 0.0
    %5388 = vmatpush1.msra.mxu0 0.0
    %5389 = vmatprep.subr.mxu0 0.0
    %5390 = vmatpush1.msra.mxu0 0.0
    %5391 = vmatprep.subr.mxu0 0.0
    %5392 = vmatpush1.msra.mxu0 0.0
    %5393 = vmatprep.subr.mxu0 0.0
    %5394 = vmatpush1.msra.mxu0 0.0
    %5395 = vmatprep.subr.mxu0 0.0
    %5396 = vmatpush1.msra.mxu0 0.0
    %5397 = vmatprep.subr.mxu0 0.0
    %5398 = vmatpush1.msra.mxu0 0.0
    %5399 = vmatprep.mubr.f32.mxu0 0.0
    %5400 = vmatmul.mubr.f32.gmra.mrb[0].mxu0 %v5036
    %v5401 = vpop.f32.mrb[0].mxu0
    %v5402 = vadd.f32 0.0, %v5401
    %v5403 = vpop.f32.mrb[0].mxu0
    %v5404 = vadd.f32 0.0, %v5403
    %5405 = vdwg.mxu0
    %v5406 = vadd.f32 %v5333, %v5402
    %v5407 = vadd.f32 %v5334, %v5404
    %v5408 = vrot.slane %v4734, 2
    %v5409 = vsel %vm1917, %v5408, 0
    %5411 = vmatprep.subr.mxu0 %v217
    %5412 = vmatpush1.msra.mxu0 %v216
    %5413 = vmatprep.subr.mxu0 %v219
    %5414 = vmatpush1.msra.mxu0 %v218
    %5415 = vmatprep.subr.mxu0 %v221
    %5416 = vmatpush1.msra.mxu0 %v220
    %5417 = vmatprep.subr.mxu0 %v223
    %5418 = vmatpush1.msra.mxu0 %v222
    %5419 = vmatprep.subr.mxu0 %v225
    %5420 = vmatpush1.msra.mxu0 %v224
    %5421 = vmatprep.subr.mxu0 %v227
    %5422 = vmatpush1.msra.mxu0 %v226
    %5423 = vmatprep.subr.mxu0 %v229
    %5424 = vmatpush1.msra.mxu0 %v228
    %5425 = vmatprep.subr.mxu0 %v231
    %5426 = vmatpush1.msra.mxu0 %v230
    %5427 = vmatprep.subr.mxu0 %v233
    %5428 = vmatpush1.msra.mxu0 %v232
    %5429 = vmatprep.subr.mxu0 %v235
    %5430 = vmatpush1.msra.mxu0 %v234
    %5431 = vmatprep.subr.mxu0 %v237
    %5432 = vmatpush1.msra.mxu0 %v236
    %5433 = vmatprep.subr.mxu0 %v239
    %5434 = vmatpush1.msra.mxu0 %v238
    %5435 = vmatprep.subr.mxu0 %v241
    %5436 = vmatpush1.msra.mxu0 %v240
    %5437 = vmatprep.subr.mxu0 %v243
    %5438 = vmatpush1.msra.mxu0 %v242
    %5439 = vmatprep.subr.mxu0 %v245
    %5440 = vmatpush1.msra.mxu0 %v244
    %5441 = vmatprep.subr.mxu0 0.0
    %5442 = vmatpush1.msra.mxu0 0.0
    %5443 = vmatprep.subr.mxu0 0.0
    %5444 = vmatpush1.msra.mxu0 0.0
    %5445 = vmatprep.subr.mxu0 0.0
    %5446 = vmatpush1.msra.mxu0 0.0
    %5447 = vmatprep.subr.mxu0 0.0
    %5448 = vmatpush1.msra.mxu0 0.0
    %5449 = vmatprep.subr.mxu0 0.0
    %5450 = vmatpush1.msra.mxu0 0.0
    %5451 = vmatprep.subr.mxu0 0.0
    %5452 = vmatpush1.msra.mxu0 0.0
    %5453 = vmatprep.subr.mxu0 0.0
    %5454 = vmatpush1.msra.mxu0 0.0
    %5455 = vmatprep.subr.mxu0 0.0
    %5456 = vmatpush1.msra.mxu0 0.0
    %5457 = vmatprep.subr.mxu0 0.0
    %5458 = vmatpush1.msra.mxu0 0.0
    %5459 = vmatprep.subr.mxu0 0.0
    %5460 = vmatpush1.msra.mxu0 0.0
    %5461 = vmatprep.subr.mxu0 0.0
    %5462 = vmatpush1.msra.mxu0 0.0
    %5463 = vmatprep.subr.mxu0 0.0
    %5464 = vmatpush1.msra.mxu0 0.0
    %5465 = vmatprep.subr.mxu0 0.0
    %5466 = vmatpush1.msra.mxu0 0.0
    %5467 = vmatprep.subr.mxu0 0.0
    %5468 = vmatpush1.msra.mxu0 0.0
    %5469 = vmatprep.subr.mxu0 0.0
    %5470 = vmatpush1.msra.mxu0 0.0
    %5471 = vmatprep.subr.mxu0 0.0
    %5472 = vmatpush1.msra.mxu0 0.0
    %5473 = vmatprep.subr.mxu0 0.0
    %5474 = vmatpush1.msra.mxu0 0.0
    %5475 = vmatprep.mubr.f32.mxu0 0.0
    %5476 = vmatmul.mubr.f32.gmra.mrb[0].mxu0 %v5409
    %v5477 = vpop.f32.mrb[0].mxu0
    %v5478 = vadd.f32 0.0, %v5477
    %v5479 = vpop.f32.mrb[0].mxu0
    %v5480 = vadd.f32 0.0, %v5479
    %5481 = vdwg.mxu0
    %v5482 = vadd.f32 %v5406, %v5478
    %v5483 = vadd.f32 %v5407, %v5480
    %v5484 = vmax.f32 %v5119, %v5482
    %5487 = vrot.lane.b32.xlu0 %v5482, 48
    %v5488 = vpop.permute.xlu0 %5487
    %5489 = vrot.lane.b32.xlu0 %v5483, 48
    %v5490 = vpop.permute.xlu0 %5489
    %v5491 = vsel %vm2300, %v5488, %v5490
    %v5493 = vmax.f32 %v5484, %v5491
    %v5494 = vadd.f32 %v5493, %v2682
    %v5495 = vmax.f32 %v5494, 0.0
    %v5497 = vsel %vm2686, %v5495, 0
    %5499 = vmatprep.subr.mxu0 %v247
    %5500 = vmatpush1.msra.mxu0 %v246
    %5501 = vmatprep.subr.mxu0 %v249
    %5502 = vmatpush1.msra.mxu0 %v248
    %5503 = vmatprep.subr.mxu0 %v251
    %5504 = vmatpush1.msra.mxu0 %v250
    %5505 = vmatprep.subr.mxu0 %v253
    %5506 = vmatpush1.msra.mxu0 %v252
    %5507 = vmatprep.subr.mxu0 %v255
    %5508 = vmatpush1.msra.mxu0 %v254
    %5509 = vmatprep.subr.mxu0 %v257
    %5510 = vmatpush1.msra.mxu0 %v256
    %5511 = vmatprep.subr.mxu0 %v259
    %5512 = vmatpush1.msra.mxu0 %v258
    %5513 = vmatprep.subr.mxu0 %v261
    %5514 = vmatpush1.msra.mxu0 %v260
    %5515 = vmatprep.subr.mxu0 %v263
    %5516 = vmatpush1.msra.mxu0 %v262
    %5517 = vmatprep.subr.mxu0 %v265
    %5518 = vmatpush1.msra.mxu0 %v264
    %5519 = vmatprep.subr.mxu0 0.0
    %5520 = vmatpush1.msra.mxu0 0.0
    %5521 = vmatprep.subr.mxu0 0.0
    %5522 = vmatpush1.msra.mxu0 0.0
    %5523 = vmatprep.subr.mxu0 0.0
    %5524 = vmatpush1.msra.mxu0 0.0
    %5525 = vmatprep.subr.mxu0 0.0
    %5526 = vmatpush1.msra.mxu0 0.0
    %5527 = vmatprep.subr.mxu0 0.0
    %5528 = vmatpush1.msra.mxu0 0.0
    %5529 = vmatprep.subr.mxu0 0.0
    %5530 = vmatpush1.msra.mxu0 0.0
    %5531 = vmatprep.subr.mxu0 0.0
    %5532 = vmatpush1.msra.mxu0 0.0
    %5533 = vmatprep.subr.mxu0 0.0
    %5534 = vmatpush1.msra.mxu0 0.0
    %5535 = vmatprep.subr.mxu0 0.0
    %5536 = vmatpush1.msra.mxu0 0.0
    %5537 = vmatprep.subr.mxu0 0.0
    %5538 = vmatpush1.msra.mxu0 0.0
    %5539 = vmatprep.subr.mxu0 0.0
    %5540 = vmatpush1.msra.mxu0 0.0
    %5541 = vmatprep.subr.mxu0 0.0
    %5542 = vmatpush1.msra.mxu0 0.0
    %5543 = vmatprep.subr.mxu0 0.0
    %5544 = vmatpush1.msra.mxu0 0.0
    %5545 = vmatprep.subr.mxu0 0.0
    %5546 = vmatpush1.msra.mxu0 0.0
    %5547 = vmatprep.subr.mxu0 0.0
    %5548 = vmatpush1.msra.mxu0 0.0
    %5549 = vmatprep.subr.mxu0 0.0
    %5550 = vmatpush1.msra.mxu0 0.0
    %5551 = vmatprep.subr.mxu0 0.0
    %5552 = vmatpush1.msra.mxu0 0.0
    %5553 = vmatprep.subr.mxu0 0.0
    %5554 = vmatpush1.msra.mxu0 0.0
    %5555 = vmatprep.subr.mxu0 0.0
    %5556 = vmatpush1.msra.mxu0 0.0
    %5557 = vmatprep.subr.mxu0 0.0
    %5558 = vmatpush1.msra.mxu0 0.0
    %5559 = vmatprep.subr.mxu0 0.0
    %5560 = vmatpush1.msra.mxu0 0.0
    %5561 = vmatprep.subr.mxu0 0.0
    %5562 = vmatpush1.msra.mxu0 0.0
    %5563 = vmatprep.mubr.f32.mxu0 0.0
    %5564 = vmatmul.mubr.f32.gmra.mrb[0].mxu0 %v5497
    %v5565 = vpop.f32.mrb[0].mxu0
    %v5566 = vadd.f32 0.0, %v5565
    %v5567 = vpop.f32.mrb[0].mxu0
    %v5568 = vadd.f32 0.0, %v5567
    %5569 = vdwg.mxu0
    %v5572 = vcombine.low %v5566, %v5568
    %v5574 = vunpack.c.l.s4 1966171168
    %v5575 = vunpack.c.0.s8 %v5574
    %v5576 = vlaneseq
    %v5577 = vshrl.u32 %v5576, 7
    %v5578 = vsub.s32 %v5575, %v5577
    %v5579 = vrot.slane %v5572, %v5578
    %v5581 = vunpack.c.l.s4 1966171168
    %v5582 = vunpack.c.0.s8 %v5581
    %v5583 = vlaneseq
    %v5584 = vshrl.u32 %v5583, 7
    %v5585 = vsub.s32 %v5582, %v5584
    %v5586 = vrot.slane %v5579, %v5585
    %v5588 = vadd.f32 %v361, %v5586
    %v5589 = vrot.slane %v5495, 1
    %v5590 = vsel %vm2686, %v5589, 0
    %5592 = vmatprep.subr.mxu0 %v268
    %5593 = vmatpush1.msra.mxu0 %v267
    %5594 = vmatprep.subr.mxu0 %v270
    %5595 = vmatpush1.msra.mxu0 %v269
    %5596 = vmatprep.subr.mxu0 %v272
    %5597 = vmatpush1.msra.mxu0 %v271
    %5598 = vmatprep.subr.mxu0 %v274
    %5599 = vmatpush1.msra.mxu0 %v273
    %5600 = vmatprep.subr.mxu0 %v276
    %5601 = vmatpush1.msra.mxu0 %v275
    %5602 = vmatprep.subr.mxu0 %v278
    %5603 = vmatpush1.msra.mxu0 %v277
    %5604 = vmatprep.subr.mxu0 %v280
    %5605 = vmatpush1.msra.mxu0 %v279
    %5606 = vmatprep.subr.mxu0 %v282
    %5607 = vmatpush1.msra.mxu0 %v281
    %5608 = vmatprep.subr.mxu0 %v284
    %5609 = vmatpush1.msra.mxu0 %v283
    %5610 = vmatprep.subr.mxu0 %v286
    %5611 = vmatpush1.msra.mxu0 %v285
    %5612 = vmatprep.subr.mxu0 0.0
    %5613 = vmatpush1.msra.mxu0 0.0
    %5614 = vmatprep.subr.mxu0 0.0
    %5615 = vmatpush1.msra.mxu0 0.0
    %5616 = vmatprep.subr.mxu0 0.0
    %5617 = vmatpush1.msra.mxu0 0.0
    %5618 = vmatprep.subr.mxu0 0.0
    %5619 = vmatpush1.msra.mxu0 0.0
    %5620 = vmatprep.subr.mxu0 0.0
    %5621 = vmatpush1.msra.mxu0 0.0
    %5622 = vmatprep.subr.mxu0 0.0
    %5623 = vmatpush1.msra.mxu0 0.0
    %5624 = vmatprep.subr.mxu0 0.0
    %5625 = vmatpush1.msra.mxu0 0.0
    %5626 = vmatprep.subr.mxu0 0.0
    %5627 = vmatpush1.msra.mxu0 0.0
    %5628 = vmatprep.subr.mxu0 0.0
    %5629 = vmatpush1.msra.mxu0 0.0
    %5630 = vmatprep.subr.mxu0 0.0
    %5631 = vmatpush1.msra.mxu0 0.0
    %5632 = vmatprep.subr.mxu0 0.0
    %5633 = vmatpush1.msra.mxu0 0.0
    %5634 = vmatprep.subr.mxu0 0.0
    %5635 = vmatpush1.msra.mxu0 0.0
    %5636 = vmatprep.subr.mxu0 0.0
    %5637 = vmatpush1.msra.mxu0 0.0
    %5638 = vmatprep.subr.mxu0 0.0
    %5639 = vmatpush1.msra.mxu0 0.0
    %5640 = vmatprep.subr.mxu0 0.0
    %5641 = vmatpush1.msra.mxu0 0.0
    %5642 = vmatprep.subr.mxu0 0.0
    %5643 = vmatpush1.msra.mxu0 0.0
    %5644 = vmatprep.subr.mxu0 0.0
    %5645 = vmatpush1.msra.mxu0 0.0
    %5646 = vmatprep.subr.mxu0 0.0
    %5647 = vmatpush1.msra.mxu0 0.0
    %5648 = vmatprep.subr.mxu0 0.0
    %5649 = vmatpush1.msra.mxu0 0.0
    %5650 = vmatprep.subr.mxu0 0.0
    %5651 = vmatpush1.msra.mxu0 0.0
    %5652 = vmatprep.subr.mxu0 0.0
    %5653 = vmatpush1.msra.mxu0 0.0
    %5654 = vmatprep.subr.mxu0 0.0
    %5655 = vmatpush1.msra.mxu0 0.0
    %5656 = vmatprep.mubr.f32.mxu0 0.0
    %5657 = vmatmul.mubr.f32.gmra.mrb[0].mxu0 %v5590
    %v5658 = vpop.f32.mrb[0].mxu0
    %v5659 = vadd.f32 0.0, %v5658
    %v5660 = vpop.f32.mrb[0].mxu0
    %v5661 = vadd.f32 0.0, %v5660
    %5662 = vdwg.mxu0
    %v5665 = vcombine.low %v5659, %v5661
    %v5667 = vunpack.c.l.s4 1966171168
    %v5668 = vunpack.c.0.s8 %v5667
    %v5669 = vlaneseq
    %v5670 = vshrl.u32 %v5669, 7
    %v5671 = vsub.s32 %v5668, %v5670
    %v5672 = vrot.slane %v5665, %v5671
    %v5674 = vunpack.c.l.s4 1966171168
    %v5675 = vunpack.c.0.s8 %v5674
    %v5676 = vlaneseq
    %v5677 = vshrl.u32 %v5676, 7
    %v5678 = vsub.s32 %v5675, %v5677
    %v5679 = vrot.slane %v5672, %v5678
    %v5681 = vadd.f32 %v5588, %v5679
    %v5682 = vrot.slane %v5495, 2
    %v5683 = vsel %vm2686, %v5682, 0
    %5685 = vmatprep.subr.mxu0 %v289
    %5686 = vmatpush1.msra.mxu0 %v288
    %5687 = vmatprep.subr.mxu0 %v291
    %5688 = vmatpush1.msra.mxu0 %v290
    %5689 = vmatprep.subr.mxu0 %v293
    %5690 = vmatpush1.msra.mxu0 %v292
    %5691 = vmatprep.subr.mxu0 %v295
    %5692 = vmatpush1.msra.mxu0 %v294
    %5693 = vmatprep.subr.mxu0 %v297
    %5694 = vmatpush1.msra.mxu0 %v296
    %5695 = vmatprep.subr.mxu0 %v299
    %5696 = vmatpush1.msra.mxu0 %v298
    %5697 = vmatprep.subr.mxu0 %v301
    %5698 = vmatpush1.msra.mxu0 %v300
    %5699 = vmatprep.subr.mxu0 %v303
    %5700 = vmatpush1.msra.mxu0 %v302
    %5701 = vmatprep.subr.mxu0 %v305
    %5702 = vmatpush1.msra.mxu0 %v304
    %5703 = vmatprep.subr.mxu0 %v307
    %5704 = vmatpush1.msra.mxu0 %v306
    %5705 = vmatprep.subr.mxu0 0.0
    %5706 = vmatpush1.msra.mxu0 0.0
    %5707 = vmatprep.subr.mxu0 0.0
    %5708 = vmatpush1.msra.mxu0 0.0
    %5709 = vmatprep.subr.mxu0 0.0
    %5710 = vmatpush1.msra.mxu0 0.0
    %5711 = vmatprep.subr.mxu0 0.0
    %5712 = vmatpush1.msra.mxu0 0.0
    %5713 = vmatprep.subr.mxu0 0.0
    %5714 = vmatpush1.msra.mxu0 0.0
    %5715 = vmatprep.subr.mxu0 0.0
    %5716 = vmatpush1.msra.mxu0 0.0
    %5717 = vmatprep.subr.mxu0 0.0
    %5718 = vmatpush1.msra.mxu0 0.0
    %5719 = vmatprep.subr.mxu0 0.0
    %5720 = vmatpush1.msra.mxu0 0.0
    %5721 = vmatprep.subr.mxu0 0.0
    %5722 = vmatpush1.msra.mxu0 0.0
    %5723 = vmatprep.subr.mxu0 0.0
    %5724 = vmatpush1.msra.mxu0 0.0
    %5725 = vmatprep.subr.mxu0 0.0
    %5726 = vmatpush1.msra.mxu0 0.0
    %5727 = vmatprep.subr.mxu0 0.0
    %5728 = vmatpush1.msra.mxu0 0.0
    %5729 = vmatprep.subr.mxu0 0.0
    %5730 = vmatpush1.msra.mxu0 0.0
    %5731 = vmatprep.subr.mxu0 0.0
    %5732 = vmatpush1.msra.mxu0 0.0
    %5733 = vmatprep.subr.mxu0 0.0
    %5734 = vmatpush1.msra.mxu0 0.0
    %5735 = vmatprep.subr.mxu0 0.0
    %5736 = vmatpush1.msra.mxu0 0.0
    %5737 = vmatprep.subr.mxu0 0.0
    %5738 = vmatpush1.msra.mxu0 0.0
    %5739 = vmatprep.subr.mxu0 0.0
    %5740 = vmatpush1.msra.mxu0 0.0
    %5741 = vmatprep.subr.mxu0 0.0
    %5742 = vmatpush1.msra.mxu0 0.0
    %5743 = vmatprep.subr.mxu0 0.0
    %5744 = vmatpush1.msra.mxu0 0.0
    %5745 = vmatprep.subr.mxu0 0.0
    %5746 = vmatpush1.msra.mxu0 0.0
    %5747 = vmatprep.subr.mxu0 0.0
    %5748 = vmatpush1.msra.mxu0 0.0
    %5749 = vmatprep.mubr.f32.mxu0 0.0
    %5750 = vmatmul.mubr.f32.gmra.mrb[0].mxu0 %v5683
    %v5751 = vpop.f32.mrb[0].mxu0
    %v5752 = vadd.f32 0.0, %v5751
    %v5753 = vpop.f32.mrb[0].mxu0
    %v5754 = vadd.f32 0.0, %v5753
    %5755 = vdwg.mxu0
    %v5758 = vcombine.low %v5752, %v5754
    %v5760 = vunpack.c.l.s4 1966171168
    %v5761 = vunpack.c.0.s8 %v5760
    %v5762 = vlaneseq
    %v5763 = vshrl.u32 %v5762, 7
    %v5764 = vsub.s32 %v5761, %v5763
    %v5765 = vrot.slane %v5758, %v5764
    %v5767 = vunpack.c.l.s4 1966171168
    %v5768 = vunpack.c.0.s8 %v5767
    %v5769 = vlaneseq
    %v5770 = vshrl.u32 %v5769, 7
    %v5771 = vsub.s32 %v5768, %v5770
    %v5772 = vrot.slane %v5765, %v5771
    %v5774 = vadd.f32 %v5681, %v5772
    %v5775 = vrot.slane %v5495, 3
    %v5776 = vsel %vm2686, %v5775, 0
    %5778 = vmatprep.subr.mxu0 %v310
    %5779 = vmatpush1.msra.mxu0 %v309
    %5780 = vmatprep.subr.mxu0 %v312
    %5781 = vmatpush1.msra.mxu0 %v311
    %5782 = vmatprep.subr.mxu0 %v314
    %5783 = vmatpush1.msra.mxu0 %v313
    %5784 = vmatprep.subr.mxu0 %v316
    %5785 = vmatpush1.msra.mxu0 %v315
    %5786 = vmatprep.subr.mxu0 %v318
    %5787 = vmatpush1.msra.mxu0 %v317
    %5788 = vmatprep.subr.mxu0 %v320
    %5789 = vmatpush1.msra.mxu0 %v319
    %5790 = vmatprep.subr.mxu0 %v322
    %5791 = vmatpush1.msra.mxu0 %v321
    %5792 = vmatprep.subr.mxu0 %v324
    %5793 = vmatpush1.msra.mxu0 %v323
    %5794 = vmatprep.subr.mxu0 %v326
    %5795 = vmatpush1.msra.mxu0 %v325
    %5796 = vmatprep.subr.mxu0 %v328
    %5797 = vmatpush1.msra.mxu0 %v327
    %5798 = vmatprep.subr.mxu0 0.0
    %5799 = vmatpush1.msra.mxu0 0.0
    %5800 = vmatprep.subr.mxu0 0.0
    %5801 = vmatpush1.msra.mxu0 0.0
    %5802 = vmatprep.subr.mxu0 0.0
    %5803 = vmatpush1.msra.mxu0 0.0
    %5804 = vmatprep.subr.mxu0 0.0
    %5805 = vmatpush1.msra.mxu0 0.0
    %5806 = vmatprep.subr.mxu0 0.0
    %5807 = vmatpush1.msra.mxu0 0.0
    %5808 = vmatprep.subr.mxu0 0.0
    %5809 = vmatpush1.msra.mxu0 0.0
    %5810 = vmatprep.subr.mxu0 0.0
    %5811 = vmatpush1.msra.mxu0 0.0
    %5812 = vmatprep.subr.mxu0 0.0
    %5813 = vmatpush1.msra.mxu0 0.0
    %5814 = vmatprep.subr.mxu0 0.0
    %5815 = vmatpush1.msra.mxu0 0.0
    %5816 = vmatprep.subr.mxu0 0.0
    %5817 = vmatpush1.msra.mxu0 0.0
    %5818 = vmatprep.subr.mxu0 0.0
    %5819 = vmatpush1.msra.mxu0 0.0
    %5820 = vmatprep.subr.mxu0 0.0
    %5821 = vmatpush1.msra.mxu0 0.0
    %5822 = vmatprep.subr.mxu0 0.0
    %5823 = vmatpush1.msra.mxu0 0.0
    %5824 = vmatprep.subr.mxu0 0.0
    %5825 = vmatpush1.msra.mxu0 0.0
    %5826 = vmatprep.subr.mxu0 0.0
    %5827 = vmatpush1.msra.mxu0 0.0
    %5828 = vmatprep.subr.mxu0 0.0
    %5829 = vmatpush1.msra.mxu0 0.0
    %5830 = vmatprep.subr.mxu0 0.0
    %5831 = vmatpush1.msra.mxu0 0.0
    %5832 = vmatprep.subr.mxu0 0.0
    %5833 = vmatpush1.msra.mxu0 0.0
    %5834 = vmatprep.subr.mxu0 0.0
    %5835 = vmatpush1.msra.mxu0 0.0
    %5836 = vmatprep.subr.mxu0 0.0
    %5837 = vmatpush1.msra.mxu0 0.0
    %5838 = vmatprep.subr.mxu0 0.0
    %5839 = vmatpush1.msra.mxu0 0.0
    %5840 = vmatprep.subr.mxu0 0.0
    %5841 = vmatpush1.msra.mxu0 0.0
    %5842 = vmatprep.mubr.f32.mxu0 0.0
    %5843 = vmatmul.mubr.f32.gmra.mrb[0].mxu0 %v5776
    %v5844 = vpop.f32.mrb[0].mxu0
    %v5845 = vadd.f32 0.0, %v5844
    %v5846 = vpop.f32.mrb[0].mxu0
    %v5847 = vadd.f32 0.0, %v5846
    %5848 = vdwg.mxu0
    %v5851 = vcombine.low %v5845, %v5847
    %v5853 = vunpack.c.l.s4 1966171168
    %v5854 = vunpack.c.0.s8 %v5853
    %v5855 = vlaneseq
    %v5856 = vshrl.u32 %v5855, 7
    %v5857 = vsub.s32 %v5854, %v5856
    %v5858 = vrot.slane %v5851, %v5857
    %v5860 = vunpack.c.l.s4 1966171168
    %v5861 = vunpack.c.0.s8 %v5860
    %v5862 = vlaneseq
    %v5863 = vshrl.u32 %v5862, 7
    %v5864 = vsub.s32 %v5861, %v5863
    %v5865 = vrot.slane %v5858, %v5864
    %v5867 = vadd.f32 %v5774, %v5865
    %v5869 = vlaneseq
    %v5870 = vshrl.u32 %v5869, 7
    %v5871 = vsub.s32 0, %v5870
    %v5872 = vrot.slane %v5867, %v5871
    %v5873 = vlaneseq
    %v5874 = vshrl.u32 %v5873, 7
    %v5875 = vsub.s32 1, %v5874
    %v5876 = vrot.slane %v5867, %v5875
    %v5878 = vsel %vm3069, %v5876, 0
    %5880 = vmatprep.subr.mxu0 0.0
    %5881 = vmatpush1.msra.mxu0 %v331
    %5882 = vmatprep.subr.mxu0 0.0
    %5883 = vmatpush1.msra.mxu0 %v332
    %5884 = vmatprep.subr.mxu0 0.0
    %5885 = vmatpush1.msra.mxu0 %v333
    %5886 = vmatprep.subr.mxu0 0.0
    %5887 = vmatpush1.msra.mxu0 %v334
    %5888 = vmatprep.subr.mxu0 0.0
    %5889 = vmatpush1.msra.mxu0 %v335
    %5890 = vmatprep.subr.mxu0 0.0
    %5891 = vmatpush1.msra.mxu0 %v336
    %5892 = vmatprep.subr.mxu0 0.0
    %5893 = vmatpush1.msra.mxu0 %v337
    %5894 = vmatprep.subr.mxu0 0.0
    %5895 = vmatpush1.msra.mxu0 %v338
    %5896 = vmatprep.subr.mxu0 0.0
    %5897 = vmatpush1.msra.mxu0 %v339
    %5898 = vmatprep.subr.mxu0 0.0
    %5899 = vmatpush1.msra.mxu0 %v340
    %5900 = vmatprep.subr.mxu0 0.0
    %5901 = vmatpush1.msra.mxu0 %v341
    %5902 = vmatprep.subr.mxu0 0.0
    %5903 = vmatpush1.msra.mxu0 %v342
    %5904 = vmatprep.subr.mxu0 0.0
    %5905 = vmatpush1.msra.mxu0 %v343
    %5906 = vmatprep.subr.mxu0 0.0
    %5907 = vmatpush1.msra.mxu0 %v344
    %5908 = vmatprep.subr.mxu0 0.0
    %5909 = vmatpush1.msra.mxu0 %v345
    %5910 = vmatprep.subr.mxu0 0.0
    %5911 = vmatpush1.msra.mxu0 %v346
    %5912 = vmatprep.subr.mxu0 0.0
    %5913 = vmatpush1.msra.mxu0 %v347
    %5914 = vmatprep.subr.mxu0 0.0
    %5915 = vmatpush1.msra.mxu0 %v348
    %5916 = vmatprep.subr.mxu0 0.0
    %5917 = vmatpush1.msra.mxu0 %v349
    %5918 = vmatprep.subr.mxu0 0.0
    %5919 = vmatpush1.msra.mxu0 %v350
    %5920 = vmatprep.subr.mxu0 0.0
    %5921 = vmatpush1.msra.mxu0 0.0
    %5922 = vmatprep.subr.mxu0 0.0
    %5923 = vmatpush1.msra.mxu0 0.0
    %5924 = vmatprep.subr.mxu0 0.0
    %5925 = vmatpush1.msra.mxu0 0.0
    %5926 = vmatprep.subr.mxu0 0.0
    %5927 = vmatpush1.msra.mxu0 0.0
    %5928 = vmatprep.subr.mxu0 0.0
    %5929 = vmatpush1.msra.mxu0 0.0
    %5930 = vmatprep.subr.mxu0 0.0
    %5931 = vmatpush1.msra.mxu0 0.0
    %5932 = vmatprep.subr.mxu0 0.0
    %5933 = vmatpush1.msra.mxu0 0.0
    %5934 = vmatprep.subr.mxu0 0.0
    %5935 = vmatpush1.msra.mxu0 0.0
    %5936 = vmatprep.subr.mxu0 0.0
    %5937 = vmatpush1.msra.mxu0 0.0
    %5938 = vmatprep.subr.mxu0 0.0
    %5939 = vmatpush1.msra.mxu0 0.0
    %5940 = vmatprep.subr.mxu0 0.0
    %5941 = vmatpush1.msra.mxu0 0.0
    %5942 = vmatprep.subr.mxu0 0.0
    %5943 = vmatpush1.msra.mxu0 0.0
    %5944 = vmatprep.mubr.f32.mxu0 %v5878
    %5945 = vmatmul.mubr.f32.gmra.mrb[0].mxu0 %v5872
    %v5946 = vpop.f32.mrb[0].mxu0
    %v5947 = vadd.f32 %v362, %v5946
    %v5948 = vpop.f32.mrb[0].mxu0
    %5949 = vdwg.mxu0
    %v5951 = vsel %vm2686, %v5947, 0
    %5953 = vmatprep.subr.mxu0 0.0
    %5954 = vmatpush1.msra.mxu0 %v351
    %5955 = vmatprep.subr.mxu0 0.0
    %5956 = vmatpush1.msra.mxu0 %v352
    %5957 = vmatprep.subr.mxu0 0.0
    %5958 = vmatpush1.msra.mxu0 %v353
    %5959 = vmatprep.subr.mxu0 0.0
    %5960 = vmatpush1.msra.mxu0 %v354
    %5961 = vmatprep.subr.mxu0 0.0
    %5962 = vmatpush1.msra.mxu0 %v355
    %5963 = vmatprep.subr.mxu0 0.0
    %5964 = vmatpush1.msra.mxu0 %v356
    %5965 = vmatprep.subr.mxu0 0.0
    %5966 = vmatpush1.msra.mxu0 %v357
    %5967 = vmatprep.subr.mxu0 0.0
    %5968 = vmatpush1.msra.mxu0 %v358
    %5969 = vmatprep.subr.mxu0 0.0
    %5970 = vmatpush1.msra.mxu0 %v359
    %5971 = vmatprep.subr.mxu0 0.0
    %5972 = vmatpush1.msra.mxu0 %v360
    %5973 = vmatprep.subr.mxu0 0.0
    %5974 = vmatpush1.msra.mxu0 0.0
    %5975 = vmatprep.subr.mxu0 0.0
    %5976 = vmatpush1.msra.mxu0 0.0
    %5977 = vmatprep.subr.mxu0 0.0
    %5978 = vmatpush1.msra.mxu0 0.0
    %5979 = vmatprep.subr.mxu0 0.0
    %5980 = vmatpush1.msra.mxu0 0.0
    %5981 = vmatprep.subr.mxu0 0.0
    %5982 = vmatpush1.msra.mxu0 0.0
    %5983 = vmatprep.subr.mxu0 0.0
    %5984 = vmatpush1.msra.mxu0 0.0
    %5985 = vmatprep.subr.mxu0 0.0
    %5986 = vmatpush1.msra.mxu0 0.0
    %5987 = vmatprep.subr.mxu0 0.0
    %5988 = vmatpush1.msra.mxu0 0.0
    %5989 = vmatprep.subr.mxu0 0.0
    %5990 = vmatpush1.msra.mxu0 0.0
    %5991 = vmatprep.subr.mxu0 0.0
    %5992 = vmatpush1.msra.mxu0 0.0
    %5993 = vmatprep.subr.mxu0 0.0
    %5994 = vmatpush1.msra.mxu0 0.0
    %5995 = vmatprep.subr.mxu0 0.0
    %5996 = vmatpush1.msra.mxu0 0.0
    %5997 = vmatprep.subr.mxu0 0.0
    %5998 = vmatpush1.msra.mxu0 0.0
    %5999 = vmatprep.subr.mxu0 0.0
    %6000 = vmatpush1.msra.mxu0 0.0
    %6001 = vmatprep.subr.mxu0 0.0
    %6002 = vmatpush1.msra.mxu0 0.0
    %6003 = vmatprep.subr.mxu0 0.0
    %6004 = vmatpush1.msra.mxu0 0.0
    %6005 = vmatprep.subr.mxu0 0.0
    %6006 = vmatpush1.msra.mxu0 0.0
    %6007 = vmatprep.subr.mxu0 0.0
    %6008 = vmatpush1.msra.mxu0 0.0
    %6009 = vmatprep.subr.mxu0 0.0
    %6010 = vmatpush1.msra.mxu0 0.0
    %6011 = vmatprep.subr.mxu0 0.0
    %6012 = vmatpush1.msra.mxu0 0.0
    %6013 = vmatprep.subr.mxu0 0.0
    %6014 = vmatpush1.msra.mxu0 0.0
    %6015 = vmatprep.subr.mxu0 0.0
    %6016 = vmatpush1.msra.mxu0 0.0
    %6017 = vmatprep.mubr.f32.mxu0 0.0
    %6018 = vmatmul.mubr.f32.gmra.mrb[0].mxu0 %v5951
    %v6019 = vpop.f32.mrb[0].mxu0
    %v6020 = vadd.f32 %v363, %v6019
    %v6021 = vpop.f32.mrb[0].mxu0
    %6022 = vdwg.mxu0
    %s6023 = scalar_lea.vmem [#allocation2], 1
    %6024 = vst.msk [vmem:[%s6023] sm:$0x1] %vm3215, %v6020
    // Predicated region
    $region58: #{tpu_custom_call.1} parent=1 // pred_check
      _
    $region59: #{tpu_custom_call.1} parent=1 // pred_check_branch
      %6026 = sbr.rel (0) target = $region61
    $region60: #{tpu_custom_call.1} parent=1 // pred_region
      %s6028 = ssub.s32 32, 32
      %6029 = vsyncadd [#allocation3], %s6028
      %s6030 = sshll.u32 [#allocation2], 4
      %s6031 = int_to_ptr.vmem [resolvable:$true] %s6030
      %6036 = dma.vmem_to_hbm [thread:$0]  %s6031, 32, %s14, [#allocation3], 16, 16, 1
    $region61: #{tpu_custom_call.1} parent=1 // pred_fallthru
      _
    // Predicated region
    $region62: #{tpu_custom_call.1} parent=1 // pred_check
      _
    $region63: #{tpu_custom_call.1} parent=1 // pred_check_branch
      %6038 = sbr.rel (0) target = $region65
    $region64: #{tpu_custom_call.1} parent=1 // pred_region
      %6039 = dma.done [#allocation3], 32
    $region65: #{tpu_custom_call.1} parent=1 // pred_fallthru
      _
    %6040 = vsyncpa [#allocation3], 1

</llo_original>
